<compile_context>
chip_gen: v5e
topology: v5e:2x2
jax: 0.10.0
libtpu: 0.0.40
codegen_flags: <defaults>
</compile_context>

<pallas_src>
import functools
import math

import jax
import jax.numpy as jnp
import numpy as np
from jax.experimental import pallas as pl
from jax.experimental.pallas import tpu as pltpu

# ---------------------------------------------------------------------------
# Geometry implied by the PyTorch module (Linear(32*22*22) => 28x28x1 input).
# ---------------------------------------------------------------------------
H_IN = W_IN = 28
STRIDE = W_IN                              # row stride of the flattened layout
C1, C2, C3 = 8, 16, 32
H_OUT = W_OUT = 22                         # after three 3x3 valid convs
SHRINK = 2 * STRIDE + 2                    # 58 rows lost (total) per conv layer
ROWS_KEEP = (H_OUT - 1) * STRIDE + W_OUT   # 610 stride-28 rows kept per image
K_LIN = ROWS_KEEP * C3                     # 19520 classifier K (garbage cols zeroed)
N_PAD = 128                                # classifier N padded to a full lane tile


def _vmem_limit_bytes():
    """Scoped VMEM budget, gated on chip generation (64 MiB v7x vs 128 MiB v5e/v6e)."""
    cap = 64 * 1024 * 1024                 # conservative fallback (v7x per-core VMEM)
    try:
        cap = int(pltpu.get_tpu_info().vmem_capacity_bytes)
    except Exception:
        pass
    return min(int(0.75 * cap), 100 * 1024 * 1024)


def _conv_batch_plan(batch):
    """(images per conv grid step, padded batch).

    Keeps >= 2 grid blocks (and an even count when cheap) so both v7x
    TensorCores get work; bb capped at 4 for VMEM headroom on all generations."""
    bb = max(1, min(4, batch // 2))
    bp = -(-batch // bb) * bb
    if batch > bb and (bp // bb) % 2:
        bp = -(-batch // (2 * bb)) * (2 * bb)
    return bb, bp


def _linear_tm(bp):
    """Batch tile for the classifier: 8-sublane aligned, >= 2 blocks when possible,
    capped at 128 so (tm, 19520) bf16 x-blocks stay small even on v7x."""
    for tm in (128, 64, 32, 16, 8):
        if bp % tm == 0 and bp // tm >= 2:
            return tm
    return bp                               # tiny batch: single full-dim block


# ---------------------------------------------------------------------------
# Fused conv stack: conv+ReLU x3, one im2col matmul per layer per grid step.
# ---------------------------------------------------------------------------
def _im2col_dot_relu(a, w_ref, b_ref, m_out):
    """a: (m_in, cin) bf16 activation, flattened spatial with row stride STRIDE
    (images stacked with a constant per-image stride of 784 rows).
    Builds (m_out, 9*cin) by concatenating the 9 tap row-slices along lanes and
    does ONE MXU matmul against the tap-major (9*cin, cout) weight.
    Returns relu(. + b) cast to bf16: (m_out, cout)."""
    cols = [a[i * STRIDE + j: i * STRIDE + j + m_out, :]
            for i in range(3) for j in range(3)]
    x = jnp.concatenate(cols, axis=1)                               # (m_out, 9*cin) bf16
    y = jnp.dot(x, w_ref[...], preferred_element_type=jnp.float32)  # f32 accumulate
    y = jnp.maximum(y + b_ref[...], 0.0)                            # bias+ReLU in f32
    return y.astype(jnp.bfloat16)


def _convstack_kernel(x_ref, w1_ref, b1_ref, w2_ref, b2_ref, w3_ref, b3_ref,
                      o_ref, *, bb):
    m0 = bb * H_IN * W_IN
    a = x_ref[...]                                                  # (bb*784, 1) bf16
    a = _im2col_dot_relu(a, w1_ref, b1_ref, m0 - SHRINK)            # (., 8)
    a = _im2col_dot_relu(a, w2_ref, b2_ref, m0 - 2 * SHRINK)        # (., 16)
    a = _im2col_dot_relu(a, w3_ref, b3_ref, m0 - 3 * SHRINK)        # (., 32)
    # Per-image writeback of the 610 stride-28 rows the classifier consumes.
    for b in range(bb):                                             # static, bb <= 4
        start = b * H_IN * W_IN
        o_ref[b, :, :] = a[start:start + ROWS_KEEP, :].astype(o_ref.dtype)


def conv_stack(x_flat, kp, bb):
    """x_flat: (Bp*784, 1) bf16 -> (Bp, 610, 32) bf16 (stride-28 rows, channels in lanes)."""
    bp = x_flat.shape[0] // (H_IN * W_IN)
    grid = (bp // bb,)

    in_specs = [pl.BlockSpec((bb * H_IN * W_IN, 1), lambda g: (g, 0))]
    args = [x_flat]
    for wk, bk in (("w1", "b1"), ("w2", "b2"), ("w3", "b3")):
        w, b = kp[wk], kp[bk]
        in_specs.append(pl.BlockSpec(w.shape, lambda g: (0, 0)))   # resident weights
        in_specs.append(pl.BlockSpec(b.shape, lambda g: (0, 0)))
        args.extend([w, b])

    kernel = functools.partial(_convstack_kernel, bb=bb)
    return pl.pallas_call(
        kernel,
        out_shape=jax.ShapeDtypeStruct((bp, ROWS_KEEP, C3), jnp.bfloat16),
        grid=grid,
        in_specs=in_specs,
        out_specs=pl.BlockSpec((bb, ROWS_KEEP, C3), lambda g: (g, 0, 0)),
        compiler_params=pltpu.CompilerParams(
            dimension_semantics=("parallel",),
            vmem_limit_bytes=_vmem_limit_bytes(),
        ),
    )(*args)


# ---------------------------------------------------------------------------
# Classifier: (Bp, 19520) bf16 @ (19520, 128) bf16 resident weight, f32 accumulate.
# ---------------------------------------------------------------------------
def _linear_kernel(x_ref, w_ref, b_ref, o_ref):
    acc = jnp.dot(x_ref[...], w_ref[...], preferred_element_type=jnp.float32)
    o_ref[...] = (acc + b_ref[...]).astype(o_ref.dtype)


def linear(x, w, b, tm):
    bp, k = x.shape
    n = w.shape[1]
    return pl.pallas_call(
        _linear_kernel,
        out_shape=jax.ShapeDtypeStruct((bp, n), jnp.float32),
        grid=(bp // tm,),
        in_specs=[
            pl.BlockSpec((tm, k), lambda i: (i, 0)),
            pl.BlockSpec((k, n), lambda i: (0, 0)),   # constant map -> DMA'd once, resident
            pl.BlockSpec((1, n), lambda i: (0, 0)),
        ],
        out_specs=pl.BlockSpec((tm, n), lambda i: (i, 0)),
        compiler_params=pltpu.CompilerParams(
            dimension_semantics=("parallel",),
            vmem_limit_bytes=_vmem_limit_bytes(),
        ),
    )(x, w, b)


# ---------------------------------------------------------------------------
# Parameter prep: tap-major bf16 conv weights; classifier permuted to the kernel's
# (row=h*28+w, channel) feature order, zero-padded to N=128, cast to bf16.
# ---------------------------------------------------------------------------
def prepare_params(params, num_classes):
    kp = {}
    for wk, bk in (("w1", "b1"), ("w2", "b2"), ("w3", "b3")):
        w = params[wk]                                            # (3,3,Cin,Cout) HWIO
        kp[wk] = w.reshape(-1, w.shape[-1]).astype(jnp.bfloat16)  # (9*Cin,Cout), (i,j,c) rows
        kp[bk] = params[bk].reshape(1, -1).astype(jnp.float32)    # (1, Cout), f32 bias

    # torch flatten is (c, h, w); kernel features sit at p = (h*28 + w)*32 + c,
    # with garbage columns (w >= 22) zero-weighted.
    h = jnp.arange(H_OUT)[:, None, None]
    w_ = jnp.arange(W_OUT)[None, :, None]
    c = jnp.arange(C3)[None, None, :]
    dest = ((h * STRIDE + w_) * C3 + c).reshape(-1)
    src = (c * (H_OUT * W_OUT) + h * W_OUT + w_).reshape(-1)
    wl, bl = params["wl"], params["bl"]
    wl_full = jnp.zeros((K_LIN, N_PAD), jnp.float32).at[dest, :num_classes].set(wl[src, :])
    kp["wl"] = wl_full.astype(jnp.bfloat16)
    kp["bl"] = jnp.zeros((1, N_PAD), jnp.float32).at[0, :num_classes].set(bl)
    return kp


# ---------------------------------------------------------------------------
# Forward pass. Only free (row-major) reshapes between the two kernels.
# ---------------------------------------------------------------------------
def convnet_forward(x_nchw, kparams, num_classes):
    b = x_nchw.shape[0]
    bb, bp = _conv_batch_plan(b)
    x = x_nchw.reshape(b, H_IN * W_IN).astype(jnp.bfloat16)
    if bp != b:                                           # explicit batch pad (finite zeros)
        x = jnp.concatenate([x, jnp.zeros((bp - b, H_IN * W_IN), jnp.bfloat16)], axis=0)
    x = x.reshape(bp * H_IN * W_IN, 1)                    # stacked flattened spatial (free)
    feat = conv_stack(x, kparams, bb)                     # (bp, 610, 32) bf16
    feat = feat.reshape(bp, K_LIN)                        # row-major, free
    logits = linear(feat, kparams["wl"], kparams["bl"], _linear_tm(bp))  # (bp, 128) f32
    return logits[:b, :num_classes]


# ---------------------------------------------------------------------------
# Deterministic torch-like init (HWIO conv weights, (fan_in, classes) linear).
# ---------------------------------------------------------------------------
def init_params(key, num_classes):
    ks = jax.random.split(key, 8)

    def conv_init(kw_key, kb_key, kh, kw, cin, cout):
        bound = 1.0 / math.sqrt(cin * kh * kw)
        w = jax.random.uniform(kw_key, (kh, kw, cin, cout), jnp.float32, -bound, bound)
        b = jax.random.uniform(kb_key, (cout,), jnp.float32, -bound, bound)
        return w, b

    w1, b1 = conv_init(ks[0], ks[1], 3, 3, 1, C1)
    w2, b2 = conv_init(ks[2], ks[3], 3, 3, C1, C2)
    w3, b3 = conv_init(ks[4], ks[5], 3, 3, C2, C3)
    fan_in = C3 * H_OUT * W_OUT
    bound = 1.0 / math.sqrt(fan_in)
    wl = jax.random.uniform(ks[6], (fan_in, num_classes), jnp.float32, -bound, bound)
    bl = jax.random.uniform(ks[7], (num_classes,), jnp.float32, -bound, bound)
    return dict(w1=w1, b1=b1, w2=w2, b2=b2, w3=w3, b3=b3, wl=wl, bl=bl)


# ---------------------------------------------------------------------------
# Pure-JAX f32 reference (torch semantics) for the correctness check.
# ---------------------------------------------------------------------------
def reference_forward(x_nchw, params):
    x = jnp.transpose(x_nchw, (0, 2, 3, 1))
    for wi, bi in (("w1", "b1"), ("w2", "b2"), ("w3", "b3")):
        x = jax.lax.conv_general_dilated(
            x, params[wi], (1, 1), "VALID",
            dimension_numbers=("NHWC", "HWIO", "NHWC"))
        x = jax.nn.relu(x + params[bi][None, None, None, :])
    x = jnp.transpose(x, (0, 3, 1, 2)).reshape(x.shape[0], -1)   # torch Flatten (C,H,W)
    return x @ params["wl"] + params["bl"][None, :]


if __name__ == "__main__":
    num_classes = 10   # stand-in for len(Y_train.unique())
    key = jax.random.PRNGKey(0)
    kx, kparams_key = jax.random.split(key)

    params = init_params(kparams_key, num_classes)
    kparams = prepare_params(params, num_classes)

    x = jax.random.normal(kx, (2, 1, H_IN, W_IN), dtype=jnp.float32)

    out = jax.block_until_ready(convnet_forward(x, kparams, num_classes))
    assert out.shape == (2, num_classes)

    ref = reference_forward(x, params)
    # bf16 MXU operands with f32 accumulation -> ~1e-2 tolerance per the review.
    np.testing.assert_allclose(np.asarray(out), np.asarray(ref), rtol=1e-2, atol=1e-2)

    print("KERNEL_OK")
</pallas_src>

<mosaic_0001>
module attributes {stable_mosaic.version = 11 : i64} {
  func.func @_convstack_kernel(%arg0: i32, %arg1: memref<784x1xbf16, #tpu.memory_space<vmem>>, %arg2: memref<9x8xbf16, #tpu.memory_space<vmem>>, %arg3: memref<1x8xf32, #tpu.memory_space<vmem>>, %arg4: memref<72x16xbf16, #tpu.memory_space<vmem>>, %arg5: memref<1x16xf32, #tpu.memory_space<vmem>>, %arg6: memref<144x32xbf16, #tpu.memory_space<vmem>>, %arg7: memref<1x32xf32, #tpu.memory_space<vmem>>, %arg8: memref<1x610x32xbf16, #tpu.memory_space<vmem>>) attributes {dimension_semantics = [#tpu.dimension_semantics<parallel>], iteration_bounds = array<i64: 2>, scalar_prefetch = 0 : i64, scratch_operands = 0 : i64, tpu.core_type = #tpu.core_type<tc>, window_params = [{transform_indices = @transform_0, window_bounds = array<i64: 784, 1>}, {pipeline_mode = #tpu.pipeline_mode<synchronous>, transform_indices = @transform_1, window_bounds = array<i64: 9, 8>}, {pipeline_mode = #tpu.pipeline_mode<synchronous>, transform_indices = @transform_2, window_bounds = array<i64: 1, 8>}, {pipeline_mode = #tpu.pipeline_mode<synchronous>, transform_indices = @transform_3, window_bounds = array<i64: 72, 16>}, {pipeline_mode = #tpu.pipeline_mode<synchronous>, transform_indices = @transform_4, window_bounds = array<i64: 1, 16>}, {pipeline_mode = #tpu.pipeline_mode<synchronous>, transform_indices = @transform_5, window_bounds = array<i64: 144, 32>}, {pipeline_mode = #tpu.pipeline_mode<synchronous>, transform_indices = @transform_6, window_bounds = array<i64: 1, 32>}, {transform_indices = @transform_7, window_bounds = array<i64: 1, 610, 32>}]} {
    %c0 = arith.constant 0 : index
    %c0_0 = arith.constant 0 : index
    %0 = vector.load %arg1[%c0, %c0_0] : memref<784x1xbf16, #tpu.memory_space<vmem>>, vector<784x1xbf16>
    %1 = vector.extract_strided_slice %0 {offsets = [0, 0], sizes = [726, 1], strides = [1, 1]} : vector<784x1xbf16> to vector<726x1xbf16>
    %2 = vector.extract_strided_slice %0 {offsets = [1, 0], sizes = [726, 1], strides = [1, 1]} : vector<784x1xbf16> to vector<726x1xbf16>
    %3 = vector.extract_strided_slice %0 {offsets = [2, 0], sizes = [726, 1], strides = [1, 1]} : vector<784x1xbf16> to vector<726x1xbf16>
    %4 = vector.extract_strided_slice %0 {offsets = [28, 0], sizes = [726, 1], strides = [1, 1]} : vector<784x1xbf16> to vector<726x1xbf16>
    %5 = vector.extract_strided_slice %0 {offsets = [29, 0], sizes = [726, 1], strides = [1, 1]} : vector<784x1xbf16> to vector<726x1xbf16>
    %6 = vector.extract_strided_slice %0 {offsets = [30, 0], sizes = [726, 1], strides = [1, 1]} : vector<784x1xbf16> to vector<726x1xbf16>
    %7 = vector.extract_strided_slice %0 {offsets = [56, 0], sizes = [726, 1], strides = [1, 1]} : vector<784x1xbf16> to vector<726x1xbf16>
    %8 = vector.extract_strided_slice %0 {offsets = [57, 0], sizes = [726, 1], strides = [1, 1]} : vector<784x1xbf16> to vector<726x1xbf16>
    %9 = vector.extract_strided_slice %0 {offsets = [58, 0], sizes = [726, 1], strides = [1, 1]} : vector<784x1xbf16> to vector<726x1xbf16>
    %10 = tpu.concatenate %1, %2, %3, %4, %5, %6, %7, %8, %9 in 1 : vector<726x1xbf16>, vector<726x1xbf16>, vector<726x1xbf16>, vector<726x1xbf16>, vector<726x1xbf16>, vector<726x1xbf16>, vector<726x1xbf16>, vector<726x1xbf16>, vector<726x1xbf16> -> vector<726x9xbf16>
    %c0_1 = arith.constant 0 : index
    %c0_2 = arith.constant 0 : index
    %11 = vector.load %arg2[%c0_1, %c0_2] : memref<9x8xbf16, #tpu.memory_space<vmem>>, vector<9x8xbf16>
    %cst = arith.constant dense<0.000000e+00> : vector<726x8xf32>
    %12 = tpu.matmul %10, %11, %cst {dimension_numbers = #tpu.dot_dimension_numbers<[1], [0], [0], [1], [0, 0, 1, 1], [], []>} : vector<726x9xbf16>, vector<9x8xbf16>, vector<726x8xf32> -> vector<726x8xf32>
    %c0_3 = arith.constant 0 : index
    %c0_4 = arith.constant 0 : index
    %13 = vector.load %arg3[%c0_3, %c0_4] : memref<1x8xf32, #tpu.memory_space<vmem>>, vector<1x8xf32>
    %14 = vector.broadcast %13 : vector<1x8xf32> to vector<726x8xf32>
    %15 = arith.addf %12, %14 : vector<726x8xf32>
    %cst_5 = arith.constant 0.000000e+00 : f32
    %16 = vector.broadcast %cst_5 : f32 to vector<726x8xf32>
    %17 = arith.maximumf %15, %16 : vector<726x8xf32>
    %18 = arith.truncf %17 : vector<726x8xf32> to vector<726x8xbf16>
    %19 = vector.extract_strided_slice %18 {offsets = [0, 0], sizes = [668, 8], strides = [1, 1]} : vector<726x8xbf16> to vector<668x8xbf16>
    %20 = vector.extract_strided_slice %18 {offsets = [1, 0], sizes = [668, 8], strides = [1, 1]} : vector<726x8xbf16> to vector<668x8xbf16>
    %21 = vector.extract_strided_slice %18 {offsets = [2, 0], sizes = [668, 8], strides = [1, 1]} : vector<726x8xbf16> to vector<668x8xbf16>
    %22 = vector.extract_strided_slice %18 {offsets = [28, 0], sizes = [668, 8], strides = [1, 1]} : vector<726x8xbf16> to vector<668x8xbf16>
    %23 = vector.extract_strided_slice %18 {offsets = [29, 0], sizes = [668, 8], strides = [1, 1]} : vector<726x8xbf16> to vector<668x8xbf16>
    %24 = vector.extract_strided_slice %18 {offsets = [30, 0], sizes = [668, 8], strides = [1, 1]} : vector<726x8xbf16> to vector<668x8xbf16>
    %25 = vector.extract_strided_slice %18 {offsets = [56, 0], sizes = [668, 8], strides = [1, 1]} : vector<726x8xbf16> to vector<668x8xbf16>
    %26 = vector.extract_strided_slice %18 {offsets = [57, 0], sizes = [668, 8], strides = [1, 1]} : vector<726x8xbf16> to vector<668x8xbf16>
    %27 = vector.extract_strided_slice %18 {offsets = [58, 0], sizes = [668, 8], strides = [1, 1]} : vector<726x8xbf16> to vector<668x8xbf16>
    %28 = tpu.concatenate %19, %20, %21, %22, %23, %24, %25, %26, %27 in 1 : vector<668x8xbf16>, vector<668x8xbf16>, vector<668x8xbf16>, vector<668x8xbf16>, vector<668x8xbf16>, vector<668x8xbf16>, vector<668x8xbf16>, vector<668x8xbf16>, vector<668x8xbf16> -> vector<668x72xbf16>
    %c0_6 = arith.constant 0 : index
    %c0_7 = arith.constant 0 : index
    %29 = vector.load %arg4[%c0_6, %c0_7] : memref<72x16xbf16, #tpu.memory_space<vmem>>, vector<72x16xbf16>
    %cst_8 = arith.constant dense<0.000000e+00> : vector<668x16xf32>
    %30 = tpu.matmul %28, %29, %cst_8 {dimension_numbers = #tpu.dot_dimension_numbers<[1], [0], [0], [1], [0, 0, 1, 1], [], []>} : vector<668x72xbf16>, vector<72x16xbf16>, vector<668x16xf32> -> vector<668x16xf32>
    %c0_9 = arith.constant 0 : index
    %c0_10 = arith.constant 0 : index
    %31 = vector.load %arg5[%c0_9, %c0_10] : memref<1x16xf32, #tpu.memory_space<vmem>>, vector<1x16xf32>
    %32 = vector.broadcast %31 : vector<1x16xf32> to vector<668x16xf32>
    %33 = arith.addf %30, %32 : vector<668x16xf32>
    %cst_11 = arith.constant 0.000000e+00 : f32
    %34 = vector.broadcast %cst_11 : f32 to vector<668x16xf32>
    %35 = arith.maximumf %33, %34 : vector<668x16xf32>
    %36 = arith.truncf %35 : vector<668x16xf32> to vector<668x16xbf16>
    %37 = vector.extract_strided_slice %36 {offsets = [0, 0], sizes = [610, 16], strides = [1, 1]} : vector<668x16xbf16> to vector<610x16xbf16>
    %38 = vector.extract_strided_slice %36 {offsets = [1, 0], sizes = [610, 16], strides = [1, 1]} : vector<668x16xbf16> to vector<610x16xbf16>
    %39 = vector.extract_strided_slice %36 {offsets = [2, 0], sizes = [610, 16], strides = [1, 1]} : vector<668x16xbf16> to vector<610x16xbf16>
    %40 = vector.extract_strided_slice %36 {offsets = [28, 0], sizes = [610, 16], strides = [1, 1]} : vector<668x16xbf16> to vector<610x16xbf16>
    %41 = vector.extract_strided_slice %36 {offsets = [29, 0], sizes = [610, 16], strides = [1, 1]} : vector<668x16xbf16> to vector<610x16xbf16>
    %42 = vector.extract_strided_slice %36 {offsets = [30, 0], sizes = [610, 16], strides = [1, 1]} : vector<668x16xbf16> to vector<610x16xbf16>
    %43 = vector.extract_strided_slice %36 {offsets = [56, 0], sizes = [610, 16], strides = [1, 1]} : vector<668x16xbf16> to vector<610x16xbf16>
    %44 = vector.extract_strided_slice %36 {offsets = [57, 0], sizes = [610, 16], strides = [1, 1]} : vector<668x16xbf16> to vector<610x16xbf16>
    %45 = vector.extract_strided_slice %36 {offsets = [58, 0], sizes = [610, 16], strides = [1, 1]} : vector<668x16xbf16> to vector<610x16xbf16>
    %46 = tpu.concatenate %37, %38, %39, %40, %41, %42, %43, %44, %45 in 1 : vector<610x16xbf16>, vector<610x16xbf16>, vector<610x16xbf16>, vector<610x16xbf16>, vector<610x16xbf16>, vector<610x16xbf16>, vector<610x16xbf16>, vector<610x16xbf16>, vector<610x16xbf16> -> vector<610x144xbf16>
    %c0_12 = arith.constant 0 : index
    %c0_13 = arith.constant 0 : index
    %47 = vector.load %arg6[%c0_12, %c0_13] : memref<144x32xbf16, #tpu.memory_space<vmem>>, vector<144x32xbf16>
    %cst_14 = arith.constant dense<0.000000e+00> : vector<610x32xf32>
    %48 = tpu.matmul %46, %47, %cst_14 {dimension_numbers = #tpu.dot_dimension_numbers<[1], [0], [0], [1], [0, 0, 1, 1], [], []>} : vector<610x144xbf16>, vector<144x32xbf16>, vector<610x32xf32> -> vector<610x32xf32>
    %c0_15 = arith.constant 0 : index
    %c0_16 = arith.constant 0 : index
    %49 = vector.load %arg7[%c0_15, %c0_16] : memref<1x32xf32, #tpu.memory_space<vmem>>, vector<1x32xf32>
    %50 = vector.broadcast %49 : vector<1x32xf32> to vector<610x32xf32>
    %51 = arith.addf %48, %50 : vector<610x32xf32>
    %cst_17 = arith.constant 0.000000e+00 : f32
    %52 = vector.broadcast %cst_17 : f32 to vector<610x32xf32>
    %53 = arith.maximumf %51, %52 : vector<610x32xf32>
    %54 = arith.truncf %53 : vector<610x32xf32> to vector<610x32xbf16>
    %c0_18 = arith.constant 0 : index
    %c0_19 = arith.constant 0 : index
    %c0_20 = arith.constant 0 : index
    %55 = vector.load %arg8[%c0_18, %c0_19, %c0_20] : memref<1x610x32xbf16, #tpu.memory_space<vmem>>, vector<1x610x32xbf16>
    %56 = vector.shape_cast %55 : vector<1x610x32xbf16> to vector<610x32xbf16>
    %57 = vector.shape_cast %54 : vector<610x32xbf16> to vector<1x610x32xbf16>
    tpu.vector_store %arg8[%c0_18, %c0_19, %c0_20], %57 {strides = array<i32>} : memref<1x610x32xbf16, #tpu.memory_space<vmem>>, vector<1x610x32xbf16>,
    return
  }
  func.func @transform_0(%arg0: i32) -> (i32, i32) {
    %c0_i32 = arith.constant 0 : i32
    %c0_i32_0 = arith.constant 0 : i32
    return %arg0, %c0_i32 : i32, i32
  }
  func.func @transform_1(%arg0: i32) -> (i32, i32) {
    %c0_i32 = arith.constant 0 : i32
    %c0_i32_0 = arith.constant 0 : i32
    %c0_i32_1 = arith.constant 0 : i32
    return %c0_i32, %c0_i32_0 : i32, i32
  }
  func.func @transform_2(%arg0: i32) -> (i32, i32) {
    %c0_i32 = arith.constant 0 : i32
    %c0_i32_0 = arith.constant 0 : i32
    %c0_i32_1 = arith.constant 0 : i32
    return %c0_i32, %c0_i32_0 : i32, i32
  }
  func.func @transform_3(%arg0: i32) -> (i32, i32) {
    %c0_i32 = arith.constant 0 : i32
    %c0_i32_0 = arith.constant 0 : i32
    %c0_i32_1 = arith.constant 0 : i32
    return %c0_i32, %c0_i32_0 : i32, i32
  }
  func.func @transform_4(%arg0: i32) -> (i32, i32) {
    %c0_i32 = arith.constant 0 : i32
    %c0_i32_0 = arith.constant 0 : i32
    %c0_i32_1 = arith.constant 0 : i32
    return %c0_i32, %c0_i32_0 : i32, i32
  }
  func.func @transform_5(%arg0: i32) -> (i32, i32) {
    %c0_i32 = arith.constant 0 : i32
    %c0_i32_0 = arith.constant 0 : i32
    %c0_i32_1 = arith.constant 0 : i32
    return %c0_i32, %c0_i32_0 : i32, i32
  }
  func.func @transform_6(%arg0: i32) -> (i32, i32) {
    %c0_i32 = arith.constant 0 : i32
    %c0_i32_0 = arith.constant 0 : i32
    %c0_i32_1 = arith.constant 0 : i32
    return %c0_i32, %c0_i32_0 : i32, i32
  }
  func.func @transform_7(%arg0: i32) -> (i32, i32, i32) {
    %c0_i32 = arith.constant 0 : i32
    %c0_i32_0 = arith.constant 0 : i32
    %c0_i32_1 = arith.constant 0 : i32
    return %arg0, %c0_i32, %c0_i32_0 : i32, i32, i32
  }
}

</mosaic_0001>

<llo_original>
// kernel: tpu_custom_call.1
$region0: #{tpu_custom_call.1}
  #allocation0 [shape = 'u32[]', space=smem, size = 0x4, offset = 0x4, fixed_abs, tag = 'smem constant byte address 0x4 - core index']
  #allocation1 [shape = 'u32[72,128]{1,0:T(1,128)}', space=vmem, size = 0x9000, scoped, tag = 'internal scratch']
  %s0 = inlined_call_operand.vmem [shape: bf16[1568,1], index: 0, kind: input, shape index: {}]
  %s1 = inlined_call_operand.vmem [shape: bf16[9,8], index: 1, kind: input, shape index: {}]
  %s2 = inlined_call_operand.vmem [shape: f32[1,8], index: 2, kind: input, shape index: {}]
  %s3 = inlined_call_operand.vmem [shape: bf16[72,16], index: 3, kind: input, shape index: {}]
  %s4 = inlined_call_operand.vmem [shape: f32[1,16], index: 4, kind: input, shape index: {}]
  %s5 = inlined_call_operand.vmem [shape: bf16[144,32], index: 5, kind: input, shape index: {}]
  %s6 = inlined_call_operand.vmem [shape: f32[1,32], index: 6, kind: input, shape index: {}]
  %s7 = inlined_call_operand.vmem [shape: bf16[2,610,32], index: 7, kind: output, shape index: {}]
  %s8 = sld [smem:[#allocation0]]
  $region61: #{tpu_custom_call.1} parent=0
    _
  %s10 = ssub.s32 1, %s8
  %s11 = scalar_select 0, %s10, %s8
  loop: start=0, step=1, limit=4
  $region2: #{tpu_custom_call.1} parent=0 // loop_pre_header
    _
  $region3: #{tpu_custom_call.1} parent=0 // loop_header
    %s13 = sphi 0, %s17
    %p14 = scmp.ge.s32.totalorder %s13, 4
    %s23 = sphi 0, %s25
    %s26 = sphi 0, %s23
    %s27 = sphi 0, %s26
    %s43 = sphi 0, %s27
    %s47 = sphi 0, %s47
    %s49 = sphi 0, %s47
    %s50 = sphi 0, %s49
    %s64 = sphi 0, %s50
    %s68 = sphi 0, %s68
    %s70 = sphi 0, %s68
    %s71 = sphi 0, %s70
    %s85 = sphi 0, %s71
    %s89 = sphi 0, %s89
    %s91 = sphi 0, %s89
    %s92 = sphi 0, %s91
    %s106 = sphi 0, %s92
    %s110 = sphi 0, %s110
    %s112 = sphi 0, %s110
    %s113 = sphi 0, %s112
    %s127 = sphi 0, %s113
    %s131 = sphi 0, %s131
    %s133 = sphi 0, %s131
    %s134 = sphi 0, %s133
    %s148 = sphi 0, %s134
    %s152 = sphi 0, %s152
    %s154 = sphi 0, %s152
    %s155 = sphi 0, %s154
    %s169 = sphi 0, %s155
    %s175 = sphi 0, %s177
    %s178 = sphi 0, %s175
    %s179 = sphi 0, %s178
    %s195 = sphi 0, %s179
  $region4: #{tpu_custom_call.1} parent=0 // loop_header_branch
    %16 = sbr.rel (%p14) target = $region8
  $region5: #{tpu_custom_call.1} parent=0 // loop_body
    %s18 = ssub.s32 %s13, 1
    %s19 = ssub.s32 %s13, 2
    %s20 = sadd.s32 %s13, 1
    %s21 = ssub.s32 %s13, %s20
    %p22 = scmp.eq.s32.totalorder %s21, 0
    %s24 = sadd.s32 %s23, 1
    %s25 = scalar_select %p22, %s23, %s24
    %p28 = pneg %p22
    %p29 = scmp.eq.s32.totalorder %s13, 1
    %p30 = por %p28, %p29
    %p31 = scmp.ne.s32.totalorder %s23, %s26
    %p32 = scmp.eq.s32.totalorder %s13, 0
    %p33 = por %p31, %p32
    %p34 = scmp.ne.s32.totalorder %s23, %s26
    %p35 = scmp.eq.s32.totalorder %s18, 1
    %p36 = por %p34, %p35
    %p37 = scmp.ne.s32.totalorder %s26, %s27
    %p38 = scmp.eq.s32.totalorder %s18, 0
    %p39 = por %p37, %p38
    %p40 = scmp.ne.s32.totalorder %s26, %s27
    %p41 = scmp.eq.s32.totalorder %s19, 1
    %p42 = por %p40, %p41
    %p44 = scmp.ne.s32.totalorder %s27, %s43
    %p45 = scmp.eq.s32.totalorder %s19, 0
    %p46 = por %p44, %p45
    %s48 = sadd.s32 %s47, 1
    %p51 = scmp.eq.s32.totalorder %s13, 1
    %p52 = scmp.ne.s32.totalorder %s47, %s49
    %p53 = scmp.eq.s32.totalorder %s13, 0
    %p54 = por %p52, %p53
    %p55 = scmp.ne.s32.totalorder %s47, %s49
    %p56 = scmp.eq.s32.totalorder %s18, 1
    %p57 = por %p55, %p56
    %p58 = scmp.ne.s32.totalorder %s49, %s50
    %p59 = scmp.eq.s32.totalorder %s18, 0
    %p60 = por %p58, %p59
    %p61 = scmp.ne.s32.totalorder %s49, %s50
    %p62 = scmp.eq.s32.totalorder %s19, 1
    %p63 = por %p61, %p62
    %p65 = scmp.ne.s32.totalorder %s50, %s64
    %p66 = scmp.eq.s32.totalorder %s19, 0
    %p67 = por %p65, %p66
    %s69 = sadd.s32 %s68, 1
    %p72 = scmp.eq.s32.totalorder %s13, 1
    %p73 = scmp.ne.s32.totalorder %s68, %s70
    %p74 = scmp.eq.s32.totalorder %s13, 0
    %p75 = por %p73, %p74
    %p76 = scmp.ne.s32.totalorder %s68, %s70
    %p77 = scmp.eq.s32.totalorder %s18, 1
    %p78 = por %p76, %p77
    %p79 = scmp.ne.s32.totalorder %s70, %s71
    %p80 = scmp.eq.s32.totalorder %s18, 0
    %p81 = por %p79, %p80
    %p82 = scmp.ne.s32.totalorder %s70, %s71
    %p83 = scmp.eq.s32.totalorder %s19, 1
    %p84 = por %p82, %p83
    %p86 = scmp.ne.s32.totalorder %s71, %s85
    %p87 = scmp.eq.s32.totalorder %s19, 0
    %p88 = por %p86, %p87
    %s90 = sadd.s32 %s89, 1
    %p93 = scmp.eq.s32.totalorder %s13, 1
    %p94 = scmp.ne.s32.totalorder %s89, %s91
    %p95 = scmp.eq.s32.totalorder %s13, 0
    %p96 = por %p94, %p95
    %p97 = scmp.ne.s32.totalorder %s89, %s91
    %p98 = scmp.eq.s32.totalorder %s18, 1
    %p99 = por %p97, %p98
    %p100 = scmp.ne.s32.totalorder %s91, %s92
    %p101 = scmp.eq.s32.totalorder %s18, 0
    %p102 = por %p100, %p101
    %p103 = scmp.ne.s32.totalorder %s91, %s92
    %p104 = scmp.eq.s32.totalorder %s19, 1
    %p105 = por %p103, %p104
    %p107 = scmp.ne.s32.totalorder %s92, %s106
    %p108 = scmp.eq.s32.totalorder %s19, 0
    %p109 = por %p107, %p108
    %s111 = sadd.s32 %s110, 1
    %p114 = scmp.eq.s32.totalorder %s13, 1
    %p115 = scmp.ne.s32.totalorder %s110, %s112
    %p116 = scmp.eq.s32.totalorder %s13, 0
    %p117 = por %p115, %p116
    %p118 = scmp.ne.s32.totalorder %s110, %s112
    %p119 = scmp.eq.s32.totalorder %s18, 1
    %p120 = por %p118, %p119
    %p121 = scmp.ne.s32.totalorder %s112, %s113
    %p122 = scmp.eq.s32.totalorder %s18, 0
    %p123 = por %p121, %p122
    %p124 = scmp.ne.s32.totalorder %s112, %s113
    %p125 = scmp.eq.s32.totalorder %s19, 1
    %p126 = por %p124, %p125
    %p128 = scmp.ne.s32.totalorder %s113, %s127
    %p129 = scmp.eq.s32.totalorder %s19, 0
    %p130 = por %p128, %p129
    %s132 = sadd.s32 %s131, 1
    %p135 = scmp.eq.s32.totalorder %s13, 1
    %p136 = scmp.ne.s32.totalorder %s131, %s133
    %p137 = scmp.eq.s32.totalorder %s13, 0
    %p138 = por %p136, %p137
    %p139 = scmp.ne.s32.totalorder %s131, %s133
    %p140 = scmp.eq.s32.totalorder %s18, 1
    %p141 = por %p139, %p140
    %p142 = scmp.ne.s32.totalorder %s133, %s134
    %p143 = scmp.eq.s32.totalorder %s18, 0
    %p144 = por %p142, %p143
    %p145 = scmp.ne.s32.totalorder %s133, %s134
    %p146 = scmp.eq.s32.totalorder %s19, 1
    %p147 = por %p145, %p146
    %p149 = scmp.ne.s32.totalorder %s134, %s148
    %p150 = scmp.eq.s32.totalorder %s19, 0
    %p151 = por %p149, %p150
    %s153 = sadd.s32 %s152, 1
    %p156 = scmp.eq.s32.totalorder %s13, 1
    %p157 = scmp.ne.s32.totalorder %s152, %s154
    %p158 = scmp.eq.s32.totalorder %s13, 0
    %p159 = por %p157, %p158
    %p160 = scmp.ne.s32.totalorder %s152, %s154
    %p161 = scmp.eq.s32.totalorder %s18, 1
    %p162 = por %p160, %p161
    %p163 = scmp.ne.s32.totalorder %s154, %s155
    %p164 = scmp.eq.s32.totalorder %s18, 0
    %p165 = por %p163, %p164
    %p166 = scmp.ne.s32.totalorder %s154, %s155
    %p167 = scmp.eq.s32.totalorder %s19, 1
    %p168 = por %p166, %p167
    %p170 = scmp.ne.s32.totalorder %s155, %s169
    %p171 = scmp.eq.s32.totalorder %s19, 0
    %p172 = por %p170, %p171
    %s173 = ssub.s32 %s13, %s20
    %p174 = scmp.eq.s32.totalorder %s173, 0
    %s176 = sadd.s32 %s175, 1
    %s177 = scalar_select %p174, %s175, %s176
    %p180 = pneg %p174
    %p181 = scmp.eq.s32.totalorder %s13, 1
    %p182 = por %p180, %p181
    %p183 = scmp.ne.s32.totalorder %s175, %s178
    %p184 = scmp.eq.s32.totalorder %s13, 0
    %p185 = por %p183, %p184
    %p186 = scmp.ne.s32.totalorder %s175, %s178
    %p187 = scmp.eq.s32.totalorder %s18, 1
    %p188 = por %p186, %p187
    %p189 = scmp.ne.s32.totalorder %s178, %s179
    %p190 = scmp.eq.s32.totalorder %s18, 0
    %p191 = por %p189, %p190
    %p192 = scmp.ne.s32.totalorder %s178, %s179
    %p193 = scmp.eq.s32.totalorder %s19, 1
    %p194 = por %p192, %p193
    %p196 = scmp.ne.s32.totalorder %s179, %s195
    %p197 = scmp.eq.s32.totalorder %s19, 0
    %p198 = por %p196, %p197
    %p199 = scmp.le.s32.totalorder 1, %s13
    %p200 = scmp.lt.s32.totalorder %s13, 3
    %p201 = pnand %p199, %p200
    %p202 = pneg %p201
    // Predicated region
    $region9: #{tpu_custom_call.1} parent=5 // pred_check
      _
    $region10: #{tpu_custom_call.1} parent=5 // pred_check_branch
      %204 = sbr.rel (%p201) target = $region12
    $region11: #{tpu_custom_call.1} parent=5 // pred_region
      %s205 = ssub.s32 %s13, 1
      // Predicated region
      $region13: #{tpu_custom_call.1} parent=11 // pred_check
        %p206 = pneg %p60
      $region14: #{tpu_custom_call.1} parent=11 // pred_check_branch
        %208 = sbr.rel (%p206) target = $region16
      $region15: #{tpu_custom_call.1} parent=11 // pred_region
        _
      $region16: #{tpu_custom_call.1} parent=11 // pred_fallthru
        _
      // Predicated region
      $region17: #{tpu_custom_call.1} parent=11 // pred_check
        %p209 = pneg %p81
      $region18: #{tpu_custom_call.1} parent=11 // pred_check_branch
        %211 = sbr.rel (%p209) target = $region20
      $region19: #{tpu_custom_call.1} parent=11 // pred_region
        _
      $region20: #{tpu_custom_call.1} parent=11 // pred_fallthru
        _
      // Predicated region
      $region21: #{tpu_custom_call.1} parent=11 // pred_check
        %p212 = pneg %p102
      $region22: #{tpu_custom_call.1} parent=11 // pred_check_branch
        %214 = sbr.rel (%p212) target = $region24
      $region23: #{tpu_custom_call.1} parent=11 // pred_region
        _
      $region24: #{tpu_custom_call.1} parent=11 // pred_fallthru
        _
      // Predicated region
      $region25: #{tpu_custom_call.1} parent=11 // pred_check
        %p215 = pneg %p123
      $region26: #{tpu_custom_call.1} parent=11 // pred_check_branch
        %217 = sbr.rel (%p215) target = $region28
      $region27: #{tpu_custom_call.1} parent=11 // pred_region
        _
      $region28: #{tpu_custom_call.1} parent=11 // pred_fallthru
        _
      // Predicated region
      $region29: #{tpu_custom_call.1} parent=11 // pred_check
        %p218 = pneg %p144
      $region30: #{tpu_custom_call.1} parent=11 // pred_check_branch
        %220 = sbr.rel (%p218) target = $region32
      $region31: #{tpu_custom_call.1} parent=11 // pred_region
        _
      $region32: #{tpu_custom_call.1} parent=11 // pred_fallthru
        _
      // Predicated region
      $region33: #{tpu_custom_call.1} parent=11 // pred_check
        %p221 = pneg %p165
      $region34: #{tpu_custom_call.1} parent=11 // pred_check_branch
        %223 = sbr.rel (%p221) target = $region36
      $region35: #{tpu_custom_call.1} parent=11 // pred_region
        _
      $region36: #{tpu_custom_call.1} parent=11 // pred_fallthru
        _
    $region12: #{tpu_custom_call.1} parent=5 // pred_fallthru
      _
    %p224 = scmp.lt.s32.totalorder %s13, 2
    // Predicated region
    $region37: #{tpu_custom_call.1} parent=5 // pred_check
      %p225 = pneg %p224
    $region38: #{tpu_custom_call.1} parent=5 // pred_check_branch
      %227 = sbr.rel (%p225) target = $region40
    $region39: #{tpu_custom_call.1} parent=5 // pred_region
      // Predicated region
      $region41: #{tpu_custom_call.1} parent=39 // pred_check
        %p228 = pneg %p33
      $region42: #{tpu_custom_call.1} parent=39 // pred_check_branch
        %230 = sbr.rel (%p228) target = $region44
      $region43: #{tpu_custom_call.1} parent=39 // pred_region
        %s231 = smul.u32 98, %s13
        %p232 = scmp.lt.s32.totalorder %s231, 195
        %s233 = scalar_select %p232, %s231, 195
        %s234 = smul.addr %s233, 4
        %s235 = scalar_lea.vmem %s0, %s234
        %s236 = smul.u32 98, %s13
      $region44: #{tpu_custom_call.1} parent=39 // pred_fallthru
        _
    $region40: #{tpu_custom_call.1} parent=5 // pred_fallthru
      _
    %p237 = scmp.le.s32.totalorder 1, %s13
    %p238 = scmp.lt.s32.totalorder %s13, 3
    %p239 = pnand %p237, %p238
    %p240 = pneg %p239
    // Predicated region
    $region45: #{tpu_custom_call.1} parent=5 // pred_check
      _
    $region46: #{tpu_custom_call.1} parent=5 // pred_check_branch
      %242 = sbr.rel (%p239) target = $region48
    $region47: #{tpu_custom_call.1} parent=5 // pred_region
      %s243 = ssub.s32 %s13, 1
      %s244 = smul.u32 98, %s18
      %p245 = scmp.lt.s32.totalorder %s244, 195
      %s246 = scalar_select %p245, %s244, 195
      %s247 = smul.addr %s246, 4
      %s248 = scalar_lea.vmem %s0, %s247
      %p249 = pneg %p39
      %p250 = pneg %p36
      %p251 = pneg %p60
      %p252 = pneg %p57
      %p253 = pneg %p81
      %p254 = pneg %p78
      %p255 = pneg %p102
      %p256 = pneg %p99
      %p257 = pneg %p123
      %p258 = pneg %p120
      %p259 = pneg %p144
      %p260 = pneg %p141
      %p261 = pneg %p165
      %p262 = pneg %p162
      %p263 = pneg %p191
      %p264 = pneg %p188
      %p265 = scmp.lt.s32.totalorder %s18, 1
      %s266 = scalar_select %p265, %s18, 1
      %s267 = smul.addr %s266, 77
      %s268 = smul.addr %s267, 4
      %s269 = scalar_lea.vmem %s7, %s268
      %s270 = smul.u32 98, %s18
      %p271 = scmp.lt.s32.totalorder %s270, 195
      %s272 = scalar_select %p271, %s270, 195
      %s273 = smul.addr %s272, 4
      %s274 = scalar_lea.vmem %s0, %s273
      %s275 = smul.u32 98, %s18
      %p276 = scmp.lt.s32.totalorder %s18, 1
      %s277 = scalar_select %p276, %s18, 1
      %s278 = smul.addr %s277, 77
      %s279 = smul.addr %s278, 4
      %s280 = scalar_lea.vmem %s7, %s279
      %v282 = vld [vmem:[%s274] sm:$0xf]
      %v283 = vld [vmem:[%s274 + $0x4] sm:$0xf]
      %v284 = vld [vmem:[%s274 + $0x8] sm:$0xf]
      %v285 = vld [vmem:[%s274 + $0xc] sm:$0xf]
      %v286 = vld [vmem:[%s274 + $0x10] sm:$0xf]
      %v287 = vld [vmem:[%s274 + $0x14] sm:$0xf]
      %v288 = vld [vmem:[%s274 + $0x18] sm:$0xf]
      %v289 = vld [vmem:[%s274 + $0x1c] sm:$0xf]
      %v290 = vld [vmem:[%s274 + $0x20] sm:$0xf]
      %v291 = vld [vmem:[%s274 + $0x24] sm:$0xf]
      %v292 = vld [vmem:[%s274 + $0x28] sm:$0xf]
      %v293 = vld [vmem:[%s274 + $0x2c] sm:$0xf]
      %v294 = vld [vmem:[%s274 + $0x30] sm:$0xf]
      %v295 = vld [vmem:[%s274 + $0x34] sm:$0xf]
      %v296 = vld [vmem:[%s274 + $0x38] sm:$0xf]
      %v297 = vld [vmem:[%s274 + $0x3c] sm:$0xf]
      %v298 = vld [vmem:[%s274 + $0x40] sm:$0xf]
      %v299 = vld [vmem:[%s274 + $0x44] sm:$0xf]
      %v300 = vld [vmem:[%s274 + $0x48] sm:$0xf]
      %v301 = vld [vmem:[%s274 + $0x4c] sm:$0xf]
      %v302 = vld [vmem:[%s274 + $0x50] sm:$0xf]
      %v303 = vld [vmem:[%s274 + $0x54] sm:$0xf]
      %v304 = vld [vmem:[%s274 + $0x58] sm:$0xf]
      %v305 = vld [vmem:[%s274 + $0x5c] sm:$0xf]
      %v306 = vld [vmem:[%s274 + $0x60] sm:$0xf]
      %v307 = vld [vmem:[%s274 + $0x64] sm:$0xf]
      %v308 = vld [vmem:[%s274 + $0x68] sm:$0xf]
      %v309 = vld [vmem:[%s274 + $0x6c] sm:$0xf]
      %v310 = vld [vmem:[%s274 + $0x70] sm:$0xf]
      %v311 = vld [vmem:[%s274 + $0x74] sm:$0xf]
      %v312 = vld [vmem:[%s274 + $0x78] sm:$0xf]
      %v313 = vld [vmem:[%s274 + $0x7c] sm:$0xf]
      %v314 = vld [vmem:[%s274 + $0x80] sm:$0xf]
      %v315 = vld [vmem:[%s274 + $0x84] sm:$0xf]
      %v316 = vld [vmem:[%s274 + $0x88] sm:$0xf]
      %v317 = vld [vmem:[%s274 + $0x8c] sm:$0xf]
      %v318 = vld [vmem:[%s274 + $0x90] sm:$0xf]
      %v319 = vld [vmem:[%s274 + $0x94] sm:$0xf]
      %v320 = vld [vmem:[%s274 + $0x98] sm:$0xf]
      %v321 = vld [vmem:[%s274 + $0x9c] sm:$0xf]
      %v322 = vld [vmem:[%s274 + $0xa0] sm:$0xf]
      %v323 = vld [vmem:[%s274 + $0xa4] sm:$0xf]
      %v324 = vld [vmem:[%s274 + $0xa8] sm:$0xf]
      %v325 = vld [vmem:[%s274 + $0xac] sm:$0xf]
      %v326 = vld [vmem:[%s274 + $0xb0] sm:$0xf]
      %v327 = vld [vmem:[%s274 + $0xb4] sm:$0xf]
      %v328 = vld [vmem:[%s274 + $0xb8] sm:$0xf]
      %v329 = vld [vmem:[%s274 + $0xbc] sm:$0xf]
      %v330 = vld [vmem:[%s274 + $0xc0] sm:$0xf]
      %v331 = vld [vmem:[%s274 + $0xc4] sm:$0xf]
      %v332 = vld [vmem:[%s274 + $0xc8] sm:$0xf]
      %v333 = vld [vmem:[%s274 + $0xcc] sm:$0xf]
      %v334 = vld [vmem:[%s274 + $0xd0] sm:$0xf]
      %v335 = vld [vmem:[%s274 + $0xd4] sm:$0xf]
      %v336 = vld [vmem:[%s274 + $0xd8] sm:$0xf]
      %v337 = vld [vmem:[%s274 + $0xdc] sm:$0xf]
      %v338 = vld [vmem:[%s274 + $0xe0] sm:$0xf]
      %v339 = vld [vmem:[%s274 + $0xe4] sm:$0xf]
      %v340 = vld [vmem:[%s274 + $0xe8] sm:$0xf]
      %v341 = vld [vmem:[%s274 + $0xec] sm:$0xf]
      %v342 = vld [vmem:[%s274 + $0xf0] sm:$0xf]
      %v343 = vld [vmem:[%s274 + $0xf4] sm:$0xf]
      %v344 = vld [vmem:[%s274 + $0xf8] sm:$0xf]
      %v345 = vld [vmem:[%s274 + $0xfc] sm:$0xf]
      %v346 = vld [vmem:[%s274 + $0x100] sm:$0xf]
      %v347 = vld [vmem:[%s274 + $0x104] sm:$0xf]
      %v348 = vld [vmem:[%s274 + $0x108] sm:$0xf]
      %v349 = vld [vmem:[%s274 + $0x10c] sm:$0xf]
      %v350 = vld [vmem:[%s274 + $0x110] sm:$0xf]
      %v351 = vld [vmem:[%s274 + $0x114] sm:$0xf]
      %v352 = vld [vmem:[%s274 + $0x118] sm:$0xf]
      %v353 = vld [vmem:[%s274 + $0x11c] sm:$0xf]
      %v354 = vld [vmem:[%s274 + $0x120] sm:$0xf]
      %v355 = vld [vmem:[%s274 + $0x124] sm:$0xf]
      %v356 = vld [vmem:[%s274 + $0x128] sm:$0xf]
      %v357 = vld [vmem:[%s274 + $0x12c] sm:$0xf]
      %v358 = vld [vmem:[%s274 + $0x130] sm:$0xf]
      %v359 = vld [vmem:[%s274 + $0x134] sm:$0xf]
      %v360 = vld [vmem:[%s274 + $0x138] sm:$0xf]
      %v361 = vld [vmem:[%s274 + $0x13c] sm:$0xf]
      %v362 = vld [vmem:[%s274 + $0x140] sm:$0xf]
      %v363 = vld [vmem:[%s274 + $0x144] sm:$0xf]
      %v364 = vld [vmem:[%s274 + $0x148] sm:$0xf]
      %v365 = vld [vmem:[%s274 + $0x14c] sm:$0xf]
      %v366 = vld [vmem:[%s274 + $0x150] sm:$0xf]
      %v367 = vld [vmem:[%s274 + $0x154] sm:$0xf]
      %v368 = vld [vmem:[%s274 + $0x158] sm:$0xf]
      %v369 = vld [vmem:[%s274 + $0x15c] sm:$0xf]
      %v370 = vld [vmem:[%s274 + $0x160] sm:$0xf]
      %v371 = vld [vmem:[%s274 + $0x164] sm:$0xf]
      %v372 = vld [vmem:[%s274 + $0x168] sm:$0xf]
      %v373 = vld [vmem:[%s274 + $0x16c] sm:$0xf]
      %v374 = vld [vmem:[%s274 + $0x170] sm:$0xf]
      %v375 = vld [vmem:[%s274 + $0x174] sm:$0xf]
      %v376 = vld [vmem:[%s274 + $0x178] sm:$0xf]
      %v377 = vld [vmem:[%s274 + $0x17c] sm:$0xf]
      %v378 = vld [vmem:[%s274 + $0x180] sm:$0xf]
      %v379 = vld [vmem:[%s274 + $0x184] sm:$0xf]
      %v471 = vunpack.c.l.b16 %v282
      %v472 = vunpack.c.l.b16 %v283
      %v473 = vunpack.c.l.b16 %v284
      %v474 = vunpack.c.l.b16 %v285
      %v475 = vunpack.c.l.b16 %v286
      %v476 = vunpack.c.l.b16 %v287
      %v477 = vunpack.c.l.b16 %v288
      %v478 = vunpack.c.l.b16 %v289
      %v479 = vunpack.c.l.b16 %v290
      %v480 = vunpack.c.l.b16 %v291
      %v481 = vunpack.c.l.b16 %v292
      %v482 = vunpack.c.l.b16 %v293
      %v483 = vunpack.c.l.b16 %v294
      %v484 = vunpack.c.l.b16 %v295
      %v485 = vunpack.c.l.b16 %v296
      %v486 = vunpack.c.l.b16 %v297
      %v487 = vunpack.c.l.b16 %v298
      %v488 = vunpack.c.l.b16 %v299
      %v489 = vunpack.c.l.b16 %v300
      %v490 = vunpack.c.l.b16 %v301
      %v491 = vunpack.c.l.b16 %v302
      %v492 = vunpack.c.l.b16 %v303
      %v493 = vunpack.c.l.b16 %v304
      %v494 = vunpack.c.l.b16 %v305
      %v495 = vunpack.c.l.b16 %v306
      %v496 = vunpack.c.l.b16 %v307
      %v497 = vunpack.c.l.b16 %v308
      %v498 = vunpack.c.l.b16 %v309
      %v499 = vunpack.c.l.b16 %v310
      %v500 = vunpack.c.l.b16 %v311
      %v501 = vunpack.c.l.b16 %v312
      %v502 = vunpack.c.l.b16 %v313
      %v503 = vunpack.c.l.b16 %v314
      %v504 = vunpack.c.l.b16 %v315
      %v505 = vunpack.c.l.b16 %v316
      %v506 = vunpack.c.l.b16 %v317
      %v507 = vunpack.c.l.b16 %v318
      %v508 = vunpack.c.l.b16 %v319
      %v509 = vunpack.c.l.b16 %v320
      %v510 = vunpack.c.l.b16 %v321
      %v511 = vunpack.c.l.b16 %v322
      %v512 = vunpack.c.l.b16 %v323
      %v513 = vunpack.c.l.b16 %v324
      %v514 = vunpack.c.l.b16 %v325
      %v515 = vunpack.c.l.b16 %v326
      %v516 = vunpack.c.l.b16 %v327
      %v517 = vunpack.c.l.b16 %v328
      %v518 = vunpack.c.l.b16 %v329
      %v519 = vunpack.c.l.b16 %v330
      %v520 = vunpack.c.l.b16 %v331
      %v521 = vunpack.c.l.b16 %v332
      %v522 = vunpack.c.l.b16 %v333
      %v523 = vunpack.c.l.b16 %v334
      %v524 = vunpack.c.l.b16 %v335
      %v525 = vunpack.c.l.b16 %v336
      %v526 = vunpack.c.l.b16 %v337
      %v527 = vunpack.c.l.b16 %v338
      %v528 = vunpack.c.l.b16 %v339
      %v529 = vunpack.c.l.b16 %v340
      %v530 = vunpack.c.l.b16 %v341
      %v531 = vunpack.c.l.b16 %v342
      %v532 = vunpack.c.l.b16 %v343
      %v533 = vunpack.c.l.b16 %v344
      %v534 = vunpack.c.l.b16 %v345
      %v535 = vunpack.c.l.b16 %v346
      %v536 = vunpack.c.l.b16 %v347
      %v537 = vunpack.c.l.b16 %v348
      %v538 = vunpack.c.l.b16 %v349
      %v539 = vunpack.c.l.b16 %v350
      %v540 = vunpack.c.l.b16 %v351
      %v541 = vunpack.c.l.b16 %v352
      %v542 = vunpack.c.l.b16 %v353
      %v543 = vunpack.c.l.b16 %v354
      %v544 = vunpack.c.l.b16 %v355
      %v545 = vunpack.c.l.b16 %v356
      %v546 = vunpack.c.l.b16 %v357
      %v547 = vunpack.c.l.b16 %v358
      %v548 = vunpack.c.l.b16 %v359
      %v549 = vunpack.c.l.b16 %v360
      %v550 = vunpack.c.l.b16 %v361
      %v551 = vunpack.c.l.b16 %v362
      %v552 = vunpack.c.l.b16 %v363
      %v553 = vunpack.c.l.b16 %v364
      %v554 = vunpack.c.l.b16 %v365
      %v555 = vunpack.c.l.b16 %v366
      %v556 = vunpack.c.l.b16 %v367
      %v557 = vunpack.c.l.b16 %v368
      %v558 = vunpack.c.l.b16 %v369
      %v559 = vunpack.c.l.b16 %v370
      %v560 = vunpack.c.l.b16 %v371
      %v561 = vunpack.c.l.b16 %v372
      %v562 = vpack.c.b16 %v472, %v471
      %v563 = vpack.c.b16 %v474, %v473
      %v564 = vpack.c.b16 %v476, %v475
      %v565 = vpack.c.b16 %v478, %v477
      %v566 = vpack.c.b16 %v480, %v479
      %v567 = vpack.c.b16 %v482, %v481
      %v568 = vpack.c.b16 %v484, %v483
      %v569 = vpack.c.b16 %v486, %v485
      %v570 = vpack.c.b16 %v488, %v487
      %v571 = vpack.c.b16 %v490, %v489
      %v572 = vpack.c.b16 %v492, %v491
      %v573 = vpack.c.b16 %v494, %v493
      %v574 = vpack.c.b16 %v496, %v495
      %v575 = vpack.c.b16 %v498, %v497
      %v576 = vpack.c.b16 %v500, %v499
      %v577 = vpack.c.b16 %v502, %v501
      %v578 = vpack.c.b16 %v504, %v503
      %v579 = vpack.c.b16 %v506, %v505
      %v580 = vpack.c.b16 %v508, %v507
      %v581 = vpack.c.b16 %v510, %v509
      %v582 = vpack.c.b16 %v512, %v511
      %v583 = vpack.c.b16 %v514, %v513
      %v584 = vpack.c.b16 %v516, %v515
      %v585 = vpack.c.b16 %v518, %v517
      %v586 = vpack.c.b16 %v520, %v519
      %v587 = vpack.c.b16 %v522, %v521
      %v588 = vpack.c.b16 %v524, %v523
      %v589 = vpack.c.b16 %v526, %v525
      %v590 = vpack.c.b16 %v528, %v527
      %v591 = vpack.c.b16 %v530, %v529
      %v592 = vpack.c.b16 %v532, %v531
      %v593 = vpack.c.b16 %v534, %v533
      %v594 = vpack.c.b16 %v536, %v535
      %v595 = vpack.c.b16 %v538, %v537
      %v596 = vpack.c.b16 %v540, %v539
      %v597 = vpack.c.b16 %v542, %v541
      %v598 = vpack.c.b16 %v544, %v543
      %v599 = vpack.c.b16 %v546, %v545
      %v600 = vpack.c.b16 %v548, %v547
      %v601 = vpack.c.b16 %v550, %v549
      %v602 = vpack.c.b16 %v552, %v551
      %v603 = vpack.c.b16 %v554, %v553
      %v604 = vpack.c.b16 %v556, %v555
      %v605 = vpack.c.b16 %v558, %v557
      %v606 = vpack.c.b16 %v560, %v559
      %v607 = vpack.c.b16 %v561, %v561
      %vm608 = vsmask.f32 7424
      %v610 = vshrl.u32 %v562, 16
      %v612 = vshll.u32 %v562, 16
      %v614 = vrot.slane %v612, 1
      %v615 = vor.u32 %v610, %v614
      %v617 = vshll.u32 %v563, 16
      %v619 = vrot.slane %v617, 1
      %v620 = vsel %vm608, %v615, %v619
      %v621 = vshrl.u32 %v563, 16
      %v623 = vor.u32 %v621, %v619
      %v625 = vshll.u32 %v564, 16
      %v627 = vrot.slane %v625, 1
      %v628 = vsel %vm608, %v623, %v627
      %v629 = vshrl.u32 %v564, 16
      %v631 = vor.u32 %v629, %v627
      %v633 = vshll.u32 %v565, 16
      %v635 = vrot.slane %v633, 1
      %v636 = vsel %vm608, %v631, %v635
      %v637 = vshrl.u32 %v565, 16
      %v639 = vor.u32 %v637, %v635
      %v641 = vshll.u32 %v566, 16
      %v643 = vrot.slane %v641, 1
      %v644 = vsel %vm608, %v639, %v643
      %v645 = vshrl.u32 %v566, 16
      %v647 = vor.u32 %v645, %v643
      %v649 = vshll.u32 %v567, 16
      %v651 = vrot.slane %v649, 1
      %v652 = vsel %vm608, %v647, %v651
      %v653 = vshrl.u32 %v567, 16
      %v655 = vor.u32 %v653, %v651
      %v657 = vshll.u32 %v568, 16
      %v659 = vrot.slane %v657, 1
      %v660 = vsel %vm608, %v655, %v659
      %v661 = vshrl.u32 %v568, 16
      %v663 = vor.u32 %v661, %v659
      %v665 = vshll.u32 %v569, 16
      %v667 = vrot.slane %v665, 1
      %v668 = vsel %vm608, %v663, %v667
      %v669 = vshrl.u32 %v569, 16
      %v671 = vor.u32 %v669, %v667
      %v673 = vshll.u32 %v570, 16
      %v675 = vrot.slane %v673, 1
      %v676 = vsel %vm608, %v671, %v675
      %v677 = vshrl.u32 %v570, 16
      %v679 = vor.u32 %v677, %v675
      %v681 = vshll.u32 %v571, 16
      %v683 = vrot.slane %v681, 1
      %v684 = vsel %vm608, %v679, %v683
      %v685 = vshrl.u32 %v571, 16
      %v687 = vor.u32 %v685, %v683
      %v689 = vshll.u32 %v572, 16
      %v691 = vrot.slane %v689, 1
      %v692 = vsel %vm608, %v687, %v691
      %v693 = vshrl.u32 %v572, 16
      %v695 = vor.u32 %v693, %v691
      %v697 = vshll.u32 %v573, 16
      %v699 = vrot.slane %v697, 1
      %v700 = vsel %vm608, %v695, %v699
      %v701 = vshrl.u32 %v573, 16
      %v703 = vor.u32 %v701, %v699
      %v705 = vshll.u32 %v574, 16
      %v707 = vrot.slane %v705, 1
      %v708 = vsel %vm608, %v703, %v707
      %v709 = vshrl.u32 %v574, 16
      %v711 = vor.u32 %v709, %v707
      %v713 = vshll.u32 %v575, 16
      %v715 = vrot.slane %v713, 1
      %v716 = vsel %vm608, %v711, %v715
      %v717 = vshrl.u32 %v575, 16
      %v719 = vor.u32 %v717, %v715
      %v721 = vshll.u32 %v576, 16
      %v723 = vrot.slane %v721, 1
      %v724 = vsel %vm608, %v719, %v723
      %v725 = vshrl.u32 %v576, 16
      %v727 = vor.u32 %v725, %v723
      %v729 = vshll.u32 %v577, 16
      %v731 = vrot.slane %v729, 1
      %v732 = vsel %vm608, %v727, %v731
      %v733 = vshrl.u32 %v577, 16
      %v735 = vor.u32 %v733, %v731
      %v737 = vshll.u32 %v578, 16
      %v739 = vrot.slane %v737, 1
      %v740 = vsel %vm608, %v735, %v739
      %v741 = vshrl.u32 %v578, 16
      %v743 = vor.u32 %v741, %v739
      %v745 = vshll.u32 %v579, 16
      %v747 = vrot.slane %v745, 1
      %v748 = vsel %vm608, %v743, %v747
      %v749 = vshrl.u32 %v579, 16
      %v751 = vor.u32 %v749, %v747
      %v753 = vshll.u32 %v580, 16
      %v755 = vrot.slane %v753, 1
      %v756 = vsel %vm608, %v751, %v755
      %v757 = vshrl.u32 %v580, 16
      %v759 = vor.u32 %v757, %v755
      %v761 = vshll.u32 %v581, 16
      %v763 = vrot.slane %v761, 1
      %v764 = vsel %vm608, %v759, %v763
      %v765 = vshrl.u32 %v581, 16
      %v767 = vor.u32 %v765, %v763
      %v769 = vshll.u32 %v582, 16
      %v771 = vrot.slane %v769, 1
      %v772 = vsel %vm608, %v767, %v771
      %v773 = vshrl.u32 %v582, 16
      %v775 = vor.u32 %v773, %v771
      %v777 = vshll.u32 %v583, 16
      %v779 = vrot.slane %v777, 1
      %v780 = vsel %vm608, %v775, %v779
      %v781 = vshrl.u32 %v583, 16
      %v783 = vor.u32 %v781, %v779
      %v785 = vshll.u32 %v584, 16
      %v787 = vrot.slane %v785, 1
      %v788 = vsel %vm608, %v783, %v787
      %v789 = vshrl.u32 %v584, 16
      %v791 = vor.u32 %v789, %v787
      %v793 = vshll.u32 %v585, 16
      %v795 = vrot.slane %v793, 1
      %v796 = vsel %vm608, %v791, %v795
      %v797 = vshrl.u32 %v585, 16
      %v799 = vor.u32 %v797, %v795
      %v801 = vshll.u32 %v586, 16
      %v803 = vrot.slane %v801, 1
      %v804 = vsel %vm608, %v799, %v803
      %v805 = vshrl.u32 %v586, 16
      %v807 = vor.u32 %v805, %v803
      %v809 = vshll.u32 %v587, 16
      %v811 = vrot.slane %v809, 1
      %v812 = vsel %vm608, %v807, %v811
      %v813 = vshrl.u32 %v587, 16
      %v815 = vor.u32 %v813, %v811
      %v817 = vshll.u32 %v588, 16
      %v819 = vrot.slane %v817, 1
      %v820 = vsel %vm608, %v815, %v819
      %v821 = vshrl.u32 %v588, 16
      %v823 = vor.u32 %v821, %v819
      %v825 = vshll.u32 %v589, 16
      %v827 = vrot.slane %v825, 1
      %v828 = vsel %vm608, %v823, %v827
      %v829 = vshrl.u32 %v589, 16
      %v831 = vor.u32 %v829, %v827
      %v833 = vshll.u32 %v590, 16
      %v835 = vrot.slane %v833, 1
      %v836 = vsel %vm608, %v831, %v835
      %v837 = vshrl.u32 %v590, 16
      %v839 = vor.u32 %v837, %v835
      %v841 = vshll.u32 %v591, 16
      %v843 = vrot.slane %v841, 1
      %v844 = vsel %vm608, %v839, %v843
      %v845 = vshrl.u32 %v591, 16
      %v847 = vor.u32 %v845, %v843
      %v849 = vshll.u32 %v592, 16
      %v851 = vrot.slane %v849, 1
      %v852 = vsel %vm608, %v847, %v851
      %v853 = vshrl.u32 %v592, 16
      %v855 = vor.u32 %v853, %v851
      %v857 = vshll.u32 %v593, 16
      %v859 = vrot.slane %v857, 1
      %v860 = vsel %vm608, %v855, %v859
      %v861 = vshrl.u32 %v593, 16
      %v863 = vor.u32 %v861, %v859
      %v865 = vshll.u32 %v594, 16
      %v867 = vrot.slane %v865, 1
      %v868 = vsel %vm608, %v863, %v867
      %v869 = vshrl.u32 %v594, 16
      %v871 = vor.u32 %v869, %v867
      %v873 = vshll.u32 %v595, 16
      %v875 = vrot.slane %v873, 1
      %v876 = vsel %vm608, %v871, %v875
      %v877 = vshrl.u32 %v595, 16
      %v879 = vor.u32 %v877, %v875
      %v881 = vshll.u32 %v596, 16
      %v883 = vrot.slane %v881, 1
      %v884 = vsel %vm608, %v879, %v883
      %v885 = vshrl.u32 %v596, 16
      %v887 = vor.u32 %v885, %v883
      %v889 = vshll.u32 %v597, 16
      %v891 = vrot.slane %v889, 1
      %v892 = vsel %vm608, %v887, %v891
      %v893 = vshrl.u32 %v597, 16
      %v895 = vor.u32 %v893, %v891
      %v897 = vshll.u32 %v598, 16
      %v899 = vrot.slane %v897, 1
      %v900 = vsel %vm608, %v895, %v899
      %v901 = vshrl.u32 %v598, 16
      %v903 = vor.u32 %v901, %v899
      %v905 = vshll.u32 %v599, 16
      %v907 = vrot.slane %v905, 1
      %v908 = vsel %vm608, %v903, %v907
      %v909 = vshrl.u32 %v599, 16
      %v911 = vor.u32 %v909, %v907
      %v913 = vshll.u32 %v600, 16
      %v915 = vrot.slane %v913, 1
      %v916 = vsel %vm608, %v911, %v915
      %v917 = vshrl.u32 %v600, 16
      %v919 = vor.u32 %v917, %v915
      %v921 = vshll.u32 %v601, 16
      %v923 = vrot.slane %v921, 1
      %v924 = vsel %vm608, %v919, %v923
      %v925 = vshrl.u32 %v601, 16
      %v927 = vor.u32 %v925, %v923
      %v929 = vshll.u32 %v602, 16
      %v931 = vrot.slane %v929, 1
      %v932 = vsel %vm608, %v927, %v931
      %v933 = vshrl.u32 %v602, 16
      %v935 = vor.u32 %v933, %v931
      %v937 = vshll.u32 %v603, 16
      %v939 = vrot.slane %v937, 1
      %v940 = vsel %vm608, %v935, %v939
      %v941 = vshrl.u32 %v603, 16
      %v943 = vor.u32 %v941, %v939
      %v945 = vshll.u32 %v604, 16
      %v947 = vrot.slane %v945, 1
      %v948 = vsel %vm608, %v943, %v947
      %v949 = vshrl.u32 %v604, 16
      %v951 = vor.u32 %v949, %v947
      %v953 = vshll.u32 %v605, 16
      %v955 = vrot.slane %v953, 1
      %v956 = vsel %vm608, %v951, %v955
      %v957 = vshrl.u32 %v605, 16
      %v959 = vor.u32 %v957, %v955
      %v961 = vshll.u32 %v606, 16
      %v963 = vrot.slane %v961, 1
      %v964 = vsel %vm608, %v959, %v963
      %v965 = vshrl.u32 %v606, 16
      %v967 = vor.u32 %v965, %v963
      %v969 = vshll.u32 %v607, 16
      %v971 = vrot.slane %v969, 1
      %v972 = vsel %vm608, %v967, %v971
      %v973 = vshrl.u32 %v607, 16
      %v975 = vor.u32 %v973, %v971
      %976 = vrot.lane.b32.xlu0 %v620, 1
      %v977 = vpop.permute.xlu0 %976
      %978 = vrot.lane.b32.xlu0 %v628, 1
      %v979 = vpop.permute.xlu0 %978
      %980 = vrot.lane.b32.xlu0 %v636, 1
      %v981 = vpop.permute.xlu0 %980
      %982 = vrot.lane.b32.xlu0 %v644, 1
      %v983 = vpop.permute.xlu0 %982
      %984 = vrot.lane.b32.xlu0 %v652, 1
      %v985 = vpop.permute.xlu0 %984
      %986 = vrot.lane.b32.xlu0 %v660, 1
      %v987 = vpop.permute.xlu0 %986
      %988 = vrot.lane.b32.xlu0 %v668, 1
      %v989 = vpop.permute.xlu0 %988
      %990 = vrot.lane.b32.xlu0 %v676, 1
      %v991 = vpop.permute.xlu0 %990
      %992 = vrot.lane.b32.xlu0 %v684, 1
      %v993 = vpop.permute.xlu0 %992
      %994 = vrot.lane.b32.xlu0 %v692, 1
      %v995 = vpop.permute.xlu0 %994
      %996 = vrot.lane.b32.xlu0 %v700, 1
      %v997 = vpop.permute.xlu0 %996
      %998 = vrot.lane.b32.xlu0 %v708, 1
      %v999 = vpop.permute.xlu0 %998
      %1000 = vrot.lane.b32.xlu0 %v716, 1
      %v1001 = vpop.permute.xlu0 %1000
      %1002 = vrot.lane.b32.xlu0 %v724, 1
      %v1003 = vpop.permute.xlu0 %1002
      %1004 = vrot.lane.b32.xlu0 %v732, 1
      %v1005 = vpop.permute.xlu0 %1004
      %1006 = vrot.lane.b32.xlu0 %v740, 1
      %v1007 = vpop.permute.xlu0 %1006
      %1008 = vrot.lane.b32.xlu0 %v748, 1
      %v1009 = vpop.permute.xlu0 %1008
      %1010 = vrot.lane.b32.xlu0 %v756, 1
      %v1011 = vpop.permute.xlu0 %1010
      %1012 = vrot.lane.b32.xlu0 %v764, 1
      %v1013 = vpop.permute.xlu0 %1012
      %1014 = vrot.lane.b32.xlu0 %v772, 1
      %v1015 = vpop.permute.xlu0 %1014
      %1016 = vrot.lane.b32.xlu0 %v780, 1
      %v1017 = vpop.permute.xlu0 %1016
      %1018 = vrot.lane.b32.xlu0 %v788, 1
      %v1019 = vpop.permute.xlu0 %1018
      %1020 = vrot.lane.b32.xlu0 %v796, 1
      %v1021 = vpop.permute.xlu0 %1020
      %1022 = vrot.lane.b32.xlu0 %v804, 1
      %v1023 = vpop.permute.xlu0 %1022
      %1024 = vrot.lane.b32.xlu0 %v812, 1
      %v1025 = vpop.permute.xlu0 %1024
      %1026 = vrot.lane.b32.xlu0 %v820, 1
      %v1027 = vpop.permute.xlu0 %1026
      %1028 = vrot.lane.b32.xlu0 %v828, 1
      %v1029 = vpop.permute.xlu0 %1028
      %1030 = vrot.lane.b32.xlu0 %v836, 1
      %v1031 = vpop.permute.xlu0 %1030
      %1032 = vrot.lane.b32.xlu0 %v844, 1
      %v1033 = vpop.permute.xlu0 %1032
      %1034 = vrot.lane.b32.xlu0 %v852, 1
      %v1035 = vpop.permute.xlu0 %1034
      %1036 = vrot.lane.b32.xlu0 %v860, 1
      %v1037 = vpop.permute.xlu0 %1036
      %1038 = vrot.lane.b32.xlu0 %v868, 1
      %v1039 = vpop.permute.xlu0 %1038
      %1040 = vrot.lane.b32.xlu0 %v876, 1
      %v1041 = vpop.permute.xlu0 %1040
      %1042 = vrot.lane.b32.xlu0 %v884, 1
      %v1043 = vpop.permute.xlu0 %1042
      %1044 = vrot.lane.b32.xlu0 %v892, 1
      %v1045 = vpop.permute.xlu0 %1044
      %1046 = vrot.lane.b32.xlu0 %v900, 1
      %v1047 = vpop.permute.xlu0 %1046
      %1048 = vrot.lane.b32.xlu0 %v908, 1
      %v1049 = vpop.permute.xlu0 %1048
      %1050 = vrot.lane.b32.xlu0 %v916, 1
      %v1051 = vpop.permute.xlu0 %1050
      %1052 = vrot.lane.b32.xlu0 %v924, 1
      %v1053 = vpop.permute.xlu0 %1052
      %1054 = vrot.lane.b32.xlu0 %v932, 1
      %v1055 = vpop.permute.xlu0 %1054
      %1056 = vrot.lane.b32.xlu0 %v940, 1
      %v1057 = vpop.permute.xlu0 %1056
      %1058 = vrot.lane.b32.xlu0 %v948, 1
      %v1059 = vpop.permute.xlu0 %1058
      %1060 = vrot.lane.b32.xlu0 %v956, 1
      %v1061 = vpop.permute.xlu0 %1060
      %1062 = vrot.lane.b32.xlu0 %v964, 1
      %v1063 = vpop.permute.xlu0 %1062
      %1064 = vrot.lane.b32.xlu0 %v972, 1
      %v1065 = vpop.permute.xlu0 %1064
      %1066 = vrot.lane.b32.xlu0 %v975, 1
      %v1067 = vpop.permute.xlu0 %1066
      %vm1068 = vcmask 1046528
      %v1069 = vrot.slane %v562, 1
      %v1070 = vrot.slane %v563, 1
      %v1071 = vsel %vm1068, %v1069, %v1070
      %v1072 = vrot.slane %v564, 1
      %v1073 = vsel %vm1068, %v1070, %v1072
      %v1074 = vrot.slane %v565, 1
      %v1075 = vsel %vm1068, %v1072, %v1074
      %v1076 = vrot.slane %v566, 1
      %v1077 = vsel %vm1068, %v1074, %v1076
      %v1078 = vrot.slane %v567, 1
      %v1079 = vsel %vm1068, %v1076, %v1078
      %v1080 = vrot.slane %v568, 1
      %v1081 = vsel %vm1068, %v1078, %v1080
      %v1082 = vrot.slane %v569, 1
      %v1083 = vsel %vm1068, %v1080, %v1082
      %v1084 = vrot.slane %v570, 1
      %v1085 = vsel %vm1068, %v1082, %v1084
      %v1086 = vrot.slane %v571, 1
      %v1087 = vsel %vm1068, %v1084, %v1086
      %v1088 = vrot.slane %v572, 1
      %v1089 = vsel %vm1068, %v1086, %v1088
      %v1090 = vrot.slane %v573, 1
      %v1091 = vsel %vm1068, %v1088, %v1090
      %v1092 = vrot.slane %v574, 1
      %v1093 = vsel %vm1068, %v1090, %v1092
      %v1094 = vrot.slane %v575, 1
      %v1095 = vsel %vm1068, %v1092, %v1094
      %v1096 = vrot.slane %v576, 1
      %v1097 = vsel %vm1068, %v1094, %v1096
      %v1098 = vrot.slane %v577, 1
      %v1099 = vsel %vm1068, %v1096, %v1098
      %v1100 = vrot.slane %v578, 1
      %v1101 = vsel %vm1068, %v1098, %v1100
      %v1102 = vrot.slane %v579, 1
      %v1103 = vsel %vm1068, %v1100, %v1102
      %v1104 = vrot.slane %v580, 1
      %v1105 = vsel %vm1068, %v1102, %v1104
      %v1106 = vrot.slane %v581, 1
      %v1107 = vsel %vm1068, %v1104, %v1106
      %v1108 = vrot.slane %v582, 1
      %v1109 = vsel %vm1068, %v1106, %v1108
      %v1110 = vrot.slane %v583, 1
      %v1111 = vsel %vm1068, %v1108, %v1110
      %v1112 = vrot.slane %v584, 1
      %v1113 = vsel %vm1068, %v1110, %v1112
      %v1114 = vrot.slane %v585, 1
      %v1115 = vsel %vm1068, %v1112, %v1114
      %v1116 = vrot.slane %v586, 1
      %v1117 = vsel %vm1068, %v1114, %v1116
      %v1118 = vrot.slane %v587, 1
      %v1119 = vsel %vm1068, %v1116, %v1118
      %v1120 = vrot.slane %v588, 1
      %v1121 = vsel %vm1068, %v1118, %v1120
      %v1122 = vrot.slane %v589, 1
      %v1123 = vsel %vm1068, %v1120, %v1122
      %v1124 = vrot.slane %v590, 1
      %v1125 = vsel %vm1068, %v1122, %v1124
      %v1126 = vrot.slane %v591, 1
      %v1127 = vsel %vm1068, %v1124, %v1126
      %v1128 = vrot.slane %v592, 1
      %v1129 = vsel %vm1068, %v1126, %v1128
      %v1130 = vrot.slane %v593, 1
      %v1131 = vsel %vm1068, %v1128, %v1130
      %v1132 = vrot.slane %v594, 1
      %v1133 = vsel %vm1068, %v1130, %v1132
      %v1134 = vrot.slane %v595, 1
      %v1135 = vsel %vm1068, %v1132, %v1134
      %v1136 = vrot.slane %v596, 1
      %v1137 = vsel %vm1068, %v1134, %v1136
      %v1138 = vrot.slane %v597, 1
      %v1139 = vsel %vm1068, %v1136, %v1138
      %v1140 = vrot.slane %v598, 1
      %v1141 = vsel %vm1068, %v1138, %v1140
      %v1142 = vrot.slane %v599, 1
      %v1143 = vsel %vm1068, %v1140, %v1142
      %v1144 = vrot.slane %v600, 1
      %v1145 = vsel %vm1068, %v1142, %v1144
      %v1146 = vrot.slane %v601, 1
      %v1147 = vsel %vm1068, %v1144, %v1146
      %v1148 = vrot.slane %v602, 1
      %v1149 = vsel %vm1068, %v1146, %v1148
      %v1150 = vrot.slane %v603, 1
      %v1151 = vsel %vm1068, %v1148, %v1150
      %v1152 = vrot.slane %v604, 1
      %v1153 = vsel %vm1068, %v1150, %v1152
      %v1154 = vrot.slane %v605, 1
      %v1155 = vsel %vm1068, %v1152, %v1154
      %v1156 = vrot.slane %v606, 1
      %v1157 = vsel %vm1068, %v1154, %v1156
      %v1158 = vrot.slane %v607, 1
      %v1159 = vsel %vm1068, %v1156, %v1158
      %1160 = vrot.lane.b32.xlu0 %v1071, 2
      %v1161 = vpop.permute.xlu0 %1160
      %1162 = vrot.lane.b32.xlu0 %v1073, 2
      %v1163 = vpop.permute.xlu0 %1162
      %1164 = vrot.lane.b32.xlu0 %v1075, 2
      %v1165 = vpop.permute.xlu0 %1164
      %1166 = vrot.lane.b32.xlu0 %v1077, 2
      %v1167 = vpop.permute.xlu0 %1166
      %1168 = vrot.lane.b32.xlu0 %v1079, 2
      %v1169 = vpop.permute.xlu0 %1168
      %1170 = vrot.lane.b32.xlu0 %v1081, 2
      %v1171 = vpop.permute.xlu0 %1170
      %1172 = vrot.lane.b32.xlu0 %v1083, 2
      %v1173 = vpop.permute.xlu0 %1172
      %1174 = vrot.lane.b32.xlu0 %v1085, 2
      %v1175 = vpop.permute.xlu0 %1174
      %1176 = vrot.lane.b32.xlu0 %v1087, 2
      %v1177 = vpop.permute.xlu0 %1176
      %1178 = vrot.lane.b32.xlu0 %v1089, 2
      %v1179 = vpop.permute.xlu0 %1178
      %1180 = vrot.lane.b32.xlu0 %v1091, 2
      %v1181 = vpop.permute.xlu0 %1180
      %1182 = vrot.lane.b32.xlu0 %v1093, 2
      %v1183 = vpop.permute.xlu0 %1182
      %1184 = vrot.lane.b32.xlu0 %v1095, 2
      %v1185 = vpop.permute.xlu0 %1184
      %1186 = vrot.lane.b32.xlu0 %v1097, 2
      %v1187 = vpop.permute.xlu0 %1186
      %1188 = vrot.lane.b32.xlu0 %v1099, 2
      %v1189 = vpop.permute.xlu0 %1188
      %1190 = vrot.lane.b32.xlu0 %v1101, 2
      %v1191 = vpop.permute.xlu0 %1190
      %1192 = vrot.lane.b32.xlu0 %v1103, 2
      %v1193 = vpop.permute.xlu0 %1192
      %1194 = vrot.lane.b32.xlu0 %v1105, 2
      %v1195 = vpop.permute.xlu0 %1194
      %1196 = vrot.lane.b32.xlu0 %v1107, 2
      %v1197 = vpop.permute.xlu0 %1196
      %1198 = vrot.lane.b32.xlu0 %v1109, 2
      %v1199 = vpop.permute.xlu0 %1198
      %1200 = vrot.lane.b32.xlu0 %v1111, 2
      %v1201 = vpop.permute.xlu0 %1200
      %1202 = vrot.lane.b32.xlu0 %v1113, 2
      %v1203 = vpop.permute.xlu0 %1202
      %1204 = vrot.lane.b32.xlu0 %v1115, 2
      %v1205 = vpop.permute.xlu0 %1204
      %1206 = vrot.lane.b32.xlu0 %v1117, 2
      %v1207 = vpop.permute.xlu0 %1206
      %1208 = vrot.lane.b32.xlu0 %v1119, 2
      %v1209 = vpop.permute.xlu0 %1208
      %1210 = vrot.lane.b32.xlu0 %v1121, 2
      %v1211 = vpop.permute.xlu0 %1210
      %1212 = vrot.lane.b32.xlu0 %v1123, 2
      %v1213 = vpop.permute.xlu0 %1212
      %1214 = vrot.lane.b32.xlu0 %v1125, 2
      %v1215 = vpop.permute.xlu0 %1214
      %1216 = vrot.lane.b32.xlu0 %v1127, 2
      %v1217 = vpop.permute.xlu0 %1216
      %1218 = vrot.lane.b32.xlu0 %v1129, 2
      %v1219 = vpop.permute.xlu0 %1218
      %1220 = vrot.lane.b32.xlu0 %v1131, 2
      %v1221 = vpop.permute.xlu0 %1220
      %1222 = vrot.lane.b32.xlu0 %v1133, 2
      %v1223 = vpop.permute.xlu0 %1222
      %1224 = vrot.lane.b32.xlu0 %v1135, 2
      %v1225 = vpop.permute.xlu0 %1224
      %1226 = vrot.lane.b32.xlu0 %v1137, 2
      %v1227 = vpop.permute.xlu0 %1226
      %1228 = vrot.lane.b32.xlu0 %v1139, 2
      %v1229 = vpop.permute.xlu0 %1228
      %1230 = vrot.lane.b32.xlu0 %v1141, 2
      %v1231 = vpop.permute.xlu0 %1230
      %1232 = vrot.lane.b32.xlu0 %v1143, 2
      %v1233 = vpop.permute.xlu0 %1232
      %1234 = vrot.lane.b32.xlu0 %v1145, 2
      %v1235 = vpop.permute.xlu0 %1234
      %1236 = vrot.lane.b32.xlu0 %v1147, 2
      %v1237 = vpop.permute.xlu0 %1236
      %1238 = vrot.lane.b32.xlu0 %v1149, 2
      %v1239 = vpop.permute.xlu0 %1238
      %1240 = vrot.lane.b32.xlu0 %v1151, 2
      %v1241 = vpop.permute.xlu0 %1240
      %1242 = vrot.lane.b32.xlu0 %v1153, 2
      %v1243 = vpop.permute.xlu0 %1242
      %1244 = vrot.lane.b32.xlu0 %v1155, 2
      %v1245 = vpop.permute.xlu0 %1244
      %1246 = vrot.lane.b32.xlu0 %v1157, 2
      %v1247 = vpop.permute.xlu0 %1246
      %1248 = vrot.lane.b32.xlu0 %v1159, 2
      %v1249 = vpop.permute.xlu0 %1248
      %1250 = vrot.lane.b32.xlu0 %v1158, 2
      %v1251 = vpop.permute.xlu0 %1250
      %v1256 = vunpack.c.l.b16 %v373
      %v1257 = vunpack.c.l.b16 %v374
      %v1258 = vunpack.c.l.b16 %v375
      %v1259 = vunpack.c.l.b16 %v376
      %v1260 = vpack.c.b16 %v475, %v474
      %v1261 = vpack.c.b16 %v477, %v476
      %v1262 = vpack.c.b16 %v479, %v478
      %v1263 = vpack.c.b16 %v481, %v480
      %v1264 = vpack.c.b16 %v483, %v482
      %v1265 = vpack.c.b16 %v485, %v484
      %v1266 = vpack.c.b16 %v487, %v486
      %v1267 = vpack.c.b16 %v489, %v488
      %v1268 = vpack.c.b16 %v491, %v490
      %v1269 = vpack.c.b16 %v493, %v492
      %v1270 = vpack.c.b16 %v495, %v494
      %v1271 = vpack.c.b16 %v497, %v496
      %v1272 = vpack.c.b16 %v499, %v498
      %v1273 = vpack.c.b16 %v501, %v500
      %v1274 = vpack.c.b16 %v503, %v502
      %v1275 = vpack.c.b16 %v505, %v504
      %v1276 = vpack.c.b16 %v507, %v506
      %v1277 = vpack.c.b16 %v509, %v508
      %v1278 = vpack.c.b16 %v511, %v510
      %v1279 = vpack.c.b16 %v513, %v512
      %v1280 = vpack.c.b16 %v515, %v514
      %v1281 = vpack.c.b16 %v517, %v516
      %v1282 = vpack.c.b16 %v519, %v518
      %v1283 = vpack.c.b16 %v521, %v520
      %v1284 = vpack.c.b16 %v523, %v522
      %v1285 = vpack.c.b16 %v525, %v524
      %v1286 = vpack.c.b16 %v527, %v526
      %v1287 = vpack.c.b16 %v529, %v528
      %v1288 = vpack.c.b16 %v531, %v530
      %v1289 = vpack.c.b16 %v533, %v532
      %v1290 = vpack.c.b16 %v535, %v534
      %v1291 = vpack.c.b16 %v537, %v536
      %v1292 = vpack.c.b16 %v539, %v538
      %v1293 = vpack.c.b16 %v541, %v540
      %v1294 = vpack.c.b16 %v543, %v542
      %v1295 = vpack.c.b16 %v545, %v544
      %v1296 = vpack.c.b16 %v547, %v546
      %v1297 = vpack.c.b16 %v549, %v548
      %v1298 = vpack.c.b16 %v551, %v550
      %v1299 = vpack.c.b16 %v553, %v552
      %v1300 = vpack.c.b16 %v555, %v554
      %v1301 = vpack.c.b16 %v557, %v556
      %v1302 = vpack.c.b16 %v559, %v558
      %v1303 = vpack.c.b16 %v561, %v560
      %v1304 = vpack.c.b16 %v1257, %v1256
      %v1305 = vpack.c.b16 %v1259, %v1258
      %vm1306 = vcmask 1045504
      %v1307 = vrot.slane %v1260, 2
      %v1308 = vrot.slane %v1261, 2
      %v1309 = vsel %vm1306, %v1307, %v1308
      %v1310 = vrot.slane %v1262, 2
      %v1311 = vsel %vm1306, %v1308, %v1310
      %v1312 = vrot.slane %v1263, 2
      %v1313 = vsel %vm1306, %v1310, %v1312
      %v1314 = vrot.slane %v1264, 2
      %v1315 = vsel %vm1306, %v1312, %v1314
      %v1316 = vrot.slane %v1265, 2
      %v1317 = vsel %vm1306, %v1314, %v1316
      %v1318 = vrot.slane %v1266, 2
      %v1319 = vsel %vm1306, %v1316, %v1318
      %v1320 = vrot.slane %v1267, 2
      %v1321 = vsel %vm1306, %v1318, %v1320
      %v1322 = vrot.slane %v1268, 2
      %v1323 = vsel %vm1306, %v1320, %v1322
      %v1324 = vrot.slane %v1269, 2
      %v1325 = vsel %vm1306, %v1322, %v1324
      %v1326 = vrot.slane %v1270, 2
      %v1327 = vsel %vm1306, %v1324, %v1326
      %v1328 = vrot.slane %v1271, 2
      %v1329 = vsel %vm1306, %v1326, %v1328
      %v1330 = vrot.slane %v1272, 2
      %v1331 = vsel %vm1306, %v1328, %v1330
      %v1332 = vrot.slane %v1273, 2
      %v1333 = vsel %vm1306, %v1330, %v1332
      %v1334 = vrot.slane %v1274, 2
      %v1335 = vsel %vm1306, %v1332, %v1334
      %v1336 = vrot.slane %v1275, 2
      %v1337 = vsel %vm1306, %v1334, %v1336
      %v1338 = vrot.slane %v1276, 2
      %v1339 = vsel %vm1306, %v1336, %v1338
      %v1340 = vrot.slane %v1277, 2
      %v1341 = vsel %vm1306, %v1338, %v1340
      %v1342 = vrot.slane %v1278, 2
      %v1343 = vsel %vm1306, %v1340, %v1342
      %v1344 = vrot.slane %v1279, 2
      %v1345 = vsel %vm1306, %v1342, %v1344
      %v1346 = vrot.slane %v1280, 2
      %v1347 = vsel %vm1306, %v1344, %v1346
      %v1348 = vrot.slane %v1281, 2
      %v1349 = vsel %vm1306, %v1346, %v1348
      %v1350 = vrot.slane %v1282, 2
      %v1351 = vsel %vm1306, %v1348, %v1350
      %v1352 = vrot.slane %v1283, 2
      %v1353 = vsel %vm1306, %v1350, %v1352
      %v1354 = vrot.slane %v1284, 2
      %v1355 = vsel %vm1306, %v1352, %v1354
      %v1356 = vrot.slane %v1285, 2
      %v1357 = vsel %vm1306, %v1354, %v1356
      %v1358 = vrot.slane %v1286, 2
      %v1359 = vsel %vm1306, %v1356, %v1358
      %v1360 = vrot.slane %v1287, 2
      %v1361 = vsel %vm1306, %v1358, %v1360
      %v1362 = vrot.slane %v1288, 2
      %v1363 = vsel %vm1306, %v1360, %v1362
      %v1364 = vrot.slane %v1289, 2
      %v1365 = vsel %vm1306, %v1362, %v1364
      %v1366 = vrot.slane %v1290, 2
      %v1367 = vsel %vm1306, %v1364, %v1366
      %v1368 = vrot.slane %v1291, 2
      %v1369 = vsel %vm1306, %v1366, %v1368
      %v1370 = vrot.slane %v1292, 2
      %v1371 = vsel %vm1306, %v1368, %v1370
      %v1372 = vrot.slane %v1293, 2
      %v1373 = vsel %vm1306, %v1370, %v1372
      %v1374 = vrot.slane %v1294, 2
      %v1375 = vsel %vm1306, %v1372, %v1374
      %v1376 = vrot.slane %v1295, 2
      %v1377 = vsel %vm1306, %v1374, %v1376
      %v1378 = vrot.slane %v1296, 2
      %v1379 = vsel %vm1306, %v1376, %v1378
      %v1380 = vrot.slane %v1297, 2
      %v1381 = vsel %vm1306, %v1378, %v1380
      %v1382 = vrot.slane %v1298, 2
      %v1383 = vsel %vm1306, %v1380, %v1382
      %v1384 = vrot.slane %v1299, 2
      %v1385 = vsel %vm1306, %v1382, %v1384
      %v1386 = vrot.slane %v1300, 2
      %v1387 = vsel %vm1306, %v1384, %v1386
      %v1388 = vrot.slane %v1301, 2
      %v1389 = vsel %vm1306, %v1386, %v1388
      %v1390 = vrot.slane %v1302, 2
      %v1391 = vsel %vm1306, %v1388, %v1390
      %v1392 = vrot.slane %v1303, 2
      %v1393 = vsel %vm1306, %v1390, %v1392
      %v1394 = vrot.slane %v1304, 2
      %v1395 = vsel %vm1306, %v1392, %v1394
      %v1396 = vrot.slane %v1305, 2
      %v1397 = vsel %vm1306, %v1394, %v1396
      %1398 = vrot.lane.b32.xlu0 %v1309, 3
      %v1399 = vpop.permute.xlu0 %1398
      %1400 = vrot.lane.b32.xlu0 %v1311, 3
      %v1401 = vpop.permute.xlu0 %1400
      %1402 = vrot.lane.b32.xlu0 %v1313, 3
      %v1403 = vpop.permute.xlu0 %1402
      %1404 = vrot.lane.b32.xlu0 %v1315, 3
      %v1405 = vpop.permute.xlu0 %1404
      %1406 = vrot.lane.b32.xlu0 %v1317, 3
      %v1407 = vpop.permute.xlu0 %1406
      %1408 = vrot.lane.b32.xlu0 %v1319, 3
      %v1409 = vpop.permute.xlu0 %1408
      %1410 = vrot.lane.b32.xlu0 %v1321, 3
      %v1411 = vpop.permute.xlu0 %1410
      %1412 = vrot.lane.b32.xlu0 %v1323, 3
      %v1413 = vpop.permute.xlu0 %1412
      %1414 = vrot.lane.b32.xlu0 %v1325, 3
      %v1415 = vpop.permute.xlu0 %1414
      %1416 = vrot.lane.b32.xlu0 %v1327, 3
      %v1417 = vpop.permute.xlu0 %1416
      %1418 = vrot.lane.b32.xlu0 %v1329, 3
      %v1419 = vpop.permute.xlu0 %1418
      %1420 = vrot.lane.b32.xlu0 %v1331, 3
      %v1421 = vpop.permute.xlu0 %1420
      %1422 = vrot.lane.b32.xlu0 %v1333, 3
      %v1423 = vpop.permute.xlu0 %1422
      %1424 = vrot.lane.b32.xlu0 %v1335, 3
      %v1425 = vpop.permute.xlu0 %1424
      %1426 = vrot.lane.b32.xlu0 %v1337, 3
      %v1427 = vpop.permute.xlu0 %1426
      %1428 = vrot.lane.b32.xlu0 %v1339, 3
      %v1429 = vpop.permute.xlu0 %1428
      %1430 = vrot.lane.b32.xlu0 %v1341, 3
      %v1431 = vpop.permute.xlu0 %1430
      %1432 = vrot.lane.b32.xlu0 %v1343, 3
      %v1433 = vpop.permute.xlu0 %1432
      %1434 = vrot.lane.b32.xlu0 %v1345, 3
      %v1435 = vpop.permute.xlu0 %1434
      %1436 = vrot.lane.b32.xlu0 %v1347, 3
      %v1437 = vpop.permute.xlu0 %1436
      %1438 = vrot.lane.b32.xlu0 %v1349, 3
      %v1439 = vpop.permute.xlu0 %1438
      %1440 = vrot.lane.b32.xlu0 %v1351, 3
      %v1441 = vpop.permute.xlu0 %1440
      %1442 = vrot.lane.b32.xlu0 %v1353, 3
      %v1443 = vpop.permute.xlu0 %1442
      %1444 = vrot.lane.b32.xlu0 %v1355, 3
      %v1445 = vpop.permute.xlu0 %1444
      %1446 = vrot.lane.b32.xlu0 %v1357, 3
      %v1447 = vpop.permute.xlu0 %1446
      %1448 = vrot.lane.b32.xlu0 %v1359, 3
      %v1449 = vpop.permute.xlu0 %1448
      %1450 = vrot.lane.b32.xlu0 %v1361, 3
      %v1451 = vpop.permute.xlu0 %1450
      %1452 = vrot.lane.b32.xlu0 %v1363, 3
      %v1453 = vpop.permute.xlu0 %1452
      %1454 = vrot.lane.b32.xlu0 %v1365, 3
      %v1455 = vpop.permute.xlu0 %1454
      %1456 = vrot.lane.b32.xlu0 %v1367, 3
      %v1457 = vpop.permute.xlu0 %1456
      %1458 = vrot.lane.b32.xlu0 %v1369, 3
      %v1459 = vpop.permute.xlu0 %1458
      %1460 = vrot.lane.b32.xlu0 %v1371, 3
      %v1461 = vpop.permute.xlu0 %1460
      %1462 = vrot.lane.b32.xlu0 %v1373, 3
      %v1463 = vpop.permute.xlu0 %1462
      %1464 = vrot.lane.b32.xlu0 %v1375, 3
      %v1465 = vpop.permute.xlu0 %1464
      %1466 = vrot.lane.b32.xlu0 %v1377, 3
      %v1467 = vpop.permute.xlu0 %1466
      %1468 = vrot.lane.b32.xlu0 %v1379, 3
      %v1469 = vpop.permute.xlu0 %1468
      %1470 = vrot.lane.b32.xlu0 %v1381, 3
      %v1471 = vpop.permute.xlu0 %1470
      %1472 = vrot.lane.b32.xlu0 %v1383, 3
      %v1473 = vpop.permute.xlu0 %1472
      %1474 = vrot.lane.b32.xlu0 %v1385, 3
      %v1475 = vpop.permute.xlu0 %1474
      %1476 = vrot.lane.b32.xlu0 %v1387, 3
      %v1477 = vpop.permute.xlu0 %1476
      %1478 = vrot.lane.b32.xlu0 %v1389, 3
      %v1479 = vpop.permute.xlu0 %1478
      %1480 = vrot.lane.b32.xlu0 %v1391, 3
      %v1481 = vpop.permute.xlu0 %1480
      %1482 = vrot.lane.b32.xlu0 %v1393, 3
      %v1483 = vpop.permute.xlu0 %1482
      %1484 = vrot.lane.b32.xlu0 %v1395, 3
      %v1485 = vpop.permute.xlu0 %1484
      %1486 = vrot.lane.b32.xlu0 %v1397, 3
      %v1487 = vpop.permute.xlu0 %1486
      %1488 = vrot.lane.b32.xlu0 %v1396, 3
      %v1489 = vpop.permute.xlu0 %1488
      %vm1490 = vsmask.f32 5376
      %v1492 = vshrl.u32 %v1260, 16
      %v1494 = vrot.slane %v1492, 2
      %v1495 = vshll.u32 %v1260, 16
      %v1497 = vrot.slane %v1495, 3
      %v1498 = vor.u32 %v1494, %v1497
      %v1500 = vshrl.u32 %v1261, 16
      %v1502 = vrot.slane %v1500, 2
      %v1503 = vshll.u32 %v1261, 16
      %v1505 = vrot.slane %v1503, 3
      %v1506 = vor.u32 %v1502, %v1505
      %v1507 = vsel %vm1490, %v1498, %v1506
      %v1509 = vshrl.u32 %v1262, 16
      %v1511 = vrot.slane %v1509, 2
      %v1512 = vshll.u32 %v1262, 16
      %v1514 = vrot.slane %v1512, 3
      %v1515 = vor.u32 %v1511, %v1514
      %v1516 = vsel %vm1490, %v1506, %v1515
      %v1518 = vshrl.u32 %v1263, 16
      %v1520 = vrot.slane %v1518, 2
      %v1521 = vshll.u32 %v1263, 16
      %v1523 = vrot.slane %v1521, 3
      %v1524 = vor.u32 %v1520, %v1523
      %v1525 = vsel %vm1490, %v1515, %v1524
      %v1527 = vshrl.u32 %v1264, 16
      %v1529 = vrot.slane %v1527, 2
      %v1530 = vshll.u32 %v1264, 16
      %v1532 = vrot.slane %v1530, 3
      %v1533 = vor.u32 %v1529, %v1532
      %v1534 = vsel %vm1490, %v1524, %v1533
      %v1536 = vshrl.u32 %v1265, 16
      %v1538 = vrot.slane %v1536, 2
      %v1539 = vshll.u32 %v1265, 16
      %v1541 = vrot.slane %v1539, 3
      %v1542 = vor.u32 %v1538, %v1541
      %v1543 = vsel %vm1490, %v1533, %v1542
      %v1545 = vshrl.u32 %v1266, 16
      %v1547 = vrot.slane %v1545, 2
      %v1548 = vshll.u32 %v1266, 16
      %v1550 = vrot.slane %v1548, 3
      %v1551 = vor.u32 %v1547, %v1550
      %v1552 = vsel %vm1490, %v1542, %v1551
      %v1554 = vshrl.u32 %v1267, 16
      %v1556 = vrot.slane %v1554, 2
      %v1557 = vshll.u32 %v1267, 16
      %v1559 = vrot.slane %v1557, 3
      %v1560 = vor.u32 %v1556, %v1559
      %v1561 = vsel %vm1490, %v1551, %v1560
      %v1563 = vshrl.u32 %v1268, 16
      %v1565 = vrot.slane %v1563, 2
      %v1566 = vshll.u32 %v1268, 16
      %v1568 = vrot.slane %v1566, 3
      %v1569 = vor.u32 %v1565, %v1568
      %v1570 = vsel %vm1490, %v1560, %v1569
      %v1572 = vshrl.u32 %v1269, 16
      %v1574 = vrot.slane %v1572, 2
      %v1575 = vshll.u32 %v1269, 16
      %v1577 = vrot.slane %v1575, 3
      %v1578 = vor.u32 %v1574, %v1577
      %v1579 = vsel %vm1490, %v1569, %v1578
      %v1581 = vshrl.u32 %v1270, 16
      %v1583 = vrot.slane %v1581, 2
      %v1584 = vshll.u32 %v1270, 16
      %v1586 = vrot.slane %v1584, 3
      %v1587 = vor.u32 %v1583, %v1586
      %v1588 = vsel %vm1490, %v1578, %v1587
      %v1590 = vshrl.u32 %v1271, 16
      %v1592 = vrot.slane %v1590, 2
      %v1593 = vshll.u32 %v1271, 16
      %v1595 = vrot.slane %v1593, 3
      %v1596 = vor.u32 %v1592, %v1595
      %v1597 = vsel %vm1490, %v1587, %v1596
      %v1599 = vshrl.u32 %v1272, 16
      %v1601 = vrot.slane %v1599, 2
      %v1602 = vshll.u32 %v1272, 16
      %v1604 = vrot.slane %v1602, 3
      %v1605 = vor.u32 %v1601, %v1604
      %v1606 = vsel %vm1490, %v1596, %v1605
      %v1608 = vshrl.u32 %v1273, 16
      %v1610 = vrot.slane %v1608, 2
      %v1611 = vshll.u32 %v1273, 16
      %v1613 = vrot.slane %v1611, 3
      %v1614 = vor.u32 %v1610, %v1613
      %v1615 = vsel %vm1490, %v1605, %v1614
      %v1617 = vshrl.u32 %v1274, 16
      %v1619 = vrot.slane %v1617, 2
      %v1620 = vshll.u32 %v1274, 16
      %v1622 = vrot.slane %v1620, 3
      %v1623 = vor.u32 %v1619, %v1622
      %v1624 = vsel %vm1490, %v1614, %v1623
      %v1626 = vshrl.u32 %v1275, 16
      %v1628 = vrot.slane %v1626, 2
      %v1629 = vshll.u32 %v1275, 16
      %v1631 = vrot.slane %v1629, 3
      %v1632 = vor.u32 %v1628, %v1631
      %v1633 = vsel %vm1490, %v1623, %v1632
      %v1635 = vshrl.u32 %v1276, 16
      %v1637 = vrot.slane %v1635, 2
      %v1638 = vshll.u32 %v1276, 16
      %v1640 = vrot.slane %v1638, 3
      %v1641 = vor.u32 %v1637, %v1640
      %v1642 = vsel %vm1490, %v1632, %v1641
      %v1644 = vshrl.u32 %v1277, 16
      %v1646 = vrot.slane %v1644, 2
      %v1647 = vshll.u32 %v1277, 16
      %v1649 = vrot.slane %v1647, 3
      %v1650 = vor.u32 %v1646, %v1649
      %v1651 = vsel %vm1490, %v1641, %v1650
      %v1653 = vshrl.u32 %v1278, 16
      %v1655 = vrot.slane %v1653, 2
      %v1656 = vshll.u32 %v1278, 16
      %v1658 = vrot.slane %v1656, 3
      %v1659 = vor.u32 %v1655, %v1658
      %v1660 = vsel %vm1490, %v1650, %v1659
      %v1662 = vshrl.u32 %v1279, 16
      %v1664 = vrot.slane %v1662, 2
      %v1665 = vshll.u32 %v1279, 16
      %v1667 = vrot.slane %v1665, 3
      %v1668 = vor.u32 %v1664, %v1667
      %v1669 = vsel %vm1490, %v1659, %v1668
      %v1671 = vshrl.u32 %v1280, 16
      %v1673 = vrot.slane %v1671, 2
      %v1674 = vshll.u32 %v1280, 16
      %v1676 = vrot.slane %v1674, 3
      %v1677 = vor.u32 %v1673, %v1676
      %v1678 = vsel %vm1490, %v1668, %v1677
      %v1680 = vshrl.u32 %v1281, 16
      %v1682 = vrot.slane %v1680, 2
      %v1683 = vshll.u32 %v1281, 16
      %v1685 = vrot.slane %v1683, 3
      %v1686 = vor.u32 %v1682, %v1685
      %v1687 = vsel %vm1490, %v1677, %v1686
      %v1689 = vshrl.u32 %v1282, 16
      %v1691 = vrot.slane %v1689, 2
      %v1692 = vshll.u32 %v1282, 16
      %v1694 = vrot.slane %v1692, 3
      %v1695 = vor.u32 %v1691, %v1694
      %v1696 = vsel %vm1490, %v1686, %v1695
      %v1698 = vshrl.u32 %v1283, 16
      %v1700 = vrot.slane %v1698, 2
      %v1701 = vshll.u32 %v1283, 16
      %v1703 = vrot.slane %v1701, 3
      %v1704 = vor.u32 %v1700, %v1703
      %v1705 = vsel %vm1490, %v1695, %v1704
      %v1707 = vshrl.u32 %v1284, 16
      %v1709 = vrot.slane %v1707, 2
      %v1710 = vshll.u32 %v1284, 16
      %v1712 = vrot.slane %v1710, 3
      %v1713 = vor.u32 %v1709, %v1712
      %v1714 = vsel %vm1490, %v1704, %v1713
      %v1716 = vshrl.u32 %v1285, 16
      %v1718 = vrot.slane %v1716, 2
      %v1719 = vshll.u32 %v1285, 16
      %v1721 = vrot.slane %v1719, 3
      %v1722 = vor.u32 %v1718, %v1721
      %v1723 = vsel %vm1490, %v1713, %v1722
      %v1725 = vshrl.u32 %v1286, 16
      %v1727 = vrot.slane %v1725, 2
      %v1728 = vshll.u32 %v1286, 16
      %v1730 = vrot.slane %v1728, 3
      %v1731 = vor.u32 %v1727, %v1730
      %v1732 = vsel %vm1490, %v1722, %v1731
      %v1734 = vshrl.u32 %v1287, 16
      %v1736 = vrot.slane %v1734, 2
      %v1737 = vshll.u32 %v1287, 16
      %v1739 = vrot.slane %v1737, 3
      %v1740 = vor.u32 %v1736, %v1739
      %v1741 = vsel %vm1490, %v1731, %v1740
      %v1743 = vshrl.u32 %v1288, 16
      %v1745 = vrot.slane %v1743, 2
      %v1746 = vshll.u32 %v1288, 16
      %v1748 = vrot.slane %v1746, 3
      %v1749 = vor.u32 %v1745, %v1748
      %v1750 = vsel %vm1490, %v1740, %v1749
      %v1752 = vshrl.u32 %v1289, 16
      %v1754 = vrot.slane %v1752, 2
      %v1755 = vshll.u32 %v1289, 16
      %v1757 = vrot.slane %v1755, 3
      %v1758 = vor.u32 %v1754, %v1757
      %v1759 = vsel %vm1490, %v1749, %v1758
      %v1761 = vshrl.u32 %v1290, 16
      %v1763 = vrot.slane %v1761, 2
      %v1764 = vshll.u32 %v1290, 16
      %v1766 = vrot.slane %v1764, 3
      %v1767 = vor.u32 %v1763, %v1766
      %v1768 = vsel %vm1490, %v1758, %v1767
      %v1770 = vshrl.u32 %v1291, 16
      %v1772 = vrot.slane %v1770, 2
      %v1773 = vshll.u32 %v1291, 16
      %v1775 = vrot.slane %v1773, 3
      %v1776 = vor.u32 %v1772, %v1775
      %v1777 = vsel %vm1490, %v1767, %v1776
      %v1779 = vshrl.u32 %v1292, 16
      %v1781 = vrot.slane %v1779, 2
      %v1782 = vshll.u32 %v1292, 16
      %v1784 = vrot.slane %v1782, 3
      %v1785 = vor.u32 %v1781, %v1784
      %v1786 = vsel %vm1490, %v1776, %v1785
      %v1788 = vshrl.u32 %v1293, 16
      %v1790 = vrot.slane %v1788, 2
      %v1791 = vshll.u32 %v1293, 16
      %v1793 = vrot.slane %v1791, 3
      %v1794 = vor.u32 %v1790, %v1793
      %v1795 = vsel %vm1490, %v1785, %v1794
      %v1797 = vshrl.u32 %v1294, 16
      %v1799 = vrot.slane %v1797, 2
      %v1800 = vshll.u32 %v1294, 16
      %v1802 = vrot.slane %v1800, 3
      %v1803 = vor.u32 %v1799, %v1802
      %v1804 = vsel %vm1490, %v1794, %v1803
      %v1806 = vshrl.u32 %v1295, 16
      %v1808 = vrot.slane %v1806, 2
      %v1809 = vshll.u32 %v1295, 16
      %v1811 = vrot.slane %v1809, 3
      %v1812 = vor.u32 %v1808, %v1811
      %v1813 = vsel %vm1490, %v1803, %v1812
      %v1815 = vshrl.u32 %v1296, 16
      %v1817 = vrot.slane %v1815, 2
      %v1818 = vshll.u32 %v1296, 16
      %v1820 = vrot.slane %v1818, 3
      %v1821 = vor.u32 %v1817, %v1820
      %v1822 = vsel %vm1490, %v1812, %v1821
      %v1824 = vshrl.u32 %v1297, 16
      %v1826 = vrot.slane %v1824, 2
      %v1827 = vshll.u32 %v1297, 16
      %v1829 = vrot.slane %v1827, 3
      %v1830 = vor.u32 %v1826, %v1829
      %v1831 = vsel %vm1490, %v1821, %v1830
      %v1833 = vshrl.u32 %v1298, 16
      %v1835 = vrot.slane %v1833, 2
      %v1836 = vshll.u32 %v1298, 16
      %v1838 = vrot.slane %v1836, 3
      %v1839 = vor.u32 %v1835, %v1838
      %v1840 = vsel %vm1490, %v1830, %v1839
      %v1842 = vshrl.u32 %v1299, 16
      %v1844 = vrot.slane %v1842, 2
      %v1845 = vshll.u32 %v1299, 16
      %v1847 = vrot.slane %v1845, 3
      %v1848 = vor.u32 %v1844, %v1847
      %v1849 = vsel %vm1490, %v1839, %v1848
      %v1851 = vshrl.u32 %v1300, 16
      %v1853 = vrot.slane %v1851, 2
      %v1854 = vshll.u32 %v1300, 16
      %v1856 = vrot.slane %v1854, 3
      %v1857 = vor.u32 %v1853, %v1856
      %v1858 = vsel %vm1490, %v1848, %v1857
      %v1860 = vshrl.u32 %v1301, 16
      %v1862 = vrot.slane %v1860, 2
      %v1863 = vshll.u32 %v1301, 16
      %v1865 = vrot.slane %v1863, 3
      %v1866 = vor.u32 %v1862, %v1865
      %v1867 = vsel %vm1490, %v1857, %v1866
      %v1869 = vshrl.u32 %v1302, 16
      %v1871 = vrot.slane %v1869, 2
      %v1872 = vshll.u32 %v1302, 16
      %v1874 = vrot.slane %v1872, 3
      %v1875 = vor.u32 %v1871, %v1874
      %v1876 = vsel %vm1490, %v1866, %v1875
      %v1878 = vshrl.u32 %v1303, 16
      %v1880 = vrot.slane %v1878, 2
      %v1881 = vshll.u32 %v1303, 16
      %v1883 = vrot.slane %v1881, 3
      %v1884 = vor.u32 %v1880, %v1883
      %v1885 = vsel %vm1490, %v1875, %v1884
      %v1887 = vshrl.u32 %v1304, 16
      %v1889 = vrot.slane %v1887, 2
      %v1890 = vshll.u32 %v1304, 16
      %v1892 = vrot.slane %v1890, 3
      %v1893 = vor.u32 %v1889, %v1892
      %v1894 = vsel %vm1490, %v1884, %v1893
      %v1896 = vshrl.u32 %v1305, 16
      %v1898 = vrot.slane %v1896, 2
      %v1899 = vshll.u32 %v1305, 16
      %v1901 = vrot.slane %v1899, 3
      %v1902 = vor.u32 %v1898, %v1901
      %v1903 = vsel %vm1490, %v1893, %v1902
      %1904 = vrot.lane.b32.xlu0 %v1507, 4
      %v1905 = vpop.permute.xlu0 %1904
      %1906 = vrot.lane.b32.xlu0 %v1516, 4
      %v1907 = vpop.permute.xlu0 %1906
      %1908 = vrot.lane.b32.xlu0 %v1525, 4
      %v1909 = vpop.permute.xlu0 %1908
      %1910 = vrot.lane.b32.xlu0 %v1534, 4
      %v1911 = vpop.permute.xlu0 %1910
      %1912 = vrot.lane.b32.xlu0 %v1543, 4
      %v1913 = vpop.permute.xlu0 %1912
      %1914 = vrot.lane.b32.xlu0 %v1552, 4
      %v1915 = vpop.permute.xlu0 %1914
      %1916 = vrot.lane.b32.xlu0 %v1561, 4
      %v1917 = vpop.permute.xlu0 %1916
      %1918 = vrot.lane.b32.xlu0 %v1570, 4
      %v1919 = vpop.permute.xlu0 %1918
      %1920 = vrot.lane.b32.xlu0 %v1579, 4
      %v1921 = vpop.permute.xlu0 %1920
      %1922 = vrot.lane.b32.xlu0 %v1588, 4
      %v1923 = vpop.permute.xlu0 %1922
      %1924 = vrot.lane.b32.xlu0 %v1597, 4
      %v1925 = vpop.permute.xlu0 %1924
      %1926 = vrot.lane.b32.xlu0 %v1606, 4
      %v1927 = vpop.permute.xlu0 %1926
      %1928 = vrot.lane.b32.xlu0 %v1615, 4
      %v1929 = vpop.permute.xlu0 %1928
      %1930 = vrot.lane.b32.xlu0 %v1624, 4
      %v1931 = vpop.permute.xlu0 %1930
      %1932 = vrot.lane.b32.xlu0 %v1633, 4
      %v1933 = vpop.permute.xlu0 %1932
      %1934 = vrot.lane.b32.xlu0 %v1642, 4
      %v1935 = vpop.permute.xlu0 %1934
      %1936 = vrot.lane.b32.xlu0 %v1651, 4
      %v1937 = vpop.permute.xlu0 %1936
      %1938 = vrot.lane.b32.xlu0 %v1660, 4
      %v1939 = vpop.permute.xlu0 %1938
      %1940 = vrot.lane.b32.xlu0 %v1669, 4
      %v1941 = vpop.permute.xlu0 %1940
      %1942 = vrot.lane.b32.xlu0 %v1678, 4
      %v1943 = vpop.permute.xlu0 %1942
      %1944 = vrot.lane.b32.xlu0 %v1687, 4
      %v1945 = vpop.permute.xlu0 %1944
      %1946 = vrot.lane.b32.xlu0 %v1696, 4
      %v1947 = vpop.permute.xlu0 %1946
      %1948 = vrot.lane.b32.xlu0 %v1705, 4
      %v1949 = vpop.permute.xlu0 %1948
      %1950 = vrot.lane.b32.xlu0 %v1714, 4
      %v1951 = vpop.permute.xlu0 %1950
      %1952 = vrot.lane.b32.xlu0 %v1723, 4
      %v1953 = vpop.permute.xlu0 %1952
      %1954 = vrot.lane.b32.xlu0 %v1732, 4
      %v1955 = vpop.permute.xlu0 %1954
      %1956 = vrot.lane.b32.xlu0 %v1741, 4
      %v1957 = vpop.permute.xlu0 %1956
      %1958 = vrot.lane.b32.xlu0 %v1750, 4
      %v1959 = vpop.permute.xlu0 %1958
      %1960 = vrot.lane.b32.xlu0 %v1759, 4
      %v1961 = vpop.permute.xlu0 %1960
      %1962 = vrot.lane.b32.xlu0 %v1768, 4
      %v1963 = vpop.permute.xlu0 %1962
      %1964 = vrot.lane.b32.xlu0 %v1777, 4
      %v1965 = vpop.permute.xlu0 %1964
      %1966 = vrot.lane.b32.xlu0 %v1786, 4
      %v1967 = vpop.permute.xlu0 %1966
      %1968 = vrot.lane.b32.xlu0 %v1795, 4
      %v1969 = vpop.permute.xlu0 %1968
      %1970 = vrot.lane.b32.xlu0 %v1804, 4
      %v1971 = vpop.permute.xlu0 %1970
      %1972 = vrot.lane.b32.xlu0 %v1813, 4
      %v1973 = vpop.permute.xlu0 %1972
      %1974 = vrot.lane.b32.xlu0 %v1822, 4
      %v1975 = vpop.permute.xlu0 %1974
      %1976 = vrot.lane.b32.xlu0 %v1831, 4
      %v1977 = vpop.permute.xlu0 %1976
      %1978 = vrot.lane.b32.xlu0 %v1840, 4
      %v1979 = vpop.permute.xlu0 %1978
      %1980 = vrot.lane.b32.xlu0 %v1849, 4
      %v1981 = vpop.permute.xlu0 %1980
      %1982 = vrot.lane.b32.xlu0 %v1858, 4
      %v1983 = vpop.permute.xlu0 %1982
      %1984 = vrot.lane.b32.xlu0 %v1867, 4
      %v1985 = vpop.permute.xlu0 %1984
      %1986 = vrot.lane.b32.xlu0 %v1876, 4
      %v1987 = vpop.permute.xlu0 %1986
      %1988 = vrot.lane.b32.xlu0 %v1885, 4
      %v1989 = vpop.permute.xlu0 %1988
      %1990 = vrot.lane.b32.xlu0 %v1894, 4
      %v1991 = vpop.permute.xlu0 %1990
      %1992 = vrot.lane.b32.xlu0 %v1903, 4
      %v1993 = vpop.permute.xlu0 %1992
      %1994 = vrot.lane.b32.xlu0 %v1902, 4
      %v1995 = vpop.permute.xlu0 %1994
      %vm1996 = vcmask 1044480
      %v1997 = vrot.slane %v1260, 3
      %v1998 = vrot.slane %v1261, 3
      %v1999 = vsel %vm1996, %v1997, %v1998
      %v2000 = vrot.slane %v1262, 3
      %v2001 = vsel %vm1996, %v1998, %v2000
      %v2002 = vrot.slane %v1263, 3
      %v2003 = vsel %vm1996, %v2000, %v2002
      %v2004 = vrot.slane %v1264, 3
      %v2005 = vsel %vm1996, %v2002, %v2004
      %v2006 = vrot.slane %v1265, 3
      %v2007 = vsel %vm1996, %v2004, %v2006
      %v2008 = vrot.slane %v1266, 3
      %v2009 = vsel %vm1996, %v2006, %v2008
      %v2010 = vrot.slane %v1267, 3
      %v2011 = vsel %vm1996, %v2008, %v2010
      %v2012 = vrot.slane %v1268, 3
      %v2013 = vsel %vm1996, %v2010, %v2012
      %v2014 = vrot.slane %v1269, 3
      %v2015 = vsel %vm1996, %v2012, %v2014
      %v2016 = vrot.slane %v1270, 3
      %v2017 = vsel %vm1996, %v2014, %v2016
      %v2018 = vrot.slane %v1271, 3
      %v2019 = vsel %vm1996, %v2016, %v2018
      %v2020 = vrot.slane %v1272, 3
      %v2021 = vsel %vm1996, %v2018, %v2020
      %v2022 = vrot.slane %v1273, 3
      %v2023 = vsel %vm1996, %v2020, %v2022
      %v2024 = vrot.slane %v1274, 3
      %v2025 = vsel %vm1996, %v2022, %v2024
      %v2026 = vrot.slane %v1275, 3
      %v2027 = vsel %vm1996, %v2024, %v2026
      %v2028 = vrot.slane %v1276, 3
      %v2029 = vsel %vm1996, %v2026, %v2028
      %v2030 = vrot.slane %v1277, 3
      %v2031 = vsel %vm1996, %v2028, %v2030
      %v2032 = vrot.slane %v1278, 3
      %v2033 = vsel %vm1996, %v2030, %v2032
      %v2034 = vrot.slane %v1279, 3
      %v2035 = vsel %vm1996, %v2032, %v2034
      %v2036 = vrot.slane %v1280, 3
      %v2037 = vsel %vm1996, %v2034, %v2036
      %v2038 = vrot.slane %v1281, 3
      %v2039 = vsel %vm1996, %v2036, %v2038
      %v2040 = vrot.slane %v1282, 3
      %v2041 = vsel %vm1996, %v2038, %v2040
      %v2042 = vrot.slane %v1283, 3
      %v2043 = vsel %vm1996, %v2040, %v2042
      %v2044 = vrot.slane %v1284, 3
      %v2045 = vsel %vm1996, %v2042, %v2044
      %v2046 = vrot.slane %v1285, 3
      %v2047 = vsel %vm1996, %v2044, %v2046
      %v2048 = vrot.slane %v1286, 3
      %v2049 = vsel %vm1996, %v2046, %v2048
      %v2050 = vrot.slane %v1287, 3
      %v2051 = vsel %vm1996, %v2048, %v2050
      %v2052 = vrot.slane %v1288, 3
      %v2053 = vsel %vm1996, %v2050, %v2052
      %v2054 = vrot.slane %v1289, 3
      %v2055 = vsel %vm1996, %v2052, %v2054
      %v2056 = vrot.slane %v1290, 3
      %v2057 = vsel %vm1996, %v2054, %v2056
      %v2058 = vrot.slane %v1291, 3
      %v2059 = vsel %vm1996, %v2056, %v2058
      %v2060 = vrot.slane %v1292, 3
      %v2061 = vsel %vm1996, %v2058, %v2060
      %v2062 = vrot.slane %v1293, 3
      %v2063 = vsel %vm1996, %v2060, %v2062
      %v2064 = vrot.slane %v1294, 3
      %v2065 = vsel %vm1996, %v2062, %v2064
      %v2066 = vrot.slane %v1295, 3
      %v2067 = vsel %vm1996, %v2064, %v2066
      %v2068 = vrot.slane %v1296, 3
      %v2069 = vsel %vm1996, %v2066, %v2068
      %v2070 = vrot.slane %v1297, 3
      %v2071 = vsel %vm1996, %v2068, %v2070
      %v2072 = vrot.slane %v1298, 3
      %v2073 = vsel %vm1996, %v2070, %v2072
      %v2074 = vrot.slane %v1299, 3
      %v2075 = vsel %vm1996, %v2072, %v2074
      %v2076 = vrot.slane %v1300, 3
      %v2077 = vsel %vm1996, %v2074, %v2076
      %v2078 = vrot.slane %v1301, 3
      %v2079 = vsel %vm1996, %v2076, %v2078
      %v2080 = vrot.slane %v1302, 3
      %v2081 = vsel %vm1996, %v2078, %v2080
      %v2082 = vrot.slane %v1303, 3
      %v2083 = vsel %vm1996, %v2080, %v2082
      %v2084 = vrot.slane %v1304, 3
      %v2085 = vsel %vm1996, %v2082, %v2084
      %v2086 = vrot.slane %v1305, 3
      %v2087 = vsel %vm1996, %v2084, %v2086
      %2088 = vrot.lane.b32.xlu0 %v1999, 5
      %v2089 = vpop.permute.xlu0 %2088
      %2090 = vrot.lane.b32.xlu0 %v2001, 5
      %v2091 = vpop.permute.xlu0 %2090
      %2092 = vrot.lane.b32.xlu0 %v2003, 5
      %v2093 = vpop.permute.xlu0 %2092
      %2094 = vrot.lane.b32.xlu0 %v2005, 5
      %v2095 = vpop.permute.xlu0 %2094
      %2096 = vrot.lane.b32.xlu0 %v2007, 5
      %v2097 = vpop.permute.xlu0 %2096
      %2098 = vrot.lane.b32.xlu0 %v2009, 5
      %v2099 = vpop.permute.xlu0 %2098
      %2100 = vrot.lane.b32.xlu0 %v2011, 5
      %v2101 = vpop.permute.xlu0 %2100
      %2102 = vrot.lane.b32.xlu0 %v2013, 5
      %v2103 = vpop.permute.xlu0 %2102
      %2104 = vrot.lane.b32.xlu0 %v2015, 5
      %v2105 = vpop.permute.xlu0 %2104
      %2106 = vrot.lane.b32.xlu0 %v2017, 5
      %v2107 = vpop.permute.xlu0 %2106
      %2108 = vrot.lane.b32.xlu0 %v2019, 5
      %v2109 = vpop.permute.xlu0 %2108
      %2110 = vrot.lane.b32.xlu0 %v2021, 5
      %v2111 = vpop.permute.xlu0 %2110
      %2112 = vrot.lane.b32.xlu0 %v2023, 5
      %v2113 = vpop.permute.xlu0 %2112
      %2114 = vrot.lane.b32.xlu0 %v2025, 5
      %v2115 = vpop.permute.xlu0 %2114
      %2116 = vrot.lane.b32.xlu0 %v2027, 5
      %v2117 = vpop.permute.xlu0 %2116
      %2118 = vrot.lane.b32.xlu0 %v2029, 5
      %v2119 = vpop.permute.xlu0 %2118
      %2120 = vrot.lane.b32.xlu0 %v2031, 5
      %v2121 = vpop.permute.xlu0 %2120
      %2122 = vrot.lane.b32.xlu0 %v2033, 5
      %v2123 = vpop.permute.xlu0 %2122
      %2124 = vrot.lane.b32.xlu0 %v2035, 5
      %v2125 = vpop.permute.xlu0 %2124
      %2126 = vrot.lane.b32.xlu0 %v2037, 5
      %v2127 = vpop.permute.xlu0 %2126
      %2128 = vrot.lane.b32.xlu0 %v2039, 5
      %v2129 = vpop.permute.xlu0 %2128
      %2130 = vrot.lane.b32.xlu0 %v2041, 5
      %v2131 = vpop.permute.xlu0 %2130
      %2132 = vrot.lane.b32.xlu0 %v2043, 5
      %v2133 = vpop.permute.xlu0 %2132
      %2134 = vrot.lane.b32.xlu0 %v2045, 5
      %v2135 = vpop.permute.xlu0 %2134
      %2136 = vrot.lane.b32.xlu0 %v2047, 5
      %v2137 = vpop.permute.xlu0 %2136
      %2138 = vrot.lane.b32.xlu0 %v2049, 5
      %v2139 = vpop.permute.xlu0 %2138
      %2140 = vrot.lane.b32.xlu0 %v2051, 5
      %v2141 = vpop.permute.xlu0 %2140
      %2142 = vrot.lane.b32.xlu0 %v2053, 5
      %v2143 = vpop.permute.xlu0 %2142
      %2144 = vrot.lane.b32.xlu0 %v2055, 5
      %v2145 = vpop.permute.xlu0 %2144
      %2146 = vrot.lane.b32.xlu0 %v2057, 5
      %v2147 = vpop.permute.xlu0 %2146
      %2148 = vrot.lane.b32.xlu0 %v2059, 5
      %v2149 = vpop.permute.xlu0 %2148
      %2150 = vrot.lane.b32.xlu0 %v2061, 5
      %v2151 = vpop.permute.xlu0 %2150
      %2152 = vrot.lane.b32.xlu0 %v2063, 5
      %v2153 = vpop.permute.xlu0 %2152
      %2154 = vrot.lane.b32.xlu0 %v2065, 5
      %v2155 = vpop.permute.xlu0 %2154
      %2156 = vrot.lane.b32.xlu0 %v2067, 5
      %v2157 = vpop.permute.xlu0 %2156
      %2158 = vrot.lane.b32.xlu0 %v2069, 5
      %v2159 = vpop.permute.xlu0 %2158
      %2160 = vrot.lane.b32.xlu0 %v2071, 5
      %v2161 = vpop.permute.xlu0 %2160
      %2162 = vrot.lane.b32.xlu0 %v2073, 5
      %v2163 = vpop.permute.xlu0 %2162
      %2164 = vrot.lane.b32.xlu0 %v2075, 5
      %v2165 = vpop.permute.xlu0 %2164
      %2166 = vrot.lane.b32.xlu0 %v2077, 5
      %v2167 = vpop.permute.xlu0 %2166
      %2168 = vrot.lane.b32.xlu0 %v2079, 5
      %v2169 = vpop.permute.xlu0 %2168
      %2170 = vrot.lane.b32.xlu0 %v2081, 5
      %v2171 = vpop.permute.xlu0 %2170
      %2172 = vrot.lane.b32.xlu0 %v2083, 5
      %v2173 = vpop.permute.xlu0 %2172
      %2174 = vrot.lane.b32.xlu0 %v2085, 5
      %v2175 = vpop.permute.xlu0 %2174
      %2176 = vrot.lane.b32.xlu0 %v2087, 5
      %v2177 = vpop.permute.xlu0 %2176
      %2178 = vrot.lane.b32.xlu0 %v2086, 5
      %v2179 = vpop.permute.xlu0 %2178
      %v2183 = vunpack.c.l.b16 %v377
      %v2184 = vunpack.c.l.b16 %v378
      %v2185 = vunpack.c.l.b16 %v379
      %v2186 = vpack.c.b16 %v2184, %v2183
      %v2187 = vpack.c.b16 %v2185, %v2185
      %2188 = vrot.lane.b32.xlu0 %v1262, 6
      %v2189 = vpop.permute.xlu0 %2188
      %2190 = vrot.lane.b32.xlu0 %v1263, 6
      %v2191 = vpop.permute.xlu0 %2190
      %2192 = vrot.lane.b32.xlu0 %v1264, 6
      %v2193 = vpop.permute.xlu0 %2192
      %2194 = vrot.lane.b32.xlu0 %v1265, 6
      %v2195 = vpop.permute.xlu0 %2194
      %2196 = vrot.lane.b32.xlu0 %v1266, 6
      %v2197 = vpop.permute.xlu0 %2196
      %2198 = vrot.lane.b32.xlu0 %v1267, 6
      %v2199 = vpop.permute.xlu0 %2198
      %2200 = vrot.lane.b32.xlu0 %v1268, 6
      %v2201 = vpop.permute.xlu0 %2200
      %2202 = vrot.lane.b32.xlu0 %v1269, 6
      %v2203 = vpop.permute.xlu0 %2202
      %2204 = vrot.lane.b32.xlu0 %v1270, 6
      %v2205 = vpop.permute.xlu0 %2204
      %2206 = vrot.lane.b32.xlu0 %v1271, 6
      %v2207 = vpop.permute.xlu0 %2206
      %2208 = vrot.lane.b32.xlu0 %v1272, 6
      %v2209 = vpop.permute.xlu0 %2208
      %2210 = vrot.lane.b32.xlu0 %v1273, 6
      %v2211 = vpop.permute.xlu0 %2210
      %2212 = vrot.lane.b32.xlu0 %v1274, 6
      %v2213 = vpop.permute.xlu0 %2212
      %2214 = vrot.lane.b32.xlu0 %v1275, 6
      %v2215 = vpop.permute.xlu0 %2214
      %2216 = vrot.lane.b32.xlu0 %v1276, 6
      %v2217 = vpop.permute.xlu0 %2216
      %2218 = vrot.lane.b32.xlu0 %v1277, 6
      %v2219 = vpop.permute.xlu0 %2218
      %2220 = vrot.lane.b32.xlu0 %v1278, 6
      %v2221 = vpop.permute.xlu0 %2220
      %2222 = vrot.lane.b32.xlu0 %v1279, 6
      %v2223 = vpop.permute.xlu0 %2222
      %2224 = vrot.lane.b32.xlu0 %v1280, 6
      %v2225 = vpop.permute.xlu0 %2224
      %2226 = vrot.lane.b32.xlu0 %v1281, 6
      %v2227 = vpop.permute.xlu0 %2226
      %2228 = vrot.lane.b32.xlu0 %v1282, 6
      %v2229 = vpop.permute.xlu0 %2228
      %2230 = vrot.lane.b32.xlu0 %v1283, 6
      %v2231 = vpop.permute.xlu0 %2230
      %2232 = vrot.lane.b32.xlu0 %v1284, 6
      %v2233 = vpop.permute.xlu0 %2232
      %2234 = vrot.lane.b32.xlu0 %v1285, 6
      %v2235 = vpop.permute.xlu0 %2234
      %2236 = vrot.lane.b32.xlu0 %v1286, 6
      %v2237 = vpop.permute.xlu0 %2236
      %2238 = vrot.lane.b32.xlu0 %v1287, 6
      %v2239 = vpop.permute.xlu0 %2238
      %2240 = vrot.lane.b32.xlu0 %v1288, 6
      %v2241 = vpop.permute.xlu0 %2240
      %2242 = vrot.lane.b32.xlu0 %v1289, 6
      %v2243 = vpop.permute.xlu0 %2242
      %2244 = vrot.lane.b32.xlu0 %v1290, 6
      %v2245 = vpop.permute.xlu0 %2244
      %2246 = vrot.lane.b32.xlu0 %v1291, 6
      %v2247 = vpop.permute.xlu0 %2246
      %2248 = vrot.lane.b32.xlu0 %v1292, 6
      %v2249 = vpop.permute.xlu0 %2248
      %2250 = vrot.lane.b32.xlu0 %v1293, 6
      %v2251 = vpop.permute.xlu0 %2250
      %2252 = vrot.lane.b32.xlu0 %v1294, 6
      %v2253 = vpop.permute.xlu0 %2252
      %2254 = vrot.lane.b32.xlu0 %v1295, 6
      %v2255 = vpop.permute.xlu0 %2254
      %2256 = vrot.lane.b32.xlu0 %v1296, 6
      %v2257 = vpop.permute.xlu0 %2256
      %2258 = vrot.lane.b32.xlu0 %v1297, 6
      %v2259 = vpop.permute.xlu0 %2258
      %2260 = vrot.lane.b32.xlu0 %v1298, 6
      %v2261 = vpop.permute.xlu0 %2260
      %2262 = vrot.lane.b32.xlu0 %v1299, 6
      %v2263 = vpop.permute.xlu0 %2262
      %2264 = vrot.lane.b32.xlu0 %v1300, 6
      %v2265 = vpop.permute.xlu0 %2264
      %2266 = vrot.lane.b32.xlu0 %v1301, 6
      %v2267 = vpop.permute.xlu0 %2266
      %2268 = vrot.lane.b32.xlu0 %v1302, 6
      %v2269 = vpop.permute.xlu0 %2268
      %2270 = vrot.lane.b32.xlu0 %v1303, 6
      %v2271 = vpop.permute.xlu0 %2270
      %2272 = vrot.lane.b32.xlu0 %v1304, 6
      %v2273 = vpop.permute.xlu0 %2272
      %2274 = vrot.lane.b32.xlu0 %v1305, 6
      %v2275 = vpop.permute.xlu0 %2274
      %2276 = vrot.lane.b32.xlu0 %v2186, 6
      %v2277 = vpop.permute.xlu0 %2276
      %2278 = vrot.lane.b32.xlu0 %v2187, 6
      %v2279 = vpop.permute.xlu0 %2278
      %v2280 = vrot.slane %v1512, 1
      %v2281 = vor.u32 %v1509, %v2280
      %v2282 = vrot.slane %v1521, 1
      %v2283 = vsel %vm608, %v2281, %v2282
      %v2284 = vor.u32 %v1518, %v2282
      %v2285 = vrot.slane %v1530, 1
      %v2286 = vsel %vm608, %v2284, %v2285
      %v2287 = vor.u32 %v1527, %v2285
      %v2288 = vrot.slane %v1539, 1
      %v2289 = vsel %vm608, %v2287, %v2288
      %v2290 = vor.u32 %v1536, %v2288
      %v2291 = vrot.slane %v1548, 1
      %v2292 = vsel %vm608, %v2290, %v2291
      %v2293 = vor.u32 %v1545, %v2291
      %v2294 = vrot.slane %v1557, 1
      %v2295 = vsel %vm608, %v2293, %v2294
      %v2296 = vor.u32 %v1554, %v2294
      %v2297 = vrot.slane %v1566, 1
      %v2298 = vsel %vm608, %v2296, %v2297
      %v2299 = vor.u32 %v1563, %v2297
      %v2300 = vrot.slane %v1575, 1
      %v2301 = vsel %vm608, %v2299, %v2300
      %v2302 = vor.u32 %v1572, %v2300
      %v2303 = vrot.slane %v1584, 1
      %v2304 = vsel %vm608, %v2302, %v2303
      %v2305 = vor.u32 %v1581, %v2303
      %v2306 = vrot.slane %v1593, 1
      %v2307 = vsel %vm608, %v2305, %v2306
      %v2308 = vor.u32 %v1590, %v2306
      %v2309 = vrot.slane %v1602, 1
      %v2310 = vsel %vm608, %v2308, %v2309
      %v2311 = vor.u32 %v1599, %v2309
      %v2312 = vrot.slane %v1611, 1
      %v2313 = vsel %vm608, %v2311, %v2312
      %v2314 = vor.u32 %v1608, %v2312
      %v2315 = vrot.slane %v1620, 1
      %v2316 = vsel %vm608, %v2314, %v2315
      %v2317 = vor.u32 %v1617, %v2315
      %v2318 = vrot.slane %v1629, 1
      %v2319 = vsel %vm608, %v2317, %v2318
      %v2320 = vor.u32 %v1626, %v2318
      %v2321 = vrot.slane %v1638, 1
      %v2322 = vsel %vm608, %v2320, %v2321
      %v2323 = vor.u32 %v1635, %v2321
      %v2324 = vrot.slane %v1647, 1
      %v2325 = vsel %vm608, %v2323, %v2324
      %v2326 = vor.u32 %v1644, %v2324
      %v2327 = vrot.slane %v1656, 1
      %v2328 = vsel %vm608, %v2326, %v2327
      %v2329 = vor.u32 %v1653, %v2327
      %v2330 = vrot.slane %v1665, 1
      %v2331 = vsel %vm608, %v2329, %v2330
      %v2332 = vor.u32 %v1662, %v2330
      %v2333 = vrot.slane %v1674, 1
      %v2334 = vsel %vm608, %v2332, %v2333
      %v2335 = vor.u32 %v1671, %v2333
      %v2336 = vrot.slane %v1683, 1
      %v2337 = vsel %vm608, %v2335, %v2336
      %v2338 = vor.u32 %v1680, %v2336
      %v2339 = vrot.slane %v1692, 1
      %v2340 = vsel %vm608, %v2338, %v2339
      %v2341 = vor.u32 %v1689, %v2339
      %v2342 = vrot.slane %v1701, 1
      %v2343 = vsel %vm608, %v2341, %v2342
      %v2344 = vor.u32 %v1698, %v2342
      %v2345 = vrot.slane %v1710, 1
      %v2346 = vsel %vm608, %v2344, %v2345
      %v2347 = vor.u32 %v1707, %v2345
      %v2348 = vrot.slane %v1719, 1
      %v2349 = vsel %vm608, %v2347, %v2348
      %v2350 = vor.u32 %v1716, %v2348
      %v2351 = vrot.slane %v1728, 1
      %v2352 = vsel %vm608, %v2350, %v2351
      %v2353 = vor.u32 %v1725, %v2351
      %v2354 = vrot.slane %v1737, 1
      %v2355 = vsel %vm608, %v2353, %v2354
      %v2356 = vor.u32 %v1734, %v2354
      %v2357 = vrot.slane %v1746, 1
      %v2358 = vsel %vm608, %v2356, %v2357
      %v2359 = vor.u32 %v1743, %v2357
      %v2360 = vrot.slane %v1755, 1
      %v2361 = vsel %vm608, %v2359, %v2360
      %v2362 = vor.u32 %v1752, %v2360
      %v2363 = vrot.slane %v1764, 1
      %v2364 = vsel %vm608, %v2362, %v2363
      %v2365 = vor.u32 %v1761, %v2363
      %v2366 = vrot.slane %v1773, 1
      %v2367 = vsel %vm608, %v2365, %v2366
      %v2368 = vor.u32 %v1770, %v2366
      %v2369 = vrot.slane %v1782, 1
      %v2370 = vsel %vm608, %v2368, %v2369
      %v2371 = vor.u32 %v1779, %v2369
      %v2372 = vrot.slane %v1791, 1
      %v2373 = vsel %vm608, %v2371, %v2372
      %v2374 = vor.u32 %v1788, %v2372
      %v2375 = vrot.slane %v1800, 1
      %v2376 = vsel %vm608, %v2374, %v2375
      %v2377 = vor.u32 %v1797, %v2375
      %v2378 = vrot.slane %v1809, 1
      %v2379 = vsel %vm608, %v2377, %v2378
      %v2380 = vor.u32 %v1806, %v2378
      %v2381 = vrot.slane %v1818, 1
      %v2382 = vsel %vm608, %v2380, %v2381
      %v2383 = vor.u32 %v1815, %v2381
      %v2384 = vrot.slane %v1827, 1
      %v2385 = vsel %vm608, %v2383, %v2384
      %v2386 = vor.u32 %v1824, %v2384
      %v2387 = vrot.slane %v1836, 1
      %v2388 = vsel %vm608, %v2386, %v2387
      %v2389 = vor.u32 %v1833, %v2387
      %v2390 = vrot.slane %v1845, 1
      %v2391 = vsel %vm608, %v2389, %v2390
      %v2392 = vor.u32 %v1842, %v2390
      %v2393 = vrot.slane %v1854, 1
      %v2394 = vsel %vm608, %v2392, %v2393
      %v2395 = vor.u32 %v1851, %v2393
      %v2396 = vrot.slane %v1863, 1
      %v2397 = vsel %vm608, %v2395, %v2396
      %v2398 = vor.u32 %v1860, %v2396
      %v2399 = vrot.slane %v1872, 1
      %v2400 = vsel %vm608, %v2398, %v2399
      %v2401 = vor.u32 %v1869, %v2399
      %v2402 = vrot.slane %v1881, 1
      %v2403 = vsel %vm608, %v2401, %v2402
      %v2404 = vor.u32 %v1878, %v2402
      %v2405 = vrot.slane %v1890, 1
      %v2406 = vsel %vm608, %v2404, %v2405
      %v2407 = vor.u32 %v1887, %v2405
      %v2408 = vrot.slane %v1899, 1
      %v2409 = vsel %vm608, %v2407, %v2408
      %v2410 = vor.u32 %v1896, %v2408
      %v2412 = vshll.u32 %v2186, 16
      %v2414 = vrot.slane %v2412, 1
      %v2415 = vsel %vm608, %v2410, %v2414
      %v2416 = vshrl.u32 %v2186, 16
      %v2418 = vor.u32 %v2416, %v2414
      %v2420 = vshll.u32 %v2187, 16
      %v2422 = vrot.slane %v2420, 1
      %v2423 = vsel %vm608, %v2418, %v2422
      %v2424 = vshrl.u32 %v2187, 16
      %v2426 = vor.u32 %v2424, %v2422
      %2427 = vrot.lane.b32.xlu0 %v2283, 7
      %v2428 = vpop.permute.xlu0 %2427
      %2429 = vrot.lane.b32.xlu0 %v2286, 7
      %v2430 = vpop.permute.xlu0 %2429
      %2431 = vrot.lane.b32.xlu0 %v2289, 7
      %v2432 = vpop.permute.xlu0 %2431
      %2433 = vrot.lane.b32.xlu0 %v2292, 7
      %v2434 = vpop.permute.xlu0 %2433
      %2435 = vrot.lane.b32.xlu0 %v2295, 7
      %v2436 = vpop.permute.xlu0 %2435
      %2437 = vrot.lane.b32.xlu0 %v2298, 7
      %v2438 = vpop.permute.xlu0 %2437
      %2439 = vrot.lane.b32.xlu0 %v2301, 7
      %v2440 = vpop.permute.xlu0 %2439
      %2441 = vrot.lane.b32.xlu0 %v2304, 7
      %v2442 = vpop.permute.xlu0 %2441
      %2443 = vrot.lane.b32.xlu0 %v2307, 7
      %v2444 = vpop.permute.xlu0 %2443
      %2445 = vrot.lane.b32.xlu0 %v2310, 7
      %v2446 = vpop.permute.xlu0 %2445
      %2447 = vrot.lane.b32.xlu0 %v2313, 7
      %v2448 = vpop.permute.xlu0 %2447
      %2449 = vrot.lane.b32.xlu0 %v2316, 7
      %v2450 = vpop.permute.xlu0 %2449
      %2451 = vrot.lane.b32.xlu0 %v2319, 7
      %v2452 = vpop.permute.xlu0 %2451
      %2453 = vrot.lane.b32.xlu0 %v2322, 7
      %v2454 = vpop.permute.xlu0 %2453
      %2455 = vrot.lane.b32.xlu0 %v2325, 7
      %v2456 = vpop.permute.xlu0 %2455
      %2457 = vrot.lane.b32.xlu0 %v2328, 7
      %v2458 = vpop.permute.xlu0 %2457
      %2459 = vrot.lane.b32.xlu0 %v2331, 7
      %v2460 = vpop.permute.xlu0 %2459
      %2461 = vrot.lane.b32.xlu0 %v2334, 7
      %v2462 = vpop.permute.xlu0 %2461
      %2463 = vrot.lane.b32.xlu0 %v2337, 7
      %v2464 = vpop.permute.xlu0 %2463
      %2465 = vrot.lane.b32.xlu0 %v2340, 7
      %v2466 = vpop.permute.xlu0 %2465
      %2467 = vrot.lane.b32.xlu0 %v2343, 7
      %v2468 = vpop.permute.xlu0 %2467
      %2469 = vrot.lane.b32.xlu0 %v2346, 7
      %v2470 = vpop.permute.xlu0 %2469
      %2471 = vrot.lane.b32.xlu0 %v2349, 7
      %v2472 = vpop.permute.xlu0 %2471
      %2473 = vrot.lane.b32.xlu0 %v2352, 7
      %v2474 = vpop.permute.xlu0 %2473
      %2475 = vrot.lane.b32.xlu0 %v2355, 7
      %v2476 = vpop.permute.xlu0 %2475
      %2477 = vrot.lane.b32.xlu0 %v2358, 7
      %v2478 = vpop.permute.xlu0 %2477
      %2479 = vrot.lane.b32.xlu0 %v2361, 7
      %v2480 = vpop.permute.xlu0 %2479
      %2481 = vrot.lane.b32.xlu0 %v2364, 7
      %v2482 = vpop.permute.xlu0 %2481
      %2483 = vrot.lane.b32.xlu0 %v2367, 7
      %v2484 = vpop.permute.xlu0 %2483
      %2485 = vrot.lane.b32.xlu0 %v2370, 7
      %v2486 = vpop.permute.xlu0 %2485
      %2487 = vrot.lane.b32.xlu0 %v2373, 7
      %v2488 = vpop.permute.xlu0 %2487
      %2489 = vrot.lane.b32.xlu0 %v2376, 7
      %v2490 = vpop.permute.xlu0 %2489
      %2491 = vrot.lane.b32.xlu0 %v2379, 7
      %v2492 = vpop.permute.xlu0 %2491
      %2493 = vrot.lane.b32.xlu0 %v2382, 7
      %v2494 = vpop.permute.xlu0 %2493
      %2495 = vrot.lane.b32.xlu0 %v2385, 7
      %v2496 = vpop.permute.xlu0 %2495
      %2497 = vrot.lane.b32.xlu0 %v2388, 7
      %v2498 = vpop.permute.xlu0 %2497
      %2499 = vrot.lane.b32.xlu0 %v2391, 7
      %v2500 = vpop.permute.xlu0 %2499
      %2501 = vrot.lane.b32.xlu0 %v2394, 7
      %v2502 = vpop.permute.xlu0 %2501
      %2503 = vrot.lane.b32.xlu0 %v2397, 7
      %v2504 = vpop.permute.xlu0 %2503
      %2505 = vrot.lane.b32.xlu0 %v2400, 7
      %v2506 = vpop.permute.xlu0 %2505
      %2507 = vrot.lane.b32.xlu0 %v2403, 7
      %v2508 = vpop.permute.xlu0 %2507
      %2509 = vrot.lane.b32.xlu0 %v2406, 7
      %v2510 = vpop.permute.xlu0 %2509
      %2511 = vrot.lane.b32.xlu0 %v2409, 7
      %v2512 = vpop.permute.xlu0 %2511
      %2513 = vrot.lane.b32.xlu0 %v2415, 7
      %v2514 = vpop.permute.xlu0 %2513
      %2515 = vrot.lane.b32.xlu0 %v2423, 7
      %v2516 = vpop.permute.xlu0 %2515
      %2517 = vrot.lane.b32.xlu0 %v2426, 7
      %v2518 = vpop.permute.xlu0 %2517
      %v2519 = vrot.slane %v1262, 1
      %v2520 = vrot.slane %v1263, 1
      %v2521 = vsel %vm1068, %v2519, %v2520
      %v2522 = vrot.slane %v1264, 1
      %v2523 = vsel %vm1068, %v2520, %v2522
      %v2524 = vrot.slane %v1265, 1
      %v2525 = vsel %vm1068, %v2522, %v2524
      %v2526 = vrot.slane %v1266, 1
      %v2527 = vsel %vm1068, %v2524, %v2526
      %v2528 = vrot.slane %v1267, 1
      %v2529 = vsel %vm1068, %v2526, %v2528
      %v2530 = vrot.slane %v1268, 1
      %v2531 = vsel %vm1068, %v2528, %v2530
      %v2532 = vrot.slane %v1269, 1
      %v2533 = vsel %vm1068, %v2530, %v2532
      %v2534 = vrot.slane %v1270, 1
      %v2535 = vsel %vm1068, %v2532, %v2534
      %v2536 = vrot.slane %v1271, 1
      %v2537 = vsel %vm1068, %v2534, %v2536
      %v2538 = vrot.slane %v1272, 1
      %v2539 = vsel %vm1068, %v2536, %v2538
      %v2540 = vrot.slane %v1273, 1
      %v2541 = vsel %vm1068, %v2538, %v2540
      %v2542 = vrot.slane %v1274, 1
      %v2543 = vsel %vm1068, %v2540, %v2542
      %v2544 = vrot.slane %v1275, 1
      %v2545 = vsel %vm1068, %v2542, %v2544
      %v2546 = vrot.slane %v1276, 1
      %v2547 = vsel %vm1068, %v2544, %v2546
      %v2548 = vrot.slane %v1277, 1
      %v2549 = vsel %vm1068, %v2546, %v2548
      %v2550 = vrot.slane %v1278, 1
      %v2551 = vsel %vm1068, %v2548, %v2550
      %v2552 = vrot.slane %v1279, 1
      %v2553 = vsel %vm1068, %v2550, %v2552
      %v2554 = vrot.slane %v1280, 1
      %v2555 = vsel %vm1068, %v2552, %v2554
      %v2556 = vrot.slane %v1281, 1
      %v2557 = vsel %vm1068, %v2554, %v2556
      %v2558 = vrot.slane %v1282, 1
      %v2559 = vsel %vm1068, %v2556, %v2558
      %v2560 = vrot.slane %v1283, 1
      %v2561 = vsel %vm1068, %v2558, %v2560
      %v2562 = vrot.slane %v1284, 1
      %v2563 = vsel %vm1068, %v2560, %v2562
      %v2564 = vrot.slane %v1285, 1
      %v2565 = vsel %vm1068, %v2562, %v2564
      %v2566 = vrot.slane %v1286, 1
      %v2567 = vsel %vm1068, %v2564, %v2566
      %v2568 = vrot.slane %v1287, 1
      %v2569 = vsel %vm1068, %v2566, %v2568
      %v2570 = vrot.slane %v1288, 1
      %v2571 = vsel %vm1068, %v2568, %v2570
      %v2572 = vrot.slane %v1289, 1
      %v2573 = vsel %vm1068, %v2570, %v2572
      %v2574 = vrot.slane %v1290, 1
      %v2575 = vsel %vm1068, %v2572, %v2574
      %v2576 = vrot.slane %v1291, 1
      %v2577 = vsel %vm1068, %v2574, %v2576
      %v2578 = vrot.slane %v1292, 1
      %v2579 = vsel %vm1068, %v2576, %v2578
      %v2580 = vrot.slane %v1293, 1
      %v2581 = vsel %vm1068, %v2578, %v2580
      %v2582 = vrot.slane %v1294, 1
      %v2583 = vsel %vm1068, %v2580, %v2582
      %v2584 = vrot.slane %v1295, 1
      %v2585 = vsel %vm1068, %v2582, %v2584
      %v2586 = vrot.slane %v1296, 1
      %v2587 = vsel %vm1068, %v2584, %v2586
      %v2588 = vrot.slane %v1297, 1
      %v2589 = vsel %vm1068, %v2586, %v2588
      %v2590 = vrot.slane %v1298, 1
      %v2591 = vsel %vm1068, %v2588, %v2590
      %v2592 = vrot.slane %v1299, 1
      %v2593 = vsel %vm1068, %v2590, %v2592
      %v2594 = vrot.slane %v1300, 1
      %v2595 = vsel %vm1068, %v2592, %v2594
      %v2596 = vrot.slane %v1301, 1
      %v2597 = vsel %vm1068, %v2594, %v2596
      %v2598 = vrot.slane %v1302, 1
      %v2599 = vsel %vm1068, %v2596, %v2598
      %v2600 = vrot.slane %v1303, 1
      %v2601 = vsel %vm1068, %v2598, %v2600
      %v2602 = vrot.slane %v1304, 1
      %v2603 = vsel %vm1068, %v2600, %v2602
      %v2604 = vrot.slane %v1305, 1
      %v2605 = vsel %vm1068, %v2602, %v2604
      %v2606 = vrot.slane %v2186, 1
      %v2607 = vsel %vm1068, %v2604, %v2606
      %v2608 = vrot.slane %v2187, 1
      %v2609 = vsel %vm1068, %v2606, %v2608
      %2610 = vrot.lane.b32.xlu0 %v2521, 8
      %v2611 = vpop.permute.xlu0 %2610
      %2612 = vrot.lane.b32.xlu0 %v2523, 8
      %v2613 = vpop.permute.xlu0 %2612
      %2614 = vrot.lane.b32.xlu0 %v2525, 8
      %v2615 = vpop.permute.xlu0 %2614
      %2616 = vrot.lane.b32.xlu0 %v2527, 8
      %v2617 = vpop.permute.xlu0 %2616
      %2618 = vrot.lane.b32.xlu0 %v2529, 8
      %v2619 = vpop.permute.xlu0 %2618
      %2620 = vrot.lane.b32.xlu0 %v2531, 8
      %v2621 = vpop.permute.xlu0 %2620
      %2622 = vrot.lane.b32.xlu0 %v2533, 8
      %v2623 = vpop.permute.xlu0 %2622
      %2624 = vrot.lane.b32.xlu0 %v2535, 8
      %v2625 = vpop.permute.xlu0 %2624
      %2626 = vrot.lane.b32.xlu0 %v2537, 8
      %v2627 = vpop.permute.xlu0 %2626
      %2628 = vrot.lane.b32.xlu0 %v2539, 8
      %v2629 = vpop.permute.xlu0 %2628
      %2630 = vrot.lane.b32.xlu0 %v2541, 8
      %v2631 = vpop.permute.xlu0 %2630
      %2632 = vrot.lane.b32.xlu0 %v2543, 8
      %v2633 = vpop.permute.xlu0 %2632
      %2634 = vrot.lane.b32.xlu0 %v2545, 8
      %v2635 = vpop.permute.xlu0 %2634
      %2636 = vrot.lane.b32.xlu0 %v2547, 8
      %v2637 = vpop.permute.xlu0 %2636
      %2638 = vrot.lane.b32.xlu0 %v2549, 8
      %v2639 = vpop.permute.xlu0 %2638
      %2640 = vrot.lane.b32.xlu0 %v2551, 8
      %v2641 = vpop.permute.xlu0 %2640
      %2642 = vrot.lane.b32.xlu0 %v2553, 8
      %v2643 = vpop.permute.xlu0 %2642
      %2644 = vrot.lane.b32.xlu0 %v2555, 8
      %v2645 = vpop.permute.xlu0 %2644
      %2646 = vrot.lane.b32.xlu0 %v2557, 8
      %v2647 = vpop.permute.xlu0 %2646
      %2648 = vrot.lane.b32.xlu0 %v2559, 8
      %v2649 = vpop.permute.xlu0 %2648
      %2650 = vrot.lane.b32.xlu0 %v2561, 8
      %v2651 = vpop.permute.xlu0 %2650
      %2652 = vrot.lane.b32.xlu0 %v2563, 8
      %v2653 = vpop.permute.xlu0 %2652
      %2654 = vrot.lane.b32.xlu0 %v2565, 8
      %v2655 = vpop.permute.xlu0 %2654
      %2656 = vrot.lane.b32.xlu0 %v2567, 8
      %v2657 = vpop.permute.xlu0 %2656
      %2658 = vrot.lane.b32.xlu0 %v2569, 8
      %v2659 = vpop.permute.xlu0 %2658
      %2660 = vrot.lane.b32.xlu0 %v2571, 8
      %v2661 = vpop.permute.xlu0 %2660
      %2662 = vrot.lane.b32.xlu0 %v2573, 8
      %v2663 = vpop.permute.xlu0 %2662
      %2664 = vrot.lane.b32.xlu0 %v2575, 8
      %v2665 = vpop.permute.xlu0 %2664
      %2666 = vrot.lane.b32.xlu0 %v2577, 8
      %v2667 = vpop.permute.xlu0 %2666
      %2668 = vrot.lane.b32.xlu0 %v2579, 8
      %v2669 = vpop.permute.xlu0 %2668
      %2670 = vrot.lane.b32.xlu0 %v2581, 8
      %v2671 = vpop.permute.xlu0 %2670
      %2672 = vrot.lane.b32.xlu0 %v2583, 8
      %v2673 = vpop.permute.xlu0 %2672
      %2674 = vrot.lane.b32.xlu0 %v2585, 8
      %v2675 = vpop.permute.xlu0 %2674
      %2676 = vrot.lane.b32.xlu0 %v2587, 8
      %v2677 = vpop.permute.xlu0 %2676
      %2678 = vrot.lane.b32.xlu0 %v2589, 8
      %v2679 = vpop.permute.xlu0 %2678
      %2680 = vrot.lane.b32.xlu0 %v2591, 8
      %v2681 = vpop.permute.xlu0 %2680
      %2682 = vrot.lane.b32.xlu0 %v2593, 8
      %v2683 = vpop.permute.xlu0 %2682
      %2684 = vrot.lane.b32.xlu0 %v2595, 8
      %v2685 = vpop.permute.xlu0 %2684
      %2686 = vrot.lane.b32.xlu0 %v2597, 8
      %v2687 = vpop.permute.xlu0 %2686
      %2688 = vrot.lane.b32.xlu0 %v2599, 8
      %v2689 = vpop.permute.xlu0 %2688
      %2690 = vrot.lane.b32.xlu0 %v2601, 8
      %v2691 = vpop.permute.xlu0 %2690
      %2692 = vrot.lane.b32.xlu0 %v2603, 8
      %v2693 = vpop.permute.xlu0 %2692
      %2694 = vrot.lane.b32.xlu0 %v2605, 8
      %v2695 = vpop.permute.xlu0 %2694
      %2696 = vrot.lane.b32.xlu0 %v2607, 8
      %v2697 = vpop.permute.xlu0 %2696
      %2698 = vrot.lane.b32.xlu0 %v2609, 8
      %v2699 = vpop.permute.xlu0 %2698
      %2700 = vrot.lane.b32.xlu0 %v2608, 8
      %v2701 = vpop.permute.xlu0 %2700
      %vm2702 = vcmask 7168
      %v2704 = vsel %vm2702, %v562, %v977
      %v2706 = vsel %vm2702, %v563, %v979
      %v2708 = vsel %vm2702, %v564, %v981
      %v2710 = vsel %vm2702, %v565, %v983
      %v2712 = vsel %vm2702, %v566, %v985
      %v2714 = vsel %vm2702, %v567, %v987
      %v2716 = vsel %vm2702, %v568, %v989
      %v2718 = vsel %vm2702, %v569, %v991
      %v2720 = vsel %vm2702, %v570, %v993
      %v2722 = vsel %vm2702, %v571, %v995
      %v2724 = vsel %vm2702, %v572, %v997
      %v2726 = vsel %vm2702, %v573, %v999
      %v2728 = vsel %vm2702, %v574, %v1001
      %v2730 = vsel %vm2702, %v575, %v1003
      %v2732 = vsel %vm2702, %v576, %v1005
      %v2734 = vsel %vm2702, %v577, %v1007
      %v2736 = vsel %vm2702, %v578, %v1009
      %v2738 = vsel %vm2702, %v579, %v1011
      %v2740 = vsel %vm2702, %v580, %v1013
      %v2742 = vsel %vm2702, %v581, %v1015
      %v2744 = vsel %vm2702, %v582, %v1017
      %v2746 = vsel %vm2702, %v583, %v1019
      %v2748 = vsel %vm2702, %v584, %v1021
      %v2750 = vsel %vm2702, %v585, %v1023
      %v2752 = vsel %vm2702, %v586, %v1025
      %v2754 = vsel %vm2702, %v587, %v1027
      %v2756 = vsel %vm2702, %v588, %v1029
      %v2758 = vsel %vm2702, %v589, %v1031
      %v2760 = vsel %vm2702, %v590, %v1033
      %v2762 = vsel %vm2702, %v591, %v1035
      %v2764 = vsel %vm2702, %v592, %v1037
      %v2766 = vsel %vm2702, %v593, %v1039
      %v2768 = vsel %vm2702, %v594, %v1041
      %v2770 = vsel %vm2702, %v595, %v1043
      %v2772 = vsel %vm2702, %v596, %v1045
      %v2774 = vsel %vm2702, %v597, %v1047
      %v2776 = vsel %vm2702, %v598, %v1049
      %v2778 = vsel %vm2702, %v599, %v1051
      %v2780 = vsel %vm2702, %v600, %v1053
      %v2782 = vsel %vm2702, %v601, %v1055
      %v2784 = vsel %vm2702, %v602, %v1057
      %v2786 = vsel %vm2702, %v603, %v1059
      %v2788 = vsel %vm2702, %v604, %v1061
      %v2790 = vsel %vm2702, %v605, %v1063
      %v2792 = vsel %vm2702, %v606, %v1065
      %v2794 = vsel %vm2702, %v607, %v1067
      %vm2795 = vcmask 15360
      %v2797 = vsel %vm2795, %v2704, %v1161
      %v2799 = vsel %vm2795, %v2706, %v1163
      %v2801 = vsel %vm2795, %v2708, %v1165
      %v2803 = vsel %vm2795, %v2710, %v1167
      %v2805 = vsel %vm2795, %v2712, %v1169
      %v2807 = vsel %vm2795, %v2714, %v1171
      %v2809 = vsel %vm2795, %v2716, %v1173
      %v2811 = vsel %vm2795, %v2718, %v1175
      %v2813 = vsel %vm2795, %v2720, %v1177
      %v2815 = vsel %vm2795, %v2722, %v1179
      %v2817 = vsel %vm2795, %v2724, %v1181
      %v2819 = vsel %vm2795, %v2726, %v1183
      %v2821 = vsel %vm2795, %v2728, %v1185
      %v2823 = vsel %vm2795, %v2730, %v1187
      %v2825 = vsel %vm2795, %v2732, %v1189
      %v2827 = vsel %vm2795, %v2734, %v1191
      %v2829 = vsel %vm2795, %v2736, %v1193
      %v2831 = vsel %vm2795, %v2738, %v1195
      %v2833 = vsel %vm2795, %v2740, %v1197
      %v2835 = vsel %vm2795, %v2742, %v1199
      %v2837 = vsel %vm2795, %v2744, %v1201
      %v2839 = vsel %vm2795, %v2746, %v1203
      %v2841 = vsel %vm2795, %v2748, %v1205
      %v2843 = vsel %vm2795, %v2750, %v1207
      %v2845 = vsel %vm2795, %v2752, %v1209
      %v2847 = vsel %vm2795, %v2754, %v1211
      %v2849 = vsel %vm2795, %v2756, %v1213
      %v2851 = vsel %vm2795, %v2758, %v1215
      %v2853 = vsel %vm2795, %v2760, %v1217
      %v2855 = vsel %vm2795, %v2762, %v1219
      %v2857 = vsel %vm2795, %v2764, %v1221
      %v2859 = vsel %vm2795, %v2766, %v1223
      %v2861 = vsel %vm2795, %v2768, %v1225
      %v2863 = vsel %vm2795, %v2770, %v1227
      %v2865 = vsel %vm2795, %v2772, %v1229
      %v2867 = vsel %vm2795, %v2774, %v1231
      %v2869 = vsel %vm2795, %v2776, %v1233
      %v2871 = vsel %vm2795, %v2778, %v1235
      %v2873 = vsel %vm2795, %v2780, %v1237
      %v2875 = vsel %vm2795, %v2782, %v1239
      %v2877 = vsel %vm2795, %v2784, %v1241
      %v2879 = vsel %vm2795, %v2786, %v1243
      %v2881 = vsel %vm2795, %v2788, %v1245
      %v2883 = vsel %vm2795, %v2790, %v1247
      %v2885 = vsel %vm2795, %v2792, %v1249
      %v2887 = vsel %vm2795, %v2794, %v1251
      %vm2888 = vcmask 23552
      %v2890 = vsel %vm2888, %v2797, %v1399
      %v2892 = vsel %vm2888, %v2799, %v1401
      %v2894 = vsel %vm2888, %v2801, %v1403
      %v2896 = vsel %vm2888, %v2803, %v1405
      %v2898 = vsel %vm2888, %v2805, %v1407
      %v2900 = vsel %vm2888, %v2807, %v1409
      %v2902 = vsel %vm2888, %v2809, %v1411
      %v2904 = vsel %vm2888, %v2811, %v1413
      %v2906 = vsel %vm2888, %v2813, %v1415
      %v2908 = vsel %vm2888, %v2815, %v1417
      %v2910 = vsel %vm2888, %v2817, %v1419
      %v2912 = vsel %vm2888, %v2819, %v1421
      %v2914 = vsel %vm2888, %v2821, %v1423
      %v2916 = vsel %vm2888, %v2823, %v1425
      %v2918 = vsel %vm2888, %v2825, %v1427
      %v2920 = vsel %vm2888, %v2827, %v1429
      %v2922 = vsel %vm2888, %v2829, %v1431
      %v2924 = vsel %vm2888, %v2831, %v1433
      %v2926 = vsel %vm2888, %v2833, %v1435
      %v2928 = vsel %vm2888, %v2835, %v1437
      %v2930 = vsel %vm2888, %v2837, %v1439
      %v2932 = vsel %vm2888, %v2839, %v1441
      %v2934 = vsel %vm2888, %v2841, %v1443
      %v2936 = vsel %vm2888, %v2843, %v1445
      %v2938 = vsel %vm2888, %v2845, %v1447
      %v2940 = vsel %vm2888, %v2847, %v1449
      %v2942 = vsel %vm2888, %v2849, %v1451
      %v2944 = vsel %vm2888, %v2851, %v1453
      %v2946 = vsel %vm2888, %v2853, %v1455
      %v2948 = vsel %vm2888, %v2855, %v1457
      %v2950 = vsel %vm2888, %v2857, %v1459
      %v2952 = vsel %vm2888, %v2859, %v1461
      %v2954 = vsel %vm2888, %v2861, %v1463
      %v2956 = vsel %vm2888, %v2863, %v1465
      %v2958 = vsel %vm2888, %v2865, %v1467
      %v2960 = vsel %vm2888, %v2867, %v1469
      %v2962 = vsel %vm2888, %v2869, %v1471
      %v2964 = vsel %vm2888, %v2871, %v1473
      %v2966 = vsel %vm2888, %v2873, %v1475
      %v2968 = vsel %vm2888, %v2875, %v1477
      %v2970 = vsel %vm2888, %v2877, %v1479
      %v2972 = vsel %vm2888, %v2879, %v1481
      %v2974 = vsel %vm2888, %v2881, %v1483
      %v2976 = vsel %vm2888, %v2883, %v1485
      %v2978 = vsel %vm2888, %v2885, %v1487
      %v2980 = vsel %vm2888, %v2887, %v1489
      %vm2981 = vcmask 31744
      %v2983 = vsel %vm2981, %v2890, %v1905
      %v2985 = vsel %vm2981, %v2892, %v1907
      %v2987 = vsel %vm2981, %v2894, %v1909
      %v2989 = vsel %vm2981, %v2896, %v1911
      %v2991 = vsel %vm2981, %v2898, %v1913
      %v2993 = vsel %vm2981, %v2900, %v1915
      %v2995 = vsel %vm2981, %v2902, %v1917
      %v2997 = vsel %vm2981, %v2904, %v1919
      %v2999 = vsel %vm2981, %v2906, %v1921
      %v3001 = vsel %vm2981, %v2908, %v1923
      %v3003 = vsel %vm2981, %v2910, %v1925
      %v3005 = vsel %vm2981, %v2912, %v1927
      %v3007 = vsel %vm2981, %v2914, %v1929
      %v3009 = vsel %vm2981, %v2916, %v1931
      %v3011 = vsel %vm2981, %v2918, %v1933
      %v3013 = vsel %vm2981, %v2920, %v1935
      %v3015 = vsel %vm2981, %v2922, %v1937
      %v3017 = vsel %vm2981, %v2924, %v1939
      %v3019 = vsel %vm2981, %v2926, %v1941
      %v3021 = vsel %vm2981, %v2928, %v1943
      %v3023 = vsel %vm2981, %v2930, %v1945
      %v3025 = vsel %vm2981, %v2932, %v1947
      %v3027 = vsel %vm2981, %v2934, %v1949
      %v3029 = vsel %vm2981, %v2936, %v1951
      %v3031 = vsel %vm2981, %v2938, %v1953
      %v3033 = vsel %vm2981, %v2940, %v1955
      %v3035 = vsel %vm2981, %v2942, %v1957
      %v3037 = vsel %vm2981, %v2944, %v1959
      %v3039 = vsel %vm2981, %v2946, %v1961
      %v3041 = vsel %vm2981, %v2948, %v1963
      %v3043 = vsel %vm2981, %v2950, %v1965
      %v3045 = vsel %vm2981, %v2952, %v1967
      %v3047 = vsel %vm2981, %v2954, %v1969
      %v3049 = vsel %vm2981, %v2956, %v1971
      %v3051 = vsel %vm2981, %v2958, %v1973
      %v3053 = vsel %vm2981, %v2960, %v1975
      %v3055 = vsel %vm2981, %v2962, %v1977
      %v3057 = vsel %vm2981, %v2964, %v1979
      %v3059 = vsel %vm2981, %v2966, %v1981
      %v3061 = vsel %vm2981, %v2968, %v1983
      %v3063 = vsel %vm2981, %v2970, %v1985
      %v3065 = vsel %vm2981, %v2972, %v1987
      %v3067 = vsel %vm2981, %v2974, %v1989
      %v3069 = vsel %vm2981, %v2976, %v1991
      %v3071 = vsel %vm2981, %v2978, %v1993
      %v3073 = vsel %vm2981, %v2980, %v1995
      %vm3074 = vcmask 39936
      %v3076 = vsel %vm3074, %v2983, %v2089
      %v3078 = vsel %vm3074, %v2985, %v2091
      %v3080 = vsel %vm3074, %v2987, %v2093
      %v3082 = vsel %vm3074, %v2989, %v2095
      %v3084 = vsel %vm3074, %v2991, %v2097
      %v3086 = vsel %vm3074, %v2993, %v2099
      %v3088 = vsel %vm3074, %v2995, %v2101
      %v3090 = vsel %vm3074, %v2997, %v2103
      %v3092 = vsel %vm3074, %v2999, %v2105
      %v3094 = vsel %vm3074, %v3001, %v2107
      %v3096 = vsel %vm3074, %v3003, %v2109
      %v3098 = vsel %vm3074, %v3005, %v2111
      %v3100 = vsel %vm3074, %v3007, %v2113
      %v3102 = vsel %vm3074, %v3009, %v2115
      %v3104 = vsel %vm3074, %v3011, %v2117
      %v3106 = vsel %vm3074, %v3013, %v2119
      %v3108 = vsel %vm3074, %v3015, %v2121
      %v3110 = vsel %vm3074, %v3017, %v2123
      %v3112 = vsel %vm3074, %v3019, %v2125
      %v3114 = vsel %vm3074, %v3021, %v2127
      %v3116 = vsel %vm3074, %v3023, %v2129
      %v3118 = vsel %vm3074, %v3025, %v2131
      %v3120 = vsel %vm3074, %v3027, %v2133
      %v3122 = vsel %vm3074, %v3029, %v2135
      %v3124 = vsel %vm3074, %v3031, %v2137
      %v3126 = vsel %vm3074, %v3033, %v2139
      %v3128 = vsel %vm3074, %v3035, %v2141
      %v3130 = vsel %vm3074, %v3037, %v2143
      %v3132 = vsel %vm3074, %v3039, %v2145
      %v3134 = vsel %vm3074, %v3041, %v2147
      %v3136 = vsel %vm3074, %v3043, %v2149
      %v3138 = vsel %vm3074, %v3045, %v2151
      %v3140 = vsel %vm3074, %v3047, %v2153
      %v3142 = vsel %vm3074, %v3049, %v2155
      %v3144 = vsel %vm3074, %v3051, %v2157
      %v3146 = vsel %vm3074, %v3053, %v2159
      %v3148 = vsel %vm3074, %v3055, %v2161
      %v3150 = vsel %vm3074, %v3057, %v2163
      %v3152 = vsel %vm3074, %v3059, %v2165
      %v3154 = vsel %vm3074, %v3061, %v2167
      %v3156 = vsel %vm3074, %v3063, %v2169
      %v3158 = vsel %vm3074, %v3065, %v2171
      %v3160 = vsel %vm3074, %v3067, %v2173
      %v3162 = vsel %vm3074, %v3069, %v2175
      %v3164 = vsel %vm3074, %v3071, %v2177
      %v3166 = vsel %vm3074, %v3073, %v2179
      %vm3167 = vcmask 48128
      %v3169 = vsel %vm3167, %v3076, %v2189
      %v3171 = vsel %vm3167, %v3078, %v2191
      %v3173 = vsel %vm3167, %v3080, %v2193
      %v3175 = vsel %vm3167, %v3082, %v2195
      %v3177 = vsel %vm3167, %v3084, %v2197
      %v3179 = vsel %vm3167, %v3086, %v2199
      %v3181 = vsel %vm3167, %v3088, %v2201
      %v3183 = vsel %vm3167, %v3090, %v2203
      %v3185 = vsel %vm3167, %v3092, %v2205
      %v3187 = vsel %vm3167, %v3094, %v2207
      %v3189 = vsel %vm3167, %v3096, %v2209
      %v3191 = vsel %vm3167, %v3098, %v2211
      %v3193 = vsel %vm3167, %v3100, %v2213
      %v3195 = vsel %vm3167, %v3102, %v2215
      %v3197 = vsel %vm3167, %v3104, %v2217
      %v3199 = vsel %vm3167, %v3106, %v2219
      %v3201 = vsel %vm3167, %v3108, %v2221
      %v3203 = vsel %vm3167, %v3110, %v2223
      %v3205 = vsel %vm3167, %v3112, %v2225
      %v3207 = vsel %vm3167, %v3114, %v2227
      %v3209 = vsel %vm3167, %v3116, %v2229
      %v3211 = vsel %vm3167, %v3118, %v2231
      %v3213 = vsel %vm3167, %v3120, %v2233
      %v3215 = vsel %vm3167, %v3122, %v2235
      %v3217 = vsel %vm3167, %v3124, %v2237
      %v3219 = vsel %vm3167, %v3126, %v2239
      %v3221 = vsel %vm3167, %v3128, %v2241
      %v3223 = vsel %vm3167, %v3130, %v2243
      %v3225 = vsel %vm3167, %v3132, %v2245
      %v3227 = vsel %vm3167, %v3134, %v2247
      %v3229 = vsel %vm3167, %v3136, %v2249
      %v3231 = vsel %vm3167, %v3138, %v2251
      %v3233 = vsel %vm3167, %v3140, %v2253
      %v3235 = vsel %vm3167, %v3142, %v2255
      %v3237 = vsel %vm3167, %v3144, %v2257
      %v3239 = vsel %vm3167, %v3146, %v2259
      %v3241 = vsel %vm3167, %v3148, %v2261
      %v3243 = vsel %vm3167, %v3150, %v2263
      %v3245 = vsel %vm3167, %v3152, %v2265
      %v3247 = vsel %vm3167, %v3154, %v2267
      %v3249 = vsel %vm3167, %v3156, %v2269
      %v3251 = vsel %vm3167, %v3158, %v2271
      %v3253 = vsel %vm3167, %v3160, %v2273
      %v3255 = vsel %vm3167, %v3162, %v2275
      %v3257 = vsel %vm3167, %v3164, %v2277
      %v3259 = vsel %vm3167, %v3166, %v2279
      %vm3260 = vcmask 56320
      %v3262 = vsel %vm3260, %v3169, %v2428
      %v3264 = vsel %vm3260, %v3171, %v2430
      %v3266 = vsel %vm3260, %v3173, %v2432
      %v3268 = vsel %vm3260, %v3175, %v2434
      %v3270 = vsel %vm3260, %v3177, %v2436
      %v3272 = vsel %vm3260, %v3179, %v2438
      %v3274 = vsel %vm3260, %v3181, %v2440
      %v3276 = vsel %vm3260, %v3183, %v2442
      %v3278 = vsel %vm3260, %v3185, %v2444
      %v3280 = vsel %vm3260, %v3187, %v2446
      %v3282 = vsel %vm3260, %v3189, %v2448
      %v3284 = vsel %vm3260, %v3191, %v2450
      %v3286 = vsel %vm3260, %v3193, %v2452
      %v3288 = vsel %vm3260, %v3195, %v2454
      %v3290 = vsel %vm3260, %v3197, %v2456
      %v3292 = vsel %vm3260, %v3199, %v2458
      %v3294 = vsel %vm3260, %v3201, %v2460
      %v3296 = vsel %vm3260, %v3203, %v2462
      %v3298 = vsel %vm3260, %v3205, %v2464
      %v3300 = vsel %vm3260, %v3207, %v2466
      %v3302 = vsel %vm3260, %v3209, %v2468
      %v3304 = vsel %vm3260, %v3211, %v2470
      %v3306 = vsel %vm3260, %v3213, %v2472
      %v3308 = vsel %vm3260, %v3215, %v2474
      %v3310 = vsel %vm3260, %v3217, %v2476
      %v3312 = vsel %vm3260, %v3219, %v2478
      %v3314 = vsel %vm3260, %v3221, %v2480
      %v3316 = vsel %vm3260, %v3223, %v2482
      %v3318 = vsel %vm3260, %v3225, %v2484
      %v3320 = vsel %vm3260, %v3227, %v2486
      %v3322 = vsel %vm3260, %v3229, %v2488
      %v3324 = vsel %vm3260, %v3231, %v2490
      %v3326 = vsel %vm3260, %v3233, %v2492
      %v3328 = vsel %vm3260, %v3235, %v2494
      %v3330 = vsel %vm3260, %v3237, %v2496
      %v3332 = vsel %vm3260, %v3239, %v2498
      %v3334 = vsel %vm3260, %v3241, %v2500
      %v3336 = vsel %vm3260, %v3243, %v2502
      %v3338 = vsel %vm3260, %v3245, %v2504
      %v3340 = vsel %vm3260, %v3247, %v2506
      %v3342 = vsel %vm3260, %v3249, %v2508
      %v3344 = vsel %vm3260, %v3251, %v2510
      %v3346 = vsel %vm3260, %v3253, %v2512
      %v3348 = vsel %vm3260, %v3255, %v2514
      %v3350 = vsel %vm3260, %v3257, %v2516
      %v3352 = vsel %vm3260, %v3259, %v2518
      %vm3353 = vcmask 64512
      %v3355 = vsel %vm3353, %v3262, %v2611
      %v3357 = vsel %vm3353, %v3264, %v2613
      %v3359 = vsel %vm3353, %v3266, %v2615
      %v3361 = vsel %vm3353, %v3268, %v2617
      %v3363 = vsel %vm3353, %v3270, %v2619
      %v3365 = vsel %vm3353, %v3272, %v2621
      %v3367 = vsel %vm3353, %v3274, %v2623
      %v3369 = vsel %vm3353, %v3276, %v2625
      %v3371 = vsel %vm3353, %v3278, %v2627
      %v3373 = vsel %vm3353, %v3280, %v2629
      %v3375 = vsel %vm3353, %v3282, %v2631
      %v3377 = vsel %vm3353, %v3284, %v2633
      %v3379 = vsel %vm3353, %v3286, %v2635
      %v3381 = vsel %vm3353, %v3288, %v2637
      %v3383 = vsel %vm3353, %v3290, %v2639
      %v3385 = vsel %vm3353, %v3292, %v2641
      %v3387 = vsel %vm3353, %v3294, %v2643
      %v3389 = vsel %vm3353, %v3296, %v2645
      %v3391 = vsel %vm3353, %v3298, %v2647
      %v3393 = vsel %vm3353, %v3300, %v2649
      %v3395 = vsel %vm3353, %v3302, %v2651
      %v3397 = vsel %vm3353, %v3304, %v2653
      %v3399 = vsel %vm3353, %v3306, %v2655
      %v3401 = vsel %vm3353, %v3308, %v2657
      %v3403 = vsel %vm3353, %v3310, %v2659
      %v3405 = vsel %vm3353, %v3312, %v2661
      %v3407 = vsel %vm3353, %v3314, %v2663
      %v3409 = vsel %vm3353, %v3316, %v2665
      %v3411 = vsel %vm3353, %v3318, %v2667
      %v3413 = vsel %vm3353, %v3320, %v2669
      %v3415 = vsel %vm3353, %v3322, %v2671
      %v3417 = vsel %vm3353, %v3324, %v2673
      %v3419 = vsel %vm3353, %v3326, %v2675
      %v3421 = vsel %vm3353, %v3328, %v2677
      %v3423 = vsel %vm3353, %v3330, %v2679
      %v3425 = vsel %vm3353, %v3332, %v2681
      %v3427 = vsel %vm3353, %v3334, %v2683
      %v3429 = vsel %vm3353, %v3336, %v2685
      %v3431 = vsel %vm3353, %v3338, %v2687
      %v3433 = vsel %vm3353, %v3340, %v2689
      %v3435 = vsel %vm3353, %v3342, %v2691
      %v3437 = vsel %vm3353, %v3344, %v2693
      %v3439 = vsel %vm3353, %v3346, %v2695
      %v3441 = vsel %vm3353, %v3348, %v2697
      %v3443 = vsel %vm3353, %v3350, %v2699
      %v3445 = vsel %vm3353, %v3352, %v2701
      %v3446 = vld [vmem:[%s1] sm:$0xf]
      %v3447 = vld [vmem:[%s1 + $0x4] sm:$0x1]
      %v3448 = vld [vmem:[%s2] sm:$0x1]
      %v3450 = vperm.slane %v3448, 0
      %v3454 = vunpack.c.l.b16 %v3446
      %v3455 = vunpack.c.l.b16 %v3447
      %v3456 = vpack.c.b16 %v3455, %v3454
      %vm3457 = vcmask 72704
      %v3458 = vsel %vm3457, %v3355, 0
      %v3460 = vsel %vm3457, %v3357, 0
      %v3462 = vsel %vm3457, %v3359, 0
      %v3464 = vsel %vm3457, %v3361, 0
      %v3466 = vsel %vm3457, %v3363, 0
      %v3468 = vsel %vm3457, %v3365, 0
      %v3470 = vsel %vm3457, %v3367, 0
      %v3472 = vsel %vm3457, %v3369, 0
      %v3474 = vsel %vm3457, %v3371, 0
      %v3476 = vsel %vm3457, %v3373, 0
      %v3478 = vsel %vm3457, %v3375, 0
      %v3480 = vsel %vm3457, %v3377, 0
      %v3482 = vsel %vm3457, %v3379, 0
      %v3484 = vsel %vm3457, %v3381, 0
      %v3486 = vsel %vm3457, %v3383, 0
      %v3488 = vsel %vm3457, %v3385, 0
      %v3490 = vsel %vm3457, %v3387, 0
      %v3492 = vsel %vm3457, %v3389, 0
      %v3494 = vsel %vm3457, %v3391, 0
      %v3496 = vsel %vm3457, %v3393, 0
      %v3498 = vsel %vm3457, %v3395, 0
      %v3500 = vsel %vm3457, %v3397, 0
      %v3502 = vsel %vm3457, %v3399, 0
      %v3504 = vsel %vm3457, %v3401, 0
      %v3506 = vsel %vm3457, %v3403, 0
      %v3508 = vsel %vm3457, %v3405, 0
      %v3510 = vsel %vm3457, %v3407, 0
      %v3512 = vsel %vm3457, %v3409, 0
      %v3514 = vsel %vm3457, %v3411, 0
      %v3516 = vsel %vm3457, %v3413, 0
      %v3518 = vsel %vm3457, %v3415, 0
      %v3520 = vsel %vm3457, %v3417, 0
      %v3522 = vsel %vm3457, %v3419, 0
      %v3524 = vsel %vm3457, %v3421, 0
      %v3526 = vsel %vm3457, %v3423, 0
      %v3528 = vsel %vm3457, %v3425, 0
      %v3530 = vsel %vm3457, %v3427, 0
      %v3532 = vsel %vm3457, %v3429, 0
      %v3534 = vsel %vm3457, %v3431, 0
      %v3536 = vsel %vm3457, %v3433, 0
      %v3538 = vsel %vm3457, %v3435, 0
      %v3540 = vsel %vm3457, %v3437, 0
      %v3542 = vsel %vm3457, %v3439, 0
      %v3544 = vsel %vm3457, %v3441, 0
      %v3546 = vsel %vm3457, %v3443, 0
      %v3548 = vsel %vm3457, %v3445, 0
      %vm3550 = vcmask 1043456
      %vm3551 = vcmask 1044480
      %v3552 = vsel %vm3550, 4294967295, 65535
      %v3553 = vsel %vm3551, %v3552, 0
      %v3555 = vand.u32 %v3456, %v3553
      %3557 = vmatpush.bf16.msra.mxu0 0
      %3558 = vmatpush.bf16.msra.mxu0 0
      %3559 = vmatpush.bf16.msra.mxu0 0
      %3560 = vmatpush.bf16.msra.mxu0 0
      %3561 = vmatpush.bf16.msra.mxu0 0
      %3562 = vmatpush.bf16.msra.mxu0 0
      %3563 = vmatpush.bf16.msra.mxu0 0
      %3564 = vmatpush.bf16.msra.mxu0 %v3555
      %3565 = vmatmul.bf16.gmra.mxu0 %v3458
      %v3566 = vpop.f32.mrf.mxu0
      %v3567 = vadd.f32 %v3450, %v3566
      %v3568 = vpop.f32.mrf.mxu0
      %v3569 = vadd.f32 %v3450, %v3568
      %3570 = vmatmul.bf16.gmra.mxu0 %v3460
      %v3571 = vpop.f32.mrf.mxu0
      %v3572 = vadd.f32 %v3450, %v3571
      %v3573 = vpop.f32.mrf.mxu0
      %v3574 = vadd.f32 %v3450, %v3573
      %3575 = vmatmul.bf16.gmra.mxu0 %v3462
      %v3576 = vpop.f32.mrf.mxu0
      %v3577 = vadd.f32 %v3450, %v3576
      %v3578 = vpop.f32.mrf.mxu0
      %v3579 = vadd.f32 %v3450, %v3578
      %3580 = vmatmul.bf16.gmra.mxu0 %v3464
      %v3581 = vpop.f32.mrf.mxu0
      %v3582 = vadd.f32 %v3450, %v3581
      %v3583 = vpop.f32.mrf.mxu0
      %v3584 = vadd.f32 %v3450, %v3583
      %3585 = vmatmul.bf16.gmra.mxu0 %v3466
      %v3586 = vpop.f32.mrf.mxu0
      %v3587 = vadd.f32 %v3450, %v3586
      %v3588 = vpop.f32.mrf.mxu0
      %v3589 = vadd.f32 %v3450, %v3588
      %3590 = vmatmul.bf16.gmra.mxu0 %v3468
      %v3591 = vpop.f32.mrf.mxu0
      %v3592 = vadd.f32 %v3450, %v3591
      %v3593 = vpop.f32.mrf.mxu0
      %v3594 = vadd.f32 %v3450, %v3593
      %3595 = vmatmul.bf16.gmra.mxu0 %v3470
      %v3596 = vpop.f32.mrf.mxu0
      %v3597 = vadd.f32 %v3450, %v3596
      %v3598 = vpop.f32.mrf.mxu0
      %v3599 = vadd.f32 %v3450, %v3598
      %3600 = vmatmul.bf16.gmra.mxu0 %v3472
      %v3601 = vpop.f32.mrf.mxu0
      %v3602 = vadd.f32 %v3450, %v3601
      %v3603 = vpop.f32.mrf.mxu0
      %v3604 = vadd.f32 %v3450, %v3603
      %3605 = vmatmul.bf16.gmra.mxu0 %v3474
      %v3606 = vpop.f32.mrf.mxu0
      %v3607 = vadd.f32 %v3450, %v3606
      %v3608 = vpop.f32.mrf.mxu0
      %v3609 = vadd.f32 %v3450, %v3608
      %3610 = vmatmul.bf16.gmra.mxu0 %v3476
      %v3611 = vpop.f32.mrf.mxu0
      %v3612 = vadd.f32 %v3450, %v3611
      %v3613 = vpop.f32.mrf.mxu0
      %v3614 = vadd.f32 %v3450, %v3613
      %3615 = vmatmul.bf16.gmra.mxu0 %v3478
      %v3616 = vpop.f32.mrf.mxu0
      %v3617 = vadd.f32 %v3450, %v3616
      %v3618 = vpop.f32.mrf.mxu0
      %v3619 = vadd.f32 %v3450, %v3618
      %3620 = vmatmul.bf16.gmra.mxu0 %v3480
      %v3621 = vpop.f32.mrf.mxu0
      %v3622 = vadd.f32 %v3450, %v3621
      %v3623 = vpop.f32.mrf.mxu0
      %v3624 = vadd.f32 %v3450, %v3623
      %3625 = vmatmul.bf16.gmra.mxu0 %v3482
      %v3626 = vpop.f32.mrf.mxu0
      %v3627 = vadd.f32 %v3450, %v3626
      %v3628 = vpop.f32.mrf.mxu0
      %v3629 = vadd.f32 %v3450, %v3628
      %3630 = vmatmul.bf16.gmra.mxu0 %v3484
      %v3631 = vpop.f32.mrf.mxu0
      %v3632 = vadd.f32 %v3450, %v3631
      %v3633 = vpop.f32.mrf.mxu0
      %v3634 = vadd.f32 %v3450, %v3633
      %3635 = vmatmul.bf16.gmra.mxu0 %v3486
      %v3636 = vpop.f32.mrf.mxu0
      %v3637 = vadd.f32 %v3450, %v3636
      %v3638 = vpop.f32.mrf.mxu0
      %v3639 = vadd.f32 %v3450, %v3638
      %3640 = vmatmul.bf16.gmra.mxu0 %v3488
      %v3641 = vpop.f32.mrf.mxu0
      %v3642 = vadd.f32 %v3450, %v3641
      %v3643 = vpop.f32.mrf.mxu0
      %v3644 = vadd.f32 %v3450, %v3643
      %3645 = vmatmul.bf16.gmra.mxu0 %v3490
      %v3646 = vpop.f32.mrf.mxu0
      %v3647 = vadd.f32 %v3450, %v3646
      %v3648 = vpop.f32.mrf.mxu0
      %v3649 = vadd.f32 %v3450, %v3648
      %3650 = vmatmul.bf16.gmra.mxu0 %v3492
      %v3651 = vpop.f32.mrf.mxu0
      %v3652 = vadd.f32 %v3450, %v3651
      %v3653 = vpop.f32.mrf.mxu0
      %v3654 = vadd.f32 %v3450, %v3653
      %3655 = vmatmul.bf16.gmra.mxu0 %v3494
      %v3656 = vpop.f32.mrf.mxu0
      %v3657 = vadd.f32 %v3450, %v3656
      %v3658 = vpop.f32.mrf.mxu0
      %v3659 = vadd.f32 %v3450, %v3658
      %3660 = vmatmul.bf16.gmra.mxu0 %v3496
      %v3661 = vpop.f32.mrf.mxu0
      %v3662 = vadd.f32 %v3450, %v3661
      %v3663 = vpop.f32.mrf.mxu0
      %v3664 = vadd.f32 %v3450, %v3663
      %3665 = vmatmul.bf16.gmra.mxu0 %v3498
      %v3666 = vpop.f32.mrf.mxu0
      %v3667 = vadd.f32 %v3450, %v3666
      %v3668 = vpop.f32.mrf.mxu0
      %v3669 = vadd.f32 %v3450, %v3668
      %3670 = vmatmul.bf16.gmra.mxu0 %v3500
      %v3671 = vpop.f32.mrf.mxu0
      %v3672 = vadd.f32 %v3450, %v3671
      %v3673 = vpop.f32.mrf.mxu0
      %v3674 = vadd.f32 %v3450, %v3673
      %3675 = vmatmul.bf16.gmra.mxu0 %v3502
      %v3676 = vpop.f32.mrf.mxu0
      %v3677 = vadd.f32 %v3450, %v3676
      %v3678 = vpop.f32.mrf.mxu0
      %v3679 = vadd.f32 %v3450, %v3678
      %3680 = vmatmul.bf16.gmra.mxu0 %v3504
      %v3681 = vpop.f32.mrf.mxu0
      %v3682 = vadd.f32 %v3450, %v3681
      %v3683 = vpop.f32.mrf.mxu0
      %v3684 = vadd.f32 %v3450, %v3683
      %3685 = vmatmul.bf16.gmra.mxu0 %v3506
      %v3686 = vpop.f32.mrf.mxu0
      %v3687 = vadd.f32 %v3450, %v3686
      %v3688 = vpop.f32.mrf.mxu0
      %v3689 = vadd.f32 %v3450, %v3688
      %3690 = vmatmul.bf16.gmra.mxu0 %v3508
      %v3691 = vpop.f32.mrf.mxu0
      %v3692 = vadd.f32 %v3450, %v3691
      %v3693 = vpop.f32.mrf.mxu0
      %v3694 = vadd.f32 %v3450, %v3693
      %3695 = vmatmul.bf16.gmra.mxu0 %v3510
      %v3696 = vpop.f32.mrf.mxu0
      %v3697 = vadd.f32 %v3450, %v3696
      %v3698 = vpop.f32.mrf.mxu0
      %v3699 = vadd.f32 %v3450, %v3698
      %3700 = vmatmul.bf16.gmra.mxu0 %v3512
      %v3701 = vpop.f32.mrf.mxu0
      %v3702 = vadd.f32 %v3450, %v3701
      %v3703 = vpop.f32.mrf.mxu0
      %v3704 = vadd.f32 %v3450, %v3703
      %3705 = vmatmul.bf16.gmra.mxu0 %v3514
      %v3706 = vpop.f32.mrf.mxu0
      %v3707 = vadd.f32 %v3450, %v3706
      %v3708 = vpop.f32.mrf.mxu0
      %v3709 = vadd.f32 %v3450, %v3708
      %3710 = vmatmul.bf16.gmra.mxu0 %v3516
      %v3711 = vpop.f32.mrf.mxu0
      %v3712 = vadd.f32 %v3450, %v3711
      %v3713 = vpop.f32.mrf.mxu0
      %v3714 = vadd.f32 %v3450, %v3713
      %3715 = vmatmul.bf16.gmra.mxu0 %v3518
      %v3716 = vpop.f32.mrf.mxu0
      %v3717 = vadd.f32 %v3450, %v3716
      %v3718 = vpop.f32.mrf.mxu0
      %v3719 = vadd.f32 %v3450, %v3718
      %3720 = vmatmul.bf16.gmra.mxu0 %v3520
      %v3721 = vpop.f32.mrf.mxu0
      %v3722 = vadd.f32 %v3450, %v3721
      %v3723 = vpop.f32.mrf.mxu0
      %v3724 = vadd.f32 %v3450, %v3723
      %3725 = vmatmul.bf16.gmra.mxu0 %v3522
      %v3726 = vpop.f32.mrf.mxu0
      %v3727 = vadd.f32 %v3450, %v3726
      %v3728 = vpop.f32.mrf.mxu0
      %v3729 = vadd.f32 %v3450, %v3728
      %3730 = vmatmul.bf16.gmra.mxu0 %v3524
      %v3731 = vpop.f32.mrf.mxu0
      %v3732 = vadd.f32 %v3450, %v3731
      %v3733 = vpop.f32.mrf.mxu0
      %v3734 = vadd.f32 %v3450, %v3733
      %3735 = vmatmul.bf16.gmra.mxu0 %v3526
      %v3736 = vpop.f32.mrf.mxu0
      %v3737 = vadd.f32 %v3450, %v3736
      %v3738 = vpop.f32.mrf.mxu0
      %v3739 = vadd.f32 %v3450, %v3738
      %3740 = vmatmul.bf16.gmra.mxu0 %v3528
      %v3741 = vpop.f32.mrf.mxu0
      %v3742 = vadd.f32 %v3450, %v3741
      %v3743 = vpop.f32.mrf.mxu0
      %v3744 = vadd.f32 %v3450, %v3743
      %3745 = vmatmul.bf16.gmra.mxu0 %v3530
      %v3746 = vpop.f32.mrf.mxu0
      %v3747 = vadd.f32 %v3450, %v3746
      %v3748 = vpop.f32.mrf.mxu0
      %v3749 = vadd.f32 %v3450, %v3748
      %3750 = vmatmul.bf16.gmra.mxu0 %v3532
      %v3751 = vpop.f32.mrf.mxu0
      %v3752 = vadd.f32 %v3450, %v3751
      %v3753 = vpop.f32.mrf.mxu0
      %v3754 = vadd.f32 %v3450, %v3753
      %3755 = vmatmul.bf16.gmra.mxu0 %v3534
      %v3756 = vpop.f32.mrf.mxu0
      %v3757 = vadd.f32 %v3450, %v3756
      %v3758 = vpop.f32.mrf.mxu0
      %v3759 = vadd.f32 %v3450, %v3758
      %3760 = vmatmul.bf16.gmra.mxu0 %v3536
      %v3761 = vpop.f32.mrf.mxu0
      %v3762 = vadd.f32 %v3450, %v3761
      %v3763 = vpop.f32.mrf.mxu0
      %v3764 = vadd.f32 %v3450, %v3763
      %3765 = vmatmul.bf16.gmra.mxu0 %v3538
      %v3766 = vpop.f32.mrf.mxu0
      %v3767 = vadd.f32 %v3450, %v3766
      %v3768 = vpop.f32.mrf.mxu0
      %v3769 = vadd.f32 %v3450, %v3768
      %3770 = vmatmul.bf16.gmra.mxu0 %v3540
      %v3771 = vpop.f32.mrf.mxu0
      %v3772 = vadd.f32 %v3450, %v3771
      %v3773 = vpop.f32.mrf.mxu0
      %v3774 = vadd.f32 %v3450, %v3773
      %3775 = vmatmul.bf16.gmra.mxu0 %v3542
      %v3776 = vpop.f32.mrf.mxu0
      %v3777 = vadd.f32 %v3450, %v3776
      %v3778 = vpop.f32.mrf.mxu0
      %v3779 = vadd.f32 %v3450, %v3778
      %3780 = vmatmul.bf16.gmra.mxu0 %v3544
      %v3781 = vpop.f32.mrf.mxu0
      %v3782 = vadd.f32 %v3450, %v3781
      %v3783 = vpop.f32.mrf.mxu0
      %v3784 = vadd.f32 %v3450, %v3783
      %3785 = vmatmul.bf16.gmra.mxu0 %v3546
      %v3786 = vpop.f32.mrf.mxu0
      %v3787 = vadd.f32 %v3450, %v3786
      %v3788 = vpop.f32.mrf.mxu0
      %v3789 = vadd.f32 %v3450, %v3788
      %3790 = vmatmul.bf16.gmra.mxu0 %v3548
      %v3791 = vpop.f32.mrf.mxu0
      %v3792 = vadd.f32 %v3450, %v3791
      %v3793 = vpop.f32.mrf.mxu0
      %3794 = vdwg.mxu0
      %v3795 = vmax.f32 %v3567, 0.0
      %v3796 = vmax.f32 %v3569, 0.0
      %v3797 = vmax.f32 %v3572, 0.0
      %v3798 = vmax.f32 %v3574, 0.0
      %v3799 = vmax.f32 %v3577, 0.0
      %v3800 = vmax.f32 %v3579, 0.0
      %v3801 = vmax.f32 %v3582, 0.0
      %v3802 = vmax.f32 %v3584, 0.0
      %v3803 = vmax.f32 %v3587, 0.0
      %v3804 = vmax.f32 %v3589, 0.0
      %v3805 = vmax.f32 %v3592, 0.0
      %v3806 = vmax.f32 %v3594, 0.0
      %v3807 = vmax.f32 %v3597, 0.0
      %v3808 = vmax.f32 %v3599, 0.0
      %v3809 = vmax.f32 %v3602, 0.0
      %v3810 = vmax.f32 %v3604, 0.0
      %v3811 = vmax.f32 %v3607, 0.0
      %v3812 = vmax.f32 %v3609, 0.0
      %v3813 = vmax.f32 %v3612, 0.0
      %v3814 = vmax.f32 %v3614, 0.0
      %v3815 = vmax.f32 %v3617, 0.0
      %v3816 = vmax.f32 %v3619, 0.0
      %v3817 = vmax.f32 %v3622, 0.0
      %v3818 = vmax.f32 %v3624, 0.0
      %v3819 = vmax.f32 %v3627, 0.0
      %v3820 = vmax.f32 %v3629, 0.0
      %v3821 = vmax.f32 %v3632, 0.0
      %v3822 = vmax.f32 %v3634, 0.0
      %v3823 = vmax.f32 %v3637, 0.0
      %v3824 = vmax.f32 %v3639, 0.0
      %v3825 = vmax.f32 %v3642, 0.0
      %v3826 = vmax.f32 %v3644, 0.0
      %v3827 = vmax.f32 %v3647, 0.0
      %v3828 = vmax.f32 %v3649, 0.0
      %v3829 = vmax.f32 %v3652, 0.0
      %v3830 = vmax.f32 %v3654, 0.0
      %v3831 = vmax.f32 %v3657, 0.0
      %v3832 = vmax.f32 %v3659, 0.0
      %v3833 = vmax.f32 %v3662, 0.0
      %v3834 = vmax.f32 %v3664, 0.0
      %v3835 = vmax.f32 %v3667, 0.0
      %v3836 = vmax.f32 %v3669, 0.0
      %v3837 = vmax.f32 %v3672, 0.0
      %v3838 = vmax.f32 %v3674, 0.0
      %v3839 = vmax.f32 %v3677, 0.0
      %v3840 = vmax.f32 %v3679, 0.0
      %v3841 = vmax.f32 %v3682, 0.0
      %v3842 = vmax.f32 %v3684, 0.0
      %v3843 = vmax.f32 %v3687, 0.0
      %v3844 = vmax.f32 %v3689, 0.0
      %v3845 = vmax.f32 %v3692, 0.0
      %v3846 = vmax.f32 %v3694, 0.0
      %v3847 = vmax.f32 %v3697, 0.0
      %v3848 = vmax.f32 %v3699, 0.0
      %v3849 = vmax.f32 %v3702, 0.0
      %v3850 = vmax.f32 %v3704, 0.0
      %v3851 = vmax.f32 %v3707, 0.0
      %v3852 = vmax.f32 %v3709, 0.0
      %v3853 = vmax.f32 %v3712, 0.0
      %v3854 = vmax.f32 %v3714, 0.0
      %v3855 = vmax.f32 %v3717, 0.0
      %v3856 = vmax.f32 %v3719, 0.0
      %v3857 = vmax.f32 %v3722, 0.0
      %v3858 = vmax.f32 %v3724, 0.0
      %v3859 = vmax.f32 %v3727, 0.0
      %v3860 = vmax.f32 %v3729, 0.0
      %v3861 = vmax.f32 %v3732, 0.0
      %v3862 = vmax.f32 %v3734, 0.0
      %v3863 = vmax.f32 %v3737, 0.0
      %v3864 = vmax.f32 %v3739, 0.0
      %v3865 = vmax.f32 %v3742, 0.0
      %v3866 = vmax.f32 %v3744, 0.0
      %v3867 = vmax.f32 %v3747, 0.0
      %v3868 = vmax.f32 %v3749, 0.0
      %v3869 = vmax.f32 %v3752, 0.0
      %v3870 = vmax.f32 %v3754, 0.0
      %v3871 = vmax.f32 %v3757, 0.0
      %v3872 = vmax.f32 %v3759, 0.0
      %v3873 = vmax.f32 %v3762, 0.0
      %v3874 = vmax.f32 %v3764, 0.0
      %v3875 = vmax.f32 %v3767, 0.0
      %v3876 = vmax.f32 %v3769, 0.0
      %v3877 = vmax.f32 %v3772, 0.0
      %v3878 = vmax.f32 %v3774, 0.0
      %v3879 = vmax.f32 %v3777, 0.0
      %v3880 = vmax.f32 %v3779, 0.0
      %v3881 = vmax.f32 %v3782, 0.0
      %v3882 = vmax.f32 %v3784, 0.0
      %v3883 = vmax.f32 %v3787, 0.0
      %v3884 = vmax.f32 %v3789, 0.0
      %v3885 = vmax.f32 %v3792, 0.0
      %v3886 = vpack.c.bf16 %v3795, %v3795
      %v3887 = vpack.c.bf16 %v3796, %v3796
      %v3888 = vpack.c.bf16 %v3797, %v3797
      %v3889 = vpack.c.bf16 %v3798, %v3798
      %v3890 = vpack.c.bf16 %v3799, %v3799
      %v3891 = vpack.c.bf16 %v3800, %v3800
      %v3892 = vpack.c.bf16 %v3801, %v3801
      %v3893 = vpack.c.bf16 %v3802, %v3802
      %v3894 = vpack.c.bf16 %v3803, %v3803
      %v3895 = vpack.c.bf16 %v3804, %v3804
      %v3896 = vpack.c.bf16 %v3805, %v3805
      %v3897 = vpack.c.bf16 %v3806, %v3806
      %v3898 = vpack.c.bf16 %v3807, %v3807
      %v3899 = vpack.c.bf16 %v3808, %v3808
      %v3900 = vpack.c.bf16 %v3809, %v3809
      %v3901 = vpack.c.bf16 %v3810, %v3810
      %v3902 = vpack.c.bf16 %v3811, %v3811
      %v3903 = vpack.c.bf16 %v3812, %v3812
      %v3904 = vpack.c.bf16 %v3813, %v3813
      %v3905 = vpack.c.bf16 %v3814, %v3814
      %v3906 = vpack.c.bf16 %v3815, %v3815
      %v3907 = vpack.c.bf16 %v3816, %v3816
      %v3908 = vpack.c.bf16 %v3817, %v3817
      %v3909 = vpack.c.bf16 %v3818, %v3818
      %v3910 = vpack.c.bf16 %v3819, %v3819
      %v3911 = vpack.c.bf16 %v3820, %v3820
      %v3912 = vpack.c.bf16 %v3821, %v3821
      %v3913 = vpack.c.bf16 %v3822, %v3822
      %v3914 = vpack.c.bf16 %v3823, %v3823
      %v3915 = vpack.c.bf16 %v3824, %v3824
      %v3916 = vpack.c.bf16 %v3825, %v3825
      %v3917 = vpack.c.bf16 %v3826, %v3826
      %v3918 = vpack.c.bf16 %v3827, %v3827
      %v3919 = vpack.c.bf16 %v3828, %v3828
      %v3920 = vpack.c.bf16 %v3829, %v3829
      %v3921 = vpack.c.bf16 %v3830, %v3830
      %v3922 = vpack.c.bf16 %v3831, %v3831
      %v3923 = vpack.c.bf16 %v3832, %v3832
      %v3924 = vpack.c.bf16 %v3833, %v3833
      %v3925 = vpack.c.bf16 %v3834, %v3834
      %v3926 = vpack.c.bf16 %v3835, %v3835
      %v3927 = vpack.c.bf16 %v3836, %v3836
      %v3928 = vpack.c.bf16 %v3837, %v3837
      %v3929 = vpack.c.bf16 %v3838, %v3838
      %v3930 = vpack.c.bf16 %v3839, %v3839
      %v3931 = vpack.c.bf16 %v3840, %v3840
      %v3932 = vpack.c.bf16 %v3841, %v3841
      %v3933 = vpack.c.bf16 %v3842, %v3842
      %v3934 = vpack.c.bf16 %v3843, %v3843
      %v3935 = vpack.c.bf16 %v3844, %v3844
      %v3936 = vpack.c.bf16 %v3845, %v3845
      %v3937 = vpack.c.bf16 %v3846, %v3846
      %v3938 = vpack.c.bf16 %v3847, %v3847
      %v3939 = vpack.c.bf16 %v3848, %v3848
      %v3940 = vpack.c.bf16 %v3849, %v3849
      %v3941 = vpack.c.bf16 %v3850, %v3850
      %v3942 = vpack.c.bf16 %v3851, %v3851
      %v3943 = vpack.c.bf16 %v3852, %v3852
      %v3944 = vpack.c.bf16 %v3853, %v3853
      %v3945 = vpack.c.bf16 %v3854, %v3854
      %v3946 = vpack.c.bf16 %v3855, %v3855
      %v3947 = vpack.c.bf16 %v3856, %v3856
      %v3948 = vpack.c.bf16 %v3857, %v3857
      %v3949 = vpack.c.bf16 %v3858, %v3858
      %v3950 = vpack.c.bf16 %v3859, %v3859
      %v3951 = vpack.c.bf16 %v3860, %v3860
      %v3952 = vpack.c.bf16 %v3861, %v3861
      %v3953 = vpack.c.bf16 %v3862, %v3862
      %v3954 = vpack.c.bf16 %v3863, %v3863
      %v3955 = vpack.c.bf16 %v3864, %v3864
      %v3956 = vpack.c.bf16 %v3865, %v3865
      %v3957 = vpack.c.bf16 %v3866, %v3866
      %v3958 = vpack.c.bf16 %v3867, %v3867
      %v3959 = vpack.c.bf16 %v3868, %v3868
      %v3960 = vpack.c.bf16 %v3869, %v3869
      %v3961 = vpack.c.bf16 %v3870, %v3870
      %v3962 = vpack.c.bf16 %v3871, %v3871
      %v3963 = vpack.c.bf16 %v3872, %v3872
      %v3964 = vpack.c.bf16 %v3873, %v3873
      %v3965 = vpack.c.bf16 %v3874, %v3874
      %v3966 = vpack.c.bf16 %v3875, %v3875
      %v3967 = vpack.c.bf16 %v3876, %v3876
      %v3968 = vpack.c.bf16 %v3877, %v3877
      %v3969 = vpack.c.bf16 %v3878, %v3878
      %v3970 = vpack.c.bf16 %v3879, %v3879
      %v3971 = vpack.c.bf16 %v3880, %v3880
      %v3972 = vpack.c.bf16 %v3881, %v3881
      %v3973 = vpack.c.bf16 %v3882, %v3882
      %v3974 = vpack.c.bf16 %v3883, %v3883
      %v3975 = vpack.c.bf16 %v3884, %v3884
      %v3976 = vpack.c.bf16 %v3885, %v3885
      %v4061 = vunpack.c.l.b16 %v3886
      %v4062 = vunpack.c.l.b16 %v3887
      %v4063 = vunpack.c.l.b16 %v3888
      %v4064 = vunpack.c.l.b16 %v3889
      %v4065 = vunpack.c.l.b16 %v3890
      %v4066 = vunpack.c.l.b16 %v3891
      %v4067 = vunpack.c.l.b16 %v3892
      %v4068 = vunpack.c.l.b16 %v3893
      %v4069 = vunpack.c.l.b16 %v3894
      %v4070 = vunpack.c.l.b16 %v3895
      %v4071 = vunpack.c.l.b16 %v3896
      %v4072 = vunpack.c.l.b16 %v3897
      %v4073 = vunpack.c.l.b16 %v3898
      %v4074 = vunpack.c.l.b16 %v3899
      %v4075 = vunpack.c.l.b16 %v3900
      %v4076 = vunpack.c.l.b16 %v3901
      %v4077 = vunpack.c.l.b16 %v3902
      %v4078 = vunpack.c.l.b16 %v3903
      %v4079 = vunpack.c.l.b16 %v3904
      %v4080 = vunpack.c.l.b16 %v3905
      %v4081 = vunpack.c.l.b16 %v3906
      %v4082 = vunpack.c.l.b16 %v3907
      %v4083 = vunpack.c.l.b16 %v3908
      %v4084 = vunpack.c.l.b16 %v3909
      %v4085 = vunpack.c.l.b16 %v3910
      %v4086 = vunpack.c.l.b16 %v3911
      %v4087 = vunpack.c.l.b16 %v3912
      %v4088 = vunpack.c.l.b16 %v3913
      %v4089 = vunpack.c.l.b16 %v3914
      %v4090 = vunpack.c.l.b16 %v3915
      %v4091 = vunpack.c.l.b16 %v3916
      %v4092 = vunpack.c.l.b16 %v3917
      %v4093 = vunpack.c.l.b16 %v3918
      %v4094 = vunpack.c.l.b16 %v3919
      %v4095 = vunpack.c.l.b16 %v3920
      %v4096 = vunpack.c.l.b16 %v3921
      %v4097 = vunpack.c.l.b16 %v3922
      %v4098 = vunpack.c.l.b16 %v3923
      %v4099 = vunpack.c.l.b16 %v3924
      %v4100 = vunpack.c.l.b16 %v3925
      %v4101 = vunpack.c.l.b16 %v3926
      %v4102 = vunpack.c.l.b16 %v3927
      %v4103 = vunpack.c.l.b16 %v3928
      %v4104 = vunpack.c.l.b16 %v3929
      %v4105 = vunpack.c.l.b16 %v3930
      %v4106 = vunpack.c.l.b16 %v3931
      %v4107 = vunpack.c.l.b16 %v3932
      %v4108 = vunpack.c.l.b16 %v3933
      %v4109 = vunpack.c.l.b16 %v3934
      %v4110 = vunpack.c.l.b16 %v3935
      %v4111 = vunpack.c.l.b16 %v3936
      %v4112 = vunpack.c.l.b16 %v3937
      %v4113 = vunpack.c.l.b16 %v3938
      %v4114 = vunpack.c.l.b16 %v3939
      %v4115 = vunpack.c.l.b16 %v3940
      %v4116 = vunpack.c.l.b16 %v3941
      %v4117 = vunpack.c.l.b16 %v3942
      %v4118 = vunpack.c.l.b16 %v3943
      %v4119 = vunpack.c.l.b16 %v3944
      %v4120 = vunpack.c.l.b16 %v3945
      %v4121 = vunpack.c.l.b16 %v3946
      %v4122 = vunpack.c.l.b16 %v3947
      %v4123 = vunpack.c.l.b16 %v3948
      %v4124 = vunpack.c.l.b16 %v3949
      %v4125 = vunpack.c.l.b16 %v3950
      %v4126 = vunpack.c.l.b16 %v3951
      %v4127 = vunpack.c.l.b16 %v3952
      %v4128 = vunpack.c.l.b16 %v3953
      %v4129 = vunpack.c.l.b16 %v3954
      %v4130 = vunpack.c.l.b16 %v3955
      %v4131 = vunpack.c.l.b16 %v3956
      %v4132 = vunpack.c.l.b16 %v3957
      %v4133 = vunpack.c.l.b16 %v3958
      %v4134 = vunpack.c.l.b16 %v3959
      %v4135 = vunpack.c.l.b16 %v3960
      %v4136 = vunpack.c.l.b16 %v3961
      %v4137 = vunpack.c.l.b16 %v3962
      %v4138 = vunpack.c.l.b16 %v3963
      %v4139 = vunpack.c.l.b16 %v3964
      %v4140 = vunpack.c.l.b16 %v3965
      %v4141 = vunpack.c.l.b16 %v3966
      %v4142 = vunpack.c.l.b16 %v3967
      %v4143 = vunpack.c.l.b16 %v3968
      %v4144 = vunpack.c.l.b16 %v3969
      %v4145 = vpack.c.b16 %v4062, %v4061
      %v4146 = vpack.c.b16 %v4064, %v4063
      %v4147 = vpack.c.b16 %v4066, %v4065
      %v4148 = vpack.c.b16 %v4068, %v4067
      %v4149 = vpack.c.b16 %v4070, %v4069
      %v4150 = vpack.c.b16 %v4072, %v4071
      %v4151 = vpack.c.b16 %v4074, %v4073
      %v4152 = vpack.c.b16 %v4076, %v4075
      %v4153 = vpack.c.b16 %v4078, %v4077
      %v4154 = vpack.c.b16 %v4080, %v4079
      %v4155 = vpack.c.b16 %v4082, %v4081
      %v4156 = vpack.c.b16 %v4084, %v4083
      %v4157 = vpack.c.b16 %v4086, %v4085
      %v4158 = vpack.c.b16 %v4088, %v4087
      %v4159 = vpack.c.b16 %v4090, %v4089
      %v4160 = vpack.c.b16 %v4092, %v4091
      %v4161 = vpack.c.b16 %v4094, %v4093
      %v4162 = vpack.c.b16 %v4096, %v4095
      %v4163 = vpack.c.b16 %v4098, %v4097
      %v4164 = vpack.c.b16 %v4100, %v4099
      %v4165 = vpack.c.b16 %v4102, %v4101
      %v4166 = vpack.c.b16 %v4104, %v4103
      %v4167 = vpack.c.b16 %v4106, %v4105
      %v4168 = vpack.c.b16 %v4108, %v4107
      %v4169 = vpack.c.b16 %v4110, %v4109
      %v4170 = vpack.c.b16 %v4112, %v4111
      %v4171 = vpack.c.b16 %v4114, %v4113
      %v4172 = vpack.c.b16 %v4116, %v4115
      %v4173 = vpack.c.b16 %v4118, %v4117
      %v4174 = vpack.c.b16 %v4120, %v4119
      %v4175 = vpack.c.b16 %v4122, %v4121
      %v4176 = vpack.c.b16 %v4124, %v4123
      %v4177 = vpack.c.b16 %v4126, %v4125
      %v4178 = vpack.c.b16 %v4128, %v4127
      %v4179 = vpack.c.b16 %v4130, %v4129
      %v4180 = vpack.c.b16 %v4132, %v4131
      %v4181 = vpack.c.b16 %v4134, %v4133
      %v4182 = vpack.c.b16 %v4136, %v4135
      %v4183 = vpack.c.b16 %v4138, %v4137
      %v4184 = vpack.c.b16 %v4140, %v4139
      %v4185 = vpack.c.b16 %v4142, %v4141
      %v4186 = vpack.c.b16 %v4144, %v4143
      %v4188 = vshrl.u32 %v4145, 16
      %v4190 = vshll.u32 %v4145, 16
      %v4192 = vrot.slane %v4190, 1
      %v4193 = vor.u32 %v4188, %v4192
      %v4195 = vshll.u32 %v4146, 16
      %v4197 = vrot.slane %v4195, 1
      %v4198 = vsel %vm608, %v4193, %v4197
      %v4199 = vshrl.u32 %v4146, 16
      %v4201 = vor.u32 %v4199, %v4197
      %v4203 = vshll.u32 %v4147, 16
      %v4205 = vrot.slane %v4203, 1
      %v4206 = vsel %vm608, %v4201, %v4205
      %v4207 = vshrl.u32 %v4147, 16
      %v4209 = vor.u32 %v4207, %v4205
      %v4211 = vshll.u32 %v4148, 16
      %v4213 = vrot.slane %v4211, 1
      %v4214 = vsel %vm608, %v4209, %v4213
      %v4215 = vshrl.u32 %v4148, 16
      %v4217 = vor.u32 %v4215, %v4213
      %v4219 = vshll.u32 %v4149, 16
      %v4221 = vrot.slane %v4219, 1
      %v4222 = vsel %vm608, %v4217, %v4221
      %v4223 = vshrl.u32 %v4149, 16
      %v4225 = vor.u32 %v4223, %v4221
      %v4227 = vshll.u32 %v4150, 16
      %v4229 = vrot.slane %v4227, 1
      %v4230 = vsel %vm608, %v4225, %v4229
      %v4231 = vshrl.u32 %v4150, 16
      %v4233 = vor.u32 %v4231, %v4229
      %v4235 = vshll.u32 %v4151, 16
      %v4237 = vrot.slane %v4235, 1
      %v4238 = vsel %vm608, %v4233, %v4237
      %v4239 = vshrl.u32 %v4151, 16
      %v4241 = vor.u32 %v4239, %v4237
      %v4243 = vshll.u32 %v4152, 16
      %v4245 = vrot.slane %v4243, 1
      %v4246 = vsel %vm608, %v4241, %v4245
      %v4247 = vshrl.u32 %v4152, 16
      %v4249 = vor.u32 %v4247, %v4245
      %v4251 = vshll.u32 %v4153, 16
      %v4253 = vrot.slane %v4251, 1
      %v4254 = vsel %vm608, %v4249, %v4253
      %v4255 = vshrl.u32 %v4153, 16
      %v4257 = vor.u32 %v4255, %v4253
      %v4259 = vshll.u32 %v4154, 16
      %v4261 = vrot.slane %v4259, 1
      %v4262 = vsel %vm608, %v4257, %v4261
      %v4263 = vshrl.u32 %v4154, 16
      %v4265 = vor.u32 %v4263, %v4261
      %v4267 = vshll.u32 %v4155, 16
      %v4269 = vrot.slane %v4267, 1
      %v4270 = vsel %vm608, %v4265, %v4269
      %v4271 = vshrl.u32 %v4155, 16
      %v4273 = vor.u32 %v4271, %v4269
      %v4275 = vshll.u32 %v4156, 16
      %v4277 = vrot.slane %v4275, 1
      %v4278 = vsel %vm608, %v4273, %v4277
      %v4279 = vshrl.u32 %v4156, 16
      %v4281 = vor.u32 %v4279, %v4277
      %v4283 = vshll.u32 %v4157, 16
      %v4285 = vrot.slane %v4283, 1
      %v4286 = vsel %vm608, %v4281, %v4285
      %v4287 = vshrl.u32 %v4157, 16
      %v4289 = vor.u32 %v4287, %v4285
      %v4291 = vshll.u32 %v4158, 16
      %v4293 = vrot.slane %v4291, 1
      %v4294 = vsel %vm608, %v4289, %v4293
      %v4295 = vshrl.u32 %v4158, 16
      %v4297 = vor.u32 %v4295, %v4293
      %v4299 = vshll.u32 %v4159, 16
      %v4301 = vrot.slane %v4299, 1
      %v4302 = vsel %vm608, %v4297, %v4301
      %v4303 = vshrl.u32 %v4159, 16
      %v4305 = vor.u32 %v4303, %v4301
      %v4307 = vshll.u32 %v4160, 16
      %v4309 = vrot.slane %v4307, 1
      %v4310 = vsel %vm608, %v4305, %v4309
      %v4311 = vshrl.u32 %v4160, 16
      %v4313 = vor.u32 %v4311, %v4309
      %v4315 = vshll.u32 %v4161, 16
      %v4317 = vrot.slane %v4315, 1
      %v4318 = vsel %vm608, %v4313, %v4317
      %v4319 = vshrl.u32 %v4161, 16
      %v4321 = vor.u32 %v4319, %v4317
      %v4323 = vshll.u32 %v4162, 16
      %v4325 = vrot.slane %v4323, 1
      %v4326 = vsel %vm608, %v4321, %v4325
      %v4327 = vshrl.u32 %v4162, 16
      %v4329 = vor.u32 %v4327, %v4325
      %v4331 = vshll.u32 %v4163, 16
      %v4333 = vrot.slane %v4331, 1
      %v4334 = vsel %vm608, %v4329, %v4333
      %v4335 = vshrl.u32 %v4163, 16
      %v4337 = vor.u32 %v4335, %v4333
      %v4339 = vshll.u32 %v4164, 16
      %v4341 = vrot.slane %v4339, 1
      %v4342 = vsel %vm608, %v4337, %v4341
      %v4343 = vshrl.u32 %v4164, 16
      %v4345 = vor.u32 %v4343, %v4341
      %v4347 = vshll.u32 %v4165, 16
      %v4349 = vrot.slane %v4347, 1
      %v4350 = vsel %vm608, %v4345, %v4349
      %v4351 = vshrl.u32 %v4165, 16
      %v4353 = vor.u32 %v4351, %v4349
      %v4355 = vshll.u32 %v4166, 16
      %v4357 = vrot.slane %v4355, 1
      %v4358 = vsel %vm608, %v4353, %v4357
      %v4359 = vshrl.u32 %v4166, 16
      %v4361 = vor.u32 %v4359, %v4357
      %v4363 = vshll.u32 %v4167, 16
      %v4365 = vrot.slane %v4363, 1
      %v4366 = vsel %vm608, %v4361, %v4365
      %v4367 = vshrl.u32 %v4167, 16
      %v4369 = vor.u32 %v4367, %v4365
      %v4371 = vshll.u32 %v4168, 16
      %v4373 = vrot.slane %v4371, 1
      %v4374 = vsel %vm608, %v4369, %v4373
      %v4375 = vshrl.u32 %v4168, 16
      %v4377 = vor.u32 %v4375, %v4373
      %v4379 = vshll.u32 %v4169, 16
      %v4381 = vrot.slane %v4379, 1
      %v4382 = vsel %vm608, %v4377, %v4381
      %v4383 = vshrl.u32 %v4169, 16
      %v4385 = vor.u32 %v4383, %v4381
      %v4387 = vshll.u32 %v4170, 16
      %v4389 = vrot.slane %v4387, 1
      %v4390 = vsel %vm608, %v4385, %v4389
      %v4391 = vshrl.u32 %v4170, 16
      %v4393 = vor.u32 %v4391, %v4389
      %v4395 = vshll.u32 %v4171, 16
      %v4397 = vrot.slane %v4395, 1
      %v4398 = vsel %vm608, %v4393, %v4397
      %v4399 = vshrl.u32 %v4171, 16
      %v4401 = vor.u32 %v4399, %v4397
      %v4403 = vshll.u32 %v4172, 16
      %v4405 = vrot.slane %v4403, 1
      %v4406 = vsel %vm608, %v4401, %v4405
      %v4407 = vshrl.u32 %v4172, 16
      %v4409 = vor.u32 %v4407, %v4405
      %v4411 = vshll.u32 %v4173, 16
      %v4413 = vrot.slane %v4411, 1
      %v4414 = vsel %vm608, %v4409, %v4413
      %v4415 = vshrl.u32 %v4173, 16
      %v4417 = vor.u32 %v4415, %v4413
      %v4419 = vshll.u32 %v4174, 16
      %v4421 = vrot.slane %v4419, 1
      %v4422 = vsel %vm608, %v4417, %v4421
      %v4423 = vshrl.u32 %v4174, 16
      %v4425 = vor.u32 %v4423, %v4421
      %v4427 = vshll.u32 %v4175, 16
      %v4429 = vrot.slane %v4427, 1
      %v4430 = vsel %vm608, %v4425, %v4429
      %v4431 = vshrl.u32 %v4175, 16
      %v4433 = vor.u32 %v4431, %v4429
      %v4435 = vshll.u32 %v4176, 16
      %v4437 = vrot.slane %v4435, 1
      %v4438 = vsel %vm608, %v4433, %v4437
      %v4439 = vshrl.u32 %v4176, 16
      %v4441 = vor.u32 %v4439, %v4437
      %v4443 = vshll.u32 %v4177, 16
      %v4445 = vrot.slane %v4443, 1
      %v4446 = vsel %vm608, %v4441, %v4445
      %v4447 = vshrl.u32 %v4177, 16
      %v4449 = vor.u32 %v4447, %v4445
      %v4451 = vshll.u32 %v4178, 16
      %v4453 = vrot.slane %v4451, 1
      %v4454 = vsel %vm608, %v4449, %v4453
      %v4455 = vshrl.u32 %v4178, 16
      %v4457 = vor.u32 %v4455, %v4453
      %v4459 = vshll.u32 %v4179, 16
      %v4461 = vrot.slane %v4459, 1
      %v4462 = vsel %vm608, %v4457, %v4461
      %v4463 = vshrl.u32 %v4179, 16
      %v4465 = vor.u32 %v4463, %v4461
      %v4467 = vshll.u32 %v4180, 16
      %v4469 = vrot.slane %v4467, 1
      %v4470 = vsel %vm608, %v4465, %v4469
      %v4471 = vshrl.u32 %v4180, 16
      %v4473 = vor.u32 %v4471, %v4469
      %v4475 = vshll.u32 %v4181, 16
      %v4477 = vrot.slane %v4475, 1
      %v4478 = vsel %vm608, %v4473, %v4477
      %v4479 = vshrl.u32 %v4181, 16
      %v4481 = vor.u32 %v4479, %v4477
      %v4483 = vshll.u32 %v4182, 16
      %v4485 = vrot.slane %v4483, 1
      %v4486 = vsel %vm608, %v4481, %v4485
      %v4487 = vshrl.u32 %v4182, 16
      %v4489 = vor.u32 %v4487, %v4485
      %v4491 = vshll.u32 %v4183, 16
      %v4493 = vrot.slane %v4491, 1
      %v4494 = vsel %vm608, %v4489, %v4493
      %v4495 = vshrl.u32 %v4183, 16
      %v4497 = vor.u32 %v4495, %v4493
      %v4499 = vshll.u32 %v4184, 16
      %v4501 = vrot.slane %v4499, 1
      %v4502 = vsel %vm608, %v4497, %v4501
      %v4503 = vshrl.u32 %v4184, 16
      %v4505 = vor.u32 %v4503, %v4501
      %v4507 = vshll.u32 %v4185, 16
      %v4509 = vrot.slane %v4507, 1
      %v4510 = vsel %vm608, %v4505, %v4509
      %v4511 = vshrl.u32 %v4185, 16
      %v4513 = vor.u32 %v4511, %v4509
      %v4515 = vshll.u32 %v4186, 16
      %v4517 = vrot.slane %v4515, 1
      %v4518 = vsel %vm608, %v4513, %v4517
      %v4519 = vshrl.u32 %v4186, 16
      %v4521 = vor.u32 %v4519, %v4517
      %4522 = vrot.lane.b32.xlu0 %v4198, 8
      %v4523 = vpop.permute.xlu0 %4522
      %4524 = vrot.lane.b32.xlu0 %v4206, 8
      %v4525 = vpop.permute.xlu0 %4524
      %4526 = vrot.lane.b32.xlu0 %v4214, 8
      %v4527 = vpop.permute.xlu0 %4526
      %4528 = vrot.lane.b32.xlu0 %v4222, 8
      %v4529 = vpop.permute.xlu0 %4528
      %4530 = vrot.lane.b32.xlu0 %v4230, 8
      %v4531 = vpop.permute.xlu0 %4530
      %4532 = vrot.lane.b32.xlu0 %v4238, 8
      %v4533 = vpop.permute.xlu0 %4532
      %4534 = vrot.lane.b32.xlu0 %v4246, 8
      %v4535 = vpop.permute.xlu0 %4534
      %4536 = vrot.lane.b32.xlu0 %v4254, 8
      %v4537 = vpop.permute.xlu0 %4536
      %4538 = vrot.lane.b32.xlu0 %v4262, 8
      %v4539 = vpop.permute.xlu0 %4538
      %4540 = vrot.lane.b32.xlu0 %v4270, 8
      %v4541 = vpop.permute.xlu0 %4540
      %4542 = vrot.lane.b32.xlu0 %v4278, 8
      %v4543 = vpop.permute.xlu0 %4542
      %4544 = vrot.lane.b32.xlu0 %v4286, 8
      %v4545 = vpop.permute.xlu0 %4544
      %4546 = vrot.lane.b32.xlu0 %v4294, 8
      %v4547 = vpop.permute.xlu0 %4546
      %4548 = vrot.lane.b32.xlu0 %v4302, 8
      %v4549 = vpop.permute.xlu0 %4548
      %4550 = vrot.lane.b32.xlu0 %v4310, 8
      %v4551 = vpop.permute.xlu0 %4550
      %4552 = vrot.lane.b32.xlu0 %v4318, 8
      %v4553 = vpop.permute.xlu0 %4552
      %4554 = vrot.lane.b32.xlu0 %v4326, 8
      %v4555 = vpop.permute.xlu0 %4554
      %4556 = vrot.lane.b32.xlu0 %v4334, 8
      %v4557 = vpop.permute.xlu0 %4556
      %4558 = vrot.lane.b32.xlu0 %v4342, 8
      %v4559 = vpop.permute.xlu0 %4558
      %4560 = vrot.lane.b32.xlu0 %v4350, 8
      %v4561 = vpop.permute.xlu0 %4560
      %4562 = vrot.lane.b32.xlu0 %v4358, 8
      %v4563 = vpop.permute.xlu0 %4562
      %4564 = vrot.lane.b32.xlu0 %v4366, 8
      %v4565 = vpop.permute.xlu0 %4564
      %4566 = vrot.lane.b32.xlu0 %v4374, 8
      %v4567 = vpop.permute.xlu0 %4566
      %4568 = vrot.lane.b32.xlu0 %v4382, 8
      %v4569 = vpop.permute.xlu0 %4568
      %4570 = vrot.lane.b32.xlu0 %v4390, 8
      %v4571 = vpop.permute.xlu0 %4570
      %4572 = vrot.lane.b32.xlu0 %v4398, 8
      %v4573 = vpop.permute.xlu0 %4572
      %4574 = vrot.lane.b32.xlu0 %v4406, 8
      %v4575 = vpop.permute.xlu0 %4574
      %4576 = vrot.lane.b32.xlu0 %v4414, 8
      %v4577 = vpop.permute.xlu0 %4576
      %4578 = vrot.lane.b32.xlu0 %v4422, 8
      %v4579 = vpop.permute.xlu0 %4578
      %4580 = vrot.lane.b32.xlu0 %v4430, 8
      %v4581 = vpop.permute.xlu0 %4580
      %4582 = vrot.lane.b32.xlu0 %v4438, 8
      %v4583 = vpop.permute.xlu0 %4582
      %4584 = vrot.lane.b32.xlu0 %v4446, 8
      %v4585 = vpop.permute.xlu0 %4584
      %4586 = vrot.lane.b32.xlu0 %v4454, 8
      %v4587 = vpop.permute.xlu0 %4586
      %4588 = vrot.lane.b32.xlu0 %v4462, 8
      %v4589 = vpop.permute.xlu0 %4588
      %4590 = vrot.lane.b32.xlu0 %v4470, 8
      %v4591 = vpop.permute.xlu0 %4590
      %4592 = vrot.lane.b32.xlu0 %v4478, 8
      %v4593 = vpop.permute.xlu0 %4592
      %4594 = vrot.lane.b32.xlu0 %v4486, 8
      %v4595 = vpop.permute.xlu0 %4594
      %4596 = vrot.lane.b32.xlu0 %v4494, 8
      %v4597 = vpop.permute.xlu0 %4596
      %4598 = vrot.lane.b32.xlu0 %v4502, 8
      %v4599 = vpop.permute.xlu0 %4598
      %4600 = vrot.lane.b32.xlu0 %v4510, 8
      %v4601 = vpop.permute.xlu0 %4600
      %4602 = vrot.lane.b32.xlu0 %v4518, 8
      %v4603 = vpop.permute.xlu0 %4602
      %4604 = vrot.lane.b32.xlu0 %v4521, 8
      %v4605 = vpop.permute.xlu0 %4604
      %v4606 = vrot.slane %v4145, 1
      %v4607 = vrot.slane %v4146, 1
      %v4608 = vsel %vm1068, %v4606, %v4607
      %v4609 = vrot.slane %v4147, 1
      %v4610 = vsel %vm1068, %v4607, %v4609
      %v4611 = vrot.slane %v4148, 1
      %v4612 = vsel %vm1068, %v4609, %v4611
      %v4613 = vrot.slane %v4149, 1
      %v4614 = vsel %vm1068, %v4611, %v4613
      %v4615 = vrot.slane %v4150, 1
      %v4616 = vsel %vm1068, %v4613, %v4615
      %v4617 = vrot.slane %v4151, 1
      %v4618 = vsel %vm1068, %v4615, %v4617
      %v4619 = vrot.slane %v4152, 1
      %v4620 = vsel %vm1068, %v4617, %v4619
      %v4621 = vrot.slane %v4153, 1
      %v4622 = vsel %vm1068, %v4619, %v4621
      %v4623 = vrot.slane %v4154, 1
      %v4624 = vsel %vm1068, %v4621, %v4623
      %v4625 = vrot.slane %v4155, 1
      %v4626 = vsel %vm1068, %v4623, %v4625
      %v4627 = vrot.slane %v4156, 1
      %v4628 = vsel %vm1068, %v4625, %v4627
      %v4629 = vrot.slane %v4157, 1
      %v4630 = vsel %vm1068, %v4627, %v4629
      %v4631 = vrot.slane %v4158, 1
      %v4632 = vsel %vm1068, %v4629, %v4631
      %v4633 = vrot.slane %v4159, 1
      %v4634 = vsel %vm1068, %v4631, %v4633
      %v4635 = vrot.slane %v4160, 1
      %v4636 = vsel %vm1068, %v4633, %v4635
      %v4637 = vrot.slane %v4161, 1
      %v4638 = vsel %vm1068, %v4635, %v4637
      %v4639 = vrot.slane %v4162, 1
      %v4640 = vsel %vm1068, %v4637, %v4639
      %v4641 = vrot.slane %v4163, 1
      %v4642 = vsel %vm1068, %v4639, %v4641
      %v4643 = vrot.slane %v4164, 1
      %v4644 = vsel %vm1068, %v4641, %v4643
      %v4645 = vrot.slane %v4165, 1
      %v4646 = vsel %vm1068, %v4643, %v4645
      %v4647 = vrot.slane %v4166, 1
      %v4648 = vsel %vm1068, %v4645, %v4647
      %v4649 = vrot.slane %v4167, 1
      %v4650 = vsel %vm1068, %v4647, %v4649
      %v4651 = vrot.slane %v4168, 1
      %v4652 = vsel %vm1068, %v4649, %v4651
      %v4653 = vrot.slane %v4169, 1
      %v4654 = vsel %vm1068, %v4651, %v4653
      %v4655 = vrot.slane %v4170, 1
      %v4656 = vsel %vm1068, %v4653, %v4655
      %v4657 = vrot.slane %v4171, 1
      %v4658 = vsel %vm1068, %v4655, %v4657
      %v4659 = vrot.slane %v4172, 1
      %v4660 = vsel %vm1068, %v4657, %v4659
      %v4661 = vrot.slane %v4173, 1
      %v4662 = vsel %vm1068, %v4659, %v4661
      %v4663 = vrot.slane %v4174, 1
      %v4664 = vsel %vm1068, %v4661, %v4663
      %v4665 = vrot.slane %v4175, 1
      %v4666 = vsel %vm1068, %v4663, %v4665
      %v4667 = vrot.slane %v4176, 1
      %v4668 = vsel %vm1068, %v4665, %v4667
      %v4669 = vrot.slane %v4177, 1
      %v4670 = vsel %vm1068, %v4667, %v4669
      %v4671 = vrot.slane %v4178, 1
      %v4672 = vsel %vm1068, %v4669, %v4671
      %v4673 = vrot.slane %v4179, 1
      %v4674 = vsel %vm1068, %v4671, %v4673
      %v4675 = vrot.slane %v4180, 1
      %v4676 = vsel %vm1068, %v4673, %v4675
      %v4677 = vrot.slane %v4181, 1
      %v4678 = vsel %vm1068, %v4675, %v4677
      %v4679 = vrot.slane %v4182, 1
      %v4680 = vsel %vm1068, %v4677, %v4679
      %v4681 = vrot.slane %v4183, 1
      %v4682 = vsel %vm1068, %v4679, %v4681
      %v4683 = vrot.slane %v4184, 1
      %v4684 = vsel %vm1068, %v4681, %v4683
      %v4685 = vrot.slane %v4185, 1
      %v4686 = vsel %vm1068, %v4683, %v4685
      %v4687 = vrot.slane %v4186, 1
      %v4688 = vsel %vm1068, %v4685, %v4687
      %4689 = vrot.lane.b32.xlu0 %v4608, 16
      %v4690 = vpop.permute.xlu0 %4689
      %4691 = vrot.lane.b32.xlu0 %v4610, 16
      %v4692 = vpop.permute.xlu0 %4691
      %4693 = vrot.lane.b32.xlu0 %v4612, 16
      %v4694 = vpop.permute.xlu0 %4693
      %4695 = vrot.lane.b32.xlu0 %v4614, 16
      %v4696 = vpop.permute.xlu0 %4695
      %4697 = vrot.lane.b32.xlu0 %v4616, 16
      %v4698 = vpop.permute.xlu0 %4697
      %4699 = vrot.lane.b32.xlu0 %v4618, 16
      %v4700 = vpop.permute.xlu0 %4699
      %4701 = vrot.lane.b32.xlu0 %v4620, 16
      %v4702 = vpop.permute.xlu0 %4701
      %4703 = vrot.lane.b32.xlu0 %v4622, 16
      %v4704 = vpop.permute.xlu0 %4703
      %4705 = vrot.lane.b32.xlu0 %v4624, 16
      %v4706 = vpop.permute.xlu0 %4705
      %4707 = vrot.lane.b32.xlu0 %v4626, 16
      %v4708 = vpop.permute.xlu0 %4707
      %4709 = vrot.lane.b32.xlu0 %v4628, 16
      %v4710 = vpop.permute.xlu0 %4709
      %4711 = vrot.lane.b32.xlu0 %v4630, 16
      %v4712 = vpop.permute.xlu0 %4711
      %4713 = vrot.lane.b32.xlu0 %v4632, 16
      %v4714 = vpop.permute.xlu0 %4713
      %4715 = vrot.lane.b32.xlu0 %v4634, 16
      %v4716 = vpop.permute.xlu0 %4715
      %4717 = vrot.lane.b32.xlu0 %v4636, 16
      %v4718 = vpop.permute.xlu0 %4717
      %4719 = vrot.lane.b32.xlu0 %v4638, 16
      %v4720 = vpop.permute.xlu0 %4719
      %4721 = vrot.lane.b32.xlu0 %v4640, 16
      %v4722 = vpop.permute.xlu0 %4721
      %4723 = vrot.lane.b32.xlu0 %v4642, 16
      %v4724 = vpop.permute.xlu0 %4723
      %4725 = vrot.lane.b32.xlu0 %v4644, 16
      %v4726 = vpop.permute.xlu0 %4725
      %4727 = vrot.lane.b32.xlu0 %v4646, 16
      %v4728 = vpop.permute.xlu0 %4727
      %4729 = vrot.lane.b32.xlu0 %v4648, 16
      %v4730 = vpop.permute.xlu0 %4729
      %4731 = vrot.lane.b32.xlu0 %v4650, 16
      %v4732 = vpop.permute.xlu0 %4731
      %4733 = vrot.lane.b32.xlu0 %v4652, 16
      %v4734 = vpop.permute.xlu0 %4733
      %4735 = vrot.lane.b32.xlu0 %v4654, 16
      %v4736 = vpop.permute.xlu0 %4735
      %4737 = vrot.lane.b32.xlu0 %v4656, 16
      %v4738 = vpop.permute.xlu0 %4737
      %4739 = vrot.lane.b32.xlu0 %v4658, 16
      %v4740 = vpop.permute.xlu0 %4739
      %4741 = vrot.lane.b32.xlu0 %v4660, 16
      %v4742 = vpop.permute.xlu0 %4741
      %4743 = vrot.lane.b32.xlu0 %v4662, 16
      %v4744 = vpop.permute.xlu0 %4743
      %4745 = vrot.lane.b32.xlu0 %v4664, 16
      %v4746 = vpop.permute.xlu0 %4745
      %4747 = vrot.lane.b32.xlu0 %v4666, 16
      %v4748 = vpop.permute.xlu0 %4747
      %4749 = vrot.lane.b32.xlu0 %v4668, 16
      %v4750 = vpop.permute.xlu0 %4749
      %4751 = vrot.lane.b32.xlu0 %v4670, 16
      %v4752 = vpop.permute.xlu0 %4751
      %4753 = vrot.lane.b32.xlu0 %v4672, 16
      %v4754 = vpop.permute.xlu0 %4753
      %4755 = vrot.lane.b32.xlu0 %v4674, 16
      %v4756 = vpop.permute.xlu0 %4755
      %4757 = vrot.lane.b32.xlu0 %v4676, 16
      %v4758 = vpop.permute.xlu0 %4757
      %4759 = vrot.lane.b32.xlu0 %v4678, 16
      %v4760 = vpop.permute.xlu0 %4759
      %4761 = vrot.lane.b32.xlu0 %v4680, 16
      %v4762 = vpop.permute.xlu0 %4761
      %4763 = vrot.lane.b32.xlu0 %v4682, 16
      %v4764 = vpop.permute.xlu0 %4763
      %4765 = vrot.lane.b32.xlu0 %v4684, 16
      %v4766 = vpop.permute.xlu0 %4765
      %4767 = vrot.lane.b32.xlu0 %v4686, 16
      %v4768 = vpop.permute.xlu0 %4767
      %4769 = vrot.lane.b32.xlu0 %v4688, 16
      %v4770 = vpop.permute.xlu0 %4769
      %4771 = vrot.lane.b32.xlu0 %v4687, 16
      %v4772 = vpop.permute.xlu0 %4771
      %v4776 = vunpack.c.l.b16 %v3970
      %v4777 = vunpack.c.l.b16 %v3971
      %v4778 = vunpack.c.l.b16 %v3972
      %v4779 = vpack.c.b16 %v4065, %v4064
      %v4780 = vpack.c.b16 %v4067, %v4066
      %v4781 = vpack.c.b16 %v4069, %v4068
      %v4782 = vpack.c.b16 %v4071, %v4070
      %v4783 = vpack.c.b16 %v4073, %v4072
      %v4784 = vpack.c.b16 %v4075, %v4074
      %v4785 = vpack.c.b16 %v4077, %v4076
      %v4786 = vpack.c.b16 %v4079, %v4078
      %v4787 = vpack.c.b16 %v4081, %v4080
      %v4788 = vpack.c.b16 %v4083, %v4082
      %v4789 = vpack.c.b16 %v4085, %v4084
      %v4790 = vpack.c.b16 %v4087, %v4086
      %v4791 = vpack.c.b16 %v4089, %v4088
      %v4792 = vpack.c.b16 %v4091, %v4090
      %v4793 = vpack.c.b16 %v4093, %v4092
      %v4794 = vpack.c.b16 %v4095, %v4094
      %v4795 = vpack.c.b16 %v4097, %v4096
      %v4796 = vpack.c.b16 %v4099, %v4098
      %v4797 = vpack.c.b16 %v4101, %v4100
      %v4798 = vpack.c.b16 %v4103, %v4102
      %v4799 = vpack.c.b16 %v4105, %v4104
      %v4800 = vpack.c.b16 %v4107, %v4106
      %v4801 = vpack.c.b16 %v4109, %v4108
      %v4802 = vpack.c.b16 %v4111, %v4110
      %v4803 = vpack.c.b16 %v4113, %v4112
      %v4804 = vpack.c.b16 %v4115, %v4114
      %v4805 = vpack.c.b16 %v4117, %v4116
      %v4806 = vpack.c.b16 %v4119, %v4118
      %v4807 = vpack.c.b16 %v4121, %v4120
      %v4808 = vpack.c.b16 %v4123, %v4122
      %v4809 = vpack.c.b16 %v4125, %v4124
      %v4810 = vpack.c.b16 %v4127, %v4126
      %v4811 = vpack.c.b16 %v4129, %v4128
      %v4812 = vpack.c.b16 %v4131, %v4130
      %v4813 = vpack.c.b16 %v4133, %v4132
      %v4814 = vpack.c.b16 %v4135, %v4134
      %v4815 = vpack.c.b16 %v4137, %v4136
      %v4816 = vpack.c.b16 %v4139, %v4138
      %v4817 = vpack.c.b16 %v4141, %v4140
      %v4818 = vpack.c.b16 %v4143, %v4142
      %v4819 = vpack.c.b16 %v4776, %v4144
      %v4820 = vpack.c.b16 %v4778, %v4777
      %v4821 = vrot.slane %v4779, 2
      %v4822 = vrot.slane %v4780, 2
      %v4823 = vsel %vm1306, %v4821, %v4822
      %v4824 = vrot.slane %v4781, 2
      %v4825 = vsel %vm1306, %v4822, %v4824
      %v4826 = vrot.slane %v4782, 2
      %v4827 = vsel %vm1306, %v4824, %v4826
      %v4828 = vrot.slane %v4783, 2
      %v4829 = vsel %vm1306, %v4826, %v4828
      %v4830 = vrot.slane %v4784, 2
      %v4831 = vsel %vm1306, %v4828, %v4830
      %v4832 = vrot.slane %v4785, 2
      %v4833 = vsel %vm1306, %v4830, %v4832
      %v4834 = vrot.slane %v4786, 2
      %v4835 = vsel %vm1306, %v4832, %v4834
      %v4836 = vrot.slane %v4787, 2
      %v4837 = vsel %vm1306, %v4834, %v4836
      %v4838 = vrot.slane %v4788, 2
      %v4839 = vsel %vm1306, %v4836, %v4838
      %v4840 = vrot.slane %v4789, 2
      %v4841 = vsel %vm1306, %v4838, %v4840
      %v4842 = vrot.slane %v4790, 2
      %v4843 = vsel %vm1306, %v4840, %v4842
      %v4844 = vrot.slane %v4791, 2
      %v4845 = vsel %vm1306, %v4842, %v4844
      %v4846 = vrot.slane %v4792, 2
      %v4847 = vsel %vm1306, %v4844, %v4846
      %v4848 = vrot.slane %v4793, 2
      %v4849 = vsel %vm1306, %v4846, %v4848
      %v4850 = vrot.slane %v4794, 2
      %v4851 = vsel %vm1306, %v4848, %v4850
      %v4852 = vrot.slane %v4795, 2
      %v4853 = vsel %vm1306, %v4850, %v4852
      %v4854 = vrot.slane %v4796, 2
      %v4855 = vsel %vm1306, %v4852, %v4854
      %v4856 = vrot.slane %v4797, 2
      %v4857 = vsel %vm1306, %v4854, %v4856
      %v4858 = vrot.slane %v4798, 2
      %v4859 = vsel %vm1306, %v4856, %v4858
      %v4860 = vrot.slane %v4799, 2
      %v4861 = vsel %vm1306, %v4858, %v4860
      %v4862 = vrot.slane %v4800, 2
      %v4863 = vsel %vm1306, %v4860, %v4862
      %v4864 = vrot.slane %v4801, 2
      %v4865 = vsel %vm1306, %v4862, %v4864
      %v4866 = vrot.slane %v4802, 2
      %v4867 = vsel %vm1306, %v4864, %v4866
      %v4868 = vrot.slane %v4803, 2
      %v4869 = vsel %vm1306, %v4866, %v4868
      %v4870 = vrot.slane %v4804, 2
      %v4871 = vsel %vm1306, %v4868, %v4870
      %v4872 = vrot.slane %v4805, 2
      %v4873 = vsel %vm1306, %v4870, %v4872
      %v4874 = vrot.slane %v4806, 2
      %v4875 = vsel %vm1306, %v4872, %v4874
      %v4876 = vrot.slane %v4807, 2
      %v4877 = vsel %vm1306, %v4874, %v4876
      %v4878 = vrot.slane %v4808, 2
      %v4879 = vsel %vm1306, %v4876, %v4878
      %v4880 = vrot.slane %v4809, 2
      %v4881 = vsel %vm1306, %v4878, %v4880
      %v4882 = vrot.slane %v4810, 2
      %v4883 = vsel %vm1306, %v4880, %v4882
      %v4884 = vrot.slane %v4811, 2
      %v4885 = vsel %vm1306, %v4882, %v4884
      %v4886 = vrot.slane %v4812, 2
      %v4887 = vsel %vm1306, %v4884, %v4886
      %v4888 = vrot.slane %v4813, 2
      %v4889 = vsel %vm1306, %v4886, %v4888
      %v4890 = vrot.slane %v4814, 2
      %v4891 = vsel %vm1306, %v4888, %v4890
      %v4892 = vrot.slane %v4815, 2
      %v4893 = vsel %vm1306, %v4890, %v4892
      %v4894 = vrot.slane %v4816, 2
      %v4895 = vsel %vm1306, %v4892, %v4894
      %v4896 = vrot.slane %v4817, 2
      %v4897 = vsel %vm1306, %v4894, %v4896
      %v4898 = vrot.slane %v4818, 2
      %v4899 = vsel %vm1306, %v4896, %v4898
      %v4900 = vrot.slane %v4819, 2
      %v4901 = vsel %vm1306, %v4898, %v4900
      %v4902 = vrot.slane %v4820, 2
      %v4903 = vsel %vm1306, %v4900, %v4902
      %4904 = vrot.lane.b32.xlu0 %v4823, 24
      %v4905 = vpop.permute.xlu0 %4904
      %4906 = vrot.lane.b32.xlu0 %v4825, 24
      %v4907 = vpop.permute.xlu0 %4906
      %4908 = vrot.lane.b32.xlu0 %v4827, 24
      %v4909 = vpop.permute.xlu0 %4908
      %4910 = vrot.lane.b32.xlu0 %v4829, 24
      %v4911 = vpop.permute.xlu0 %4910
      %4912 = vrot.lane.b32.xlu0 %v4831, 24
      %v4913 = vpop.permute.xlu0 %4912
      %4914 = vrot.lane.b32.xlu0 %v4833, 24
      %v4915 = vpop.permute.xlu0 %4914
      %4916 = vrot.lane.b32.xlu0 %v4835, 24
      %v4917 = vpop.permute.xlu0 %4916
      %4918 = vrot.lane.b32.xlu0 %v4837, 24
      %v4919 = vpop.permute.xlu0 %4918
      %4920 = vrot.lane.b32.xlu0 %v4839, 24
      %v4921 = vpop.permute.xlu0 %4920
      %4922 = vrot.lane.b32.xlu0 %v4841, 24
      %v4923 = vpop.permute.xlu0 %4922
      %4924 = vrot.lane.b32.xlu0 %v4843, 24
      %v4925 = vpop.permute.xlu0 %4924
      %4926 = vrot.lane.b32.xlu0 %v4845, 24
      %v4927 = vpop.permute.xlu0 %4926
      %4928 = vrot.lane.b32.xlu0 %v4847, 24
      %v4929 = vpop.permute.xlu0 %4928
      %4930 = vrot.lane.b32.xlu0 %v4849, 24
      %v4931 = vpop.permute.xlu0 %4930
      %4932 = vrot.lane.b32.xlu0 %v4851, 24
      %v4933 = vpop.permute.xlu0 %4932
      %4934 = vrot.lane.b32.xlu0 %v4853, 24
      %v4935 = vpop.permute.xlu0 %4934
      %4936 = vrot.lane.b32.xlu0 %v4855, 24
      %v4937 = vpop.permute.xlu0 %4936
      %4938 = vrot.lane.b32.xlu0 %v4857, 24
      %v4939 = vpop.permute.xlu0 %4938
      %4940 = vrot.lane.b32.xlu0 %v4859, 24
      %v4941 = vpop.permute.xlu0 %4940
      %4942 = vrot.lane.b32.xlu0 %v4861, 24
      %v4943 = vpop.permute.xlu0 %4942
      %4944 = vrot.lane.b32.xlu0 %v4863, 24
      %v4945 = vpop.permute.xlu0 %4944
      %4946 = vrot.lane.b32.xlu0 %v4865, 24
      %v4947 = vpop.permute.xlu0 %4946
      %4948 = vrot.lane.b32.xlu0 %v4867, 24
      %v4949 = vpop.permute.xlu0 %4948
      %4950 = vrot.lane.b32.xlu0 %v4869, 24
      %v4951 = vpop.permute.xlu0 %4950
      %4952 = vrot.lane.b32.xlu0 %v4871, 24
      %v4953 = vpop.permute.xlu0 %4952
      %4954 = vrot.lane.b32.xlu0 %v4873, 24
      %v4955 = vpop.permute.xlu0 %4954
      %4956 = vrot.lane.b32.xlu0 %v4875, 24
      %v4957 = vpop.permute.xlu0 %4956
      %4958 = vrot.lane.b32.xlu0 %v4877, 24
      %v4959 = vpop.permute.xlu0 %4958
      %4960 = vrot.lane.b32.xlu0 %v4879, 24
      %v4961 = vpop.permute.xlu0 %4960
      %4962 = vrot.lane.b32.xlu0 %v4881, 24
      %v4963 = vpop.permute.xlu0 %4962
      %4964 = vrot.lane.b32.xlu0 %v4883, 24
      %v4965 = vpop.permute.xlu0 %4964
      %4966 = vrot.lane.b32.xlu0 %v4885, 24
      %v4967 = vpop.permute.xlu0 %4966
      %4968 = vrot.lane.b32.xlu0 %v4887, 24
      %v4969 = vpop.permute.xlu0 %4968
      %4970 = vrot.lane.b32.xlu0 %v4889, 24
      %v4971 = vpop.permute.xlu0 %4970
      %4972 = vrot.lane.b32.xlu0 %v4891, 24
      %v4973 = vpop.permute.xlu0 %4972
      %4974 = vrot.lane.b32.xlu0 %v4893, 24
      %v4975 = vpop.permute.xlu0 %4974
      %4976 = vrot.lane.b32.xlu0 %v4895, 24
      %v4977 = vpop.permute.xlu0 %4976
      %4978 = vrot.lane.b32.xlu0 %v4897, 24
      %v4979 = vpop.permute.xlu0 %4978
      %4980 = vrot.lane.b32.xlu0 %v4899, 24
      %v4981 = vpop.permute.xlu0 %4980
      %4982 = vrot.lane.b32.xlu0 %v4901, 24
      %v4983 = vpop.permute.xlu0 %4982
      %4984 = vrot.lane.b32.xlu0 %v4903, 24
      %v4985 = vpop.permute.xlu0 %4984
      %4986 = vrot.lane.b32.xlu0 %v4902, 24
      %v4987 = vpop.permute.xlu0 %4986
      %v4989 = vunpack.c.l.b16 %v3973
      %v4990 = vpack.c.b16 %v4989, %v4989
      %v4992 = vshrl.u32 %v4779, 16
      %v4994 = vrot.slane %v4992, 2
      %v4995 = vshll.u32 %v4779, 16
      %v4997 = vrot.slane %v4995, 3
      %v4998 = vor.u32 %v4994, %v4997
      %v5000 = vshrl.u32 %v4780, 16
      %v5002 = vrot.slane %v5000, 2
      %v5003 = vshll.u32 %v4780, 16
      %v5005 = vrot.slane %v5003, 3
      %v5006 = vor.u32 %v5002, %v5005
      %v5007 = vsel %vm1490, %v4998, %v5006
      %v5009 = vshrl.u32 %v4781, 16
      %v5011 = vrot.slane %v5009, 2
      %v5012 = vshll.u32 %v4781, 16
      %v5014 = vrot.slane %v5012, 3
      %v5015 = vor.u32 %v5011, %v5014
      %v5016 = vsel %vm1490, %v5006, %v5015
      %v5018 = vshrl.u32 %v4782, 16
      %v5020 = vrot.slane %v5018, 2
      %v5021 = vshll.u32 %v4782, 16
      %v5023 = vrot.slane %v5021, 3
      %v5024 = vor.u32 %v5020, %v5023
      %v5025 = vsel %vm1490, %v5015, %v5024
      %v5027 = vshrl.u32 %v4783, 16
      %v5029 = vrot.slane %v5027, 2
      %v5030 = vshll.u32 %v4783, 16
      %v5032 = vrot.slane %v5030, 3
      %v5033 = vor.u32 %v5029, %v5032
      %v5034 = vsel %vm1490, %v5024, %v5033
      %v5036 = vshrl.u32 %v4784, 16
      %v5038 = vrot.slane %v5036, 2
      %v5039 = vshll.u32 %v4784, 16
      %v5041 = vrot.slane %v5039, 3
      %v5042 = vor.u32 %v5038, %v5041
      %v5043 = vsel %vm1490, %v5033, %v5042
      %v5045 = vshrl.u32 %v4785, 16
      %v5047 = vrot.slane %v5045, 2
      %v5048 = vshll.u32 %v4785, 16
      %v5050 = vrot.slane %v5048, 3
      %v5051 = vor.u32 %v5047, %v5050
      %v5052 = vsel %vm1490, %v5042, %v5051
      %v5054 = vshrl.u32 %v4786, 16
      %v5056 = vrot.slane %v5054, 2
      %v5057 = vshll.u32 %v4786, 16
      %v5059 = vrot.slane %v5057, 3
      %v5060 = vor.u32 %v5056, %v5059
      %v5061 = vsel %vm1490, %v5051, %v5060
      %v5063 = vshrl.u32 %v4787, 16
      %v5065 = vrot.slane %v5063, 2
      %v5066 = vshll.u32 %v4787, 16
      %v5068 = vrot.slane %v5066, 3
      %v5069 = vor.u32 %v5065, %v5068
      %v5070 = vsel %vm1490, %v5060, %v5069
      %v5072 = vshrl.u32 %v4788, 16
      %v5074 = vrot.slane %v5072, 2
      %v5075 = vshll.u32 %v4788, 16
      %v5077 = vrot.slane %v5075, 3
      %v5078 = vor.u32 %v5074, %v5077
      %v5079 = vsel %vm1490, %v5069, %v5078
      %v5081 = vshrl.u32 %v4789, 16
      %v5083 = vrot.slane %v5081, 2
      %v5084 = vshll.u32 %v4789, 16
      %v5086 = vrot.slane %v5084, 3
      %v5087 = vor.u32 %v5083, %v5086
      %v5088 = vsel %vm1490, %v5078, %v5087
      %v5090 = vshrl.u32 %v4790, 16
      %v5092 = vrot.slane %v5090, 2
      %v5093 = vshll.u32 %v4790, 16
      %v5095 = vrot.slane %v5093, 3
      %v5096 = vor.u32 %v5092, %v5095
      %v5097 = vsel %vm1490, %v5087, %v5096
      %v5099 = vshrl.u32 %v4791, 16
      %v5101 = vrot.slane %v5099, 2
      %v5102 = vshll.u32 %v4791, 16
      %v5104 = vrot.slane %v5102, 3
      %v5105 = vor.u32 %v5101, %v5104
      %v5106 = vsel %vm1490, %v5096, %v5105
      %v5108 = vshrl.u32 %v4792, 16
      %v5110 = vrot.slane %v5108, 2
      %v5111 = vshll.u32 %v4792, 16
      %v5113 = vrot.slane %v5111, 3
      %v5114 = vor.u32 %v5110, %v5113
      %v5115 = vsel %vm1490, %v5105, %v5114
      %v5117 = vshrl.u32 %v4793, 16
      %v5119 = vrot.slane %v5117, 2
      %v5120 = vshll.u32 %v4793, 16
      %v5122 = vrot.slane %v5120, 3
      %v5123 = vor.u32 %v5119, %v5122
      %v5124 = vsel %vm1490, %v5114, %v5123
      %v5126 = vshrl.u32 %v4794, 16
      %v5128 = vrot.slane %v5126, 2
      %v5129 = vshll.u32 %v4794, 16
      %v5131 = vrot.slane %v5129, 3
      %v5132 = vor.u32 %v5128, %v5131
      %v5133 = vsel %vm1490, %v5123, %v5132
      %v5135 = vshrl.u32 %v4795, 16
      %v5137 = vrot.slane %v5135, 2
      %v5138 = vshll.u32 %v4795, 16
      %v5140 = vrot.slane %v5138, 3
      %v5141 = vor.u32 %v5137, %v5140
      %v5142 = vsel %vm1490, %v5132, %v5141
      %v5144 = vshrl.u32 %v4796, 16
      %v5146 = vrot.slane %v5144, 2
      %v5147 = vshll.u32 %v4796, 16
      %v5149 = vrot.slane %v5147, 3
      %v5150 = vor.u32 %v5146, %v5149
      %v5151 = vsel %vm1490, %v5141, %v5150
      %v5153 = vshrl.u32 %v4797, 16
      %v5155 = vrot.slane %v5153, 2
      %v5156 = vshll.u32 %v4797, 16
      %v5158 = vrot.slane %v5156, 3
      %v5159 = vor.u32 %v5155, %v5158
      %v5160 = vsel %vm1490, %v5150, %v5159
      %v5162 = vshrl.u32 %v4798, 16
      %v5164 = vrot.slane %v5162, 2
      %v5165 = vshll.u32 %v4798, 16
      %v5167 = vrot.slane %v5165, 3
      %v5168 = vor.u32 %v5164, %v5167
      %v5169 = vsel %vm1490, %v5159, %v5168
      %v5171 = vshrl.u32 %v4799, 16
      %v5173 = vrot.slane %v5171, 2
      %v5174 = vshll.u32 %v4799, 16
      %v5176 = vrot.slane %v5174, 3
      %v5177 = vor.u32 %v5173, %v5176
      %v5178 = vsel %vm1490, %v5168, %v5177
      %v5180 = vshrl.u32 %v4800, 16
      %v5182 = vrot.slane %v5180, 2
      %v5183 = vshll.u32 %v4800, 16
      %v5185 = vrot.slane %v5183, 3
      %v5186 = vor.u32 %v5182, %v5185
      %v5187 = vsel %vm1490, %v5177, %v5186
      %v5189 = vshrl.u32 %v4801, 16
      %v5191 = vrot.slane %v5189, 2
      %v5192 = vshll.u32 %v4801, 16
      %v5194 = vrot.slane %v5192, 3
      %v5195 = vor.u32 %v5191, %v5194
      %v5196 = vsel %vm1490, %v5186, %v5195
      %v5198 = vshrl.u32 %v4802, 16
      %v5200 = vrot.slane %v5198, 2
      %v5201 = vshll.u32 %v4802, 16
      %v5203 = vrot.slane %v5201, 3
      %v5204 = vor.u32 %v5200, %v5203
      %v5205 = vsel %vm1490, %v5195, %v5204
      %v5207 = vshrl.u32 %v4803, 16
      %v5209 = vrot.slane %v5207, 2
      %v5210 = vshll.u32 %v4803, 16
      %v5212 = vrot.slane %v5210, 3
      %v5213 = vor.u32 %v5209, %v5212
      %v5214 = vsel %vm1490, %v5204, %v5213
      %v5216 = vshrl.u32 %v4804, 16
      %v5218 = vrot.slane %v5216, 2
      %v5219 = vshll.u32 %v4804, 16
      %v5221 = vrot.slane %v5219, 3
      %v5222 = vor.u32 %v5218, %v5221
      %v5223 = vsel %vm1490, %v5213, %v5222
      %v5225 = vshrl.u32 %v4805, 16
      %v5227 = vrot.slane %v5225, 2
      %v5228 = vshll.u32 %v4805, 16
      %v5230 = vrot.slane %v5228, 3
      %v5231 = vor.u32 %v5227, %v5230
      %v5232 = vsel %vm1490, %v5222, %v5231
      %v5234 = vshrl.u32 %v4806, 16
      %v5236 = vrot.slane %v5234, 2
      %v5237 = vshll.u32 %v4806, 16
      %v5239 = vrot.slane %v5237, 3
      %v5240 = vor.u32 %v5236, %v5239
      %v5241 = vsel %vm1490, %v5231, %v5240
      %v5243 = vshrl.u32 %v4807, 16
      %v5245 = vrot.slane %v5243, 2
      %v5246 = vshll.u32 %v4807, 16
      %v5248 = vrot.slane %v5246, 3
      %v5249 = vor.u32 %v5245, %v5248
      %v5250 = vsel %vm1490, %v5240, %v5249
      %v5252 = vshrl.u32 %v4808, 16
      %v5254 = vrot.slane %v5252, 2
      %v5255 = vshll.u32 %v4808, 16
      %v5257 = vrot.slane %v5255, 3
      %v5258 = vor.u32 %v5254, %v5257
      %v5259 = vsel %vm1490, %v5249, %v5258
      %v5261 = vshrl.u32 %v4809, 16
      %v5263 = vrot.slane %v5261, 2
      %v5264 = vshll.u32 %v4809, 16
      %v5266 = vrot.slane %v5264, 3
      %v5267 = vor.u32 %v5263, %v5266
      %v5268 = vsel %vm1490, %v5258, %v5267
      %v5270 = vshrl.u32 %v4810, 16
      %v5272 = vrot.slane %v5270, 2
      %v5273 = vshll.u32 %v4810, 16
      %v5275 = vrot.slane %v5273, 3
      %v5276 = vor.u32 %v5272, %v5275
      %v5277 = vsel %vm1490, %v5267, %v5276
      %v5279 = vshrl.u32 %v4811, 16
      %v5281 = vrot.slane %v5279, 2
      %v5282 = vshll.u32 %v4811, 16
      %v5284 = vrot.slane %v5282, 3
      %v5285 = vor.u32 %v5281, %v5284
      %v5286 = vsel %vm1490, %v5276, %v5285
      %v5288 = vshrl.u32 %v4812, 16
      %v5290 = vrot.slane %v5288, 2
      %v5291 = vshll.u32 %v4812, 16
      %v5293 = vrot.slane %v5291, 3
      %v5294 = vor.u32 %v5290, %v5293
      %v5295 = vsel %vm1490, %v5285, %v5294
      %v5297 = vshrl.u32 %v4813, 16
      %v5299 = vrot.slane %v5297, 2
      %v5300 = vshll.u32 %v4813, 16
      %v5302 = vrot.slane %v5300, 3
      %v5303 = vor.u32 %v5299, %v5302
      %v5304 = vsel %vm1490, %v5294, %v5303
      %v5306 = vshrl.u32 %v4814, 16
      %v5308 = vrot.slane %v5306, 2
      %v5309 = vshll.u32 %v4814, 16
      %v5311 = vrot.slane %v5309, 3
      %v5312 = vor.u32 %v5308, %v5311
      %v5313 = vsel %vm1490, %v5303, %v5312
      %v5315 = vshrl.u32 %v4815, 16
      %v5317 = vrot.slane %v5315, 2
      %v5318 = vshll.u32 %v4815, 16
      %v5320 = vrot.slane %v5318, 3
      %v5321 = vor.u32 %v5317, %v5320
      %v5322 = vsel %vm1490, %v5312, %v5321
      %v5324 = vshrl.u32 %v4816, 16
      %v5326 = vrot.slane %v5324, 2
      %v5327 = vshll.u32 %v4816, 16
      %v5329 = vrot.slane %v5327, 3
      %v5330 = vor.u32 %v5326, %v5329
      %v5331 = vsel %vm1490, %v5321, %v5330
      %v5333 = vshrl.u32 %v4817, 16
      %v5335 = vrot.slane %v5333, 2
      %v5336 = vshll.u32 %v4817, 16
      %v5338 = vrot.slane %v5336, 3
      %v5339 = vor.u32 %v5335, %v5338
      %v5340 = vsel %vm1490, %v5330, %v5339
      %v5342 = vshrl.u32 %v4818, 16
      %v5344 = vrot.slane %v5342, 2
      %v5345 = vshll.u32 %v4818, 16
      %v5347 = vrot.slane %v5345, 3
      %v5348 = vor.u32 %v5344, %v5347
      %v5349 = vsel %vm1490, %v5339, %v5348
      %v5351 = vshrl.u32 %v4819, 16
      %v5353 = vrot.slane %v5351, 2
      %v5354 = vshll.u32 %v4819, 16
      %v5356 = vrot.slane %v5354, 3
      %v5357 = vor.u32 %v5353, %v5356
      %v5358 = vsel %vm1490, %v5348, %v5357
      %v5360 = vshrl.u32 %v4820, 16
      %v5362 = vrot.slane %v5360, 2
      %v5363 = vshll.u32 %v4820, 16
      %v5365 = vrot.slane %v5363, 3
      %v5366 = vor.u32 %v5362, %v5365
      %v5367 = vsel %vm1490, %v5357, %v5366
      %v5369 = vshll.u32 %v4990, 16
      %v5371 = vrot.slane %v5369, 3
      %v5372 = vsel %vm1490, %v5366, %v5371
      %5373 = vrot.lane.b32.xlu0 %v5007, 32
      %v5374 = vpop.permute.xlu0 %5373
      %5375 = vrot.lane.b32.xlu0 %v5016, 32
      %v5376 = vpop.permute.xlu0 %5375
      %5377 = vrot.lane.b32.xlu0 %v5025, 32
      %v5378 = vpop.permute.xlu0 %5377
      %5379 = vrot.lane.b32.xlu0 %v5034, 32
      %v5380 = vpop.permute.xlu0 %5379
      %5381 = vrot.lane.b32.xlu0 %v5043, 32
      %v5382 = vpop.permute.xlu0 %5381
      %5383 = vrot.lane.b32.xlu0 %v5052, 32
      %v5384 = vpop.permute.xlu0 %5383
      %5385 = vrot.lane.b32.xlu0 %v5061, 32
      %v5386 = vpop.permute.xlu0 %5385
      %5387 = vrot.lane.b32.xlu0 %v5070, 32
      %v5388 = vpop.permute.xlu0 %5387
      %5389 = vrot.lane.b32.xlu0 %v5079, 32
      %v5390 = vpop.permute.xlu0 %5389
      %5391 = vrot.lane.b32.xlu0 %v5088, 32
      %v5392 = vpop.permute.xlu0 %5391
      %5393 = vrot.lane.b32.xlu0 %v5097, 32
      %v5394 = vpop.permute.xlu0 %5393
      %5395 = vrot.lane.b32.xlu0 %v5106, 32
      %v5396 = vpop.permute.xlu0 %5395
      %5397 = vrot.lane.b32.xlu0 %v5115, 32
      %v5398 = vpop.permute.xlu0 %5397
      %5399 = vrot.lane.b32.xlu0 %v5124, 32
      %v5400 = vpop.permute.xlu0 %5399
      %5401 = vrot.lane.b32.xlu0 %v5133, 32
      %v5402 = vpop.permute.xlu0 %5401
      %5403 = vrot.lane.b32.xlu0 %v5142, 32
      %v5404 = vpop.permute.xlu0 %5403
      %5405 = vrot.lane.b32.xlu0 %v5151, 32
      %v5406 = vpop.permute.xlu0 %5405
      %5407 = vrot.lane.b32.xlu0 %v5160, 32
      %v5408 = vpop.permute.xlu0 %5407
      %5409 = vrot.lane.b32.xlu0 %v5169, 32
      %v5410 = vpop.permute.xlu0 %5409
      %5411 = vrot.lane.b32.xlu0 %v5178, 32
      %v5412 = vpop.permute.xlu0 %5411
      %5413 = vrot.lane.b32.xlu0 %v5187, 32
      %v5414 = vpop.permute.xlu0 %5413
      %5415 = vrot.lane.b32.xlu0 %v5196, 32
      %v5416 = vpop.permute.xlu0 %5415
      %5417 = vrot.lane.b32.xlu0 %v5205, 32
      %v5418 = vpop.permute.xlu0 %5417
      %5419 = vrot.lane.b32.xlu0 %v5214, 32
      %v5420 = vpop.permute.xlu0 %5419
      %5421 = vrot.lane.b32.xlu0 %v5223, 32
      %v5422 = vpop.permute.xlu0 %5421
      %5423 = vrot.lane.b32.xlu0 %v5232, 32
      %v5424 = vpop.permute.xlu0 %5423
      %5425 = vrot.lane.b32.xlu0 %v5241, 32
      %v5426 = vpop.permute.xlu0 %5425
      %5427 = vrot.lane.b32.xlu0 %v5250, 32
      %v5428 = vpop.permute.xlu0 %5427
      %5429 = vrot.lane.b32.xlu0 %v5259, 32
      %v5430 = vpop.permute.xlu0 %5429
      %5431 = vrot.lane.b32.xlu0 %v5268, 32
      %v5432 = vpop.permute.xlu0 %5431
      %5433 = vrot.lane.b32.xlu0 %v5277, 32
      %v5434 = vpop.permute.xlu0 %5433
      %5435 = vrot.lane.b32.xlu0 %v5286, 32
      %v5436 = vpop.permute.xlu0 %5435
      %5437 = vrot.lane.b32.xlu0 %v5295, 32
      %v5438 = vpop.permute.xlu0 %5437
      %5439 = vrot.lane.b32.xlu0 %v5304, 32
      %v5440 = vpop.permute.xlu0 %5439
      %5441 = vrot.lane.b32.xlu0 %v5313, 32
      %v5442 = vpop.permute.xlu0 %5441
      %5443 = vrot.lane.b32.xlu0 %v5322, 32
      %v5444 = vpop.permute.xlu0 %5443
      %5445 = vrot.lane.b32.xlu0 %v5331, 32
      %v5446 = vpop.permute.xlu0 %5445
      %5447 = vrot.lane.b32.xlu0 %v5340, 32
      %v5448 = vpop.permute.xlu0 %5447
      %5449 = vrot.lane.b32.xlu0 %v5349, 32
      %v5450 = vpop.permute.xlu0 %5449
      %5451 = vrot.lane.b32.xlu0 %v5358, 32
      %v5452 = vpop.permute.xlu0 %5451
      %5453 = vrot.lane.b32.xlu0 %v5367, 32
      %v5454 = vpop.permute.xlu0 %5453
      %5455 = vrot.lane.b32.xlu0 %v5372, 32
      %v5456 = vpop.permute.xlu0 %5455
      %v5457 = vrot.slane %v4779, 3
      %v5458 = vrot.slane %v4780, 3
      %v5459 = vsel %vm1996, %v5457, %v5458
      %v5460 = vrot.slane %v4781, 3
      %v5461 = vsel %vm1996, %v5458, %v5460
      %v5462 = vrot.slane %v4782, 3
      %v5463 = vsel %vm1996, %v5460, %v5462
      %v5464 = vrot.slane %v4783, 3
      %v5465 = vsel %vm1996, %v5462, %v5464
      %v5466 = vrot.slane %v4784, 3
      %v5467 = vsel %vm1996, %v5464, %v5466
      %v5468 = vrot.slane %v4785, 3
      %v5469 = vsel %vm1996, %v5466, %v5468
      %v5470 = vrot.slane %v4786, 3
      %v5471 = vsel %vm1996, %v5468, %v5470
      %v5472 = vrot.slane %v4787, 3
      %v5473 = vsel %vm1996, %v5470, %v5472
      %v5474 = vrot.slane %v4788, 3
      %v5475 = vsel %vm1996, %v5472, %v5474
      %v5476 = vrot.slane %v4789, 3
      %v5477 = vsel %vm1996, %v5474, %v5476
      %v5478 = vrot.slane %v4790, 3
      %v5479 = vsel %vm1996, %v5476, %v5478
      %v5480 = vrot.slane %v4791, 3
      %v5481 = vsel %vm1996, %v5478, %v5480
      %v5482 = vrot.slane %v4792, 3
      %v5483 = vsel %vm1996, %v5480, %v5482
      %v5484 = vrot.slane %v4793, 3
      %v5485 = vsel %vm1996, %v5482, %v5484
      %v5486 = vrot.slane %v4794, 3
      %v5487 = vsel %vm1996, %v5484, %v5486
      %v5488 = vrot.slane %v4795, 3
      %v5489 = vsel %vm1996, %v5486, %v5488
      %v5490 = vrot.slane %v4796, 3
      %v5491 = vsel %vm1996, %v5488, %v5490
      %v5492 = vrot.slane %v4797, 3
      %v5493 = vsel %vm1996, %v5490, %v5492
      %v5494 = vrot.slane %v4798, 3
      %v5495 = vsel %vm1996, %v5492, %v5494
      %v5496 = vrot.slane %v4799, 3
      %v5497 = vsel %vm1996, %v5494, %v5496
      %v5498 = vrot.slane %v4800, 3
      %v5499 = vsel %vm1996, %v5496, %v5498
      %v5500 = vrot.slane %v4801, 3
      %v5501 = vsel %vm1996, %v5498, %v5500
      %v5502 = vrot.slane %v4802, 3
      %v5503 = vsel %vm1996, %v5500, %v5502
      %v5504 = vrot.slane %v4803, 3
      %v5505 = vsel %vm1996, %v5502, %v5504
      %v5506 = vrot.slane %v4804, 3
      %v5507 = vsel %vm1996, %v5504, %v5506
      %v5508 = vrot.slane %v4805, 3
      %v5509 = vsel %vm1996, %v5506, %v5508
      %v5510 = vrot.slane %v4806, 3
      %v5511 = vsel %vm1996, %v5508, %v5510
      %v5512 = vrot.slane %v4807, 3
      %v5513 = vsel %vm1996, %v5510, %v5512
      %v5514 = vrot.slane %v4808, 3
      %v5515 = vsel %vm1996, %v5512, %v5514
      %v5516 = vrot.slane %v4809, 3
      %v5517 = vsel %vm1996, %v5514, %v5516
      %v5518 = vrot.slane %v4810, 3
      %v5519 = vsel %vm1996, %v5516, %v5518
      %v5520 = vrot.slane %v4811, 3
      %v5521 = vsel %vm1996, %v5518, %v5520
      %v5522 = vrot.slane %v4812, 3
      %v5523 = vsel %vm1996, %v5520, %v5522
      %v5524 = vrot.slane %v4813, 3
      %v5525 = vsel %vm1996, %v5522, %v5524
      %v5526 = vrot.slane %v4814, 3
      %v5527 = vsel %vm1996, %v5524, %v5526
      %v5528 = vrot.slane %v4815, 3
      %v5529 = vsel %vm1996, %v5526, %v5528
      %v5530 = vrot.slane %v4816, 3
      %v5531 = vsel %vm1996, %v5528, %v5530
      %v5532 = vrot.slane %v4817, 3
      %v5533 = vsel %vm1996, %v5530, %v5532
      %v5534 = vrot.slane %v4818, 3
      %v5535 = vsel %vm1996, %v5532, %v5534
      %v5536 = vrot.slane %v4819, 3
      %v5537 = vsel %vm1996, %v5534, %v5536
      %v5538 = vrot.slane %v4820, 3
      %v5539 = vsel %vm1996, %v5536, %v5538
      %v5540 = vrot.slane %v4990, 3
      %v5541 = vsel %vm1996, %v5538, %v5540
      %5542 = vrot.lane.b32.xlu0 %v5459, 40
      %v5543 = vpop.permute.xlu0 %5542
      %5544 = vrot.lane.b32.xlu0 %v5461, 40
      %v5545 = vpop.permute.xlu0 %5544
      %5546 = vrot.lane.b32.xlu0 %v5463, 40
      %v5547 = vpop.permute.xlu0 %5546
      %5548 = vrot.lane.b32.xlu0 %v5465, 40
      %v5549 = vpop.permute.xlu0 %5548
      %5550 = vrot.lane.b32.xlu0 %v5467, 40
      %v5551 = vpop.permute.xlu0 %5550
      %5552 = vrot.lane.b32.xlu0 %v5469, 40
      %v5553 = vpop.permute.xlu0 %5552
      %5554 = vrot.lane.b32.xlu0 %v5471, 40
      %v5555 = vpop.permute.xlu0 %5554
      %5556 = vrot.lane.b32.xlu0 %v5473, 40
      %v5557 = vpop.permute.xlu0 %5556
      %5558 = vrot.lane.b32.xlu0 %v5475, 40
      %v5559 = vpop.permute.xlu0 %5558
      %5560 = vrot.lane.b32.xlu0 %v5477, 40
      %v5561 = vpop.permute.xlu0 %5560
      %5562 = vrot.lane.b32.xlu0 %v5479, 40
      %v5563 = vpop.permute.xlu0 %5562
      %5564 = vrot.lane.b32.xlu0 %v5481, 40
      %v5565 = vpop.permute.xlu0 %5564
      %5566 = vrot.lane.b32.xlu0 %v5483, 40
      %v5567 = vpop.permute.xlu0 %5566
      %5568 = vrot.lane.b32.xlu0 %v5485, 40
      %v5569 = vpop.permute.xlu0 %5568
      %5570 = vrot.lane.b32.xlu0 %v5487, 40
      %v5571 = vpop.permute.xlu0 %5570
      %5572 = vrot.lane.b32.xlu0 %v5489, 40
      %v5573 = vpop.permute.xlu0 %5572
      %5574 = vrot.lane.b32.xlu0 %v5491, 40
      %v5575 = vpop.permute.xlu0 %5574
      %5576 = vrot.lane.b32.xlu0 %v5493, 40
      %v5577 = vpop.permute.xlu0 %5576
      %5578 = vrot.lane.b32.xlu0 %v5495, 40
      %v5579 = vpop.permute.xlu0 %5578
      %5580 = vrot.lane.b32.xlu0 %v5497, 40
      %v5581 = vpop.permute.xlu0 %5580
      %5582 = vrot.lane.b32.xlu0 %v5499, 40
      %v5583 = vpop.permute.xlu0 %5582
      %5584 = vrot.lane.b32.xlu0 %v5501, 40
      %v5585 = vpop.permute.xlu0 %5584
      %5586 = vrot.lane.b32.xlu0 %v5503, 40
      %v5587 = vpop.permute.xlu0 %5586
      %5588 = vrot.lane.b32.xlu0 %v5505, 40
      %v5589 = vpop.permute.xlu0 %5588
      %5590 = vrot.lane.b32.xlu0 %v5507, 40
      %v5591 = vpop.permute.xlu0 %5590
      %5592 = vrot.lane.b32.xlu0 %v5509, 40
      %v5593 = vpop.permute.xlu0 %5592
      %5594 = vrot.lane.b32.xlu0 %v5511, 40
      %v5595 = vpop.permute.xlu0 %5594
      %5596 = vrot.lane.b32.xlu0 %v5513, 40
      %v5597 = vpop.permute.xlu0 %5596
      %5598 = vrot.lane.b32.xlu0 %v5515, 40
      %v5599 = vpop.permute.xlu0 %5598
      %5600 = vrot.lane.b32.xlu0 %v5517, 40
      %v5601 = vpop.permute.xlu0 %5600
      %5602 = vrot.lane.b32.xlu0 %v5519, 40
      %v5603 = vpop.permute.xlu0 %5602
      %5604 = vrot.lane.b32.xlu0 %v5521, 40
      %v5605 = vpop.permute.xlu0 %5604
      %5606 = vrot.lane.b32.xlu0 %v5523, 40
      %v5607 = vpop.permute.xlu0 %5606
      %5608 = vrot.lane.b32.xlu0 %v5525, 40
      %v5609 = vpop.permute.xlu0 %5608
      %5610 = vrot.lane.b32.xlu0 %v5527, 40
      %v5611 = vpop.permute.xlu0 %5610
      %5612 = vrot.lane.b32.xlu0 %v5529, 40
      %v5613 = vpop.permute.xlu0 %5612
      %5614 = vrot.lane.b32.xlu0 %v5531, 40
      %v5615 = vpop.permute.xlu0 %5614
      %5616 = vrot.lane.b32.xlu0 %v5533, 40
      %v5617 = vpop.permute.xlu0 %5616
      %5618 = vrot.lane.b32.xlu0 %v5535, 40
      %v5619 = vpop.permute.xlu0 %5618
      %5620 = vrot.lane.b32.xlu0 %v5537, 40
      %v5621 = vpop.permute.xlu0 %5620
      %5622 = vrot.lane.b32.xlu0 %v5539, 40
      %v5623 = vpop.permute.xlu0 %5622
      %5624 = vrot.lane.b32.xlu0 %v5541, 40
      %v5625 = vpop.permute.xlu0 %5624
      %v5629 = vunpack.c.l.b16 %v3974
      %v5630 = vunpack.c.l.b16 %v3975
      %v5631 = vunpack.c.l.b16 %v3976
      %v5632 = vpack.c.b16 %v5629, %v4989
      %v5633 = vpack.c.b16 %v5631, %v5630
      %5634 = vrot.lane.b32.xlu0 %v4781, 48
      %v5635 = vpop.permute.xlu0 %5634
      %5636 = vrot.lane.b32.xlu0 %v4782, 48
      %v5637 = vpop.permute.xlu0 %5636
      %5638 = vrot.lane.b32.xlu0 %v4783, 48
      %v5639 = vpop.permute.xlu0 %5638
      %5640 = vrot.lane.b32.xlu0 %v4784, 48
      %v5641 = vpop.permute.xlu0 %5640
      %5642 = vrot.lane.b32.xlu0 %v4785, 48
      %v5643 = vpop.permute.xlu0 %5642
      %5644 = vrot.lane.b32.xlu0 %v4786, 48
      %v5645 = vpop.permute.xlu0 %5644
      %5646 = vrot.lane.b32.xlu0 %v4787, 48
      %v5647 = vpop.permute.xlu0 %5646
      %5648 = vrot.lane.b32.xlu0 %v4788, 48
      %v5649 = vpop.permute.xlu0 %5648
      %5650 = vrot.lane.b32.xlu0 %v4789, 48
      %v5651 = vpop.permute.xlu0 %5650
      %5652 = vrot.lane.b32.xlu0 %v4790, 48
      %v5653 = vpop.permute.xlu0 %5652
      %5654 = vrot.lane.b32.xlu0 %v4791, 48
      %v5655 = vpop.permute.xlu0 %5654
      %5656 = vrot.lane.b32.xlu0 %v4792, 48
      %v5657 = vpop.permute.xlu0 %5656
      %5658 = vrot.lane.b32.xlu0 %v4793, 48
      %v5659 = vpop.permute.xlu0 %5658
      %5660 = vrot.lane.b32.xlu0 %v4794, 48
      %v5661 = vpop.permute.xlu0 %5660
      %5662 = vrot.lane.b32.xlu0 %v4795, 48
      %v5663 = vpop.permute.xlu0 %5662
      %5664 = vrot.lane.b32.xlu0 %v4796, 48
      %v5665 = vpop.permute.xlu0 %5664
      %5666 = vrot.lane.b32.xlu0 %v4797, 48
      %v5667 = vpop.permute.xlu0 %5666
      %5668 = vrot.lane.b32.xlu0 %v4798, 48
      %v5669 = vpop.permute.xlu0 %5668
      %5670 = vrot.lane.b32.xlu0 %v4799, 48
      %v5671 = vpop.permute.xlu0 %5670
      %5672 = vrot.lane.b32.xlu0 %v4800, 48
      %v5673 = vpop.permute.xlu0 %5672
      %5674 = vrot.lane.b32.xlu0 %v4801, 48
      %v5675 = vpop.permute.xlu0 %5674
      %5676 = vrot.lane.b32.xlu0 %v4802, 48
      %v5677 = vpop.permute.xlu0 %5676
      %5678 = vrot.lane.b32.xlu0 %v4803, 48
      %v5679 = vpop.permute.xlu0 %5678
      %5680 = vrot.lane.b32.xlu0 %v4804, 48
      %v5681 = vpop.permute.xlu0 %5680
      %5682 = vrot.lane.b32.xlu0 %v4805, 48
      %v5683 = vpop.permute.xlu0 %5682
      %5684 = vrot.lane.b32.xlu0 %v4806, 48
      %v5685 = vpop.permute.xlu0 %5684
      %5686 = vrot.lane.b32.xlu0 %v4807, 48
      %v5687 = vpop.permute.xlu0 %5686
      %5688 = vrot.lane.b32.xlu0 %v4808, 48
      %v5689 = vpop.permute.xlu0 %5688
      %5690 = vrot.lane.b32.xlu0 %v4809, 48
      %v5691 = vpop.permute.xlu0 %5690
      %5692 = vrot.lane.b32.xlu0 %v4810, 48
      %v5693 = vpop.permute.xlu0 %5692
      %5694 = vrot.lane.b32.xlu0 %v4811, 48
      %v5695 = vpop.permute.xlu0 %5694
      %5696 = vrot.lane.b32.xlu0 %v4812, 48
      %v5697 = vpop.permute.xlu0 %5696
      %5698 = vrot.lane.b32.xlu0 %v4813, 48
      %v5699 = vpop.permute.xlu0 %5698
      %5700 = vrot.lane.b32.xlu0 %v4814, 48
      %v5701 = vpop.permute.xlu0 %5700
      %5702 = vrot.lane.b32.xlu0 %v4815, 48
      %v5703 = vpop.permute.xlu0 %5702
      %5704 = vrot.lane.b32.xlu0 %v4816, 48
      %v5705 = vpop.permute.xlu0 %5704
      %5706 = vrot.lane.b32.xlu0 %v4817, 48
      %v5707 = vpop.permute.xlu0 %5706
      %5708 = vrot.lane.b32.xlu0 %v4818, 48
      %v5709 = vpop.permute.xlu0 %5708
      %5710 = vrot.lane.b32.xlu0 %v4819, 48
      %v5711 = vpop.permute.xlu0 %5710
      %5712 = vrot.lane.b32.xlu0 %v4820, 48
      %v5713 = vpop.permute.xlu0 %5712
      %5714 = vrot.lane.b32.xlu0 %v5632, 48
      %v5715 = vpop.permute.xlu0 %5714
      %5716 = vrot.lane.b32.xlu0 %v5633, 48
      %v5717 = vpop.permute.xlu0 %5716
      %v5718 = vrot.slane %v5012, 1
      %v5719 = vor.u32 %v5009, %v5718
      %v5720 = vrot.slane %v5021, 1
      %v5721 = vsel %vm608, %v5719, %v5720
      %v5722 = vor.u32 %v5018, %v5720
      %v5723 = vrot.slane %v5030, 1
      %v5724 = vsel %vm608, %v5722, %v5723
      %v5725 = vor.u32 %v5027, %v5723
      %v5726 = vrot.slane %v5039, 1
      %v5727 = vsel %vm608, %v5725, %v5726
      %v5728 = vor.u32 %v5036, %v5726
      %v5729 = vrot.slane %v5048, 1
      %v5730 = vsel %vm608, %v5728, %v5729
      %v5731 = vor.u32 %v5045, %v5729
      %v5732 = vrot.slane %v5057, 1
      %v5733 = vsel %vm608, %v5731, %v5732
      %v5734 = vor.u32 %v5054, %v5732
      %v5735 = vrot.slane %v5066, 1
      %v5736 = vsel %vm608, %v5734, %v5735
      %v5737 = vor.u32 %v5063, %v5735
      %v5738 = vrot.slane %v5075, 1
      %v5739 = vsel %vm608, %v5737, %v5738
      %v5740 = vor.u32 %v5072, %v5738
      %v5741 = vrot.slane %v5084, 1
      %v5742 = vsel %vm608, %v5740, %v5741
      %v5743 = vor.u32 %v5081, %v5741
      %v5744 = vrot.slane %v5093, 1
      %v5745 = vsel %vm608, %v5743, %v5744
      %v5746 = vor.u32 %v5090, %v5744
      %v5747 = vrot.slane %v5102, 1
      %v5748 = vsel %vm608, %v5746, %v5747
      %v5749 = vor.u32 %v5099, %v5747
      %v5750 = vrot.slane %v5111, 1
      %v5751 = vsel %vm608, %v5749, %v5750
      %v5752 = vor.u32 %v5108, %v5750
      %v5753 = vrot.slane %v5120, 1
      %v5754 = vsel %vm608, %v5752, %v5753
      %v5755 = vor.u32 %v5117, %v5753
      %v5756 = vrot.slane %v5129, 1
      %v5757 = vsel %vm608, %v5755, %v5756
      %v5758 = vor.u32 %v5126, %v5756
      %v5759 = vrot.slane %v5138, 1
      %v5760 = vsel %vm608, %v5758, %v5759
      %v5761 = vor.u32 %v5135, %v5759
      %v5762 = vrot.slane %v5147, 1
      %v5763 = vsel %vm608, %v5761, %v5762
      %v5764 = vor.u32 %v5144, %v5762
      %v5765 = vrot.slane %v5156, 1
      %v5766 = vsel %vm608, %v5764, %v5765
      %v5767 = vor.u32 %v5153, %v5765
      %v5768 = vrot.slane %v5165, 1
      %v5769 = vsel %vm608, %v5767, %v5768
      %v5770 = vor.u32 %v5162, %v5768
      %v5771 = vrot.slane %v5174, 1
      %v5772 = vsel %vm608, %v5770, %v5771
      %v5773 = vor.u32 %v5171, %v5771
      %v5774 = vrot.slane %v5183, 1
      %v5775 = vsel %vm608, %v5773, %v5774
      %v5776 = vor.u32 %v5180, %v5774
      %v5777 = vrot.slane %v5192, 1
      %v5778 = vsel %vm608, %v5776, %v5777
      %v5779 = vor.u32 %v5189, %v5777
      %v5780 = vrot.slane %v5201, 1
      %v5781 = vsel %vm608, %v5779, %v5780
      %v5782 = vor.u32 %v5198, %v5780
      %v5783 = vrot.slane %v5210, 1
      %v5784 = vsel %vm608, %v5782, %v5783
      %v5785 = vor.u32 %v5207, %v5783
      %v5786 = vrot.slane %v5219, 1
      %v5787 = vsel %vm608, %v5785, %v5786
      %v5788 = vor.u32 %v5216, %v5786
      %v5789 = vrot.slane %v5228, 1
      %v5790 = vsel %vm608, %v5788, %v5789
      %v5791 = vor.u32 %v5225, %v5789
      %v5792 = vrot.slane %v5237, 1
      %v5793 = vsel %vm608, %v5791, %v5792
      %v5794 = vor.u32 %v5234, %v5792
      %v5795 = vrot.slane %v5246, 1
      %v5796 = vsel %vm608, %v5794, %v5795
      %v5797 = vor.u32 %v5243, %v5795
      %v5798 = vrot.slane %v5255, 1
      %v5799 = vsel %vm608, %v5797, %v5798
      %v5800 = vor.u32 %v5252, %v5798
      %v5801 = vrot.slane %v5264, 1
      %v5802 = vsel %vm608, %v5800, %v5801
      %v5803 = vor.u32 %v5261, %v5801
      %v5804 = vrot.slane %v5273, 1
      %v5805 = vsel %vm608, %v5803, %v5804
      %v5806 = vor.u32 %v5270, %v5804
      %v5807 = vrot.slane %v5282, 1
      %v5808 = vsel %vm608, %v5806, %v5807
      %v5809 = vor.u32 %v5279, %v5807
      %v5810 = vrot.slane %v5291, 1
      %v5811 = vsel %vm608, %v5809, %v5810
      %v5812 = vor.u32 %v5288, %v5810
      %v5813 = vrot.slane %v5300, 1
      %v5814 = vsel %vm608, %v5812, %v5813
      %v5815 = vor.u32 %v5297, %v5813
      %v5816 = vrot.slane %v5309, 1
      %v5817 = vsel %vm608, %v5815, %v5816
      %v5818 = vor.u32 %v5306, %v5816
      %v5819 = vrot.slane %v5318, 1
      %v5820 = vsel %vm608, %v5818, %v5819
      %v5821 = vor.u32 %v5315, %v5819
      %v5822 = vrot.slane %v5327, 1
      %v5823 = vsel %vm608, %v5821, %v5822
      %v5824 = vor.u32 %v5324, %v5822
      %v5825 = vrot.slane %v5336, 1
      %v5826 = vsel %vm608, %v5824, %v5825
      %v5827 = vor.u32 %v5333, %v5825
      %v5828 = vrot.slane %v5345, 1
      %v5829 = vsel %vm608, %v5827, %v5828
      %v5830 = vor.u32 %v5342, %v5828
      %v5831 = vrot.slane %v5354, 1
      %v5832 = vsel %vm608, %v5830, %v5831
      %v5833 = vor.u32 %v5351, %v5831
      %v5834 = vrot.slane %v5363, 1
      %v5835 = vsel %vm608, %v5833, %v5834
      %v5836 = vor.u32 %v5360, %v5834
      %v5838 = vshll.u32 %v5632, 16
      %v5840 = vrot.slane %v5838, 1
      %v5841 = vsel %vm608, %v5836, %v5840
      %v5842 = vshrl.u32 %v5632, 16
      %v5844 = vor.u32 %v5842, %v5840
      %v5846 = vshll.u32 %v5633, 16
      %v5848 = vrot.slane %v5846, 1
      %v5849 = vsel %vm608, %v5844, %v5848
      %v5850 = vshrl.u32 %v5633, 16
      %v5852 = vor.u32 %v5850, %v5848
      %5853 = vrot.lane.b32.xlu0 %v5721, 56
      %v5854 = vpop.permute.xlu0 %5853
      %5855 = vrot.lane.b32.xlu0 %v5724, 56
      %v5856 = vpop.permute.xlu0 %5855
      %5857 = vrot.lane.b32.xlu0 %v5727, 56
      %v5858 = vpop.permute.xlu0 %5857
      %5859 = vrot.lane.b32.xlu0 %v5730, 56
      %v5860 = vpop.permute.xlu0 %5859
      %5861 = vrot.lane.b32.xlu0 %v5733, 56
      %v5862 = vpop.permute.xlu0 %5861
      %5863 = vrot.lane.b32.xlu0 %v5736, 56
      %v5864 = vpop.permute.xlu0 %5863
      %5865 = vrot.lane.b32.xlu0 %v5739, 56
      %v5866 = vpop.permute.xlu0 %5865
      %5867 = vrot.lane.b32.xlu0 %v5742, 56
      %v5868 = vpop.permute.xlu0 %5867
      %5869 = vrot.lane.b32.xlu0 %v5745, 56
      %v5870 = vpop.permute.xlu0 %5869
      %5871 = vrot.lane.b32.xlu0 %v5748, 56
      %v5872 = vpop.permute.xlu0 %5871
      %5873 = vrot.lane.b32.xlu0 %v5751, 56
      %v5874 = vpop.permute.xlu0 %5873
      %5875 = vrot.lane.b32.xlu0 %v5754, 56
      %v5876 = vpop.permute.xlu0 %5875
      %5877 = vrot.lane.b32.xlu0 %v5757, 56
      %v5878 = vpop.permute.xlu0 %5877
      %5879 = vrot.lane.b32.xlu0 %v5760, 56
      %v5880 = vpop.permute.xlu0 %5879
      %5881 = vrot.lane.b32.xlu0 %v5763, 56
      %v5882 = vpop.permute.xlu0 %5881
      %5883 = vrot.lane.b32.xlu0 %v5766, 56
      %v5884 = vpop.permute.xlu0 %5883
      %5885 = vrot.lane.b32.xlu0 %v5769, 56
      %v5886 = vpop.permute.xlu0 %5885
      %5887 = vrot.lane.b32.xlu0 %v5772, 56
      %v5888 = vpop.permute.xlu0 %5887
      %5889 = vrot.lane.b32.xlu0 %v5775, 56
      %v5890 = vpop.permute.xlu0 %5889
      %5891 = vrot.lane.b32.xlu0 %v5778, 56
      %v5892 = vpop.permute.xlu0 %5891
      %5893 = vrot.lane.b32.xlu0 %v5781, 56
      %v5894 = vpop.permute.xlu0 %5893
      %5895 = vrot.lane.b32.xlu0 %v5784, 56
      %v5896 = vpop.permute.xlu0 %5895
      %5897 = vrot.lane.b32.xlu0 %v5787, 56
      %v5898 = vpop.permute.xlu0 %5897
      %5899 = vrot.lane.b32.xlu0 %v5790, 56
      %v5900 = vpop.permute.xlu0 %5899
      %5901 = vrot.lane.b32.xlu0 %v5793, 56
      %v5902 = vpop.permute.xlu0 %5901
      %5903 = vrot.lane.b32.xlu0 %v5796, 56
      %v5904 = vpop.permute.xlu0 %5903
      %5905 = vrot.lane.b32.xlu0 %v5799, 56
      %v5906 = vpop.permute.xlu0 %5905
      %5907 = vrot.lane.b32.xlu0 %v5802, 56
      %v5908 = vpop.permute.xlu0 %5907
      %5909 = vrot.lane.b32.xlu0 %v5805, 56
      %v5910 = vpop.permute.xlu0 %5909
      %5911 = vrot.lane.b32.xlu0 %v5808, 56
      %v5912 = vpop.permute.xlu0 %5911
      %5913 = vrot.lane.b32.xlu0 %v5811, 56
      %v5914 = vpop.permute.xlu0 %5913
      %5915 = vrot.lane.b32.xlu0 %v5814, 56
      %v5916 = vpop.permute.xlu0 %5915
      %5917 = vrot.lane.b32.xlu0 %v5817, 56
      %v5918 = vpop.permute.xlu0 %5917
      %5919 = vrot.lane.b32.xlu0 %v5820, 56
      %v5920 = vpop.permute.xlu0 %5919
      %5921 = vrot.lane.b32.xlu0 %v5823, 56
      %v5922 = vpop.permute.xlu0 %5921
      %5923 = vrot.lane.b32.xlu0 %v5826, 56
      %v5924 = vpop.permute.xlu0 %5923
      %5925 = vrot.lane.b32.xlu0 %v5829, 56
      %v5926 = vpop.permute.xlu0 %5925
      %5927 = vrot.lane.b32.xlu0 %v5832, 56
      %v5928 = vpop.permute.xlu0 %5927
      %5929 = vrot.lane.b32.xlu0 %v5835, 56
      %v5930 = vpop.permute.xlu0 %5929
      %5931 = vrot.lane.b32.xlu0 %v5841, 56
      %v5932 = vpop.permute.xlu0 %5931
      %5933 = vrot.lane.b32.xlu0 %v5849, 56
      %v5934 = vpop.permute.xlu0 %5933
      %5935 = vrot.lane.b32.xlu0 %v5852, 56
      %v5936 = vpop.permute.xlu0 %5935
      %v5937 = vrot.slane %v4781, 1
      %v5938 = vrot.slane %v4782, 1
      %v5939 = vsel %vm1068, %v5937, %v5938
      %v5940 = vrot.slane %v4783, 1
      %v5941 = vsel %vm1068, %v5938, %v5940
      %v5942 = vrot.slane %v4784, 1
      %v5943 = vsel %vm1068, %v5940, %v5942
      %v5944 = vrot.slane %v4785, 1
      %v5945 = vsel %vm1068, %v5942, %v5944
      %v5946 = vrot.slane %v4786, 1
      %v5947 = vsel %vm1068, %v5944, %v5946
      %v5948 = vrot.slane %v4787, 1
      %v5949 = vsel %vm1068, %v5946, %v5948
      %v5950 = vrot.slane %v4788, 1
      %v5951 = vsel %vm1068, %v5948, %v5950
      %v5952 = vrot.slane %v4789, 1
      %v5953 = vsel %vm1068, %v5950, %v5952
      %v5954 = vrot.slane %v4790, 1
      %v5955 = vsel %vm1068, %v5952, %v5954
      %v5956 = vrot.slane %v4791, 1
      %v5957 = vsel %vm1068, %v5954, %v5956
      %v5958 = vrot.slane %v4792, 1
      %v5959 = vsel %vm1068, %v5956, %v5958
      %v5960 = vrot.slane %v4793, 1
      %v5961 = vsel %vm1068, %v5958, %v5960
      %v5962 = vrot.slane %v4794, 1
      %v5963 = vsel %vm1068, %v5960, %v5962
      %v5964 = vrot.slane %v4795, 1
      %v5965 = vsel %vm1068, %v5962, %v5964
      %v5966 = vrot.slane %v4796, 1
      %v5967 = vsel %vm1068, %v5964, %v5966
      %v5968 = vrot.slane %v4797, 1
      %v5969 = vsel %vm1068, %v5966, %v5968
      %v5970 = vrot.slane %v4798, 1
      %v5971 = vsel %vm1068, %v5968, %v5970
      %v5972 = vrot.slane %v4799, 1
      %v5973 = vsel %vm1068, %v5970, %v5972
      %v5974 = vrot.slane %v4800, 1
      %v5975 = vsel %vm1068, %v5972, %v5974
      %v5976 = vrot.slane %v4801, 1
      %v5977 = vsel %vm1068, %v5974, %v5976
      %v5978 = vrot.slane %v4802, 1
      %v5979 = vsel %vm1068, %v5976, %v5978
      %v5980 = vrot.slane %v4803, 1
      %v5981 = vsel %vm1068, %v5978, %v5980
      %v5982 = vrot.slane %v4804, 1
      %v5983 = vsel %vm1068, %v5980, %v5982
      %v5984 = vrot.slane %v4805, 1
      %v5985 = vsel %vm1068, %v5982, %v5984
      %v5986 = vrot.slane %v4806, 1
      %v5987 = vsel %vm1068, %v5984, %v5986
      %v5988 = vrot.slane %v4807, 1
      %v5989 = vsel %vm1068, %v5986, %v5988
      %v5990 = vrot.slane %v4808, 1
      %v5991 = vsel %vm1068, %v5988, %v5990
      %v5992 = vrot.slane %v4809, 1
      %v5993 = vsel %vm1068, %v5990, %v5992
      %v5994 = vrot.slane %v4810, 1
      %v5995 = vsel %vm1068, %v5992, %v5994
      %v5996 = vrot.slane %v4811, 1
      %v5997 = vsel %vm1068, %v5994, %v5996
      %v5998 = vrot.slane %v4812, 1
      %v5999 = vsel %vm1068, %v5996, %v5998
      %v6000 = vrot.slane %v4813, 1
      %v6001 = vsel %vm1068, %v5998, %v6000
      %v6002 = vrot.slane %v4814, 1
      %v6003 = vsel %vm1068, %v6000, %v6002
      %v6004 = vrot.slane %v4815, 1
      %v6005 = vsel %vm1068, %v6002, %v6004
      %v6006 = vrot.slane %v4816, 1
      %v6007 = vsel %vm1068, %v6004, %v6006
      %v6008 = vrot.slane %v4817, 1
      %v6009 = vsel %vm1068, %v6006, %v6008
      %v6010 = vrot.slane %v4818, 1
      %v6011 = vsel %vm1068, %v6008, %v6010
      %v6012 = vrot.slane %v4819, 1
      %v6013 = vsel %vm1068, %v6010, %v6012
      %v6014 = vrot.slane %v4820, 1
      %v6015 = vsel %vm1068, %v6012, %v6014
      %v6016 = vrot.slane %v5632, 1
      %v6017 = vsel %vm1068, %v6014, %v6016
      %v6018 = vrot.slane %v5633, 1
      %v6019 = vsel %vm1068, %v6016, %v6018
      %6020 = vrot.lane.b32.xlu0 %v5939, 64
      %v6021 = vpop.permute.xlu0 %6020
      %6022 = vrot.lane.b32.xlu0 %v5941, 64
      %v6023 = vpop.permute.xlu0 %6022
      %6024 = vrot.lane.b32.xlu0 %v5943, 64
      %v6025 = vpop.permute.xlu0 %6024
      %6026 = vrot.lane.b32.xlu0 %v5945, 64
      %v6027 = vpop.permute.xlu0 %6026
      %6028 = vrot.lane.b32.xlu0 %v5947, 64
      %v6029 = vpop.permute.xlu0 %6028
      %6030 = vrot.lane.b32.xlu0 %v5949, 64
      %v6031 = vpop.permute.xlu0 %6030
      %6032 = vrot.lane.b32.xlu0 %v5951, 64
      %v6033 = vpop.permute.xlu0 %6032
      %6034 = vrot.lane.b32.xlu0 %v5953, 64
      %v6035 = vpop.permute.xlu0 %6034
      %6036 = vrot.lane.b32.xlu0 %v5955, 64
      %v6037 = vpop.permute.xlu0 %6036
      %6038 = vrot.lane.b32.xlu0 %v5957, 64
      %v6039 = vpop.permute.xlu0 %6038
      %6040 = vrot.lane.b32.xlu0 %v5959, 64
      %v6041 = vpop.permute.xlu0 %6040
      %6042 = vrot.lane.b32.xlu0 %v5961, 64
      %v6043 = vpop.permute.xlu0 %6042
      %6044 = vrot.lane.b32.xlu0 %v5963, 64
      %v6045 = vpop.permute.xlu0 %6044
      %6046 = vrot.lane.b32.xlu0 %v5965, 64
      %v6047 = vpop.permute.xlu0 %6046
      %6048 = vrot.lane.b32.xlu0 %v5967, 64
      %v6049 = vpop.permute.xlu0 %6048
      %6050 = vrot.lane.b32.xlu0 %v5969, 64
      %v6051 = vpop.permute.xlu0 %6050
      %6052 = vrot.lane.b32.xlu0 %v5971, 64
      %v6053 = vpop.permute.xlu0 %6052
      %6054 = vrot.lane.b32.xlu0 %v5973, 64
      %v6055 = vpop.permute.xlu0 %6054
      %6056 = vrot.lane.b32.xlu0 %v5975, 64
      %v6057 = vpop.permute.xlu0 %6056
      %6058 = vrot.lane.b32.xlu0 %v5977, 64
      %v6059 = vpop.permute.xlu0 %6058
      %6060 = vrot.lane.b32.xlu0 %v5979, 64
      %v6061 = vpop.permute.xlu0 %6060
      %6062 = vrot.lane.b32.xlu0 %v5981, 64
      %v6063 = vpop.permute.xlu0 %6062
      %6064 = vrot.lane.b32.xlu0 %v5983, 64
      %v6065 = vpop.permute.xlu0 %6064
      %6066 = vrot.lane.b32.xlu0 %v5985, 64
      %v6067 = vpop.permute.xlu0 %6066
      %6068 = vrot.lane.b32.xlu0 %v5987, 64
      %v6069 = vpop.permute.xlu0 %6068
      %6070 = vrot.lane.b32.xlu0 %v5989, 64
      %v6071 = vpop.permute.xlu0 %6070
      %6072 = vrot.lane.b32.xlu0 %v5991, 64
      %v6073 = vpop.permute.xlu0 %6072
      %6074 = vrot.lane.b32.xlu0 %v5993, 64
      %v6075 = vpop.permute.xlu0 %6074
      %6076 = vrot.lane.b32.xlu0 %v5995, 64
      %v6077 = vpop.permute.xlu0 %6076
      %6078 = vrot.lane.b32.xlu0 %v5997, 64
      %v6079 = vpop.permute.xlu0 %6078
      %6080 = vrot.lane.b32.xlu0 %v5999, 64
      %v6081 = vpop.permute.xlu0 %6080
      %6082 = vrot.lane.b32.xlu0 %v6001, 64
      %v6083 = vpop.permute.xlu0 %6082
      %6084 = vrot.lane.b32.xlu0 %v6003, 64
      %v6085 = vpop.permute.xlu0 %6084
      %6086 = vrot.lane.b32.xlu0 %v6005, 64
      %v6087 = vpop.permute.xlu0 %6086
      %6088 = vrot.lane.b32.xlu0 %v6007, 64
      %v6089 = vpop.permute.xlu0 %6088
      %6090 = vrot.lane.b32.xlu0 %v6009, 64
      %v6091 = vpop.permute.xlu0 %6090
      %6092 = vrot.lane.b32.xlu0 %v6011, 64
      %v6093 = vpop.permute.xlu0 %6092
      %6094 = vrot.lane.b32.xlu0 %v6013, 64
      %v6095 = vpop.permute.xlu0 %6094
      %6096 = vrot.lane.b32.xlu0 %v6015, 64
      %v6097 = vpop.permute.xlu0 %6096
      %6098 = vrot.lane.b32.xlu0 %v6017, 64
      %v6099 = vpop.permute.xlu0 %6098
      %6100 = vrot.lane.b32.xlu0 %v6019, 64
      %v6101 = vpop.permute.xlu0 %6100
      %6102 = vrot.lane.b32.xlu0 %v6018, 64
      %v6103 = vpop.permute.xlu0 %6102
      %v6105 = vsel %vm3353, %v4145, %v4523
      %v6107 = vsel %vm3353, %v4146, %v4525
      %v6109 = vsel %vm3353, %v4147, %v4527
      %v6111 = vsel %vm3353, %v4148, %v4529
      %v6113 = vsel %vm3353, %v4149, %v4531
      %v6115 = vsel %vm3353, %v4150, %v4533
      %v6117 = vsel %vm3353, %v4151, %v4535
      %v6119 = vsel %vm3353, %v4152, %v4537
      %v6121 = vsel %vm3353, %v4153, %v4539
      %v6123 = vsel %vm3353, %v4154, %v4541
      %v6125 = vsel %vm3353, %v4155, %v4543
      %v6127 = vsel %vm3353, %v4156, %v4545
      %v6129 = vsel %vm3353, %v4157, %v4547
      %v6131 = vsel %vm3353, %v4158, %v4549
      %v6133 = vsel %vm3353, %v4159, %v4551
      %v6135 = vsel %vm3353, %v4160, %v4553
      %v6137 = vsel %vm3353, %v4161, %v4555
      %v6139 = vsel %vm3353, %v4162, %v4557
      %v6141 = vsel %vm3353, %v4163, %v4559
      %v6143 = vsel %vm3353, %v4164, %v4561
      %v6145 = vsel %vm3353, %v4165, %v4563
      %v6147 = vsel %vm3353, %v4166, %v4565
      %v6149 = vsel %vm3353, %v4167, %v4567
      %v6151 = vsel %vm3353, %v4168, %v4569
      %v6153 = vsel %vm3353, %v4169, %v4571
      %v6155 = vsel %vm3353, %v4170, %v4573
      %v6157 = vsel %vm3353, %v4171, %v4575
      %v6159 = vsel %vm3353, %v4172, %v4577
      %v6161 = vsel %vm3353, %v4173, %v4579
      %v6163 = vsel %vm3353, %v4174, %v4581
      %v6165 = vsel %vm3353, %v4175, %v4583
      %v6167 = vsel %vm3353, %v4176, %v4585
      %v6169 = vsel %vm3353, %v4177, %v4587
      %v6171 = vsel %vm3353, %v4178, %v4589
      %v6173 = vsel %vm3353, %v4179, %v4591
      %v6175 = vsel %vm3353, %v4180, %v4593
      %v6177 = vsel %vm3353, %v4181, %v4595
      %v6179 = vsel %vm3353, %v4182, %v4597
      %v6181 = vsel %vm3353, %v4183, %v4599
      %v6183 = vsel %vm3353, %v4184, %v4601
      %v6185 = vsel %vm3353, %v4185, %v4603
      %v6187 = vsel %vm3353, %v4186, %v4605
      %vm6188 = vcmask 130048
      %v6190 = vsel %vm6188, %v6105, %v4690
      %v6192 = vsel %vm6188, %v6107, %v4692
      %v6194 = vsel %vm6188, %v6109, %v4694
      %v6196 = vsel %vm6188, %v6111, %v4696
      %v6198 = vsel %vm6188, %v6113, %v4698
      %v6200 = vsel %vm6188, %v6115, %v4700
      %v6202 = vsel %vm6188, %v6117, %v4702
      %v6204 = vsel %vm6188, %v6119, %v4704
      %v6206 = vsel %vm6188, %v6121, %v4706
      %v6208 = vsel %vm6188, %v6123, %v4708
      %v6210 = vsel %vm6188, %v6125, %v4710
      %v6212 = vsel %vm6188, %v6127, %v4712
      %v6214 = vsel %vm6188, %v6129, %v4714
      %v6216 = vsel %vm6188, %v6131, %v4716
      %v6218 = vsel %vm6188, %v6133, %v4718
      %v6220 = vsel %vm6188, %v6135, %v4720
      %v6222 = vsel %vm6188, %v6137, %v4722
      %v6224 = vsel %vm6188, %v6139, %v4724
      %v6226 = vsel %vm6188, %v6141, %v4726
      %v6228 = vsel %vm6188, %v6143, %v4728
      %v6230 = vsel %vm6188, %v6145, %v4730
      %v6232 = vsel %vm6188, %v6147, %v4732
      %v6234 = vsel %vm6188, %v6149, %v4734
      %v6236 = vsel %vm6188, %v6151, %v4736
      %v6238 = vsel %vm6188, %v6153, %v4738
      %v6240 = vsel %vm6188, %v6155, %v4740
      %v6242 = vsel %vm6188, %v6157, %v4742
      %v6244 = vsel %vm6188, %v6159, %v4744
      %v6246 = vsel %vm6188, %v6161, %v4746
      %v6248 = vsel %vm6188, %v6163, %v4748
      %v6250 = vsel %vm6188, %v6165, %v4750
      %v6252 = vsel %vm6188, %v6167, %v4752
      %v6254 = vsel %vm6188, %v6169, %v4754
      %v6256 = vsel %vm6188, %v6171, %v4756
      %v6258 = vsel %vm6188, %v6173, %v4758
      %v6260 = vsel %vm6188, %v6175, %v4760
      %v6262 = vsel %vm6188, %v6177, %v4762
      %v6264 = vsel %vm6188, %v6179, %v4764
      %v6266 = vsel %vm6188, %v6181, %v4766
      %v6268 = vsel %vm6188, %v6183, %v4768
      %v6270 = vsel %vm6188, %v6185, %v4770
      %v6272 = vsel %vm6188, %v6187, %v4772
      %vm6273 = vcmask 195584
      %v6275 = vsel %vm6273, %v6190, %v4905
      %v6277 = vsel %vm6273, %v6192, %v4907
      %v6279 = vsel %vm6273, %v6194, %v4909
      %v6281 = vsel %vm6273, %v6196, %v4911
      %v6283 = vsel %vm6273, %v6198, %v4913
      %v6285 = vsel %vm6273, %v6200, %v4915
      %v6287 = vsel %vm6273, %v6202, %v4917
      %v6289 = vsel %vm6273, %v6204, %v4919
      %v6291 = vsel %vm6273, %v6206, %v4921
      %v6293 = vsel %vm6273, %v6208, %v4923
      %v6295 = vsel %vm6273, %v6210, %v4925
      %v6297 = vsel %vm6273, %v6212, %v4927
      %v6299 = vsel %vm6273, %v6214, %v4929
      %v6301 = vsel %vm6273, %v6216, %v4931
      %v6303 = vsel %vm6273, %v6218, %v4933
      %v6305 = vsel %vm6273, %v6220, %v4935
      %v6307 = vsel %vm6273, %v6222, %v4937
      %v6309 = vsel %vm6273, %v6224, %v4939
      %v6311 = vsel %vm6273, %v6226, %v4941
      %v6313 = vsel %vm6273, %v6228, %v4943
      %v6315 = vsel %vm6273, %v6230, %v4945
      %v6317 = vsel %vm6273, %v6232, %v4947
      %v6319 = vsel %vm6273, %v6234, %v4949
      %v6321 = vsel %vm6273, %v6236, %v4951
      %v6323 = vsel %vm6273, %v6238, %v4953
      %v6325 = vsel %vm6273, %v6240, %v4955
      %v6327 = vsel %vm6273, %v6242, %v4957
      %v6329 = vsel %vm6273, %v6244, %v4959
      %v6331 = vsel %vm6273, %v6246, %v4961
      %v6333 = vsel %vm6273, %v6248, %v4963
      %v6335 = vsel %vm6273, %v6250, %v4965
      %v6337 = vsel %vm6273, %v6252, %v4967
      %v6339 = vsel %vm6273, %v6254, %v4969
      %v6341 = vsel %vm6273, %v6256, %v4971
      %v6343 = vsel %vm6273, %v6258, %v4973
      %v6345 = vsel %vm6273, %v6260, %v4975
      %v6347 = vsel %vm6273, %v6262, %v4977
      %v6349 = vsel %vm6273, %v6264, %v4979
      %v6351 = vsel %vm6273, %v6266, %v4981
      %v6353 = vsel %vm6273, %v6268, %v4983
      %v6355 = vsel %vm6273, %v6270, %v4985
      %v6357 = vsel %vm6273, %v6272, %v4987
      %vm6358 = vcmask 261120
      %v6360 = vsel %vm6358, %v6275, %v5374
      %v6362 = vsel %vm6358, %v6277, %v5376
      %v6364 = vsel %vm6358, %v6279, %v5378
      %v6366 = vsel %vm6358, %v6281, %v5380
      %v6368 = vsel %vm6358, %v6283, %v5382
      %v6370 = vsel %vm6358, %v6285, %v5384
      %v6372 = vsel %vm6358, %v6287, %v5386
      %v6374 = vsel %vm6358, %v6289, %v5388
      %v6376 = vsel %vm6358, %v6291, %v5390
      %v6378 = vsel %vm6358, %v6293, %v5392
      %v6380 = vsel %vm6358, %v6295, %v5394
      %v6382 = vsel %vm6358, %v6297, %v5396
      %v6384 = vsel %vm6358, %v6299, %v5398
      %v6386 = vsel %vm6358, %v6301, %v5400
      %v6388 = vsel %vm6358, %v6303, %v5402
      %v6390 = vsel %vm6358, %v6305, %v5404
      %v6392 = vsel %vm6358, %v6307, %v5406
      %v6394 = vsel %vm6358, %v6309, %v5408
      %v6396 = vsel %vm6358, %v6311, %v5410
      %v6398 = vsel %vm6358, %v6313, %v5412
      %v6400 = vsel %vm6358, %v6315, %v5414
      %v6402 = vsel %vm6358, %v6317, %v5416
      %v6404 = vsel %vm6358, %v6319, %v5418
      %v6406 = vsel %vm6358, %v6321, %v5420
      %v6408 = vsel %vm6358, %v6323, %v5422
      %v6410 = vsel %vm6358, %v6325, %v5424
      %v6412 = vsel %vm6358, %v6327, %v5426
      %v6414 = vsel %vm6358, %v6329, %v5428
      %v6416 = vsel %vm6358, %v6331, %v5430
      %v6418 = vsel %vm6358, %v6333, %v5432
      %v6420 = vsel %vm6358, %v6335, %v5434
      %v6422 = vsel %vm6358, %v6337, %v5436
      %v6424 = vsel %vm6358, %v6339, %v5438
      %v6426 = vsel %vm6358, %v6341, %v5440
      %v6428 = vsel %vm6358, %v6343, %v5442
      %v6430 = vsel %vm6358, %v6345, %v5444
      %v6432 = vsel %vm6358, %v6347, %v5446
      %v6434 = vsel %vm6358, %v6349, %v5448
      %v6436 = vsel %vm6358, %v6351, %v5450
      %v6438 = vsel %vm6358, %v6353, %v5452
      %v6440 = vsel %vm6358, %v6355, %v5454
      %v6442 = vsel %vm6358, %v6357, %v5456
      %vm6443 = vcmask 326656
      %v6445 = vsel %vm6443, %v6360, %v5543
      %v6447 = vsel %vm6443, %v6362, %v5545
      %v6449 = vsel %vm6443, %v6364, %v5547
      %v6451 = vsel %vm6443, %v6366, %v5549
      %v6453 = vsel %vm6443, %v6368, %v5551
      %v6455 = vsel %vm6443, %v6370, %v5553
      %v6457 = vsel %vm6443, %v6372, %v5555
      %v6459 = vsel %vm6443, %v6374, %v5557
      %v6461 = vsel %vm6443, %v6376, %v5559
      %v6463 = vsel %vm6443, %v6378, %v5561
      %v6465 = vsel %vm6443, %v6380, %v5563
      %v6467 = vsel %vm6443, %v6382, %v5565
      %v6469 = vsel %vm6443, %v6384, %v5567
      %v6471 = vsel %vm6443, %v6386, %v5569
      %v6473 = vsel %vm6443, %v6388, %v5571
      %v6475 = vsel %vm6443, %v6390, %v5573
      %v6477 = vsel %vm6443, %v6392, %v5575
      %v6479 = vsel %vm6443, %v6394, %v5577
      %v6481 = vsel %vm6443, %v6396, %v5579
      %v6483 = vsel %vm6443, %v6398, %v5581
      %v6485 = vsel %vm6443, %v6400, %v5583
      %v6487 = vsel %vm6443, %v6402, %v5585
      %v6489 = vsel %vm6443, %v6404, %v5587
      %v6491 = vsel %vm6443, %v6406, %v5589
      %v6493 = vsel %vm6443, %v6408, %v5591
      %v6495 = vsel %vm6443, %v6410, %v5593
      %v6497 = vsel %vm6443, %v6412, %v5595
      %v6499 = vsel %vm6443, %v6414, %v5597
      %v6501 = vsel %vm6443, %v6416, %v5599
      %v6503 = vsel %vm6443, %v6418, %v5601
      %v6505 = vsel %vm6443, %v6420, %v5603
      %v6507 = vsel %vm6443, %v6422, %v5605
      %v6509 = vsel %vm6443, %v6424, %v5607
      %v6511 = vsel %vm6443, %v6426, %v5609
      %v6513 = vsel %vm6443, %v6428, %v5611
      %v6515 = vsel %vm6443, %v6430, %v5613
      %v6517 = vsel %vm6443, %v6432, %v5615
      %v6519 = vsel %vm6443, %v6434, %v5617
      %v6521 = vsel %vm6443, %v6436, %v5619
      %v6523 = vsel %vm6443, %v6438, %v5621
      %v6525 = vsel %vm6443, %v6440, %v5623
      %v6527 = vsel %vm6443, %v6442, %v5625
      %vm6528 = vcmask 392192
      %v6530 = vsel %vm6528, %v6445, %v5635
      %v6532 = vsel %vm6528, %v6447, %v5637
      %v6534 = vsel %vm6528, %v6449, %v5639
      %v6536 = vsel %vm6528, %v6451, %v5641
      %v6538 = vsel %vm6528, %v6453, %v5643
      %v6540 = vsel %vm6528, %v6455, %v5645
      %v6542 = vsel %vm6528, %v6457, %v5647
      %v6544 = vsel %vm6528, %v6459, %v5649
      %v6546 = vsel %vm6528, %v6461, %v5651
      %v6548 = vsel %vm6528, %v6463, %v5653
      %v6550 = vsel %vm6528, %v6465, %v5655
      %v6552 = vsel %vm6528, %v6467, %v5657
      %v6554 = vsel %vm6528, %v6469, %v5659
      %v6556 = vsel %vm6528, %v6471, %v5661
      %v6558 = vsel %vm6528, %v6473, %v5663
      %v6560 = vsel %vm6528, %v6475, %v5665
      %v6562 = vsel %vm6528, %v6477, %v5667
      %v6564 = vsel %vm6528, %v6479, %v5669
      %v6566 = vsel %vm6528, %v6481, %v5671
      %v6568 = vsel %vm6528, %v6483, %v5673
      %v6570 = vsel %vm6528, %v6485, %v5675
      %v6572 = vsel %vm6528, %v6487, %v5677
      %v6574 = vsel %vm6528, %v6489, %v5679
      %v6576 = vsel %vm6528, %v6491, %v5681
      %v6578 = vsel %vm6528, %v6493, %v5683
      %v6580 = vsel %vm6528, %v6495, %v5685
      %v6582 = vsel %vm6528, %v6497, %v5687
      %v6584 = vsel %vm6528, %v6499, %v5689
      %v6586 = vsel %vm6528, %v6501, %v5691
      %v6588 = vsel %vm6528, %v6503, %v5693
      %v6590 = vsel %vm6528, %v6505, %v5695
      %v6592 = vsel %vm6528, %v6507, %v5697
      %v6594 = vsel %vm6528, %v6509, %v5699
      %v6596 = vsel %vm6528, %v6511, %v5701
      %v6598 = vsel %vm6528, %v6513, %v5703
      %v6600 = vsel %vm6528, %v6515, %v5705
      %v6602 = vsel %vm6528, %v6517, %v5707
      %v6604 = vsel %vm6528, %v6519, %v5709
      %v6606 = vsel %vm6528, %v6521, %v5711
      %v6608 = vsel %vm6528, %v6523, %v5713
      %v6610 = vsel %vm6528, %v6525, %v5715
      %v6612 = vsel %vm6528, %v6527, %v5717
      %vm6613 = vcmask 457728
      %v6615 = vsel %vm6613, %v6530, %v5854
      %v6617 = vsel %vm6613, %v6532, %v5856
      %v6619 = vsel %vm6613, %v6534, %v5858
      %v6621 = vsel %vm6613, %v6536, %v5860
      %v6623 = vsel %vm6613, %v6538, %v5862
      %v6625 = vsel %vm6613, %v6540, %v5864
      %v6627 = vsel %vm6613, %v6542, %v5866
      %v6629 = vsel %vm6613, %v6544, %v5868
      %v6631 = vsel %vm6613, %v6546, %v5870
      %v6633 = vsel %vm6613, %v6548, %v5872
      %v6635 = vsel %vm6613, %v6550, %v5874
      %v6637 = vsel %vm6613, %v6552, %v5876
      %v6639 = vsel %vm6613, %v6554, %v5878
      %v6641 = vsel %vm6613, %v6556, %v5880
      %v6643 = vsel %vm6613, %v6558, %v5882
      %v6645 = vsel %vm6613, %v6560, %v5884
      %v6647 = vsel %vm6613, %v6562, %v5886
      %v6649 = vsel %vm6613, %v6564, %v5888
      %v6651 = vsel %vm6613, %v6566, %v5890
      %v6653 = vsel %vm6613, %v6568, %v5892
      %v6655 = vsel %vm6613, %v6570, %v5894
      %v6657 = vsel %vm6613, %v6572, %v5896
      %v6659 = vsel %vm6613, %v6574, %v5898
      %v6661 = vsel %vm6613, %v6576, %v5900
      %v6663 = vsel %vm6613, %v6578, %v5902
      %v6665 = vsel %vm6613, %v6580, %v5904
      %v6667 = vsel %vm6613, %v6582, %v5906
      %v6669 = vsel %vm6613, %v6584, %v5908
      %v6671 = vsel %vm6613, %v6586, %v5910
      %v6673 = vsel %vm6613, %v6588, %v5912
      %v6675 = vsel %vm6613, %v6590, %v5914
      %v6677 = vsel %vm6613, %v6592, %v5916
      %v6679 = vsel %vm6613, %v6594, %v5918
      %v6681 = vsel %vm6613, %v6596, %v5920
      %v6683 = vsel %vm6613, %v6598, %v5922
      %v6685 = vsel %vm6613, %v6600, %v5924
      %v6687 = vsel %vm6613, %v6602, %v5926
      %v6689 = vsel %vm6613, %v6604, %v5928
      %v6691 = vsel %vm6613, %v6606, %v5930
      %v6693 = vsel %vm6613, %v6608, %v5932
      %v6695 = vsel %vm6613, %v6610, %v5934
      %v6697 = vsel %vm6613, %v6612, %v5936
      %vm6698 = vcmask 523264
      %v6700 = vsel %vm6698, %v6615, %v6021
      %v6702 = vsel %vm6698, %v6617, %v6023
      %v6704 = vsel %vm6698, %v6619, %v6025
      %v6706 = vsel %vm6698, %v6621, %v6027
      %v6708 = vsel %vm6698, %v6623, %v6029
      %v6710 = vsel %vm6698, %v6625, %v6031
      %v6712 = vsel %vm6698, %v6627, %v6033
      %v6714 = vsel %vm6698, %v6629, %v6035
      %v6716 = vsel %vm6698, %v6631, %v6037
      %v6718 = vsel %vm6698, %v6633, %v6039
      %v6720 = vsel %vm6698, %v6635, %v6041
      %v6722 = vsel %vm6698, %v6637, %v6043
      %v6724 = vsel %vm6698, %v6639, %v6045
      %v6726 = vsel %vm6698, %v6641, %v6047
      %v6728 = vsel %vm6698, %v6643, %v6049
      %v6730 = vsel %vm6698, %v6645, %v6051
      %v6732 = vsel %vm6698, %v6647, %v6053
      %v6734 = vsel %vm6698, %v6649, %v6055
      %v6736 = vsel %vm6698, %v6651, %v6057
      %v6738 = vsel %vm6698, %v6653, %v6059
      %v6740 = vsel %vm6698, %v6655, %v6061
      %v6742 = vsel %vm6698, %v6657, %v6063
      %v6744 = vsel %vm6698, %v6659, %v6065
      %v6746 = vsel %vm6698, %v6661, %v6067
      %v6748 = vsel %vm6698, %v6663, %v6069
      %v6750 = vsel %vm6698, %v6665, %v6071
      %v6752 = vsel %vm6698, %v6667, %v6073
      %v6754 = vsel %vm6698, %v6669, %v6075
      %v6756 = vsel %vm6698, %v6671, %v6077
      %v6758 = vsel %vm6698, %v6673, %v6079
      %v6760 = vsel %vm6698, %v6675, %v6081
      %v6762 = vsel %vm6698, %v6677, %v6083
      %v6764 = vsel %vm6698, %v6679, %v6085
      %v6766 = vsel %vm6698, %v6681, %v6087
      %v6768 = vsel %vm6698, %v6683, %v6089
      %v6770 = vsel %vm6698, %v6685, %v6091
      %v6772 = vsel %vm6698, %v6687, %v6093
      %v6774 = vsel %vm6698, %v6689, %v6095
      %v6776 = vsel %vm6698, %v6691, %v6097
      %v6778 = vsel %vm6698, %v6693, %v6099
      %v6780 = vsel %vm6698, %v6695, %v6101
      %v6782 = vsel %vm6698, %v6697, %v6103
      %v6783 = vld [vmem:[%s3] sm:$0xf]
      %v6784 = vld [vmem:[%s3 + $0x4] sm:$0xf]
      %v6785 = vld [vmem:[%s3 + $0x8] sm:$0xf]
      %v6786 = vld [vmem:[%s3 + $0xc] sm:$0xf]
      %v6787 = vld [vmem:[%s3 + $0x10] sm:$0xf]
      %v6788 = vld [vmem:[%s3 + $0x14] sm:$0xf]
      %v6789 = vld [vmem:[%s3 + $0x18] sm:$0xf]
      %v6790 = vld [vmem:[%s3 + $0x1c] sm:$0xf]
      %v6791 = vld [vmem:[%s3 + $0x20] sm:$0xf]
      %v6792 = vld [vmem:[%s4] sm:$0x1]
      %v6794 = vperm.slane %v6792, 0
      %v6805 = vunpack.c.l.b16 %v6783
      %v6806 = vunpack.c.l.b16 %v6784
      %v6807 = vunpack.c.l.b16 %v6785
      %v6808 = vunpack.c.l.b16 %v6786
      %v6809 = vunpack.c.l.b16 %v6787
      %v6810 = vunpack.c.l.b16 %v6788
      %v6811 = vunpack.c.l.b16 %v6789
      %v6812 = vunpack.c.l.b16 %v6790
      %v6813 = vunpack.c.l.b16 %v6791
      %v6814 = vpack.c.b16 %v6806, %v6805
      %v6815 = vpack.c.b16 %v6808, %v6807
      %v6816 = vpack.c.b16 %v6810, %v6809
      %v6817 = vpack.c.b16 %v6812, %v6811
      %v6818 = vpack.c.b16 %v6813, %v6813
      %vm6823 = vcmask 588800
      %v6824 = vsel %vm6823, %v6700, 0
      %v6826 = vsel %vm6823, %v6702, 0
      %v6828 = vsel %vm6823, %v6704, 0
      %v6830 = vsel %vm6823, %v6706, 0
      %v6832 = vsel %vm6823, %v6708, 0
      %v6834 = vsel %vm6823, %v6710, 0
      %v6836 = vsel %vm6823, %v6712, 0
      %v6838 = vsel %vm6823, %v6714, 0
      %v6840 = vsel %vm6823, %v6716, 0
      %v6842 = vsel %vm6823, %v6718, 0
      %v6844 = vsel %vm6823, %v6720, 0
      %v6846 = vsel %vm6823, %v6722, 0
      %v6848 = vsel %vm6823, %v6724, 0
      %v6850 = vsel %vm6823, %v6726, 0
      %v6852 = vsel %vm6823, %v6728, 0
      %v6854 = vsel %vm6823, %v6730, 0
      %v6856 = vsel %vm6823, %v6732, 0
      %v6858 = vsel %vm6823, %v6734, 0
      %v6860 = vsel %vm6823, %v6736, 0
      %v6862 = vsel %vm6823, %v6738, 0
      %v6864 = vsel %vm6823, %v6740, 0
      %v6866 = vsel %vm6823, %v6742, 0
      %v6868 = vsel %vm6823, %v6744, 0
      %v6870 = vsel %vm6823, %v6746, 0
      %v6872 = vsel %vm6823, %v6748, 0
      %v6874 = vsel %vm6823, %v6750, 0
      %v6876 = vsel %vm6823, %v6752, 0
      %v6878 = vsel %vm6823, %v6754, 0
      %v6880 = vsel %vm6823, %v6756, 0
      %v6882 = vsel %vm6823, %v6758, 0
      %v6884 = vsel %vm6823, %v6760, 0
      %v6886 = vsel %vm6823, %v6762, 0
      %v6888 = vsel %vm6823, %v6764, 0
      %v6890 = vsel %vm6823, %v6766, 0
      %v6892 = vsel %vm6823, %v6768, 0
      %v6894 = vsel %vm6823, %v6770, 0
      %v6896 = vsel %vm6823, %v6772, 0
      %v6898 = vsel %vm6823, %v6774, 0
      %v6900 = vsel %vm6823, %v6776, 0
      %v6902 = vsel %vm6823, %v6778, 0
      %v6904 = vsel %vm6823, %v6780, 0
      %v6906 = vsel %vm6823, %v6782, 0
      %v6909 = vsel %vm3550, %v6818, 0
      %6911 = vmatpush.bf16.msra.mxu0 0
      %6912 = vmatpush.bf16.msra.mxu0 0
      %6913 = vmatpush.bf16.msra.mxu0 0
      %6914 = vmatpush.bf16.msra.mxu0 %v6909
      %6915 = vmatpush.bf16.msra.mxu0 %v6817
      %6916 = vmatpush.bf16.msra.mxu0 %v6816
      %6917 = vmatpush.bf16.msra.mxu0 %v6815
      %6918 = vmatpush.bf16.msra.mxu0 %v6814
      %6919 = vmatmul.bf16.gmra.mxu0 %v6824
      %v6920 = vpop.f32.mrf.mxu0
      %v6921 = vadd.f32 %v6794, %v6920
      %v6922 = vpop.f32.mrf.mxu0
      %v6923 = vadd.f32 %v6794, %v6922
      %6924 = vmatmul.bf16.gmra.mxu0 %v6826
      %v6925 = vpop.f32.mrf.mxu0
      %v6926 = vadd.f32 %v6794, %v6925
      %v6927 = vpop.f32.mrf.mxu0
      %v6928 = vadd.f32 %v6794, %v6927
      %6929 = vmatmul.bf16.gmra.mxu0 %v6828
      %v6930 = vpop.f32.mrf.mxu0
      %v6931 = vadd.f32 %v6794, %v6930
      %v6932 = vpop.f32.mrf.mxu0
      %v6933 = vadd.f32 %v6794, %v6932
      %6934 = vmatmul.bf16.gmra.mxu0 %v6830
      %v6935 = vpop.f32.mrf.mxu0
      %v6936 = vadd.f32 %v6794, %v6935
      %v6937 = vpop.f32.mrf.mxu0
      %v6938 = vadd.f32 %v6794, %v6937
      %6939 = vmatmul.bf16.gmra.mxu0 %v6832
      %v6940 = vpop.f32.mrf.mxu0
      %v6941 = vadd.f32 %v6794, %v6940
      %v6942 = vpop.f32.mrf.mxu0
      %v6943 = vadd.f32 %v6794, %v6942
      %6944 = vmatmul.bf16.gmra.mxu0 %v6834
      %v6945 = vpop.f32.mrf.mxu0
      %v6946 = vadd.f32 %v6794, %v6945
      %v6947 = vpop.f32.mrf.mxu0
      %v6948 = vadd.f32 %v6794, %v6947
      %6949 = vmatmul.bf16.gmra.mxu0 %v6836
      %v6950 = vpop.f32.mrf.mxu0
      %v6951 = vadd.f32 %v6794, %v6950
      %v6952 = vpop.f32.mrf.mxu0
      %v6953 = vadd.f32 %v6794, %v6952
      %6954 = vmatmul.bf16.gmra.mxu0 %v6838
      %v6955 = vpop.f32.mrf.mxu0
      %v6956 = vadd.f32 %v6794, %v6955
      %v6957 = vpop.f32.mrf.mxu0
      %v6958 = vadd.f32 %v6794, %v6957
      %6959 = vmatmul.bf16.gmra.mxu0 %v6840
      %v6960 = vpop.f32.mrf.mxu0
      %v6961 = vadd.f32 %v6794, %v6960
      %v6962 = vpop.f32.mrf.mxu0
      %v6963 = vadd.f32 %v6794, %v6962
      %6964 = vmatmul.bf16.gmra.mxu0 %v6842
      %v6965 = vpop.f32.mrf.mxu0
      %v6966 = vadd.f32 %v6794, %v6965
      %v6967 = vpop.f32.mrf.mxu0
      %v6968 = vadd.f32 %v6794, %v6967
      %6969 = vmatmul.bf16.gmra.mxu0 %v6844
      %v6970 = vpop.f32.mrf.mxu0
      %v6971 = vadd.f32 %v6794, %v6970
      %v6972 = vpop.f32.mrf.mxu0
      %v6973 = vadd.f32 %v6794, %v6972
      %6974 = vmatmul.bf16.gmra.mxu0 %v6846
      %v6975 = vpop.f32.mrf.mxu0
      %v6976 = vadd.f32 %v6794, %v6975
      %v6977 = vpop.f32.mrf.mxu0
      %v6978 = vadd.f32 %v6794, %v6977
      %6979 = vmatmul.bf16.gmra.mxu0 %v6848
      %v6980 = vpop.f32.mrf.mxu0
      %v6981 = vadd.f32 %v6794, %v6980
      %v6982 = vpop.f32.mrf.mxu0
      %v6983 = vadd.f32 %v6794, %v6982
      %6984 = vmatmul.bf16.gmra.mxu0 %v6850
      %v6985 = vpop.f32.mrf.mxu0
      %v6986 = vadd.f32 %v6794, %v6985
      %v6987 = vpop.f32.mrf.mxu0
      %v6988 = vadd.f32 %v6794, %v6987
      %6989 = vmatmul.bf16.gmra.mxu0 %v6852
      %v6990 = vpop.f32.mrf.mxu0
      %v6991 = vadd.f32 %v6794, %v6990
      %v6992 = vpop.f32.mrf.mxu0
      %v6993 = vadd.f32 %v6794, %v6992
      %6994 = vmatmul.bf16.gmra.mxu0 %v6854
      %v6995 = vpop.f32.mrf.mxu0
      %v6996 = vadd.f32 %v6794, %v6995
      %v6997 = vpop.f32.mrf.mxu0
      %v6998 = vadd.f32 %v6794, %v6997
      %6999 = vmatmul.bf16.gmra.mxu0 %v6856
      %v7000 = vpop.f32.mrf.mxu0
      %v7001 = vadd.f32 %v6794, %v7000
      %v7002 = vpop.f32.mrf.mxu0
      %v7003 = vadd.f32 %v6794, %v7002
      %7004 = vmatmul.bf16.gmra.mxu0 %v6858
      %v7005 = vpop.f32.mrf.mxu0
      %v7006 = vadd.f32 %v6794, %v7005
      %v7007 = vpop.f32.mrf.mxu0
      %v7008 = vadd.f32 %v6794, %v7007
      %7009 = vmatmul.bf16.gmra.mxu0 %v6860
      %v7010 = vpop.f32.mrf.mxu0
      %v7011 = vadd.f32 %v6794, %v7010
      %v7012 = vpop.f32.mrf.mxu0
      %v7013 = vadd.f32 %v6794, %v7012
      %7014 = vmatmul.bf16.gmra.mxu0 %v6862
      %v7015 = vpop.f32.mrf.mxu0
      %v7016 = vadd.f32 %v6794, %v7015
      %v7017 = vpop.f32.mrf.mxu0
      %v7018 = vadd.f32 %v6794, %v7017
      %7019 = vmatmul.bf16.gmra.mxu0 %v6864
      %v7020 = vpop.f32.mrf.mxu0
      %v7021 = vadd.f32 %v6794, %v7020
      %v7022 = vpop.f32.mrf.mxu0
      %v7023 = vadd.f32 %v6794, %v7022
      %7024 = vmatmul.bf16.gmra.mxu0 %v6866
      %v7025 = vpop.f32.mrf.mxu0
      %v7026 = vadd.f32 %v6794, %v7025
      %v7027 = vpop.f32.mrf.mxu0
      %v7028 = vadd.f32 %v6794, %v7027
      %7029 = vmatmul.bf16.gmra.mxu0 %v6868
      %v7030 = vpop.f32.mrf.mxu0
      %v7031 = vadd.f32 %v6794, %v7030
      %v7032 = vpop.f32.mrf.mxu0
      %v7033 = vadd.f32 %v6794, %v7032
      %7034 = vmatmul.bf16.gmra.mxu0 %v6870
      %v7035 = vpop.f32.mrf.mxu0
      %v7036 = vadd.f32 %v6794, %v7035
      %v7037 = vpop.f32.mrf.mxu0
      %v7038 = vadd.f32 %v6794, %v7037
      %7039 = vmatmul.bf16.gmra.mxu0 %v6872
      %v7040 = vpop.f32.mrf.mxu0
      %v7041 = vadd.f32 %v6794, %v7040
      %v7042 = vpop.f32.mrf.mxu0
      %v7043 = vadd.f32 %v6794, %v7042
      %7044 = vmatmul.bf16.gmra.mxu0 %v6874
      %v7045 = vpop.f32.mrf.mxu0
      %v7046 = vadd.f32 %v6794, %v7045
      %v7047 = vpop.f32.mrf.mxu0
      %v7048 = vadd.f32 %v6794, %v7047
      %7049 = vmatmul.bf16.gmra.mxu0 %v6876
      %v7050 = vpop.f32.mrf.mxu0
      %v7051 = vadd.f32 %v6794, %v7050
      %v7052 = vpop.f32.mrf.mxu0
      %v7053 = vadd.f32 %v6794, %v7052
      %7054 = vmatmul.bf16.gmra.mxu0 %v6878
      %v7055 = vpop.f32.mrf.mxu0
      %v7056 = vadd.f32 %v6794, %v7055
      %v7057 = vpop.f32.mrf.mxu0
      %v7058 = vadd.f32 %v6794, %v7057
      %7059 = vmatmul.bf16.gmra.mxu0 %v6880
      %v7060 = vpop.f32.mrf.mxu0
      %v7061 = vadd.f32 %v6794, %v7060
      %v7062 = vpop.f32.mrf.mxu0
      %v7063 = vadd.f32 %v6794, %v7062
      %7064 = vmatmul.bf16.gmra.mxu0 %v6882
      %v7065 = vpop.f32.mrf.mxu0
      %v7066 = vadd.f32 %v6794, %v7065
      %v7067 = vpop.f32.mrf.mxu0
      %v7068 = vadd.f32 %v6794, %v7067
      %7069 = vmatmul.bf16.gmra.mxu0 %v6884
      %v7070 = vpop.f32.mrf.mxu0
      %v7071 = vadd.f32 %v6794, %v7070
      %v7072 = vpop.f32.mrf.mxu0
      %v7073 = vadd.f32 %v6794, %v7072
      %7074 = vmatmul.bf16.gmra.mxu0 %v6886
      %v7075 = vpop.f32.mrf.mxu0
      %v7076 = vadd.f32 %v6794, %v7075
      %v7077 = vpop.f32.mrf.mxu0
      %v7078 = vadd.f32 %v6794, %v7077
      %7079 = vmatmul.bf16.gmra.mxu0 %v6888
      %v7080 = vpop.f32.mrf.mxu0
      %v7081 = vadd.f32 %v6794, %v7080
      %v7082 = vpop.f32.mrf.mxu0
      %v7083 = vadd.f32 %v6794, %v7082
      %7084 = vmatmul.bf16.gmra.mxu0 %v6890
      %v7085 = vpop.f32.mrf.mxu0
      %v7086 = vadd.f32 %v6794, %v7085
      %v7087 = vpop.f32.mrf.mxu0
      %v7088 = vadd.f32 %v6794, %v7087
      %7089 = vmatmul.bf16.gmra.mxu0 %v6892
      %v7090 = vpop.f32.mrf.mxu0
      %v7091 = vadd.f32 %v6794, %v7090
      %v7092 = vpop.f32.mrf.mxu0
      %v7093 = vadd.f32 %v6794, %v7092
      %7094 = vmatmul.bf16.gmra.mxu0 %v6894
      %v7095 = vpop.f32.mrf.mxu0
      %v7096 = vadd.f32 %v6794, %v7095
      %v7097 = vpop.f32.mrf.mxu0
      %v7098 = vadd.f32 %v6794, %v7097
      %7099 = vmatmul.bf16.gmra.mxu0 %v6896
      %v7100 = vpop.f32.mrf.mxu0
      %v7101 = vadd.f32 %v6794, %v7100
      %v7102 = vpop.f32.mrf.mxu0
      %v7103 = vadd.f32 %v6794, %v7102
      %7104 = vmatmul.bf16.gmra.mxu0 %v6898
      %v7105 = vpop.f32.mrf.mxu0
      %v7106 = vadd.f32 %v6794, %v7105
      %v7107 = vpop.f32.mrf.mxu0
      %v7108 = vadd.f32 %v6794, %v7107
      %7109 = vmatmul.bf16.gmra.mxu0 %v6900
      %v7110 = vpop.f32.mrf.mxu0
      %v7111 = vadd.f32 %v6794, %v7110
      %v7112 = vpop.f32.mrf.mxu0
      %v7113 = vadd.f32 %v6794, %v7112
      %7114 = vmatmul.bf16.gmra.mxu0 %v6902
      %v7115 = vpop.f32.mrf.mxu0
      %v7116 = vadd.f32 %v6794, %v7115
      %v7117 = vpop.f32.mrf.mxu0
      %v7118 = vadd.f32 %v6794, %v7117
      %7119 = vmatmul.bf16.gmra.mxu0 %v6904
      %v7120 = vpop.f32.mrf.mxu0
      %v7121 = vadd.f32 %v6794, %v7120
      %v7122 = vpop.f32.mrf.mxu0
      %v7123 = vadd.f32 %v6794, %v7122
      %7124 = vmatmul.bf16.gmra.mxu0 %v6906
      %v7125 = vpop.f32.mrf.mxu0
      %v7126 = vadd.f32 %v6794, %v7125
      %v7127 = vpop.f32.mrf.mxu0
      %v7128 = vadd.f32 %v6794, %v7127
      %7129 = vdwg.mxu0
      %v7130 = vmax.f32 %v6921, 0.0
      %v7131 = vmax.f32 %v6923, 0.0
      %v7132 = vmax.f32 %v6926, 0.0
      %v7133 = vmax.f32 %v6928, 0.0
      %v7134 = vmax.f32 %v6931, 0.0
      %v7135 = vmax.f32 %v6933, 0.0
      %v7136 = vmax.f32 %v6936, 0.0
      %v7137 = vmax.f32 %v6938, 0.0
      %v7138 = vmax.f32 %v6941, 0.0
      %v7139 = vmax.f32 %v6943, 0.0
      %v7140 = vmax.f32 %v6946, 0.0
      %v7141 = vmax.f32 %v6948, 0.0
      %v7142 = vmax.f32 %v6951, 0.0
      %v7143 = vmax.f32 %v6953, 0.0
      %v7144 = vmax.f32 %v6956, 0.0
      %v7145 = vmax.f32 %v6958, 0.0
      %v7146 = vmax.f32 %v6961, 0.0
      %v7147 = vmax.f32 %v6963, 0.0
      %v7148 = vmax.f32 %v6966, 0.0
      %v7149 = vmax.f32 %v6968, 0.0
      %v7150 = vmax.f32 %v6971, 0.0
      %v7151 = vmax.f32 %v6973, 0.0
      %v7152 = vmax.f32 %v6976, 0.0
      %v7153 = vmax.f32 %v6978, 0.0
      %v7154 = vmax.f32 %v6981, 0.0
      %v7155 = vmax.f32 %v6983, 0.0
      %v7156 = vmax.f32 %v6986, 0.0
      %v7157 = vmax.f32 %v6988, 0.0
      %v7158 = vmax.f32 %v6991, 0.0
      %v7159 = vmax.f32 %v6993, 0.0
      %v7160 = vmax.f32 %v6996, 0.0
      %v7161 = vmax.f32 %v6998, 0.0
      %v7162 = vmax.f32 %v7001, 0.0
      %v7163 = vmax.f32 %v7003, 0.0
      %v7164 = vmax.f32 %v7006, 0.0
      %v7165 = vmax.f32 %v7008, 0.0
      %v7166 = vmax.f32 %v7011, 0.0
      %v7167 = vmax.f32 %v7013, 0.0
      %v7168 = vmax.f32 %v7016, 0.0
      %v7169 = vmax.f32 %v7018, 0.0
      %v7170 = vmax.f32 %v7021, 0.0
      %v7171 = vmax.f32 %v7023, 0.0
      %v7172 = vmax.f32 %v7026, 0.0
      %v7173 = vmax.f32 %v7028, 0.0
      %v7174 = vmax.f32 %v7031, 0.0
      %v7175 = vmax.f32 %v7033, 0.0
      %v7176 = vmax.f32 %v7036, 0.0
      %v7177 = vmax.f32 %v7038, 0.0
      %v7178 = vmax.f32 %v7041, 0.0
      %v7179 = vmax.f32 %v7043, 0.0
      %v7180 = vmax.f32 %v7046, 0.0
      %v7181 = vmax.f32 %v7048, 0.0
      %v7182 = vmax.f32 %v7051, 0.0
      %v7183 = vmax.f32 %v7053, 0.0
      %v7184 = vmax.f32 %v7056, 0.0
      %v7185 = vmax.f32 %v7058, 0.0
      %v7186 = vmax.f32 %v7061, 0.0
      %v7187 = vmax.f32 %v7063, 0.0
      %v7188 = vmax.f32 %v7066, 0.0
      %v7189 = vmax.f32 %v7068, 0.0
      %v7190 = vmax.f32 %v7071, 0.0
      %v7191 = vmax.f32 %v7073, 0.0
      %v7192 = vmax.f32 %v7076, 0.0
      %v7193 = vmax.f32 %v7078, 0.0
      %v7194 = vmax.f32 %v7081, 0.0
      %v7195 = vmax.f32 %v7083, 0.0
      %v7196 = vmax.f32 %v7086, 0.0
      %v7197 = vmax.f32 %v7088, 0.0
      %v7198 = vmax.f32 %v7091, 0.0
      %v7199 = vmax.f32 %v7093, 0.0
      %v7200 = vmax.f32 %v7096, 0.0
      %v7201 = vmax.f32 %v7098, 0.0
      %v7202 = vmax.f32 %v7101, 0.0
      %v7203 = vmax.f32 %v7103, 0.0
      %v7204 = vmax.f32 %v7106, 0.0
      %v7205 = vmax.f32 %v7108, 0.0
      %v7206 = vmax.f32 %v7111, 0.0
      %v7207 = vmax.f32 %v7113, 0.0
      %v7208 = vmax.f32 %v7116, 0.0
      %v7209 = vmax.f32 %v7118, 0.0
      %v7210 = vmax.f32 %v7121, 0.0
      %v7211 = vmax.f32 %v7123, 0.0
      %v7212 = vmax.f32 %v7126, 0.0
      %v7213 = vmax.f32 %v7128, 0.0
      %v7214 = vpack.c.bf16 %v7130, %v7130
      %v7215 = vpack.c.bf16 %v7131, %v7131
      %v7216 = vpack.c.bf16 %v7132, %v7132
      %v7217 = vpack.c.bf16 %v7133, %v7133
      %v7218 = vpack.c.bf16 %v7134, %v7134
      %v7219 = vpack.c.bf16 %v7135, %v7135
      %v7220 = vpack.c.bf16 %v7136, %v7136
      %v7221 = vpack.c.bf16 %v7137, %v7137
      %v7222 = vpack.c.bf16 %v7138, %v7138
      %v7223 = vpack.c.bf16 %v7139, %v7139
      %v7224 = vpack.c.bf16 %v7140, %v7140
      %v7225 = vpack.c.bf16 %v7141, %v7141
      %v7226 = vpack.c.bf16 %v7142, %v7142
      %v7227 = vpack.c.bf16 %v7143, %v7143
      %v7228 = vpack.c.bf16 %v7144, %v7144
      %v7229 = vpack.c.bf16 %v7145, %v7145
      %v7230 = vpack.c.bf16 %v7146, %v7146
      %v7231 = vpack.c.bf16 %v7147, %v7147
      %v7232 = vpack.c.bf16 %v7148, %v7148
      %v7233 = vpack.c.bf16 %v7149, %v7149
      %v7234 = vpack.c.bf16 %v7150, %v7150
      %v7235 = vpack.c.bf16 %v7151, %v7151
      %v7236 = vpack.c.bf16 %v7152, %v7152
      %v7237 = vpack.c.bf16 %v7153, %v7153
      %v7238 = vpack.c.bf16 %v7154, %v7154
      %v7239 = vpack.c.bf16 %v7155, %v7155
      %v7240 = vpack.c.bf16 %v7156, %v7156
      %v7241 = vpack.c.bf16 %v7157, %v7157
      %v7242 = vpack.c.bf16 %v7158, %v7158
      %v7243 = vpack.c.bf16 %v7159, %v7159
      %v7244 = vpack.c.bf16 %v7160, %v7160
      %v7245 = vpack.c.bf16 %v7161, %v7161
      %v7246 = vpack.c.bf16 %v7162, %v7162
      %v7247 = vpack.c.bf16 %v7163, %v7163
      %v7248 = vpack.c.bf16 %v7164, %v7164
      %v7249 = vpack.c.bf16 %v7165, %v7165
      %v7250 = vpack.c.bf16 %v7166, %v7166
      %v7251 = vpack.c.bf16 %v7167, %v7167
      %v7252 = vpack.c.bf16 %v7168, %v7168
      %v7253 = vpack.c.bf16 %v7169, %v7169
      %v7254 = vpack.c.bf16 %v7170, %v7170
      %v7255 = vpack.c.bf16 %v7171, %v7171
      %v7256 = vpack.c.bf16 %v7172, %v7172
      %v7257 = vpack.c.bf16 %v7173, %v7173
      %v7258 = vpack.c.bf16 %v7174, %v7174
      %v7259 = vpack.c.bf16 %v7175, %v7175
      %v7260 = vpack.c.bf16 %v7176, %v7176
      %v7261 = vpack.c.bf16 %v7177, %v7177
      %v7262 = vpack.c.bf16 %v7178, %v7178
      %v7263 = vpack.c.bf16 %v7179, %v7179
      %v7264 = vpack.c.bf16 %v7180, %v7180
      %v7265 = vpack.c.bf16 %v7181, %v7181
      %v7266 = vpack.c.bf16 %v7182, %v7182
      %v7267 = vpack.c.bf16 %v7183, %v7183
      %v7268 = vpack.c.bf16 %v7184, %v7184
      %v7269 = vpack.c.bf16 %v7185, %v7185
      %v7270 = vpack.c.bf16 %v7186, %v7186
      %v7271 = vpack.c.bf16 %v7187, %v7187
      %v7272 = vpack.c.bf16 %v7188, %v7188
      %v7273 = vpack.c.bf16 %v7189, %v7189
      %v7274 = vpack.c.bf16 %v7190, %v7190
      %v7275 = vpack.c.bf16 %v7191, %v7191
      %v7276 = vpack.c.bf16 %v7192, %v7192
      %v7277 = vpack.c.bf16 %v7193, %v7193
      %v7278 = vpack.c.bf16 %v7194, %v7194
      %v7279 = vpack.c.bf16 %v7195, %v7195
      %v7280 = vpack.c.bf16 %v7196, %v7196
      %v7281 = vpack.c.bf16 %v7197, %v7197
      %v7282 = vpack.c.bf16 %v7198, %v7198
      %v7283 = vpack.c.bf16 %v7199, %v7199
      %v7284 = vpack.c.bf16 %v7200, %v7200
      %v7285 = vpack.c.bf16 %v7201, %v7201
      %v7286 = vpack.c.bf16 %v7202, %v7202
      %v7287 = vpack.c.bf16 %v7203, %v7203
      %v7288 = vpack.c.bf16 %v7204, %v7204
      %v7289 = vpack.c.bf16 %v7205, %v7205
      %v7290 = vpack.c.bf16 %v7206, %v7206
      %v7291 = vpack.c.bf16 %v7207, %v7207
      %v7292 = vpack.c.bf16 %v7208, %v7208
      %v7293 = vpack.c.bf16 %v7209, %v7209
      %v7294 = vpack.c.bf16 %v7210, %v7210
      %v7295 = vpack.c.bf16 %v7211, %v7211
      %v7296 = vpack.c.bf16 %v7212, %v7212
      %v7297 = vpack.c.bf16 %v7213, %v7213
      %v7375 = vunpack.c.l.b16 %v7214
      %v7376 = vunpack.c.l.b16 %v7215
      %v7377 = vunpack.c.l.b16 %v7216
      %v7378 = vunpack.c.l.b16 %v7217
      %v7379 = vunpack.c.l.b16 %v7218
      %v7380 = vunpack.c.l.b16 %v7219
      %v7381 = vunpack.c.l.b16 %v7220
      %v7382 = vunpack.c.l.b16 %v7221
      %v7383 = vunpack.c.l.b16 %v7222
      %v7384 = vunpack.c.l.b16 %v7223
      %v7385 = vunpack.c.l.b16 %v7224
      %v7386 = vunpack.c.l.b16 %v7225
      %v7387 = vunpack.c.l.b16 %v7226
      %v7388 = vunpack.c.l.b16 %v7227
      %v7389 = vunpack.c.l.b16 %v7228
      %v7390 = vunpack.c.l.b16 %v7229
      %v7391 = vunpack.c.l.b16 %v7230
      %v7392 = vunpack.c.l.b16 %v7231
      %v7393 = vunpack.c.l.b16 %v7232
      %v7394 = vunpack.c.l.b16 %v7233
      %v7395 = vunpack.c.l.b16 %v7234
      %v7396 = vunpack.c.l.b16 %v7235
      %v7397 = vunpack.c.l.b16 %v7236
      %v7398 = vunpack.c.l.b16 %v7237
      %v7399 = vunpack.c.l.b16 %v7238
      %v7400 = vunpack.c.l.b16 %v7239
      %v7401 = vunpack.c.l.b16 %v7240
      %v7402 = vunpack.c.l.b16 %v7241
      %v7403 = vunpack.c.l.b16 %v7242
      %v7404 = vunpack.c.l.b16 %v7243
      %v7405 = vunpack.c.l.b16 %v7244
      %v7406 = vunpack.c.l.b16 %v7245
      %v7407 = vunpack.c.l.b16 %v7246
      %v7408 = vunpack.c.l.b16 %v7247
      %v7409 = vunpack.c.l.b16 %v7248
      %v7410 = vunpack.c.l.b16 %v7249
      %v7411 = vunpack.c.l.b16 %v7250
      %v7412 = vunpack.c.l.b16 %v7251
      %v7413 = vunpack.c.l.b16 %v7252
      %v7414 = vunpack.c.l.b16 %v7253
      %v7415 = vunpack.c.l.b16 %v7254
      %v7416 = vunpack.c.l.b16 %v7255
      %v7417 = vunpack.c.l.b16 %v7256
      %v7418 = vunpack.c.l.b16 %v7257
      %v7419 = vunpack.c.l.b16 %v7258
      %v7420 = vunpack.c.l.b16 %v7259
      %v7421 = vunpack.c.l.b16 %v7260
      %v7422 = vunpack.c.l.b16 %v7261
      %v7423 = vunpack.c.l.b16 %v7262
      %v7424 = vunpack.c.l.b16 %v7263
      %v7425 = vunpack.c.l.b16 %v7264
      %v7426 = vunpack.c.l.b16 %v7265
      %v7427 = vunpack.c.l.b16 %v7266
      %v7428 = vunpack.c.l.b16 %v7267
      %v7429 = vunpack.c.l.b16 %v7268
      %v7430 = vunpack.c.l.b16 %v7269
      %v7431 = vunpack.c.l.b16 %v7270
      %v7432 = vunpack.c.l.b16 %v7271
      %v7433 = vunpack.c.l.b16 %v7272
      %v7434 = vunpack.c.l.b16 %v7273
      %v7435 = vunpack.c.l.b16 %v7274
      %v7436 = vunpack.c.l.b16 %v7275
      %v7437 = vunpack.c.l.b16 %v7276
      %v7438 = vunpack.c.l.b16 %v7277
      %v7439 = vunpack.c.l.b16 %v7278
      %v7440 = vunpack.c.l.b16 %v7279
      %v7441 = vunpack.c.l.b16 %v7280
      %v7442 = vunpack.c.l.b16 %v7281
      %v7443 = vunpack.c.l.b16 %v7282
      %v7444 = vunpack.c.l.b16 %v7283
      %v7445 = vunpack.c.l.b16 %v7284
      %v7446 = vunpack.c.l.b16 %v7285
      %v7447 = vunpack.c.l.b16 %v7286
      %v7448 = vunpack.c.l.b16 %v7287
      %v7449 = vunpack.c.l.b16 %v7288
      %v7450 = vunpack.c.l.b16 %v7289
      %v7451 = vunpack.c.l.b16 %v7290
      %v7452 = vpack.c.b16 %v7376, %v7375
      %v7453 = vpack.c.b16 %v7378, %v7377
      %v7454 = vpack.c.b16 %v7380, %v7379
      %v7455 = vpack.c.b16 %v7382, %v7381
      %v7456 = vpack.c.b16 %v7384, %v7383
      %v7457 = vpack.c.b16 %v7386, %v7385
      %v7458 = vpack.c.b16 %v7388, %v7387
      %v7459 = vpack.c.b16 %v7390, %v7389
      %v7460 = vpack.c.b16 %v7392, %v7391
      %v7461 = vpack.c.b16 %v7394, %v7393
      %v7462 = vpack.c.b16 %v7396, %v7395
      %v7463 = vpack.c.b16 %v7398, %v7397
      %v7464 = vpack.c.b16 %v7400, %v7399
      %v7465 = vpack.c.b16 %v7402, %v7401
      %v7466 = vpack.c.b16 %v7404, %v7403
      %v7467 = vpack.c.b16 %v7406, %v7405
      %v7468 = vpack.c.b16 %v7408, %v7407
      %v7469 = vpack.c.b16 %v7410, %v7409
      %v7470 = vpack.c.b16 %v7412, %v7411
      %v7471 = vpack.c.b16 %v7414, %v7413
      %v7472 = vpack.c.b16 %v7416, %v7415
      %v7473 = vpack.c.b16 %v7418, %v7417
      %v7474 = vpack.c.b16 %v7420, %v7419
      %v7475 = vpack.c.b16 %v7422, %v7421
      %v7476 = vpack.c.b16 %v7424, %v7423
      %v7477 = vpack.c.b16 %v7426, %v7425
      %v7478 = vpack.c.b16 %v7428, %v7427
      %v7479 = vpack.c.b16 %v7430, %v7429
      %v7480 = vpack.c.b16 %v7432, %v7431
      %v7481 = vpack.c.b16 %v7434, %v7433
      %v7482 = vpack.c.b16 %v7436, %v7435
      %v7483 = vpack.c.b16 %v7438, %v7437
      %v7484 = vpack.c.b16 %v7440, %v7439
      %v7485 = vpack.c.b16 %v7442, %v7441
      %v7486 = vpack.c.b16 %v7444, %v7443
      %v7487 = vpack.c.b16 %v7446, %v7445
      %v7488 = vpack.c.b16 %v7448, %v7447
      %v7489 = vpack.c.b16 %v7450, %v7449
      %v7490 = vpack.c.b16 %v7451, %v7451
      %v7492 = vshrl.u32 %v7452, 16
      %v7494 = vshll.u32 %v7452, 16
      %v7496 = vrot.slane %v7494, 1
      %v7497 = vor.u32 %v7492, %v7496
      %v7499 = vshll.u32 %v7453, 16
      %v7501 = vrot.slane %v7499, 1
      %v7502 = vsel %vm608, %v7497, %v7501
      %v7503 = vshrl.u32 %v7453, 16
      %v7505 = vor.u32 %v7503, %v7501
      %v7507 = vshll.u32 %v7454, 16
      %v7509 = vrot.slane %v7507, 1
      %v7510 = vsel %vm608, %v7505, %v7509
      %v7511 = vshrl.u32 %v7454, 16
      %v7513 = vor.u32 %v7511, %v7509
      %v7515 = vshll.u32 %v7455, 16
      %v7517 = vrot.slane %v7515, 1
      %v7518 = vsel %vm608, %v7513, %v7517
      %v7519 = vshrl.u32 %v7455, 16
      %v7521 = vor.u32 %v7519, %v7517
      %v7523 = vshll.u32 %v7456, 16
      %v7525 = vrot.slane %v7523, 1
      %v7526 = vsel %vm608, %v7521, %v7525
      %v7527 = vshrl.u32 %v7456, 16
      %v7529 = vor.u32 %v7527, %v7525
      %v7531 = vshll.u32 %v7457, 16
      %v7533 = vrot.slane %v7531, 1
      %v7534 = vsel %vm608, %v7529, %v7533
      %v7535 = vshrl.u32 %v7457, 16
      %v7537 = vor.u32 %v7535, %v7533
      %v7539 = vshll.u32 %v7458, 16
      %v7541 = vrot.slane %v7539, 1
      %v7542 = vsel %vm608, %v7537, %v7541
      %v7543 = vshrl.u32 %v7458, 16
      %v7545 = vor.u32 %v7543, %v7541
      %v7547 = vshll.u32 %v7459, 16
      %v7549 = vrot.slane %v7547, 1
      %v7550 = vsel %vm608, %v7545, %v7549
      %v7551 = vshrl.u32 %v7459, 16
      %v7553 = vor.u32 %v7551, %v7549
      %v7555 = vshll.u32 %v7460, 16
      %v7557 = vrot.slane %v7555, 1
      %v7558 = vsel %vm608, %v7553, %v7557
      %v7559 = vshrl.u32 %v7460, 16
      %v7561 = vor.u32 %v7559, %v7557
      %v7563 = vshll.u32 %v7461, 16
      %v7565 = vrot.slane %v7563, 1
      %v7566 = vsel %vm608, %v7561, %v7565
      %v7567 = vshrl.u32 %v7461, 16
      %v7569 = vor.u32 %v7567, %v7565
      %v7571 = vshll.u32 %v7462, 16
      %v7573 = vrot.slane %v7571, 1
      %v7574 = vsel %vm608, %v7569, %v7573
      %v7575 = vshrl.u32 %v7462, 16
      %v7577 = vor.u32 %v7575, %v7573
      %v7579 = vshll.u32 %v7463, 16
      %v7581 = vrot.slane %v7579, 1
      %v7582 = vsel %vm608, %v7577, %v7581
      %v7583 = vshrl.u32 %v7463, 16
      %v7585 = vor.u32 %v7583, %v7581
      %v7587 = vshll.u32 %v7464, 16
      %v7589 = vrot.slane %v7587, 1
      %v7590 = vsel %vm608, %v7585, %v7589
      %v7591 = vshrl.u32 %v7464, 16
      %v7593 = vor.u32 %v7591, %v7589
      %v7595 = vshll.u32 %v7465, 16
      %v7597 = vrot.slane %v7595, 1
      %v7598 = vsel %vm608, %v7593, %v7597
      %v7599 = vshrl.u32 %v7465, 16
      %v7601 = vor.u32 %v7599, %v7597
      %v7603 = vshll.u32 %v7466, 16
      %v7605 = vrot.slane %v7603, 1
      %v7606 = vsel %vm608, %v7601, %v7605
      %v7607 = vshrl.u32 %v7466, 16
      %v7609 = vor.u32 %v7607, %v7605
      %v7611 = vshll.u32 %v7467, 16
      %v7613 = vrot.slane %v7611, 1
      %v7614 = vsel %vm608, %v7609, %v7613
      %v7615 = vshrl.u32 %v7467, 16
      %v7617 = vor.u32 %v7615, %v7613
      %v7619 = vshll.u32 %v7468, 16
      %v7621 = vrot.slane %v7619, 1
      %v7622 = vsel %vm608, %v7617, %v7621
      %v7623 = vshrl.u32 %v7468, 16
      %v7625 = vor.u32 %v7623, %v7621
      %v7627 = vshll.u32 %v7469, 16
      %v7629 = vrot.slane %v7627, 1
      %v7630 = vsel %vm608, %v7625, %v7629
      %v7631 = vshrl.u32 %v7469, 16
      %v7633 = vor.u32 %v7631, %v7629
      %v7635 = vshll.u32 %v7470, 16
      %v7637 = vrot.slane %v7635, 1
      %v7638 = vsel %vm608, %v7633, %v7637
      %v7639 = vshrl.u32 %v7470, 16
      %v7641 = vor.u32 %v7639, %v7637
      %v7643 = vshll.u32 %v7471, 16
      %v7645 = vrot.slane %v7643, 1
      %v7646 = vsel %vm608, %v7641, %v7645
      %v7647 = vshrl.u32 %v7471, 16
      %v7649 = vor.u32 %v7647, %v7645
      %v7651 = vshll.u32 %v7472, 16
      %v7653 = vrot.slane %v7651, 1
      %v7654 = vsel %vm608, %v7649, %v7653
      %v7655 = vshrl.u32 %v7472, 16
      %v7657 = vor.u32 %v7655, %v7653
      %v7659 = vshll.u32 %v7473, 16
      %v7661 = vrot.slane %v7659, 1
      %v7662 = vsel %vm608, %v7657, %v7661
      %v7663 = vshrl.u32 %v7473, 16
      %v7665 = vor.u32 %v7663, %v7661
      %v7667 = vshll.u32 %v7474, 16
      %v7669 = vrot.slane %v7667, 1
      %v7670 = vsel %vm608, %v7665, %v7669
      %v7671 = vshrl.u32 %v7474, 16
      %v7673 = vor.u32 %v7671, %v7669
      %v7675 = vshll.u32 %v7475, 16
      %v7677 = vrot.slane %v7675, 1
      %v7678 = vsel %vm608, %v7673, %v7677
      %v7679 = vshrl.u32 %v7475, 16
      %v7681 = vor.u32 %v7679, %v7677
      %v7683 = vshll.u32 %v7476, 16
      %v7685 = vrot.slane %v7683, 1
      %v7686 = vsel %vm608, %v7681, %v7685
      %v7687 = vshrl.u32 %v7476, 16
      %v7689 = vor.u32 %v7687, %v7685
      %v7691 = vshll.u32 %v7477, 16
      %v7693 = vrot.slane %v7691, 1
      %v7694 = vsel %vm608, %v7689, %v7693
      %v7695 = vshrl.u32 %v7477, 16
      %v7697 = vor.u32 %v7695, %v7693
      %v7699 = vshll.u32 %v7478, 16
      %v7701 = vrot.slane %v7699, 1
      %v7702 = vsel %vm608, %v7697, %v7701
      %v7703 = vshrl.u32 %v7478, 16
      %v7705 = vor.u32 %v7703, %v7701
      %v7707 = vshll.u32 %v7479, 16
      %v7709 = vrot.slane %v7707, 1
      %v7710 = vsel %vm608, %v7705, %v7709
      %v7711 = vshrl.u32 %v7479, 16
      %v7713 = vor.u32 %v7711, %v7709
      %v7715 = vshll.u32 %v7480, 16
      %v7717 = vrot.slane %v7715, 1
      %v7718 = vsel %vm608, %v7713, %v7717
      %v7719 = vshrl.u32 %v7480, 16
      %v7721 = vor.u32 %v7719, %v7717
      %v7723 = vshll.u32 %v7481, 16
      %v7725 = vrot.slane %v7723, 1
      %v7726 = vsel %vm608, %v7721, %v7725
      %v7727 = vshrl.u32 %v7481, 16
      %v7729 = vor.u32 %v7727, %v7725
      %v7731 = vshll.u32 %v7482, 16
      %v7733 = vrot.slane %v7731, 1
      %v7734 = vsel %vm608, %v7729, %v7733
      %v7735 = vshrl.u32 %v7482, 16
      %v7737 = vor.u32 %v7735, %v7733
      %v7739 = vshll.u32 %v7483, 16
      %v7741 = vrot.slane %v7739, 1
      %v7742 = vsel %vm608, %v7737, %v7741
      %v7743 = vshrl.u32 %v7483, 16
      %v7745 = vor.u32 %v7743, %v7741
      %v7747 = vshll.u32 %v7484, 16
      %v7749 = vrot.slane %v7747, 1
      %v7750 = vsel %vm608, %v7745, %v7749
      %v7751 = vshrl.u32 %v7484, 16
      %v7753 = vor.u32 %v7751, %v7749
      %v7755 = vshll.u32 %v7485, 16
      %v7757 = vrot.slane %v7755, 1
      %v7758 = vsel %vm608, %v7753, %v7757
      %v7759 = vshrl.u32 %v7485, 16
      %v7761 = vor.u32 %v7759, %v7757
      %v7763 = vshll.u32 %v7486, 16
      %v7765 = vrot.slane %v7763, 1
      %v7766 = vsel %vm608, %v7761, %v7765
      %v7767 = vshrl.u32 %v7486, 16
      %v7769 = vor.u32 %v7767, %v7765
      %v7771 = vshll.u32 %v7487, 16
      %v7773 = vrot.slane %v7771, 1
      %v7774 = vsel %vm608, %v7769, %v7773
      %v7775 = vshrl.u32 %v7487, 16
      %v7777 = vor.u32 %v7775, %v7773
      %v7779 = vshll.u32 %v7488, 16
      %v7781 = vrot.slane %v7779, 1
      %v7782 = vsel %vm608, %v7777, %v7781
      %v7783 = vshrl.u32 %v7488, 16
      %v7785 = vor.u32 %v7783, %v7781
      %v7787 = vshll.u32 %v7489, 16
      %v7789 = vrot.slane %v7787, 1
      %v7790 = vsel %vm608, %v7785, %v7789
      %v7791 = vshrl.u32 %v7489, 16
      %v7793 = vor.u32 %v7791, %v7789
      %v7795 = vshll.u32 %v7490, 16
      %v7797 = vrot.slane %v7795, 1
      %v7798 = vsel %vm608, %v7793, %v7797
      %v7799 = vshrl.u32 %v7490, 16
      %v7801 = vor.u32 %v7799, %v7797
      %7802 = vrot.lane.b32.xlu0 %v7502, 16
      %v7803 = vpop.permute.xlu0 %7802
      %7804 = vrot.lane.b32.xlu0 %v7510, 16
      %v7805 = vpop.permute.xlu0 %7804
      %7806 = vrot.lane.b32.xlu0 %v7518, 16
      %v7807 = vpop.permute.xlu0 %7806
      %7808 = vrot.lane.b32.xlu0 %v7526, 16
      %v7809 = vpop.permute.xlu0 %7808
      %7810 = vrot.lane.b32.xlu0 %v7534, 16
      %v7811 = vpop.permute.xlu0 %7810
      %7812 = vrot.lane.b32.xlu0 %v7542, 16
      %v7813 = vpop.permute.xlu0 %7812
      %7814 = vrot.lane.b32.xlu0 %v7550, 16
      %v7815 = vpop.permute.xlu0 %7814
      %7816 = vrot.lane.b32.xlu0 %v7558, 16
      %v7817 = vpop.permute.xlu0 %7816
      %7818 = vrot.lane.b32.xlu0 %v7566, 16
      %v7819 = vpop.permute.xlu0 %7818
      %7820 = vrot.lane.b32.xlu0 %v7574, 16
      %v7821 = vpop.permute.xlu0 %7820
      %7822 = vrot.lane.b32.xlu0 %v7582, 16
      %v7823 = vpop.permute.xlu0 %7822
      %7824 = vrot.lane.b32.xlu0 %v7590, 16
      %v7825 = vpop.permute.xlu0 %7824
      %7826 = vrot.lane.b32.xlu0 %v7598, 16
      %v7827 = vpop.permute.xlu0 %7826
      %7828 = vrot.lane.b32.xlu0 %v7606, 16
      %v7829 = vpop.permute.xlu0 %7828
      %7830 = vrot.lane.b32.xlu0 %v7614, 16
      %v7831 = vpop.permute.xlu0 %7830
      %7832 = vrot.lane.b32.xlu0 %v7622, 16
      %v7833 = vpop.permute.xlu0 %7832
      %7834 = vrot.lane.b32.xlu0 %v7630, 16
      %v7835 = vpop.permute.xlu0 %7834
      %7836 = vrot.lane.b32.xlu0 %v7638, 16
      %v7837 = vpop.permute.xlu0 %7836
      %7838 = vrot.lane.b32.xlu0 %v7646, 16
      %v7839 = vpop.permute.xlu0 %7838
      %7840 = vrot.lane.b32.xlu0 %v7654, 16
      %v7841 = vpop.permute.xlu0 %7840
      %7842 = vrot.lane.b32.xlu0 %v7662, 16
      %v7843 = vpop.permute.xlu0 %7842
      %7844 = vrot.lane.b32.xlu0 %v7670, 16
      %v7845 = vpop.permute.xlu0 %7844
      %7846 = vrot.lane.b32.xlu0 %v7678, 16
      %v7847 = vpop.permute.xlu0 %7846
      %7848 = vrot.lane.b32.xlu0 %v7686, 16
      %v7849 = vpop.permute.xlu0 %7848
      %7850 = vrot.lane.b32.xlu0 %v7694, 16
      %v7851 = vpop.permute.xlu0 %7850
      %7852 = vrot.lane.b32.xlu0 %v7702, 16
      %v7853 = vpop.permute.xlu0 %7852
      %7854 = vrot.lane.b32.xlu0 %v7710, 16
      %v7855 = vpop.permute.xlu0 %7854
      %7856 = vrot.lane.b32.xlu0 %v7718, 16
      %v7857 = vpop.permute.xlu0 %7856
      %7858 = vrot.lane.b32.xlu0 %v7726, 16
      %v7859 = vpop.permute.xlu0 %7858
      %7860 = vrot.lane.b32.xlu0 %v7734, 16
      %v7861 = vpop.permute.xlu0 %7860
      %7862 = vrot.lane.b32.xlu0 %v7742, 16
      %v7863 = vpop.permute.xlu0 %7862
      %7864 = vrot.lane.b32.xlu0 %v7750, 16
      %v7865 = vpop.permute.xlu0 %7864
      %7866 = vrot.lane.b32.xlu0 %v7758, 16
      %v7867 = vpop.permute.xlu0 %7866
      %7868 = vrot.lane.b32.xlu0 %v7766, 16
      %v7869 = vpop.permute.xlu0 %7868
      %7870 = vrot.lane.b32.xlu0 %v7774, 16
      %v7871 = vpop.permute.xlu0 %7870
      %7872 = vrot.lane.b32.xlu0 %v7782, 16
      %v7873 = vpop.permute.xlu0 %7872
      %7874 = vrot.lane.b32.xlu0 %v7790, 16
      %v7875 = vpop.permute.xlu0 %7874
      %7876 = vrot.lane.b32.xlu0 %v7798, 16
      %v7877 = vpop.permute.xlu0 %7876
      %7878 = vrot.lane.b32.xlu0 %v7801, 16
      %v7879 = vpop.permute.xlu0 %7878
      %v7880 = vrot.slane %v7452, 1
      %v7881 = vrot.slane %v7453, 1
      %v7882 = vsel %vm1068, %v7880, %v7881
      %v7883 = vrot.slane %v7454, 1
      %v7884 = vsel %vm1068, %v7881, %v7883
      %v7885 = vrot.slane %v7455, 1
      %v7886 = vsel %vm1068, %v7883, %v7885
      %v7887 = vrot.slane %v7456, 1
      %v7888 = vsel %vm1068, %v7885, %v7887
      %v7889 = vrot.slane %v7457, 1
      %v7890 = vsel %vm1068, %v7887, %v7889
      %v7891 = vrot.slane %v7458, 1
      %v7892 = vsel %vm1068, %v7889, %v7891
      %v7893 = vrot.slane %v7459, 1
      %v7894 = vsel %vm1068, %v7891, %v7893
      %v7895 = vrot.slane %v7460, 1
      %v7896 = vsel %vm1068, %v7893, %v7895
      %v7897 = vrot.slane %v7461, 1
      %v7898 = vsel %vm1068, %v7895, %v7897
      %v7899 = vrot.slane %v7462, 1
      %v7900 = vsel %vm1068, %v7897, %v7899
      %v7901 = vrot.slane %v7463, 1
      %v7902 = vsel %vm1068, %v7899, %v7901
      %v7903 = vrot.slane %v7464, 1
      %v7904 = vsel %vm1068, %v7901, %v7903
      %v7905 = vrot.slane %v7465, 1
      %v7906 = vsel %vm1068, %v7903, %v7905
      %v7907 = vrot.slane %v7466, 1
      %v7908 = vsel %vm1068, %v7905, %v7907
      %v7909 = vrot.slane %v7467, 1
      %v7910 = vsel %vm1068, %v7907, %v7909
      %v7911 = vrot.slane %v7468, 1
      %v7912 = vsel %vm1068, %v7909, %v7911
      %v7913 = vrot.slane %v7469, 1
      %v7914 = vsel %vm1068, %v7911, %v7913
      %v7915 = vrot.slane %v7470, 1
      %v7916 = vsel %vm1068, %v7913, %v7915
      %v7917 = vrot.slane %v7471, 1
      %v7918 = vsel %vm1068, %v7915, %v7917
      %v7919 = vrot.slane %v7472, 1
      %v7920 = vsel %vm1068, %v7917, %v7919
      %v7921 = vrot.slane %v7473, 1
      %v7922 = vsel %vm1068, %v7919, %v7921
      %v7923 = vrot.slane %v7474, 1
      %v7924 = vsel %vm1068, %v7921, %v7923
      %v7925 = vrot.slane %v7475, 1
      %v7926 = vsel %vm1068, %v7923, %v7925
      %v7927 = vrot.slane %v7476, 1
      %v7928 = vsel %vm1068, %v7925, %v7927
      %v7929 = vrot.slane %v7477, 1
      %v7930 = vsel %vm1068, %v7927, %v7929
      %v7931 = vrot.slane %v7478, 1
      %v7932 = vsel %vm1068, %v7929, %v7931
      %v7933 = vrot.slane %v7479, 1
      %v7934 = vsel %vm1068, %v7931, %v7933
      %v7935 = vrot.slane %v7480, 1
      %v7936 = vsel %vm1068, %v7933, %v7935
      %v7937 = vrot.slane %v7481, 1
      %v7938 = vsel %vm1068, %v7935, %v7937
      %v7939 = vrot.slane %v7482, 1
      %v7940 = vsel %vm1068, %v7937, %v7939
      %v7941 = vrot.slane %v7483, 1
      %v7942 = vsel %vm1068, %v7939, %v7941
      %v7943 = vrot.slane %v7484, 1
      %v7944 = vsel %vm1068, %v7941, %v7943
      %v7945 = vrot.slane %v7485, 1
      %v7946 = vsel %vm1068, %v7943, %v7945
      %v7947 = vrot.slane %v7486, 1
      %v7948 = vsel %vm1068, %v7945, %v7947
      %v7949 = vrot.slane %v7487, 1
      %v7950 = vsel %vm1068, %v7947, %v7949
      %v7951 = vrot.slane %v7488, 1
      %v7952 = vsel %vm1068, %v7949, %v7951
      %v7953 = vrot.slane %v7489, 1
      %v7954 = vsel %vm1068, %v7951, %v7953
      %v7955 = vrot.slane %v7490, 1
      %v7956 = vsel %vm1068, %v7953, %v7955
      %7957 = vrot.lane.b32.xlu0 %v7882, 32
      %v7958 = vpop.permute.xlu0 %7957
      %7959 = vrot.lane.b32.xlu0 %v7884, 32
      %v7960 = vpop.permute.xlu0 %7959
      %7961 = vrot.lane.b32.xlu0 %v7886, 32
      %v7962 = vpop.permute.xlu0 %7961
      %7963 = vrot.lane.b32.xlu0 %v7888, 32
      %v7964 = vpop.permute.xlu0 %7963
      %7965 = vrot.lane.b32.xlu0 %v7890, 32
      %v7966 = vpop.permute.xlu0 %7965
      %7967 = vrot.lane.b32.xlu0 %v7892, 32
      %v7968 = vpop.permute.xlu0 %7967
      %7969 = vrot.lane.b32.xlu0 %v7894, 32
      %v7970 = vpop.permute.xlu0 %7969
      %7971 = vrot.lane.b32.xlu0 %v7896, 32
      %v7972 = vpop.permute.xlu0 %7971
      %7973 = vrot.lane.b32.xlu0 %v7898, 32
      %v7974 = vpop.permute.xlu0 %7973
      %7975 = vrot.lane.b32.xlu0 %v7900, 32
      %v7976 = vpop.permute.xlu0 %7975
      %7977 = vrot.lane.b32.xlu0 %v7902, 32
      %v7978 = vpop.permute.xlu0 %7977
      %7979 = vrot.lane.b32.xlu0 %v7904, 32
      %v7980 = vpop.permute.xlu0 %7979
      %7981 = vrot.lane.b32.xlu0 %v7906, 32
      %v7982 = vpop.permute.xlu0 %7981
      %7983 = vrot.lane.b32.xlu0 %v7908, 32
      %v7984 = vpop.permute.xlu0 %7983
      %7985 = vrot.lane.b32.xlu0 %v7910, 32
      %v7986 = vpop.permute.xlu0 %7985
      %7987 = vrot.lane.b32.xlu0 %v7912, 32
      %v7988 = vpop.permute.xlu0 %7987
      %7989 = vrot.lane.b32.xlu0 %v7914, 32
      %v7990 = vpop.permute.xlu0 %7989
      %7991 = vrot.lane.b32.xlu0 %v7916, 32
      %v7992 = vpop.permute.xlu0 %7991
      %7993 = vrot.lane.b32.xlu0 %v7918, 32
      %v7994 = vpop.permute.xlu0 %7993
      %7995 = vrot.lane.b32.xlu0 %v7920, 32
      %v7996 = vpop.permute.xlu0 %7995
      %7997 = vrot.lane.b32.xlu0 %v7922, 32
      %v7998 = vpop.permute.xlu0 %7997
      %7999 = vrot.lane.b32.xlu0 %v7924, 32
      %v8000 = vpop.permute.xlu0 %7999
      %8001 = vrot.lane.b32.xlu0 %v7926, 32
      %v8002 = vpop.permute.xlu0 %8001
      %8003 = vrot.lane.b32.xlu0 %v7928, 32
      %v8004 = vpop.permute.xlu0 %8003
      %8005 = vrot.lane.b32.xlu0 %v7930, 32
      %v8006 = vpop.permute.xlu0 %8005
      %8007 = vrot.lane.b32.xlu0 %v7932, 32
      %v8008 = vpop.permute.xlu0 %8007
      %8009 = vrot.lane.b32.xlu0 %v7934, 32
      %v8010 = vpop.permute.xlu0 %8009
      %8011 = vrot.lane.b32.xlu0 %v7936, 32
      %v8012 = vpop.permute.xlu0 %8011
      %8013 = vrot.lane.b32.xlu0 %v7938, 32
      %v8014 = vpop.permute.xlu0 %8013
      %8015 = vrot.lane.b32.xlu0 %v7940, 32
      %v8016 = vpop.permute.xlu0 %8015
      %8017 = vrot.lane.b32.xlu0 %v7942, 32
      %v8018 = vpop.permute.xlu0 %8017
      %8019 = vrot.lane.b32.xlu0 %v7944, 32
      %v8020 = vpop.permute.xlu0 %8019
      %8021 = vrot.lane.b32.xlu0 %v7946, 32
      %v8022 = vpop.permute.xlu0 %8021
      %8023 = vrot.lane.b32.xlu0 %v7948, 32
      %v8024 = vpop.permute.xlu0 %8023
      %8025 = vrot.lane.b32.xlu0 %v7950, 32
      %v8026 = vpop.permute.xlu0 %8025
      %8027 = vrot.lane.b32.xlu0 %v7952, 32
      %v8028 = vpop.permute.xlu0 %8027
      %8029 = vrot.lane.b32.xlu0 %v7954, 32
      %v8030 = vpop.permute.xlu0 %8029
      %8031 = vrot.lane.b32.xlu0 %v7956, 32
      %v8032 = vpop.permute.xlu0 %8031
      %8033 = vrot.lane.b32.xlu0 %v7955, 32
      %v8034 = vpop.permute.xlu0 %8033
      %v8038 = vunpack.c.l.b16 %v7291
      %v8039 = vunpack.c.l.b16 %v7292
      %v8040 = vunpack.c.l.b16 %v7293
      %v8041 = vpack.c.b16 %v7379, %v7378
      %v8042 = vpack.c.b16 %v7381, %v7380
      %v8043 = vpack.c.b16 %v7383, %v7382
      %v8044 = vpack.c.b16 %v7385, %v7384
      %v8045 = vpack.c.b16 %v7387, %v7386
      %v8046 = vpack.c.b16 %v7389, %v7388
      %v8047 = vpack.c.b16 %v7391, %v7390
      %v8048 = vpack.c.b16 %v7393, %v7392
      %v8049 = vpack.c.b16 %v7395, %v7394
      %v8050 = vpack.c.b16 %v7397, %v7396
      %v8051 = vpack.c.b16 %v7399, %v7398
      %v8052 = vpack.c.b16 %v7401, %v7400
      %v8053 = vpack.c.b16 %v7403, %v7402
      %v8054 = vpack.c.b16 %v7405, %v7404
      %v8055 = vpack.c.b16 %v7407, %v7406
      %v8056 = vpack.c.b16 %v7409, %v7408
      %v8057 = vpack.c.b16 %v7411, %v7410
      %v8058 = vpack.c.b16 %v7413, %v7412
      %v8059 = vpack.c.b16 %v7415, %v7414
      %v8060 = vpack.c.b16 %v7417, %v7416
      %v8061 = vpack.c.b16 %v7419, %v7418
      %v8062 = vpack.c.b16 %v7421, %v7420
      %v8063 = vpack.c.b16 %v7423, %v7422
      %v8064 = vpack.c.b16 %v7425, %v7424
      %v8065 = vpack.c.b16 %v7427, %v7426
      %v8066 = vpack.c.b16 %v7429, %v7428
      %v8067 = vpack.c.b16 %v7431, %v7430
      %v8068 = vpack.c.b16 %v7433, %v7432
      %v8069 = vpack.c.b16 %v7435, %v7434
      %v8070 = vpack.c.b16 %v7437, %v7436
      %v8071 = vpack.c.b16 %v7439, %v7438
      %v8072 = vpack.c.b16 %v7441, %v7440
      %v8073 = vpack.c.b16 %v7443, %v7442
      %v8074 = vpack.c.b16 %v7445, %v7444
      %v8075 = vpack.c.b16 %v7447, %v7446
      %v8076 = vpack.c.b16 %v7449, %v7448
      %v8077 = vpack.c.b16 %v7451, %v7450
      %v8078 = vpack.c.b16 %v8039, %v8038
      %v8079 = vpack.c.b16 %v8040, %v8040
      %v8080 = vrot.slane %v8041, 2
      %v8081 = vrot.slane %v8042, 2
      %v8082 = vsel %vm1306, %v8080, %v8081
      %v8083 = vrot.slane %v8043, 2
      %v8084 = vsel %vm1306, %v8081, %v8083
      %v8085 = vrot.slane %v8044, 2
      %v8086 = vsel %vm1306, %v8083, %v8085
      %v8087 = vrot.slane %v8045, 2
      %v8088 = vsel %vm1306, %v8085, %v8087
      %v8089 = vrot.slane %v8046, 2
      %v8090 = vsel %vm1306, %v8087, %v8089
      %v8091 = vrot.slane %v8047, 2
      %v8092 = vsel %vm1306, %v8089, %v8091
      %v8093 = vrot.slane %v8048, 2
      %v8094 = vsel %vm1306, %v8091, %v8093
      %v8095 = vrot.slane %v8049, 2
      %v8096 = vsel %vm1306, %v8093, %v8095
      %v8097 = vrot.slane %v8050, 2
      %v8098 = vsel %vm1306, %v8095, %v8097
      %v8099 = vrot.slane %v8051, 2
      %v8100 = vsel %vm1306, %v8097, %v8099
      %v8101 = vrot.slane %v8052, 2
      %v8102 = vsel %vm1306, %v8099, %v8101
      %v8103 = vrot.slane %v8053, 2
      %v8104 = vsel %vm1306, %v8101, %v8103
      %v8105 = vrot.slane %v8054, 2
      %v8106 = vsel %vm1306, %v8103, %v8105
      %v8107 = vrot.slane %v8055, 2
      %v8108 = vsel %vm1306, %v8105, %v8107
      %v8109 = vrot.slane %v8056, 2
      %v8110 = vsel %vm1306, %v8107, %v8109
      %v8111 = vrot.slane %v8057, 2
      %v8112 = vsel %vm1306, %v8109, %v8111
      %v8113 = vrot.slane %v8058, 2
      %v8114 = vsel %vm1306, %v8111, %v8113
      %v8115 = vrot.slane %v8059, 2
      %v8116 = vsel %vm1306, %v8113, %v8115
      %v8117 = vrot.slane %v8060, 2
      %v8118 = vsel %vm1306, %v8115, %v8117
      %v8119 = vrot.slane %v8061, 2
      %v8120 = vsel %vm1306, %v8117, %v8119
      %v8121 = vrot.slane %v8062, 2
      %v8122 = vsel %vm1306, %v8119, %v8121
      %v8123 = vrot.slane %v8063, 2
      %v8124 = vsel %vm1306, %v8121, %v8123
      %v8125 = vrot.slane %v8064, 2
      %v8126 = vsel %vm1306, %v8123, %v8125
      %v8127 = vrot.slane %v8065, 2
      %v8128 = vsel %vm1306, %v8125, %v8127
      %v8129 = vrot.slane %v8066, 2
      %v8130 = vsel %vm1306, %v8127, %v8129
      %v8131 = vrot.slane %v8067, 2
      %v8132 = vsel %vm1306, %v8129, %v8131
      %v8133 = vrot.slane %v8068, 2
      %v8134 = vsel %vm1306, %v8131, %v8133
      %v8135 = vrot.slane %v8069, 2
      %v8136 = vsel %vm1306, %v8133, %v8135
      %v8137 = vrot.slane %v8070, 2
      %v8138 = vsel %vm1306, %v8135, %v8137
      %v8139 = vrot.slane %v8071, 2
      %v8140 = vsel %vm1306, %v8137, %v8139
      %v8141 = vrot.slane %v8072, 2
      %v8142 = vsel %vm1306, %v8139, %v8141
      %v8143 = vrot.slane %v8073, 2
      %v8144 = vsel %vm1306, %v8141, %v8143
      %v8145 = vrot.slane %v8074, 2
      %v8146 = vsel %vm1306, %v8143, %v8145
      %v8147 = vrot.slane %v8075, 2
      %v8148 = vsel %vm1306, %v8145, %v8147
      %v8149 = vrot.slane %v8076, 2
      %v8150 = vsel %vm1306, %v8147, %v8149
      %v8151 = vrot.slane %v8077, 2
      %v8152 = vsel %vm1306, %v8149, %v8151
      %v8153 = vrot.slane %v8078, 2
      %v8154 = vsel %vm1306, %v8151, %v8153
      %v8155 = vrot.slane %v8079, 2
      %v8156 = vsel %vm1306, %v8153, %v8155
      %8157 = vrot.lane.b32.xlu0 %v8082, 48
      %v8158 = vpop.permute.xlu0 %8157
      %8159 = vrot.lane.b32.xlu0 %v8084, 48
      %v8160 = vpop.permute.xlu0 %8159
      %8161 = vrot.lane.b32.xlu0 %v8086, 48
      %v8162 = vpop.permute.xlu0 %8161
      %8163 = vrot.lane.b32.xlu0 %v8088, 48
      %v8164 = vpop.permute.xlu0 %8163
      %8165 = vrot.lane.b32.xlu0 %v8090, 48
      %v8166 = vpop.permute.xlu0 %8165
      %8167 = vrot.lane.b32.xlu0 %v8092, 48
      %v8168 = vpop.permute.xlu0 %8167
      %8169 = vrot.lane.b32.xlu0 %v8094, 48
      %v8170 = vpop.permute.xlu0 %8169
      %8171 = vrot.lane.b32.xlu0 %v8096, 48
      %v8172 = vpop.permute.xlu0 %8171
      %8173 = vrot.lane.b32.xlu0 %v8098, 48
      %v8174 = vpop.permute.xlu0 %8173
      %8175 = vrot.lane.b32.xlu0 %v8100, 48
      %v8176 = vpop.permute.xlu0 %8175
      %8177 = vrot.lane.b32.xlu0 %v8102, 48
      %v8178 = vpop.permute.xlu0 %8177
      %8179 = vrot.lane.b32.xlu0 %v8104, 48
      %v8180 = vpop.permute.xlu0 %8179
      %8181 = vrot.lane.b32.xlu0 %v8106, 48
      %v8182 = vpop.permute.xlu0 %8181
      %8183 = vrot.lane.b32.xlu0 %v8108, 48
      %v8184 = vpop.permute.xlu0 %8183
      %8185 = vrot.lane.b32.xlu0 %v8110, 48
      %v8186 = vpop.permute.xlu0 %8185
      %8187 = vrot.lane.b32.xlu0 %v8112, 48
      %v8188 = vpop.permute.xlu0 %8187
      %8189 = vrot.lane.b32.xlu0 %v8114, 48
      %v8190 = vpop.permute.xlu0 %8189
      %8191 = vrot.lane.b32.xlu0 %v8116, 48
      %v8192 = vpop.permute.xlu0 %8191
      %8193 = vrot.lane.b32.xlu0 %v8118, 48
      %v8194 = vpop.permute.xlu0 %8193
      %8195 = vrot.lane.b32.xlu0 %v8120, 48
      %v8196 = vpop.permute.xlu0 %8195
      %8197 = vrot.lane.b32.xlu0 %v8122, 48
      %v8198 = vpop.permute.xlu0 %8197
      %8199 = vrot.lane.b32.xlu0 %v8124, 48
      %v8200 = vpop.permute.xlu0 %8199
      %8201 = vrot.lane.b32.xlu0 %v8126, 48
      %v8202 = vpop.permute.xlu0 %8201
      %8203 = vrot.lane.b32.xlu0 %v8128, 48
      %v8204 = vpop.permute.xlu0 %8203
      %8205 = vrot.lane.b32.xlu0 %v8130, 48
      %v8206 = vpop.permute.xlu0 %8205
      %8207 = vrot.lane.b32.xlu0 %v8132, 48
      %v8208 = vpop.permute.xlu0 %8207
      %8209 = vrot.lane.b32.xlu0 %v8134, 48
      %v8210 = vpop.permute.xlu0 %8209
      %8211 = vrot.lane.b32.xlu0 %v8136, 48
      %v8212 = vpop.permute.xlu0 %8211
      %8213 = vrot.lane.b32.xlu0 %v8138, 48
      %v8214 = vpop.permute.xlu0 %8213
      %8215 = vrot.lane.b32.xlu0 %v8140, 48
      %v8216 = vpop.permute.xlu0 %8215
      %8217 = vrot.lane.b32.xlu0 %v8142, 48
      %v8218 = vpop.permute.xlu0 %8217
      %8219 = vrot.lane.b32.xlu0 %v8144, 48
      %v8220 = vpop.permute.xlu0 %8219
      %8221 = vrot.lane.b32.xlu0 %v8146, 48
      %v8222 = vpop.permute.xlu0 %8221
      %8223 = vrot.lane.b32.xlu0 %v8148, 48
      %v8224 = vpop.permute.xlu0 %8223
      %8225 = vrot.lane.b32.xlu0 %v8150, 48
      %v8226 = vpop.permute.xlu0 %8225
      %8227 = vrot.lane.b32.xlu0 %v8152, 48
      %v8228 = vpop.permute.xlu0 %8227
      %8229 = vrot.lane.b32.xlu0 %v8154, 48
      %v8230 = vpop.permute.xlu0 %8229
      %8231 = vrot.lane.b32.xlu0 %v8156, 48
      %v8232 = vpop.permute.xlu0 %8231
      %8233 = vrot.lane.b32.xlu0 %v8155, 48
      %v8234 = vpop.permute.xlu0 %8233
      %v8236 = vshrl.u32 %v8041, 16
      %v8238 = vrot.slane %v8236, 2
      %v8239 = vshll.u32 %v8041, 16
      %v8241 = vrot.slane %v8239, 3
      %v8242 = vor.u32 %v8238, %v8241
      %v8244 = vshrl.u32 %v8042, 16
      %v8246 = vrot.slane %v8244, 2
      %v8247 = vshll.u32 %v8042, 16
      %v8249 = vrot.slane %v8247, 3
      %v8250 = vor.u32 %v8246, %v8249
      %v8251 = vsel %vm1490, %v8242, %v8250
      %v8253 = vshrl.u32 %v8043, 16
      %v8255 = vrot.slane %v8253, 2
      %v8256 = vshll.u32 %v8043, 16
      %v8258 = vrot.slane %v8256, 3
      %v8259 = vor.u32 %v8255, %v8258
      %v8260 = vsel %vm1490, %v8250, %v8259
      %v8262 = vshrl.u32 %v8044, 16
      %v8264 = vrot.slane %v8262, 2
      %v8265 = vshll.u32 %v8044, 16
      %v8267 = vrot.slane %v8265, 3
      %v8268 = vor.u32 %v8264, %v8267
      %v8269 = vsel %vm1490, %v8259, %v8268
      %v8271 = vshrl.u32 %v8045, 16
      %v8273 = vrot.slane %v8271, 2
      %v8274 = vshll.u32 %v8045, 16
      %v8276 = vrot.slane %v8274, 3
      %v8277 = vor.u32 %v8273, %v8276
      %v8278 = vsel %vm1490, %v8268, %v8277
      %v8280 = vshrl.u32 %v8046, 16
      %v8282 = vrot.slane %v8280, 2
      %v8283 = vshll.u32 %v8046, 16
      %v8285 = vrot.slane %v8283, 3
      %v8286 = vor.u32 %v8282, %v8285
      %v8287 = vsel %vm1490, %v8277, %v8286
      %v8289 = vshrl.u32 %v8047, 16
      %v8291 = vrot.slane %v8289, 2
      %v8292 = vshll.u32 %v8047, 16
      %v8294 = vrot.slane %v8292, 3
      %v8295 = vor.u32 %v8291, %v8294
      %v8296 = vsel %vm1490, %v8286, %v8295
      %v8298 = vshrl.u32 %v8048, 16
      %v8300 = vrot.slane %v8298, 2
      %v8301 = vshll.u32 %v8048, 16
      %v8303 = vrot.slane %v8301, 3
      %v8304 = vor.u32 %v8300, %v8303
      %v8305 = vsel %vm1490, %v8295, %v8304
      %v8307 = vshrl.u32 %v8049, 16
      %v8309 = vrot.slane %v8307, 2
      %v8310 = vshll.u32 %v8049, 16
      %v8312 = vrot.slane %v8310, 3
      %v8313 = vor.u32 %v8309, %v8312
      %v8314 = vsel %vm1490, %v8304, %v8313
      %v8316 = vshrl.u32 %v8050, 16
      %v8318 = vrot.slane %v8316, 2
      %v8319 = vshll.u32 %v8050, 16
      %v8321 = vrot.slane %v8319, 3
      %v8322 = vor.u32 %v8318, %v8321
      %v8323 = vsel %vm1490, %v8313, %v8322
      %v8325 = vshrl.u32 %v8051, 16
      %v8327 = vrot.slane %v8325, 2
      %v8328 = vshll.u32 %v8051, 16
      %v8330 = vrot.slane %v8328, 3
      %v8331 = vor.u32 %v8327, %v8330
      %v8332 = vsel %vm1490, %v8322, %v8331
      %v8334 = vshrl.u32 %v8052, 16
      %v8336 = vrot.slane %v8334, 2
      %v8337 = vshll.u32 %v8052, 16
      %v8339 = vrot.slane %v8337, 3
      %v8340 = vor.u32 %v8336, %v8339
      %v8341 = vsel %vm1490, %v8331, %v8340
      %v8343 = vshrl.u32 %v8053, 16
      %v8345 = vrot.slane %v8343, 2
      %v8346 = vshll.u32 %v8053, 16
      %v8348 = vrot.slane %v8346, 3
      %v8349 = vor.u32 %v8345, %v8348
      %v8350 = vsel %vm1490, %v8340, %v8349
      %v8352 = vshrl.u32 %v8054, 16
      %v8354 = vrot.slane %v8352, 2
      %v8355 = vshll.u32 %v8054, 16
      %v8357 = vrot.slane %v8355, 3
      %v8358 = vor.u32 %v8354, %v8357
      %v8359 = vsel %vm1490, %v8349, %v8358
      %v8361 = vshrl.u32 %v8055, 16
      %v8363 = vrot.slane %v8361, 2
      %v8364 = vshll.u32 %v8055, 16
      %v8366 = vrot.slane %v8364, 3
      %v8367 = vor.u32 %v8363, %v8366
      %v8368 = vsel %vm1490, %v8358, %v8367
      %v8370 = vshrl.u32 %v8056, 16
      %v8372 = vrot.slane %v8370, 2
      %v8373 = vshll.u32 %v8056, 16
      %v8375 = vrot.slane %v8373, 3
      %v8376 = vor.u32 %v8372, %v8375
      %v8377 = vsel %vm1490, %v8367, %v8376
      %v8379 = vshrl.u32 %v8057, 16
      %v8381 = vrot.slane %v8379, 2
      %v8382 = vshll.u32 %v8057, 16
      %v8384 = vrot.slane %v8382, 3
      %v8385 = vor.u32 %v8381, %v8384
      %v8386 = vsel %vm1490, %v8376, %v8385
      %v8388 = vshrl.u32 %v8058, 16
      %v8390 = vrot.slane %v8388, 2
      %v8391 = vshll.u32 %v8058, 16
      %v8393 = vrot.slane %v8391, 3
      %v8394 = vor.u32 %v8390, %v8393
      %v8395 = vsel %vm1490, %v8385, %v8394
      %v8397 = vshrl.u32 %v8059, 16
      %v8399 = vrot.slane %v8397, 2
      %v8400 = vshll.u32 %v8059, 16
      %v8402 = vrot.slane %v8400, 3
      %v8403 = vor.u32 %v8399, %v8402
      %v8404 = vsel %vm1490, %v8394, %v8403
      %v8406 = vshrl.u32 %v8060, 16
      %v8408 = vrot.slane %v8406, 2
      %v8409 = vshll.u32 %v8060, 16
      %v8411 = vrot.slane %v8409, 3
      %v8412 = vor.u32 %v8408, %v8411
      %v8413 = vsel %vm1490, %v8403, %v8412
      %v8415 = vshrl.u32 %v8061, 16
      %v8417 = vrot.slane %v8415, 2
      %v8418 = vshll.u32 %v8061, 16
      %v8420 = vrot.slane %v8418, 3
      %v8421 = vor.u32 %v8417, %v8420
      %v8422 = vsel %vm1490, %v8412, %v8421
      %v8424 = vshrl.u32 %v8062, 16
      %v8426 = vrot.slane %v8424, 2
      %v8427 = vshll.u32 %v8062, 16
      %v8429 = vrot.slane %v8427, 3
      %v8430 = vor.u32 %v8426, %v8429
      %v8431 = vsel %vm1490, %v8421, %v8430
      %v8433 = vshrl.u32 %v8063, 16
      %v8435 = vrot.slane %v8433, 2
      %v8436 = vshll.u32 %v8063, 16
      %v8438 = vrot.slane %v8436, 3
      %v8439 = vor.u32 %v8435, %v8438
      %v8440 = vsel %vm1490, %v8430, %v8439
      %v8442 = vshrl.u32 %v8064, 16
      %v8444 = vrot.slane %v8442, 2
      %v8445 = vshll.u32 %v8064, 16
      %v8447 = vrot.slane %v8445, 3
      %v8448 = vor.u32 %v8444, %v8447
      %v8449 = vsel %vm1490, %v8439, %v8448
      %v8451 = vshrl.u32 %v8065, 16
      %v8453 = vrot.slane %v8451, 2
      %v8454 = vshll.u32 %v8065, 16
      %v8456 = vrot.slane %v8454, 3
      %v8457 = vor.u32 %v8453, %v8456
      %v8458 = vsel %vm1490, %v8448, %v8457
      %v8460 = vshrl.u32 %v8066, 16
      %v8462 = vrot.slane %v8460, 2
      %v8463 = vshll.u32 %v8066, 16
      %v8465 = vrot.slane %v8463, 3
      %v8466 = vor.u32 %v8462, %v8465
      %v8467 = vsel %vm1490, %v8457, %v8466
      %v8469 = vshrl.u32 %v8067, 16
      %v8471 = vrot.slane %v8469, 2
      %v8472 = vshll.u32 %v8067, 16
      %v8474 = vrot.slane %v8472, 3
      %v8475 = vor.u32 %v8471, %v8474
      %v8476 = vsel %vm1490, %v8466, %v8475
      %v8478 = vshrl.u32 %v8068, 16
      %v8480 = vrot.slane %v8478, 2
      %v8481 = vshll.u32 %v8068, 16
      %v8483 = vrot.slane %v8481, 3
      %v8484 = vor.u32 %v8480, %v8483
      %v8485 = vsel %vm1490, %v8475, %v8484
      %v8487 = vshrl.u32 %v8069, 16
      %v8489 = vrot.slane %v8487, 2
      %v8490 = vshll.u32 %v8069, 16
      %v8492 = vrot.slane %v8490, 3
      %v8493 = vor.u32 %v8489, %v8492
      %v8494 = vsel %vm1490, %v8484, %v8493
      %v8496 = vshrl.u32 %v8070, 16
      %v8498 = vrot.slane %v8496, 2
      %v8499 = vshll.u32 %v8070, 16
      %v8501 = vrot.slane %v8499, 3
      %v8502 = vor.u32 %v8498, %v8501
      %v8503 = vsel %vm1490, %v8493, %v8502
      %v8505 = vshrl.u32 %v8071, 16
      %v8507 = vrot.slane %v8505, 2
      %v8508 = vshll.u32 %v8071, 16
      %v8510 = vrot.slane %v8508, 3
      %v8511 = vor.u32 %v8507, %v8510
      %v8512 = vsel %vm1490, %v8502, %v8511
      %v8514 = vshrl.u32 %v8072, 16
      %v8516 = vrot.slane %v8514, 2
      %v8517 = vshll.u32 %v8072, 16
      %v8519 = vrot.slane %v8517, 3
      %v8520 = vor.u32 %v8516, %v8519
      %v8521 = vsel %vm1490, %v8511, %v8520
      %v8523 = vshrl.u32 %v8073, 16
      %v8525 = vrot.slane %v8523, 2
      %v8526 = vshll.u32 %v8073, 16
      %v8528 = vrot.slane %v8526, 3
      %v8529 = vor.u32 %v8525, %v8528
      %v8530 = vsel %vm1490, %v8520, %v8529
      %v8532 = vshrl.u32 %v8074, 16
      %v8534 = vrot.slane %v8532, 2
      %v8535 = vshll.u32 %v8074, 16
      %v8537 = vrot.slane %v8535, 3
      %v8538 = vor.u32 %v8534, %v8537
      %v8539 = vsel %vm1490, %v8529, %v8538
      %v8541 = vshrl.u32 %v8075, 16
      %v8543 = vrot.slane %v8541, 2
      %v8544 = vshll.u32 %v8075, 16
      %v8546 = vrot.slane %v8544, 3
      %v8547 = vor.u32 %v8543, %v8546
      %v8548 = vsel %vm1490, %v8538, %v8547
      %v8550 = vshrl.u32 %v8076, 16
      %v8552 = vrot.slane %v8550, 2
      %v8553 = vshll.u32 %v8076, 16
      %v8555 = vrot.slane %v8553, 3
      %v8556 = vor.u32 %v8552, %v8555
      %v8557 = vsel %vm1490, %v8547, %v8556
      %v8559 = vshrl.u32 %v8077, 16
      %v8561 = vrot.slane %v8559, 2
      %v8562 = vshll.u32 %v8077, 16
      %v8564 = vrot.slane %v8562, 3
      %v8565 = vor.u32 %v8561, %v8564
      %v8566 = vsel %vm1490, %v8556, %v8565
      %v8568 = vshrl.u32 %v8078, 16
      %v8570 = vrot.slane %v8568, 2
      %v8571 = vshll.u32 %v8078, 16
      %v8573 = vrot.slane %v8571, 3
      %v8574 = vor.u32 %v8570, %v8573
      %v8575 = vsel %vm1490, %v8565, %v8574
      %v8577 = vshrl.u32 %v8079, 16
      %v8579 = vrot.slane %v8577, 2
      %v8580 = vshll.u32 %v8079, 16
      %v8582 = vrot.slane %v8580, 3
      %v8583 = vor.u32 %v8579, %v8582
      %v8584 = vsel %vm1490, %v8574, %v8583
      %8585 = vrot.lane.b32.xlu0 %v8251, 64
      %v8586 = vpop.permute.xlu0 %8585
      %8587 = vrot.lane.b32.xlu0 %v8260, 64
      %v8588 = vpop.permute.xlu0 %8587
      %8589 = vrot.lane.b32.xlu0 %v8269, 64
      %v8590 = vpop.permute.xlu0 %8589
      %8591 = vrot.lane.b32.xlu0 %v8278, 64
      %v8592 = vpop.permute.xlu0 %8591
      %8593 = vrot.lane.b32.xlu0 %v8287, 64
      %v8594 = vpop.permute.xlu0 %8593
      %8595 = vrot.lane.b32.xlu0 %v8296, 64
      %v8596 = vpop.permute.xlu0 %8595
      %8597 = vrot.lane.b32.xlu0 %v8305, 64
      %v8598 = vpop.permute.xlu0 %8597
      %8599 = vrot.lane.b32.xlu0 %v8314, 64
      %v8600 = vpop.permute.xlu0 %8599
      %8601 = vrot.lane.b32.xlu0 %v8323, 64
      %v8602 = vpop.permute.xlu0 %8601
      %8603 = vrot.lane.b32.xlu0 %v8332, 64
      %v8604 = vpop.permute.xlu0 %8603
      %8605 = vrot.lane.b32.xlu0 %v8341, 64
      %v8606 = vpop.permute.xlu0 %8605
      %8607 = vrot.lane.b32.xlu0 %v8350, 64
      %v8608 = vpop.permute.xlu0 %8607
      %8609 = vrot.lane.b32.xlu0 %v8359, 64
      %v8610 = vpop.permute.xlu0 %8609
      %8611 = vrot.lane.b32.xlu0 %v8368, 64
      %v8612 = vpop.permute.xlu0 %8611
      %8613 = vrot.lane.b32.xlu0 %v8377, 64
      %v8614 = vpop.permute.xlu0 %8613
      %8615 = vrot.lane.b32.xlu0 %v8386, 64
      %v8616 = vpop.permute.xlu0 %8615
      %8617 = vrot.lane.b32.xlu0 %v8395, 64
      %v8618 = vpop.permute.xlu0 %8617
      %8619 = vrot.lane.b32.xlu0 %v8404, 64
      %v8620 = vpop.permute.xlu0 %8619
      %8621 = vrot.lane.b32.xlu0 %v8413, 64
      %v8622 = vpop.permute.xlu0 %8621
      %8623 = vrot.lane.b32.xlu0 %v8422, 64
      %v8624 = vpop.permute.xlu0 %8623
      %8625 = vrot.lane.b32.xlu0 %v8431, 64
      %v8626 = vpop.permute.xlu0 %8625
      %8627 = vrot.lane.b32.xlu0 %v8440, 64
      %v8628 = vpop.permute.xlu0 %8627
      %8629 = vrot.lane.b32.xlu0 %v8449, 64
      %v8630 = vpop.permute.xlu0 %8629
      %8631 = vrot.lane.b32.xlu0 %v8458, 64
      %v8632 = vpop.permute.xlu0 %8631
      %8633 = vrot.lane.b32.xlu0 %v8467, 64
      %v8634 = vpop.permute.xlu0 %8633
      %8635 = vrot.lane.b32.xlu0 %v8476, 64
      %v8636 = vpop.permute.xlu0 %8635
      %8637 = vrot.lane.b32.xlu0 %v8485, 64
      %v8638 = vpop.permute.xlu0 %8637
      %8639 = vrot.lane.b32.xlu0 %v8494, 64
      %v8640 = vpop.permute.xlu0 %8639
      %8641 = vrot.lane.b32.xlu0 %v8503, 64
      %v8642 = vpop.permute.xlu0 %8641
      %8643 = vrot.lane.b32.xlu0 %v8512, 64
      %v8644 = vpop.permute.xlu0 %8643
      %8645 = vrot.lane.b32.xlu0 %v8521, 64
      %v8646 = vpop.permute.xlu0 %8645
      %8647 = vrot.lane.b32.xlu0 %v8530, 64
      %v8648 = vpop.permute.xlu0 %8647
      %8649 = vrot.lane.b32.xlu0 %v8539, 64
      %v8650 = vpop.permute.xlu0 %8649
      %8651 = vrot.lane.b32.xlu0 %v8548, 64
      %v8652 = vpop.permute.xlu0 %8651
      %8653 = vrot.lane.b32.xlu0 %v8557, 64
      %v8654 = vpop.permute.xlu0 %8653
      %8655 = vrot.lane.b32.xlu0 %v8566, 64
      %v8656 = vpop.permute.xlu0 %8655
      %8657 = vrot.lane.b32.xlu0 %v8575, 64
      %v8658 = vpop.permute.xlu0 %8657
      %8659 = vrot.lane.b32.xlu0 %v8584, 64
      %v8660 = vpop.permute.xlu0 %8659
      %8661 = vrot.lane.b32.xlu0 %v8583, 64
      %v8662 = vpop.permute.xlu0 %8661
      %v8663 = vrot.slane %v8041, 3
      %v8664 = vrot.slane %v8042, 3
      %v8665 = vsel %vm1996, %v8663, %v8664
      %v8666 = vrot.slane %v8043, 3
      %v8667 = vsel %vm1996, %v8664, %v8666
      %v8668 = vrot.slane %v8044, 3
      %v8669 = vsel %vm1996, %v8666, %v8668
      %v8670 = vrot.slane %v8045, 3
      %v8671 = vsel %vm1996, %v8668, %v8670
      %v8672 = vrot.slane %v8046, 3
      %v8673 = vsel %vm1996, %v8670, %v8672
      %v8674 = vrot.slane %v8047, 3
      %v8675 = vsel %vm1996, %v8672, %v8674
      %v8676 = vrot.slane %v8048, 3
      %v8677 = vsel %vm1996, %v8674, %v8676
      %v8678 = vrot.slane %v8049, 3
      %v8679 = vsel %vm1996, %v8676, %v8678
      %v8680 = vrot.slane %v8050, 3
      %v8681 = vsel %vm1996, %v8678, %v8680
      %v8682 = vrot.slane %v8051, 3
      %v8683 = vsel %vm1996, %v8680, %v8682
      %v8684 = vrot.slane %v8052, 3
      %v8685 = vsel %vm1996, %v8682, %v8684
      %v8686 = vrot.slane %v8053, 3
      %v8687 = vsel %vm1996, %v8684, %v8686
      %v8688 = vrot.slane %v8054, 3
      %v8689 = vsel %vm1996, %v8686, %v8688
      %v8690 = vrot.slane %v8055, 3
      %v8691 = vsel %vm1996, %v8688, %v8690
      %v8692 = vrot.slane %v8056, 3
      %v8693 = vsel %vm1996, %v8690, %v8692
      %v8694 = vrot.slane %v8057, 3
      %v8695 = vsel %vm1996, %v8692, %v8694
      %v8696 = vrot.slane %v8058, 3
      %v8697 = vsel %vm1996, %v8694, %v8696
      %v8698 = vrot.slane %v8059, 3
      %v8699 = vsel %vm1996, %v8696, %v8698
      %v8700 = vrot.slane %v8060, 3
      %v8701 = vsel %vm1996, %v8698, %v8700
      %v8702 = vrot.slane %v8061, 3
      %v8703 = vsel %vm1996, %v8700, %v8702
      %v8704 = vrot.slane %v8062, 3
      %v8705 = vsel %vm1996, %v8702, %v8704
      %v8706 = vrot.slane %v8063, 3
      %v8707 = vsel %vm1996, %v8704, %v8706
      %v8708 = vrot.slane %v8064, 3
      %v8709 = vsel %vm1996, %v8706, %v8708
      %v8710 = vrot.slane %v8065, 3
      %v8711 = vsel %vm1996, %v8708, %v8710
      %v8712 = vrot.slane %v8066, 3
      %v8713 = vsel %vm1996, %v8710, %v8712
      %v8714 = vrot.slane %v8067, 3
      %v8715 = vsel %vm1996, %v8712, %v8714
      %v8716 = vrot.slane %v8068, 3
      %v8717 = vsel %vm1996, %v8714, %v8716
      %v8718 = vrot.slane %v8069, 3
      %v8719 = vsel %vm1996, %v8716, %v8718
      %v8720 = vrot.slane %v8070, 3
      %v8721 = vsel %vm1996, %v8718, %v8720
      %v8722 = vrot.slane %v8071, 3
      %v8723 = vsel %vm1996, %v8720, %v8722
      %v8724 = vrot.slane %v8072, 3
      %v8725 = vsel %vm1996, %v8722, %v8724
      %v8726 = vrot.slane %v8073, 3
      %v8727 = vsel %vm1996, %v8724, %v8726
      %v8728 = vrot.slane %v8074, 3
      %v8729 = vsel %vm1996, %v8726, %v8728
      %v8730 = vrot.slane %v8075, 3
      %v8731 = vsel %vm1996, %v8728, %v8730
      %v8732 = vrot.slane %v8076, 3
      %v8733 = vsel %vm1996, %v8730, %v8732
      %v8734 = vrot.slane %v8077, 3
      %v8735 = vsel %vm1996, %v8732, %v8734
      %v8736 = vrot.slane %v8078, 3
      %v8737 = vsel %vm1996, %v8734, %v8736
      %v8738 = vrot.slane %v8079, 3
      %v8739 = vsel %vm1996, %v8736, %v8738
      %8740 = vrot.lane.b32.xlu0 %v8665, 80
      %v8741 = vpop.permute.xlu0 %8740
      %8742 = vrot.lane.b32.xlu0 %v8667, 80
      %v8743 = vpop.permute.xlu0 %8742
      %8744 = vrot.lane.b32.xlu0 %v8669, 80
      %v8745 = vpop.permute.xlu0 %8744
      %8746 = vrot.lane.b32.xlu0 %v8671, 80
      %v8747 = vpop.permute.xlu0 %8746
      %8748 = vrot.lane.b32.xlu0 %v8673, 80
      %v8749 = vpop.permute.xlu0 %8748
      %8750 = vrot.lane.b32.xlu0 %v8675, 80
      %v8751 = vpop.permute.xlu0 %8750
      %8752 = vrot.lane.b32.xlu0 %v8677, 80
      %v8753 = vpop.permute.xlu0 %8752
      %8754 = vrot.lane.b32.xlu0 %v8679, 80
      %v8755 = vpop.permute.xlu0 %8754
      %8756 = vrot.lane.b32.xlu0 %v8681, 80
      %v8757 = vpop.permute.xlu0 %8756
      %8758 = vrot.lane.b32.xlu0 %v8683, 80
      %v8759 = vpop.permute.xlu0 %8758
      %8760 = vrot.lane.b32.xlu0 %v8685, 80
      %v8761 = vpop.permute.xlu0 %8760
      %8762 = vrot.lane.b32.xlu0 %v8687, 80
      %v8763 = vpop.permute.xlu0 %8762
      %8764 = vrot.lane.b32.xlu0 %v8689, 80
      %v8765 = vpop.permute.xlu0 %8764
      %8766 = vrot.lane.b32.xlu0 %v8691, 80
      %v8767 = vpop.permute.xlu0 %8766
      %8768 = vrot.lane.b32.xlu0 %v8693, 80
      %v8769 = vpop.permute.xlu0 %8768
      %8770 = vrot.lane.b32.xlu0 %v8695, 80
      %v8771 = vpop.permute.xlu0 %8770
      %8772 = vrot.lane.b32.xlu0 %v8697, 80
      %v8773 = vpop.permute.xlu0 %8772
      %8774 = vrot.lane.b32.xlu0 %v8699, 80
      %v8775 = vpop.permute.xlu0 %8774
      %8776 = vrot.lane.b32.xlu0 %v8701, 80
      %v8777 = vpop.permute.xlu0 %8776
      %8778 = vrot.lane.b32.xlu0 %v8703, 80
      %v8779 = vpop.permute.xlu0 %8778
      %8780 = vrot.lane.b32.xlu0 %v8705, 80
      %v8781 = vpop.permute.xlu0 %8780
      %8782 = vrot.lane.b32.xlu0 %v8707, 80
      %v8783 = vpop.permute.xlu0 %8782
      %8784 = vrot.lane.b32.xlu0 %v8709, 80
      %v8785 = vpop.permute.xlu0 %8784
      %8786 = vrot.lane.b32.xlu0 %v8711, 80
      %v8787 = vpop.permute.xlu0 %8786
      %8788 = vrot.lane.b32.xlu0 %v8713, 80
      %v8789 = vpop.permute.xlu0 %8788
      %8790 = vrot.lane.b32.xlu0 %v8715, 80
      %v8791 = vpop.permute.xlu0 %8790
      %8792 = vrot.lane.b32.xlu0 %v8717, 80
      %v8793 = vpop.permute.xlu0 %8792
      %8794 = vrot.lane.b32.xlu0 %v8719, 80
      %v8795 = vpop.permute.xlu0 %8794
      %8796 = vrot.lane.b32.xlu0 %v8721, 80
      %v8797 = vpop.permute.xlu0 %8796
      %8798 = vrot.lane.b32.xlu0 %v8723, 80
      %v8799 = vpop.permute.xlu0 %8798
      %8800 = vrot.lane.b32.xlu0 %v8725, 80
      %v8801 = vpop.permute.xlu0 %8800
      %8802 = vrot.lane.b32.xlu0 %v8727, 80
      %v8803 = vpop.permute.xlu0 %8802
      %8804 = vrot.lane.b32.xlu0 %v8729, 80
      %v8805 = vpop.permute.xlu0 %8804
      %8806 = vrot.lane.b32.xlu0 %v8731, 80
      %v8807 = vpop.permute.xlu0 %8806
      %8808 = vrot.lane.b32.xlu0 %v8733, 80
      %v8809 = vpop.permute.xlu0 %8808
      %8810 = vrot.lane.b32.xlu0 %v8735, 80
      %v8811 = vpop.permute.xlu0 %8810
      %8812 = vrot.lane.b32.xlu0 %v8737, 80
      %v8813 = vpop.permute.xlu0 %8812
      %8814 = vrot.lane.b32.xlu0 %v8739, 80
      %v8815 = vpop.permute.xlu0 %8814
      %8816 = vrot.lane.b32.xlu0 %v8738, 80
      %v8817 = vpop.permute.xlu0 %8816
      %v8822 = vunpack.c.l.b16 %v7294
      %v8823 = vunpack.c.l.b16 %v7295
      %v8824 = vunpack.c.l.b16 %v7296
      %v8825 = vunpack.c.l.b16 %v7297
      %v8826 = vpack.c.b16 %v8822, %v8040
      %v8827 = vpack.c.b16 %v8824, %v8823
      %v8828 = vpack.c.b16 %v8825, %v8825
      %8829 = vrot.lane.b32.xlu0 %v8043, 96
      %v8830 = vpop.permute.xlu0 %8829
      %8831 = vrot.lane.b32.xlu0 %v8044, 96
      %v8832 = vpop.permute.xlu0 %8831
      %8833 = vrot.lane.b32.xlu0 %v8045, 96
      %v8834 = vpop.permute.xlu0 %8833
      %8835 = vrot.lane.b32.xlu0 %v8046, 96
      %v8836 = vpop.permute.xlu0 %8835
      %8837 = vrot.lane.b32.xlu0 %v8047, 96
      %v8838 = vpop.permute.xlu0 %8837
      %8839 = vrot.lane.b32.xlu0 %v8048, 96
      %v8840 = vpop.permute.xlu0 %8839
      %8841 = vrot.lane.b32.xlu0 %v8049, 96
      %v8842 = vpop.permute.xlu0 %8841
      %8843 = vrot.lane.b32.xlu0 %v8050, 96
      %v8844 = vpop.permute.xlu0 %8843
      %8845 = vrot.lane.b32.xlu0 %v8051, 96
      %v8846 = vpop.permute.xlu0 %8845
      %8847 = vrot.lane.b32.xlu0 %v8052, 96
      %v8848 = vpop.permute.xlu0 %8847
      %8849 = vrot.lane.b32.xlu0 %v8053, 96
      %v8850 = vpop.permute.xlu0 %8849
      %8851 = vrot.lane.b32.xlu0 %v8054, 96
      %v8852 = vpop.permute.xlu0 %8851
      %8853 = vrot.lane.b32.xlu0 %v8055, 96
      %v8854 = vpop.permute.xlu0 %8853
      %8855 = vrot.lane.b32.xlu0 %v8056, 96
      %v8856 = vpop.permute.xlu0 %8855
      %8857 = vrot.lane.b32.xlu0 %v8057, 96
      %v8858 = vpop.permute.xlu0 %8857
      %8859 = vrot.lane.b32.xlu0 %v8058, 96
      %v8860 = vpop.permute.xlu0 %8859
      %8861 = vrot.lane.b32.xlu0 %v8059, 96
      %v8862 = vpop.permute.xlu0 %8861
      %8863 = vrot.lane.b32.xlu0 %v8060, 96
      %v8864 = vpop.permute.xlu0 %8863
      %8865 = vrot.lane.b32.xlu0 %v8061, 96
      %v8866 = vpop.permute.xlu0 %8865
      %8867 = vrot.lane.b32.xlu0 %v8062, 96
      %v8868 = vpop.permute.xlu0 %8867
      %8869 = vrot.lane.b32.xlu0 %v8063, 96
      %v8870 = vpop.permute.xlu0 %8869
      %8871 = vrot.lane.b32.xlu0 %v8064, 96
      %v8872 = vpop.permute.xlu0 %8871
      %8873 = vrot.lane.b32.xlu0 %v8065, 96
      %v8874 = vpop.permute.xlu0 %8873
      %8875 = vrot.lane.b32.xlu0 %v8066, 96
      %v8876 = vpop.permute.xlu0 %8875
      %8877 = vrot.lane.b32.xlu0 %v8067, 96
      %v8878 = vpop.permute.xlu0 %8877
      %8879 = vrot.lane.b32.xlu0 %v8068, 96
      %v8880 = vpop.permute.xlu0 %8879
      %8881 = vrot.lane.b32.xlu0 %v8069, 96
      %v8882 = vpop.permute.xlu0 %8881
      %8883 = vrot.lane.b32.xlu0 %v8070, 96
      %v8884 = vpop.permute.xlu0 %8883
      %8885 = vrot.lane.b32.xlu0 %v8071, 96
      %v8886 = vpop.permute.xlu0 %8885
      %8887 = vrot.lane.b32.xlu0 %v8072, 96
      %v8888 = vpop.permute.xlu0 %8887
      %8889 = vrot.lane.b32.xlu0 %v8073, 96
      %v8890 = vpop.permute.xlu0 %8889
      %8891 = vrot.lane.b32.xlu0 %v8074, 96
      %v8892 = vpop.permute.xlu0 %8891
      %8893 = vrot.lane.b32.xlu0 %v8075, 96
      %v8894 = vpop.permute.xlu0 %8893
      %8895 = vrot.lane.b32.xlu0 %v8076, 96
      %v8896 = vpop.permute.xlu0 %8895
      %8897 = vrot.lane.b32.xlu0 %v8077, 96
      %v8898 = vpop.permute.xlu0 %8897
      %8899 = vrot.lane.b32.xlu0 %v8078, 96
      %v8900 = vpop.permute.xlu0 %8899
      %8901 = vrot.lane.b32.xlu0 %v8826, 96
      %v8902 = vpop.permute.xlu0 %8901
      %8903 = vrot.lane.b32.xlu0 %v8827, 96
      %v8904 = vpop.permute.xlu0 %8903
      %8905 = vrot.lane.b32.xlu0 %v8828, 96
      %v8906 = vpop.permute.xlu0 %8905
      %v8907 = vrot.slane %v8256, 1
      %v8908 = vor.u32 %v8253, %v8907
      %v8909 = vrot.slane %v8265, 1
      %v8910 = vsel %vm608, %v8908, %v8909
      %v8911 = vor.u32 %v8262, %v8909
      %v8912 = vrot.slane %v8274, 1
      %v8913 = vsel %vm608, %v8911, %v8912
      %v8914 = vor.u32 %v8271, %v8912
      %v8915 = vrot.slane %v8283, 1
      %v8916 = vsel %vm608, %v8914, %v8915
      %v8917 = vor.u32 %v8280, %v8915
      %v8918 = vrot.slane %v8292, 1
      %v8919 = vsel %vm608, %v8917, %v8918
      %v8920 = vor.u32 %v8289, %v8918
      %v8921 = vrot.slane %v8301, 1
      %v8922 = vsel %vm608, %v8920, %v8921
      %v8923 = vor.u32 %v8298, %v8921
      %v8924 = vrot.slane %v8310, 1
      %v8925 = vsel %vm608, %v8923, %v8924
      %v8926 = vor.u32 %v8307, %v8924
      %v8927 = vrot.slane %v8319, 1
      %v8928 = vsel %vm608, %v8926, %v8927
      %v8929 = vor.u32 %v8316, %v8927
      %v8930 = vrot.slane %v8328, 1
      %v8931 = vsel %vm608, %v8929, %v8930
      %v8932 = vor.u32 %v8325, %v8930
      %v8933 = vrot.slane %v8337, 1
      %v8934 = vsel %vm608, %v8932, %v8933
      %v8935 = vor.u32 %v8334, %v8933
      %v8936 = vrot.slane %v8346, 1
      %v8937 = vsel %vm608, %v8935, %v8936
      %v8938 = vor.u32 %v8343, %v8936
      %v8939 = vrot.slane %v8355, 1
      %v8940 = vsel %vm608, %v8938, %v8939
      %v8941 = vor.u32 %v8352, %v8939
      %v8942 = vrot.slane %v8364, 1
      %v8943 = vsel %vm608, %v8941, %v8942
      %v8944 = vor.u32 %v8361, %v8942
      %v8945 = vrot.slane %v8373, 1
      %v8946 = vsel %vm608, %v8944, %v8945
      %v8947 = vor.u32 %v8370, %v8945
      %v8948 = vrot.slane %v8382, 1
      %v8949 = vsel %vm608, %v8947, %v8948
      %v8950 = vor.u32 %v8379, %v8948
      %v8951 = vrot.slane %v8391, 1
      %v8952 = vsel %vm608, %v8950, %v8951
      %v8953 = vor.u32 %v8388, %v8951
      %v8954 = vrot.slane %v8400, 1
      %v8955 = vsel %vm608, %v8953, %v8954
      %v8956 = vor.u32 %v8397, %v8954
      %v8957 = vrot.slane %v8409, 1
      %v8958 = vsel %vm608, %v8956, %v8957
      %v8959 = vor.u32 %v8406, %v8957
      %v8960 = vrot.slane %v8418, 1
      %v8961 = vsel %vm608, %v8959, %v8960
      %v8962 = vor.u32 %v8415, %v8960
      %v8963 = vrot.slane %v8427, 1
      %v8964 = vsel %vm608, %v8962, %v8963
      %v8965 = vor.u32 %v8424, %v8963
      %v8966 = vrot.slane %v8436, 1
      %v8967 = vsel %vm608, %v8965, %v8966
      %v8968 = vor.u32 %v8433, %v8966
      %v8969 = vrot.slane %v8445, 1
      %v8970 = vsel %vm608, %v8968, %v8969
      %v8971 = vor.u32 %v8442, %v8969
      %v8972 = vrot.slane %v8454, 1
      %v8973 = vsel %vm608, %v8971, %v8972
      %v8974 = vor.u32 %v8451, %v8972
      %v8975 = vrot.slane %v8463, 1
      %v8976 = vsel %vm608, %v8974, %v8975
      %v8977 = vor.u32 %v8460, %v8975
      %v8978 = vrot.slane %v8472, 1
      %v8979 = vsel %vm608, %v8977, %v8978
      %v8980 = vor.u32 %v8469, %v8978
      %v8981 = vrot.slane %v8481, 1
      %v8982 = vsel %vm608, %v8980, %v8981
      %v8983 = vor.u32 %v8478, %v8981
      %v8984 = vrot.slane %v8490, 1
      %v8985 = vsel %vm608, %v8983, %v8984
      %v8986 = vor.u32 %v8487, %v8984
      %v8987 = vrot.slane %v8499, 1
      %v8988 = vsel %vm608, %v8986, %v8987
      %v8989 = vor.u32 %v8496, %v8987
      %v8990 = vrot.slane %v8508, 1
      %v8991 = vsel %vm608, %v8989, %v8990
      %v8992 = vor.u32 %v8505, %v8990
      %v8993 = vrot.slane %v8517, 1
      %v8994 = vsel %vm608, %v8992, %v8993
      %v8995 = vor.u32 %v8514, %v8993
      %v8996 = vrot.slane %v8526, 1
      %v8997 = vsel %vm608, %v8995, %v8996
      %v8998 = vor.u32 %v8523, %v8996
      %v8999 = vrot.slane %v8535, 1
      %v9000 = vsel %vm608, %v8998, %v8999
      %v9001 = vor.u32 %v8532, %v8999
      %v9002 = vrot.slane %v8544, 1
      %v9003 = vsel %vm608, %v9001, %v9002
      %v9004 = vor.u32 %v8541, %v9002
      %v9005 = vrot.slane %v8553, 1
      %v9006 = vsel %vm608, %v9004, %v9005
      %v9007 = vor.u32 %v8550, %v9005
      %v9008 = vrot.slane %v8562, 1
      %v9009 = vsel %vm608, %v9007, %v9008
      %v9010 = vor.u32 %v8559, %v9008
      %v9011 = vrot.slane %v8571, 1
      %v9012 = vsel %vm608, %v9010, %v9011
      %v9013 = vor.u32 %v8568, %v9011
      %v9015 = vshll.u32 %v8826, 16
      %v9017 = vrot.slane %v9015, 1
      %v9018 = vsel %vm608, %v9013, %v9017
      %v9019 = vshrl.u32 %v8826, 16
      %v9021 = vor.u32 %v9019, %v9017
      %v9023 = vshll.u32 %v8827, 16
      %v9025 = vrot.slane %v9023, 1
      %v9026 = vsel %vm608, %v9021, %v9025
      %v9027 = vshrl.u32 %v8827, 16
      %v9029 = vor.u32 %v9027, %v9025
      %v9031 = vshll.u32 %v8828, 16
      %v9033 = vrot.slane %v9031, 1
      %v9034 = vsel %vm608, %v9029, %v9033
      %v9035 = vshrl.u32 %v8828, 16
      %v9037 = vor.u32 %v9035, %v9033
      %9038 = vrot.lane.b32.xlu0 %v8910, 112
      %v9039 = vpop.permute.xlu0 %9038
      %9040 = vrot.lane.b32.xlu0 %v8913, 112
      %v9041 = vpop.permute.xlu0 %9040
      %9042 = vrot.lane.b32.xlu0 %v8916, 112
      %v9043 = vpop.permute.xlu0 %9042
      %9044 = vrot.lane.b32.xlu0 %v8919, 112
      %v9045 = vpop.permute.xlu0 %9044
      %9046 = vrot.lane.b32.xlu0 %v8922, 112
      %v9047 = vpop.permute.xlu0 %9046
      %9048 = vrot.lane.b32.xlu0 %v8925, 112
      %v9049 = vpop.permute.xlu0 %9048
      %9050 = vrot.lane.b32.xlu0 %v8928, 112
      %v9051 = vpop.permute.xlu0 %9050
      %9052 = vrot.lane.b32.xlu0 %v8931, 112
      %v9053 = vpop.permute.xlu0 %9052
      %9054 = vrot.lane.b32.xlu0 %v8934, 112
      %v9055 = vpop.permute.xlu0 %9054
      %9056 = vrot.lane.b32.xlu0 %v8937, 112
      %v9057 = vpop.permute.xlu0 %9056
      %9058 = vrot.lane.b32.xlu0 %v8940, 112
      %v9059 = vpop.permute.xlu0 %9058
      %9060 = vrot.lane.b32.xlu0 %v8943, 112
      %v9061 = vpop.permute.xlu0 %9060
      %9062 = vrot.lane.b32.xlu0 %v8946, 112
      %v9063 = vpop.permute.xlu0 %9062
      %9064 = vrot.lane.b32.xlu0 %v8949, 112
      %v9065 = vpop.permute.xlu0 %9064
      %9066 = vrot.lane.b32.xlu0 %v8952, 112
      %v9067 = vpop.permute.xlu0 %9066
      %9068 = vrot.lane.b32.xlu0 %v8955, 112
      %v9069 = vpop.permute.xlu0 %9068
      %9070 = vrot.lane.b32.xlu0 %v8958, 112
      %v9071 = vpop.permute.xlu0 %9070
      %9072 = vrot.lane.b32.xlu0 %v8961, 112
      %v9073 = vpop.permute.xlu0 %9072
      %9074 = vrot.lane.b32.xlu0 %v8964, 112
      %v9075 = vpop.permute.xlu0 %9074
      %9076 = vrot.lane.b32.xlu0 %v8967, 112
      %v9077 = vpop.permute.xlu0 %9076
      %9078 = vrot.lane.b32.xlu0 %v8970, 112
      %v9079 = vpop.permute.xlu0 %9078
      %9080 = vrot.lane.b32.xlu0 %v8973, 112
      %v9081 = vpop.permute.xlu0 %9080
      %9082 = vrot.lane.b32.xlu0 %v8976, 112
      %v9083 = vpop.permute.xlu0 %9082
      %9084 = vrot.lane.b32.xlu0 %v8979, 112
      %v9085 = vpop.permute.xlu0 %9084
      %9086 = vrot.lane.b32.xlu0 %v8982, 112
      %v9087 = vpop.permute.xlu0 %9086
      %9088 = vrot.lane.b32.xlu0 %v8985, 112
      %v9089 = vpop.permute.xlu0 %9088
      %9090 = vrot.lane.b32.xlu0 %v8988, 112
      %v9091 = vpop.permute.xlu0 %9090
      %9092 = vrot.lane.b32.xlu0 %v8991, 112
      %v9093 = vpop.permute.xlu0 %9092
      %9094 = vrot.lane.b32.xlu0 %v8994, 112
      %v9095 = vpop.permute.xlu0 %9094
      %9096 = vrot.lane.b32.xlu0 %v8997, 112
      %v9097 = vpop.permute.xlu0 %9096
      %9098 = vrot.lane.b32.xlu0 %v9000, 112
      %v9099 = vpop.permute.xlu0 %9098
      %9100 = vrot.lane.b32.xlu0 %v9003, 112
      %v9101 = vpop.permute.xlu0 %9100
      %9102 = vrot.lane.b32.xlu0 %v9006, 112
      %v9103 = vpop.permute.xlu0 %9102
      %9104 = vrot.lane.b32.xlu0 %v9009, 112
      %v9105 = vpop.permute.xlu0 %9104
      %9106 = vrot.lane.b32.xlu0 %v9012, 112
      %v9107 = vpop.permute.xlu0 %9106
      %9108 = vrot.lane.b32.xlu0 %v9018, 112
      %v9109 = vpop.permute.xlu0 %9108
      %9110 = vrot.lane.b32.xlu0 %v9026, 112
      %v9111 = vpop.permute.xlu0 %9110
      %9112 = vrot.lane.b32.xlu0 %v9034, 112
      %v9113 = vpop.permute.xlu0 %9112
      %9114 = vrot.lane.b32.xlu0 %v9037, 112
      %v9115 = vpop.permute.xlu0 %9114
      %v9116 = vrot.slane %v8043, 1
      %v9117 = vrot.slane %v8044, 1
      %v9118 = vsel %vm1068, %v9116, %v9117
      %v9119 = vrot.slane %v8045, 1
      %v9120 = vsel %vm1068, %v9117, %v9119
      %v9121 = vrot.slane %v8046, 1
      %v9122 = vsel %vm1068, %v9119, %v9121
      %v9123 = vrot.slane %v8047, 1
      %v9124 = vsel %vm1068, %v9121, %v9123
      %v9125 = vrot.slane %v8048, 1
      %v9126 = vsel %vm1068, %v9123, %v9125
      %v9127 = vrot.slane %v8049, 1
      %v9128 = vsel %vm1068, %v9125, %v9127
      %v9129 = vrot.slane %v8050, 1
      %v9130 = vsel %vm1068, %v9127, %v9129
      %v9131 = vrot.slane %v8051, 1
      %v9132 = vsel %vm1068, %v9129, %v9131
      %v9133 = vrot.slane %v8052, 1
      %v9134 = vsel %vm1068, %v9131, %v9133
      %v9135 = vrot.slane %v8053, 1
      %v9136 = vsel %vm1068, %v9133, %v9135
      %v9137 = vrot.slane %v8054, 1
      %v9138 = vsel %vm1068, %v9135, %v9137
      %v9139 = vrot.slane %v8055, 1
      %v9140 = vsel %vm1068, %v9137, %v9139
      %v9141 = vrot.slane %v8056, 1
      %v9142 = vsel %vm1068, %v9139, %v9141
      %v9143 = vrot.slane %v8057, 1
      %v9144 = vsel %vm1068, %v9141, %v9143
      %v9145 = vrot.slane %v8058, 1
      %v9146 = vsel %vm1068, %v9143, %v9145
      %v9147 = vrot.slane %v8059, 1
      %v9148 = vsel %vm1068, %v9145, %v9147
      %v9149 = vrot.slane %v8060, 1
      %v9150 = vsel %vm1068, %v9147, %v9149
      %v9151 = vrot.slane %v8061, 1
      %v9152 = vsel %vm1068, %v9149, %v9151
      %v9153 = vrot.slane %v8062, 1
      %v9154 = vsel %vm1068, %v9151, %v9153
      %v9155 = vrot.slane %v8063, 1
      %v9156 = vsel %vm1068, %v9153, %v9155
      %v9157 = vrot.slane %v8064, 1
      %v9158 = vsel %vm1068, %v9155, %v9157
      %v9159 = vrot.slane %v8065, 1
      %v9160 = vsel %vm1068, %v9157, %v9159
      %v9161 = vrot.slane %v8066, 1
      %v9162 = vsel %vm1068, %v9159, %v9161
      %v9163 = vrot.slane %v8067, 1
      %v9164 = vsel %vm1068, %v9161, %v9163
      %v9165 = vrot.slane %v8068, 1
      %v9166 = vsel %vm1068, %v9163, %v9165
      %v9167 = vrot.slane %v8069, 1
      %v9168 = vsel %vm1068, %v9165, %v9167
      %v9169 = vrot.slane %v8070, 1
      %v9170 = vsel %vm1068, %v9167, %v9169
      %v9171 = vrot.slane %v8071, 1
      %v9172 = vsel %vm1068, %v9169, %v9171
      %v9173 = vrot.slane %v8072, 1
      %v9174 = vsel %vm1068, %v9171, %v9173
      %v9175 = vrot.slane %v8073, 1
      %v9176 = vsel %vm1068, %v9173, %v9175
      %v9177 = vrot.slane %v8074, 1
      %v9178 = vsel %vm1068, %v9175, %v9177
      %v9179 = vrot.slane %v8075, 1
      %v9180 = vsel %vm1068, %v9177, %v9179
      %v9181 = vrot.slane %v8076, 1
      %v9182 = vsel %vm1068, %v9179, %v9181
      %v9183 = vrot.slane %v8077, 1
      %v9184 = vsel %vm1068, %v9181, %v9183
      %v9185 = vrot.slane %v8078, 1
      %v9186 = vsel %vm1068, %v9183, %v9185
      %v9187 = vrot.slane %v8826, 1
      %v9188 = vsel %vm1068, %v9185, %v9187
      %v9189 = vrot.slane %v8827, 1
      %v9190 = vsel %vm1068, %v9187, %v9189
      %v9191 = vrot.slane %v8828, 1
      %v9192 = vsel %vm1068, %v9189, %v9191
      %v9194 = vsel %vm6188, %v7452, %v7803
      %v9196 = vsel %vm6188, %v7453, %v7805
      %v9198 = vsel %vm6188, %v7454, %v7807
      %v9200 = vsel %vm6188, %v7455, %v7809
      %v9202 = vsel %vm6188, %v7456, %v7811
      %v9204 = vsel %vm6188, %v7457, %v7813
      %v9206 = vsel %vm6188, %v7458, %v7815
      %v9208 = vsel %vm6188, %v7459, %v7817
      %v9210 = vsel %vm6188, %v7460, %v7819
      %v9212 = vsel %vm6188, %v7461, %v7821
      %v9214 = vsel %vm6188, %v7462, %v7823
      %v9216 = vsel %vm6188, %v7463, %v7825
      %v9218 = vsel %vm6188, %v7464, %v7827
      %v9220 = vsel %vm6188, %v7465, %v7829
      %v9222 = vsel %vm6188, %v7466, %v7831
      %v9224 = vsel %vm6188, %v7467, %v7833
      %v9226 = vsel %vm6188, %v7468, %v7835
      %v9228 = vsel %vm6188, %v7469, %v7837
      %v9230 = vsel %vm6188, %v7470, %v7839
      %v9232 = vsel %vm6188, %v7471, %v7841
      %v9234 = vsel %vm6188, %v7472, %v7843
      %v9236 = vsel %vm6188, %v7473, %v7845
      %v9238 = vsel %vm6188, %v7474, %v7847
      %v9240 = vsel %vm6188, %v7475, %v7849
      %v9242 = vsel %vm6188, %v7476, %v7851
      %v9244 = vsel %vm6188, %v7477, %v7853
      %v9246 = vsel %vm6188, %v7478, %v7855
      %v9248 = vsel %vm6188, %v7479, %v7857
      %v9250 = vsel %vm6188, %v7480, %v7859
      %v9252 = vsel %vm6188, %v7481, %v7861
      %v9254 = vsel %vm6188, %v7482, %v7863
      %v9256 = vsel %vm6188, %v7483, %v7865
      %v9258 = vsel %vm6188, %v7484, %v7867
      %v9260 = vsel %vm6188, %v7485, %v7869
      %v9262 = vsel %vm6188, %v7486, %v7871
      %v9264 = vsel %vm6188, %v7487, %v7873
      %v9266 = vsel %vm6188, %v7488, %v7875
      %v9268 = vsel %vm6188, %v7489, %v7877
      %v9270 = vsel %vm6188, %v7490, %v7879
      %v9272 = vsel %vm6358, %v9194, %v7958
      %v9274 = vsel %vm6358, %v9196, %v7960
      %v9276 = vsel %vm6358, %v9198, %v7962
      %v9278 = vsel %vm6358, %v9200, %v7964
      %v9280 = vsel %vm6358, %v9202, %v7966
      %v9282 = vsel %vm6358, %v9204, %v7968
      %v9284 = vsel %vm6358, %v9206, %v7970
      %v9286 = vsel %vm6358, %v9208, %v7972
      %v9288 = vsel %vm6358, %v9210, %v7974
      %v9290 = vsel %vm6358, %v9212, %v7976
      %v9292 = vsel %vm6358, %v9214, %v7978
      %v9294 = vsel %vm6358, %v9216, %v7980
      %v9296 = vsel %vm6358, %v9218, %v7982
      %v9298 = vsel %vm6358, %v9220, %v7984
      %v9300 = vsel %vm6358, %v9222, %v7986
      %v9302 = vsel %vm6358, %v9224, %v7988
      %v9304 = vsel %vm6358, %v9226, %v7990
      %v9306 = vsel %vm6358, %v9228, %v7992
      %v9308 = vsel %vm6358, %v9230, %v7994
      %v9310 = vsel %vm6358, %v9232, %v7996
      %v9312 = vsel %vm6358, %v9234, %v7998
      %v9314 = vsel %vm6358, %v9236, %v8000
      %v9316 = vsel %vm6358, %v9238, %v8002
      %v9318 = vsel %vm6358, %v9240, %v8004
      %v9320 = vsel %vm6358, %v9242, %v8006
      %v9322 = vsel %vm6358, %v9244, %v8008
      %v9324 = vsel %vm6358, %v9246, %v8010
      %v9326 = vsel %vm6358, %v9248, %v8012
      %v9328 = vsel %vm6358, %v9250, %v8014
      %v9330 = vsel %vm6358, %v9252, %v8016
      %v9332 = vsel %vm6358, %v9254, %v8018
      %v9334 = vsel %vm6358, %v9256, %v8020
      %v9336 = vsel %vm6358, %v9258, %v8022
      %v9338 = vsel %vm6358, %v9260, %v8024
      %v9340 = vsel %vm6358, %v9262, %v8026
      %v9342 = vsel %vm6358, %v9264, %v8028
      %v9344 = vsel %vm6358, %v9266, %v8030
      %v9346 = vsel %vm6358, %v9268, %v8032
      %v9348 = vsel %vm6358, %v9270, %v8034
      %v9350 = vsel %vm6528, %v9272, %v8158
      %v9352 = vsel %vm6528, %v9274, %v8160
      %v9354 = vsel %vm6528, %v9276, %v8162
      %v9356 = vsel %vm6528, %v9278, %v8164
      %v9358 = vsel %vm6528, %v9280, %v8166
      %v9360 = vsel %vm6528, %v9282, %v8168
      %v9362 = vsel %vm6528, %v9284, %v8170
      %v9364 = vsel %vm6528, %v9286, %v8172
      %v9366 = vsel %vm6528, %v9288, %v8174
      %v9368 = vsel %vm6528, %v9290, %v8176
      %v9370 = vsel %vm6528, %v9292, %v8178
      %v9372 = vsel %vm6528, %v9294, %v8180
      %v9374 = vsel %vm6528, %v9296, %v8182
      %v9376 = vsel %vm6528, %v9298, %v8184
      %v9378 = vsel %vm6528, %v9300, %v8186
      %v9380 = vsel %vm6528, %v9302, %v8188
      %v9382 = vsel %vm6528, %v9304, %v8190
      %v9384 = vsel %vm6528, %v9306, %v8192
      %v9386 = vsel %vm6528, %v9308, %v8194
      %v9388 = vsel %vm6528, %v9310, %v8196
      %v9390 = vsel %vm6528, %v9312, %v8198
      %v9392 = vsel %vm6528, %v9314, %v8200
      %v9394 = vsel %vm6528, %v9316, %v8202
      %v9396 = vsel %vm6528, %v9318, %v8204
      %v9398 = vsel %vm6528, %v9320, %v8206
      %v9400 = vsel %vm6528, %v9322, %v8208
      %v9402 = vsel %vm6528, %v9324, %v8210
      %v9404 = vsel %vm6528, %v9326, %v8212
      %v9406 = vsel %vm6528, %v9328, %v8214
      %v9408 = vsel %vm6528, %v9330, %v8216
      %v9410 = vsel %vm6528, %v9332, %v8218
      %v9412 = vsel %vm6528, %v9334, %v8220
      %v9414 = vsel %vm6528, %v9336, %v8222
      %v9416 = vsel %vm6528, %v9338, %v8224
      %v9418 = vsel %vm6528, %v9340, %v8226
      %v9420 = vsel %vm6528, %v9342, %v8228
      %v9422 = vsel %vm6528, %v9344, %v8230
      %v9424 = vsel %vm6528, %v9346, %v8232
      %v9426 = vsel %vm6528, %v9348, %v8234
      %v9428 = vsel %vm6698, %v9350, %v8586
      %v9430 = vsel %vm6698, %v9352, %v8588
      %v9432 = vsel %vm6698, %v9354, %v8590
      %v9434 = vsel %vm6698, %v9356, %v8592
      %v9436 = vsel %vm6698, %v9358, %v8594
      %v9438 = vsel %vm6698, %v9360, %v8596
      %v9440 = vsel %vm6698, %v9362, %v8598
      %v9442 = vsel %vm6698, %v9364, %v8600
      %v9444 = vsel %vm6698, %v9366, %v8602
      %v9446 = vsel %vm6698, %v9368, %v8604
      %v9448 = vsel %vm6698, %v9370, %v8606
      %v9450 = vsel %vm6698, %v9372, %v8608
      %v9452 = vsel %vm6698, %v9374, %v8610
      %v9454 = vsel %vm6698, %v9376, %v8612
      %v9456 = vsel %vm6698, %v9378, %v8614
      %v9458 = vsel %vm6698, %v9380, %v8616
      %v9460 = vsel %vm6698, %v9382, %v8618
      %v9462 = vsel %vm6698, %v9384, %v8620
      %v9464 = vsel %vm6698, %v9386, %v8622
      %v9466 = vsel %vm6698, %v9388, %v8624
      %v9468 = vsel %vm6698, %v9390, %v8626
      %v9470 = vsel %vm6698, %v9392, %v8628
      %v9472 = vsel %vm6698, %v9394, %v8630
      %v9474 = vsel %vm6698, %v9396, %v8632
      %v9476 = vsel %vm6698, %v9398, %v8634
      %v9478 = vsel %vm6698, %v9400, %v8636
      %v9480 = vsel %vm6698, %v9402, %v8638
      %v9482 = vsel %vm6698, %v9404, %v8640
      %v9484 = vsel %vm6698, %v9406, %v8642
      %v9486 = vsel %vm6698, %v9408, %v8644
      %v9488 = vsel %vm6698, %v9410, %v8646
      %v9490 = vsel %vm6698, %v9412, %v8648
      %v9492 = vsel %vm6698, %v9414, %v8650
      %v9494 = vsel %vm6698, %v9416, %v8652
      %v9496 = vsel %vm6698, %v9418, %v8654
      %v9498 = vsel %vm6698, %v9420, %v8656
      %v9500 = vsel %vm6698, %v9422, %v8658
      %v9502 = vsel %vm6698, %v9424, %v8660
      %v9504 = vsel %vm6698, %v9426, %v8662
      %vm9505 = vcmask 654336
      %v9507 = vsel %vm9505, %v9428, %v8741
      %v9509 = vsel %vm9505, %v9430, %v8743
      %v9511 = vsel %vm9505, %v9432, %v8745
      %v9513 = vsel %vm9505, %v9434, %v8747
      %v9515 = vsel %vm9505, %v9436, %v8749
      %v9517 = vsel %vm9505, %v9438, %v8751
      %v9519 = vsel %vm9505, %v9440, %v8753
      %v9521 = vsel %vm9505, %v9442, %v8755
      %v9523 = vsel %vm9505, %v9444, %v8757
      %v9525 = vsel %vm9505, %v9446, %v8759
      %v9527 = vsel %vm9505, %v9448, %v8761
      %v9529 = vsel %vm9505, %v9450, %v8763
      %v9531 = vsel %vm9505, %v9452, %v8765
      %v9533 = vsel %vm9505, %v9454, %v8767
      %v9535 = vsel %vm9505, %v9456, %v8769
      %v9537 = vsel %vm9505, %v9458, %v8771
      %v9539 = vsel %vm9505, %v9460, %v8773
      %v9541 = vsel %vm9505, %v9462, %v8775
      %v9543 = vsel %vm9505, %v9464, %v8777
      %v9545 = vsel %vm9505, %v9466, %v8779
      %v9547 = vsel %vm9505, %v9468, %v8781
      %v9549 = vsel %vm9505, %v9470, %v8783
      %v9551 = vsel %vm9505, %v9472, %v8785
      %v9553 = vsel %vm9505, %v9474, %v8787
      %v9555 = vsel %vm9505, %v9476, %v8789
      %v9557 = vsel %vm9505, %v9478, %v8791
      %v9559 = vsel %vm9505, %v9480, %v8793
      %v9561 = vsel %vm9505, %v9482, %v8795
      %v9563 = vsel %vm9505, %v9484, %v8797
      %v9565 = vsel %vm9505, %v9486, %v8799
      %v9567 = vsel %vm9505, %v9488, %v8801
      %v9569 = vsel %vm9505, %v9490, %v8803
      %v9571 = vsel %vm9505, %v9492, %v8805
      %v9573 = vsel %vm9505, %v9494, %v8807
      %v9575 = vsel %vm9505, %v9496, %v8809
      %v9577 = vsel %vm9505, %v9498, %v8811
      %v9579 = vsel %vm9505, %v9500, %v8813
      %v9581 = vsel %vm9505, %v9502, %v8815
      %v9583 = vsel %vm9505, %v9504, %v8817
      %vm9584 = vcmask 785408
      %v9586 = vsel %vm9584, %v9507, %v8830
      %v9588 = vsel %vm9584, %v9509, %v8832
      %v9590 = vsel %vm9584, %v9511, %v8834
      %v9592 = vsel %vm9584, %v9513, %v8836
      %v9594 = vsel %vm9584, %v9515, %v8838
      %v9596 = vsel %vm9584, %v9517, %v8840
      %v9598 = vsel %vm9584, %v9519, %v8842
      %v9600 = vsel %vm9584, %v9521, %v8844
      %v9602 = vsel %vm9584, %v9523, %v8846
      %v9604 = vsel %vm9584, %v9525, %v8848
      %v9606 = vsel %vm9584, %v9527, %v8850
      %v9608 = vsel %vm9584, %v9529, %v8852
      %v9610 = vsel %vm9584, %v9531, %v8854
      %v9612 = vsel %vm9584, %v9533, %v8856
      %v9614 = vsel %vm9584, %v9535, %v8858
      %v9616 = vsel %vm9584, %v9537, %v8860
      %v9618 = vsel %vm9584, %v9539, %v8862
      %v9620 = vsel %vm9584, %v9541, %v8864
      %v9622 = vsel %vm9584, %v9543, %v8866
      %v9624 = vsel %vm9584, %v9545, %v8868
      %v9626 = vsel %vm9584, %v9547, %v8870
      %v9628 = vsel %vm9584, %v9549, %v8872
      %v9630 = vsel %vm9584, %v9551, %v8874
      %v9632 = vsel %vm9584, %v9553, %v8876
      %v9634 = vsel %vm9584, %v9555, %v8878
      %v9636 = vsel %vm9584, %v9557, %v8880
      %v9638 = vsel %vm9584, %v9559, %v8882
      %v9640 = vsel %vm9584, %v9561, %v8884
      %v9642 = vsel %vm9584, %v9563, %v8886
      %v9644 = vsel %vm9584, %v9565, %v8888
      %v9646 = vsel %vm9584, %v9567, %v8890
      %v9648 = vsel %vm9584, %v9569, %v8892
      %v9650 = vsel %vm9584, %v9571, %v8894
      %v9652 = vsel %vm9584, %v9573, %v8896
      %v9654 = vsel %vm9584, %v9575, %v8898
      %v9656 = vsel %vm9584, %v9577, %v8900
      %v9658 = vsel %vm9584, %v9579, %v8902
      %v9660 = vsel %vm9584, %v9581, %v8904
      %v9662 = vsel %vm9584, %v9583, %v8906
      %vm9663 = vcmask 916480
      %v9665 = vsel %vm9663, %v9586, %v9039
      %v9668 = vsel %vm9663, %v9588, %v9041
      %v9671 = vsel %vm9663, %v9590, %v9043
      %v9674 = vsel %vm9663, %v9592, %v9045
      %v9677 = vsel %vm9663, %v9594, %v9047
      %v9680 = vsel %vm9663, %v9596, %v9049
      %v9683 = vsel %vm9663, %v9598, %v9051
      %v9686 = vsel %vm9663, %v9600, %v9053
      %v9689 = vsel %vm9663, %v9602, %v9055
      %v9692 = vsel %vm9663, %v9604, %v9057
      %v9695 = vsel %vm9663, %v9606, %v9059
      %v9698 = vsel %vm9663, %v9608, %v9061
      %v9701 = vsel %vm9663, %v9610, %v9063
      %v9704 = vsel %vm9663, %v9612, %v9065
      %v9707 = vsel %vm9663, %v9614, %v9067
      %v9710 = vsel %vm9663, %v9616, %v9069
      %v9713 = vsel %vm9663, %v9618, %v9071
      %v9716 = vsel %vm9663, %v9620, %v9073
      %v9719 = vsel %vm9663, %v9622, %v9075
      %v9722 = vsel %vm9663, %v9624, %v9077
      %v9725 = vsel %vm9663, %v9626, %v9079
      %v9728 = vsel %vm9663, %v9628, %v9081
      %v9731 = vsel %vm9663, %v9630, %v9083
      %v9734 = vsel %vm9663, %v9632, %v9085
      %v9737 = vsel %vm9663, %v9634, %v9087
      %v9740 = vsel %vm9663, %v9636, %v9089
      %v9743 = vsel %vm9663, %v9638, %v9091
      %v9746 = vsel %vm9663, %v9640, %v9093
      %v9749 = vsel %vm9663, %v9642, %v9095
      %v9752 = vsel %vm9663, %v9644, %v9097
      %v9755 = vsel %vm9663, %v9646, %v9099
      %v9758 = vsel %vm9663, %v9648, %v9101
      %v9761 = vsel %vm9663, %v9650, %v9103
      %v9764 = vsel %vm9663, %v9652, %v9105
      %v9767 = vsel %vm9663, %v9654, %v9107
      %v9770 = vsel %vm9663, %v9656, %v9109
      %v9773 = vsel %vm9663, %v9658, %v9111
      %v9776 = vsel %vm9663, %v9660, %v9113
      %v9779 = vsel %vm9663, %v9662, %v9115
      %v9781 = vld [vmem:[%s5] sm:$0xf]
      %v9782 = vld [vmem:[%s5 + $0x4] sm:$0xf]
      %v9783 = vld [vmem:[%s5 + $0x8] sm:$0xf]
      %v9784 = vld [vmem:[%s5 + $0xc] sm:$0xf]
      %v9785 = vld [vmem:[%s5 + $0x10] sm:$0xf]
      %v9786 = vld [vmem:[%s5 + $0x14] sm:$0xf]
      %v9787 = vld [vmem:[%s5 + $0x18] sm:$0xf]
      %v9788 = vld [vmem:[%s5 + $0x1c] sm:$0xf]
      %v9789 = vld [vmem:[%s5 + $0x20] sm:$0xf]
      %v9790 = vld [vmem:[%s5 + $0x24] sm:$0xf]
      %v9791 = vld [vmem:[%s5 + $0x28] sm:$0xf]
      %v9792 = vld [vmem:[%s5 + $0x2c] sm:$0xf]
      %v9793 = vld [vmem:[%s5 + $0x30] sm:$0xf]
      %v9794 = vld [vmem:[%s5 + $0x34] sm:$0xf]
      %v9795 = vld [vmem:[%s5 + $0x38] sm:$0xf]
      %v9796 = vld [vmem:[%s5 + $0x3c] sm:$0xf]
      %v9797 = vld [vmem:[%s5 + $0x40] sm:$0xf]
      %v9798 = vld [vmem:[%s5 + $0x44] sm:$0xf]
      %v9799 = vld [vmem:[%s6] sm:$0x1]
      %v9801 = vperm.slane %v9799, 0
      %v9821 = vunpack.c.l.b16 %v9781
      %v9822 = vunpack.c.l.b16 %v9782
      %v9823 = vunpack.c.l.b16 %v9783
      %v9824 = vunpack.c.l.b16 %v9784
      %v9825 = vunpack.c.l.b16 %v9785
      %v9826 = vunpack.c.l.b16 %v9786
      %v9827 = vunpack.c.l.b16 %v9787
      %v9828 = vunpack.c.l.b16 %v9788
      %v9829 = vunpack.c.l.b16 %v9789
      %v9830 = vunpack.c.l.b16 %v9790
      %v9831 = vunpack.c.l.b16 %v9791
      %v9832 = vunpack.c.l.b16 %v9792
      %v9833 = vunpack.c.l.b16 %v9793
      %v9834 = vunpack.c.l.b16 %v9794
      %v9835 = vunpack.c.l.b16 %v9795
      %v9836 = vunpack.c.l.b16 %v9796
      %v9837 = vunpack.c.l.b16 %v9797
      %v9838 = vunpack.c.l.b16 %v9798
      %v9839 = vpack.c.b16 %v9822, %v9821
      %v9840 = vpack.c.b16 %v9824, %v9823
      %v9841 = vpack.c.b16 %v9826, %v9825
      %v9842 = vpack.c.b16 %v9828, %v9827
      %v9843 = vpack.c.b16 %v9830, %v9829
      %v9844 = vpack.c.b16 %v9832, %v9831
      %v9845 = vpack.c.b16 %v9834, %v9833
      %v9846 = vpack.c.b16 %v9836, %v9835
      %v9847 = vpack.c.b16 %v9838, %v9837
      %v9858 = vsel %vm6188, %v9118, 0
      %v9861 = vsel %vm6188, %v9120, 0
      %v9864 = vsel %vm6188, %v9122, 0
      %v9867 = vsel %vm6188, %v9124, 0
      %v9870 = vsel %vm6188, %v9126, 0
      %v9873 = vsel %vm6188, %v9128, 0
      %v9876 = vsel %vm6188, %v9130, 0
      %v9879 = vsel %vm6188, %v9132, 0
      %v9882 = vsel %vm6188, %v9134, 0
      %v9885 = vsel %vm6188, %v9136, 0
      %v9888 = vsel %vm6188, %v9138, 0
      %v9891 = vsel %vm6188, %v9140, 0
      %v9894 = vsel %vm6188, %v9142, 0
      %v9897 = vsel %vm6188, %v9144, 0
      %v9900 = vsel %vm6188, %v9146, 0
      %v9903 = vsel %vm6188, %v9148, 0
      %v9906 = vsel %vm6188, %v9150, 0
      %v9909 = vsel %vm6188, %v9152, 0
      %v9912 = vsel %vm6188, %v9154, 0
      %v9915 = vsel %vm6188, %v9156, 0
      %v9918 = vsel %vm6188, %v9158, 0
      %v9921 = vsel %vm6188, %v9160, 0
      %v9924 = vsel %vm6188, %v9162, 0
      %v9927 = vsel %vm6188, %v9164, 0
      %v9930 = vsel %vm6188, %v9166, 0
      %v9933 = vsel %vm6188, %v9168, 0
      %v9936 = vsel %vm6188, %v9170, 0
      %v9939 = vsel %vm6188, %v9172, 0
      %v9942 = vsel %vm6188, %v9174, 0
      %v9945 = vsel %vm6188, %v9176, 0
      %v9948 = vsel %vm6188, %v9178, 0
      %v9951 = vsel %vm6188, %v9180, 0
      %v9954 = vsel %vm6188, %v9182, 0
      %v9957 = vsel %vm6188, %v9184, 0
      %v9960 = vsel %vm6188, %v9186, 0
      %v9963 = vsel %vm6188, %v9188, 0
      %v9966 = vsel %vm6188, %v9190, 0
      %v9969 = vsel %vm6188, %v9192, 0
      %v9972 = vsel %vm6188, %v9191, 0
      %9974 = vmatpush.bf16.msra.mxu0 %v9846
      %9975 = vmatpush.bf16.msra.mxu0 %v9845
      %9976 = vmatpush.bf16.msra.mxu0 %v9844
      %9977 = vmatpush.bf16.msra.mxu0 %v9843
      %9978 = vmatpush.bf16.msra.mxu0 %v9842
      %9979 = vmatpush.bf16.msra.mxu0 %v9841
      %9980 = vmatpush.bf16.msra.mxu0 %v9840
      %9981 = vmatpush.bf16.msra.mxu0 %v9839
      %9982 = vmatmul.bf16.gmra.mxu0 %v9665
      %v9983 = vpop.f32.mrf.mxu0
      %v9984 = vadd.f32 %v9801, %v9983
      %v9985 = vpop.f32.mrf.mxu0
      %v9986 = vadd.f32 %v9801, %v9985
      %9987 = vmatmul.bf16.gmra.mxu0 %v9668
      %v9988 = vpop.f32.mrf.mxu0
      %v9989 = vadd.f32 %v9801, %v9988
      %v9990 = vpop.f32.mrf.mxu0
      %v9991 = vadd.f32 %v9801, %v9990
      %9992 = vmatmul.bf16.gmra.mxu0 %v9671
      %v9993 = vpop.f32.mrf.mxu0
      %v9994 = vadd.f32 %v9801, %v9993
      %v9995 = vpop.f32.mrf.mxu0
      %v9996 = vadd.f32 %v9801, %v9995
      %9997 = vmatmul.bf16.gmra.mxu0 %v9674
      %v9998 = vpop.f32.mrf.mxu0
      %v9999 = vadd.f32 %v9801, %v9998
      %v10000 = vpop.f32.mrf.mxu0
      %v10001 = vadd.f32 %v9801, %v10000
      %10002 = vmatmul.bf16.gmra.mxu0 %v9677
      %v10003 = vpop.f32.mrf.mxu0
      %v10004 = vadd.f32 %v9801, %v10003
      %v10005 = vpop.f32.mrf.mxu0
      %v10006 = vadd.f32 %v9801, %v10005
      %10007 = vmatmul.bf16.gmra.mxu0 %v9680
      %v10008 = vpop.f32.mrf.mxu0
      %v10009 = vadd.f32 %v9801, %v10008
      %v10010 = vpop.f32.mrf.mxu0
      %v10011 = vadd.f32 %v9801, %v10010
      %10012 = vmatmul.bf16.gmra.mxu0 %v9683
      %v10013 = vpop.f32.mrf.mxu0
      %v10014 = vadd.f32 %v9801, %v10013
      %v10015 = vpop.f32.mrf.mxu0
      %v10016 = vadd.f32 %v9801, %v10015
      %10017 = vmatmul.bf16.gmra.mxu0 %v9686
      %v10018 = vpop.f32.mrf.mxu0
      %v10019 = vadd.f32 %v9801, %v10018
      %v10020 = vpop.f32.mrf.mxu0
      %v10021 = vadd.f32 %v9801, %v10020
      %10022 = vmatmul.bf16.gmra.mxu0 %v9689
      %v10023 = vpop.f32.mrf.mxu0
      %v10024 = vadd.f32 %v9801, %v10023
      %v10025 = vpop.f32.mrf.mxu0
      %v10026 = vadd.f32 %v9801, %v10025
      %10027 = vmatmul.bf16.gmra.mxu0 %v9692
      %v10028 = vpop.f32.mrf.mxu0
      %v10029 = vadd.f32 %v9801, %v10028
      %v10030 = vpop.f32.mrf.mxu0
      %v10031 = vadd.f32 %v9801, %v10030
      %10032 = vmatmul.bf16.gmra.mxu0 %v9695
      %v10033 = vpop.f32.mrf.mxu0
      %v10034 = vadd.f32 %v9801, %v10033
      %v10035 = vpop.f32.mrf.mxu0
      %v10036 = vadd.f32 %v9801, %v10035
      %10037 = vmatmul.bf16.gmra.mxu0 %v9698
      %v10038 = vpop.f32.mrf.mxu0
      %v10039 = vadd.f32 %v9801, %v10038
      %v10040 = vpop.f32.mrf.mxu0
      %v10041 = vadd.f32 %v9801, %v10040
      %10042 = vmatmul.bf16.gmra.mxu0 %v9701
      %v10043 = vpop.f32.mrf.mxu0
      %v10044 = vadd.f32 %v9801, %v10043
      %v10045 = vpop.f32.mrf.mxu0
      %v10046 = vadd.f32 %v9801, %v10045
      %10047 = vmatmul.bf16.gmra.mxu0 %v9704
      %v10048 = vpop.f32.mrf.mxu0
      %v10049 = vadd.f32 %v9801, %v10048
      %v10050 = vpop.f32.mrf.mxu0
      %v10051 = vadd.f32 %v9801, %v10050
      %10052 = vmatmul.bf16.gmra.mxu0 %v9707
      %v10053 = vpop.f32.mrf.mxu0
      %v10054 = vadd.f32 %v9801, %v10053
      %v10055 = vpop.f32.mrf.mxu0
      %v10056 = vadd.f32 %v9801, %v10055
      %10057 = vmatmul.bf16.gmra.mxu0 %v9710
      %v10058 = vpop.f32.mrf.mxu0
      %v10059 = vadd.f32 %v9801, %v10058
      %v10060 = vpop.f32.mrf.mxu0
      %v10061 = vadd.f32 %v9801, %v10060
      %10062 = vmatmul.bf16.gmra.mxu0 %v9713
      %v10063 = vpop.f32.mrf.mxu0
      %v10064 = vadd.f32 %v9801, %v10063
      %v10065 = vpop.f32.mrf.mxu0
      %v10066 = vadd.f32 %v9801, %v10065
      %10067 = vmatmul.bf16.gmra.mxu0 %v9716
      %v10068 = vpop.f32.mrf.mxu0
      %v10069 = vadd.f32 %v9801, %v10068
      %v10070 = vpop.f32.mrf.mxu0
      %v10071 = vadd.f32 %v9801, %v10070
      %10072 = vmatmul.bf16.gmra.mxu0 %v9719
      %v10073 = vpop.f32.mrf.mxu0
      %v10074 = vadd.f32 %v9801, %v10073
      %v10075 = vpop.f32.mrf.mxu0
      %v10076 = vadd.f32 %v9801, %v10075
      %10077 = vmatmul.bf16.gmra.mxu0 %v9722
      %v10078 = vpop.f32.mrf.mxu0
      %v10079 = vadd.f32 %v9801, %v10078
      %v10080 = vpop.f32.mrf.mxu0
      %v10081 = vadd.f32 %v9801, %v10080
      %10082 = vmatmul.bf16.gmra.mxu0 %v9725
      %v10083 = vpop.f32.mrf.mxu0
      %v10084 = vadd.f32 %v9801, %v10083
      %v10085 = vpop.f32.mrf.mxu0
      %v10086 = vadd.f32 %v9801, %v10085
      %10087 = vmatmul.bf16.gmra.mxu0 %v9728
      %v10088 = vpop.f32.mrf.mxu0
      %v10089 = vadd.f32 %v9801, %v10088
      %v10090 = vpop.f32.mrf.mxu0
      %v10091 = vadd.f32 %v9801, %v10090
      %10092 = vmatmul.bf16.gmra.mxu0 %v9731
      %v10093 = vpop.f32.mrf.mxu0
      %v10094 = vadd.f32 %v9801, %v10093
      %v10095 = vpop.f32.mrf.mxu0
      %v10096 = vadd.f32 %v9801, %v10095
      %10097 = vmatmul.bf16.gmra.mxu0 %v9734
      %v10098 = vpop.f32.mrf.mxu0
      %v10099 = vadd.f32 %v9801, %v10098
      %v10100 = vpop.f32.mrf.mxu0
      %v10101 = vadd.f32 %v9801, %v10100
      %10102 = vmatmul.bf16.gmra.mxu0 %v9737
      %v10103 = vpop.f32.mrf.mxu0
      %v10104 = vadd.f32 %v9801, %v10103
      %v10105 = vpop.f32.mrf.mxu0
      %v10106 = vadd.f32 %v9801, %v10105
      %10107 = vmatmul.bf16.gmra.mxu0 %v9740
      %v10108 = vpop.f32.mrf.mxu0
      %v10109 = vadd.f32 %v9801, %v10108
      %v10110 = vpop.f32.mrf.mxu0
      %v10111 = vadd.f32 %v9801, %v10110
      %10112 = vmatmul.bf16.gmra.mxu0 %v9743
      %v10113 = vpop.f32.mrf.mxu0
      %v10114 = vadd.f32 %v9801, %v10113
      %v10115 = vpop.f32.mrf.mxu0
      %v10116 = vadd.f32 %v9801, %v10115
      %10117 = vmatmul.bf16.gmra.mxu0 %v9746
      %v10118 = vpop.f32.mrf.mxu0
      %v10119 = vadd.f32 %v9801, %v10118
      %v10120 = vpop.f32.mrf.mxu0
      %v10121 = vadd.f32 %v9801, %v10120
      %10122 = vmatmul.bf16.gmra.mxu0 %v9749
      %v10123 = vpop.f32.mrf.mxu0
      %v10124 = vadd.f32 %v9801, %v10123
      %v10125 = vpop.f32.mrf.mxu0
      %v10126 = vadd.f32 %v9801, %v10125
      %10127 = vmatmul.bf16.gmra.mxu0 %v9752
      %v10128 = vpop.f32.mrf.mxu0
      %v10129 = vadd.f32 %v9801, %v10128
      %v10130 = vpop.f32.mrf.mxu0
      %v10131 = vadd.f32 %v9801, %v10130
      %10132 = vmatmul.bf16.gmra.mxu0 %v9755
      %v10133 = vpop.f32.mrf.mxu0
      %v10134 = vadd.f32 %v9801, %v10133
      %v10135 = vpop.f32.mrf.mxu0
      %v10136 = vadd.f32 %v9801, %v10135
      %10137 = vmatmul.bf16.gmra.mxu0 %v9758
      %v10138 = vpop.f32.mrf.mxu0
      %v10139 = vadd.f32 %v9801, %v10138
      %v10140 = vpop.f32.mrf.mxu0
      %v10141 = vadd.f32 %v9801, %v10140
      %10142 = vmatmul.bf16.gmra.mxu0 %v9761
      %v10143 = vpop.f32.mrf.mxu0
      %v10144 = vadd.f32 %v9801, %v10143
      %v10145 = vpop.f32.mrf.mxu0
      %v10146 = vadd.f32 %v9801, %v10145
      %10147 = vmatmul.bf16.gmra.mxu0 %v9764
      %v10148 = vpop.f32.mrf.mxu0
      %v10149 = vadd.f32 %v9801, %v10148
      %v10150 = vpop.f32.mrf.mxu0
      %v10151 = vadd.f32 %v9801, %v10150
      %10152 = vmatmul.bf16.gmra.mxu0 %v9767
      %v10153 = vpop.f32.mrf.mxu0
      %v10154 = vadd.f32 %v9801, %v10153
      %v10155 = vpop.f32.mrf.mxu0
      %v10156 = vadd.f32 %v9801, %v10155
      %10157 = vmatmul.bf16.gmra.mxu0 %v9770
      %v10158 = vpop.f32.mrf.mxu0
      %v10159 = vadd.f32 %v9801, %v10158
      %v10160 = vpop.f32.mrf.mxu0
      %v10161 = vadd.f32 %v9801, %v10160
      %10162 = vmatmul.bf16.gmra.mxu0 %v9773
      %v10163 = vpop.f32.mrf.mxu0
      %v10164 = vadd.f32 %v9801, %v10163
      %v10165 = vpop.f32.mrf.mxu0
      %v10166 = vadd.f32 %v9801, %v10165
      %10167 = vmatmul.bf16.gmra.mxu0 %v9776
      %v10168 = vpop.f32.mrf.mxu0
      %v10169 = vadd.f32 %v9801, %v10168
      %v10170 = vpop.f32.mrf.mxu0
      %v10171 = vadd.f32 %v9801, %v10170
      %10172 = vmatmul.bf16.gmra.mxu0 %v9779
      %v10173 = vpop.f32.mrf.mxu0
      %v10174 = vadd.f32 %v9801, %v10173
      %v10175 = vpop.f32.mrf.mxu0
      %10176 = vdwg.mxu0
      %10177 = vmatpush.bf16.msra.mxu0 0
      %10178 = vmatpush.bf16.msra.mxu0 0
      %10179 = vmatpush.bf16.msra.mxu0 0
      %10180 = vmatpush.bf16.msra.mxu0 0
      %10181 = vmatpush.bf16.msra.mxu0 0
      %10182 = vmatpush.bf16.msra.mxu0 0
      %10183 = vmatpush.bf16.msra.mxu0 0
      %10184 = vmatpush.bf16.msra.mxu0 %v9847
      %10185 = vmatmul.bf16.gmra.mxu0 %v9858
      %v10186 = vpop.f32.mrf.mxu0
      %v10187 = vadd.f32 %v9984, %v10186
      %v10188 = vpop.f32.mrf.mxu0
      %v10189 = vadd.f32 %v9986, %v10188
      %10190 = vmatmul.bf16.gmra.mxu0 %v9861
      %v10191 = vpop.f32.mrf.mxu0
      %v10192 = vadd.f32 %v9989, %v10191
      %v10193 = vpop.f32.mrf.mxu0
      %v10194 = vadd.f32 %v9991, %v10193
      %10195 = vmatmul.bf16.gmra.mxu0 %v9864
      %v10196 = vpop.f32.mrf.mxu0
      %v10197 = vadd.f32 %v9994, %v10196
      %v10198 = vpop.f32.mrf.mxu0
      %v10199 = vadd.f32 %v9996, %v10198
      %10200 = vmatmul.bf16.gmra.mxu0 %v9867
      %v10201 = vpop.f32.mrf.mxu0
      %v10202 = vadd.f32 %v9999, %v10201
      %v10203 = vpop.f32.mrf.mxu0
      %v10204 = vadd.f32 %v10001, %v10203
      %10205 = vmatmul.bf16.gmra.mxu0 %v9870
      %v10206 = vpop.f32.mrf.mxu0
      %v10207 = vadd.f32 %v10004, %v10206
      %v10208 = vpop.f32.mrf.mxu0
      %v10209 = vadd.f32 %v10006, %v10208
      %10210 = vmatmul.bf16.gmra.mxu0 %v9873
      %v10211 = vpop.f32.mrf.mxu0
      %v10212 = vadd.f32 %v10009, %v10211
      %v10213 = vpop.f32.mrf.mxu0
      %v10214 = vadd.f32 %v10011, %v10213
      %10215 = vmatmul.bf16.gmra.mxu0 %v9876
      %v10216 = vpop.f32.mrf.mxu0
      %v10217 = vadd.f32 %v10014, %v10216
      %v10218 = vpop.f32.mrf.mxu0
      %v10219 = vadd.f32 %v10016, %v10218
      %10220 = vmatmul.bf16.gmra.mxu0 %v9879
      %v10221 = vpop.f32.mrf.mxu0
      %v10222 = vadd.f32 %v10019, %v10221
      %v10223 = vpop.f32.mrf.mxu0
      %v10224 = vadd.f32 %v10021, %v10223
      %10225 = vmatmul.bf16.gmra.mxu0 %v9882
      %v10226 = vpop.f32.mrf.mxu0
      %v10227 = vadd.f32 %v10024, %v10226
      %v10228 = vpop.f32.mrf.mxu0
      %v10229 = vadd.f32 %v10026, %v10228
      %10230 = vmatmul.bf16.gmra.mxu0 %v9885
      %v10231 = vpop.f32.mrf.mxu0
      %v10232 = vadd.f32 %v10029, %v10231
      %v10233 = vpop.f32.mrf.mxu0
      %v10234 = vadd.f32 %v10031, %v10233
      %10235 = vmatmul.bf16.gmra.mxu0 %v9888
      %v10236 = vpop.f32.mrf.mxu0
      %v10237 = vadd.f32 %v10034, %v10236
      %v10238 = vpop.f32.mrf.mxu0
      %v10239 = vadd.f32 %v10036, %v10238
      %10240 = vmatmul.bf16.gmra.mxu0 %v9891
      %v10241 = vpop.f32.mrf.mxu0
      %v10242 = vadd.f32 %v10039, %v10241
      %v10243 = vpop.f32.mrf.mxu0
      %v10244 = vadd.f32 %v10041, %v10243
      %10245 = vmatmul.bf16.gmra.mxu0 %v9894
      %v10246 = vpop.f32.mrf.mxu0
      %v10247 = vadd.f32 %v10044, %v10246
      %v10248 = vpop.f32.mrf.mxu0
      %v10249 = vadd.f32 %v10046, %v10248
      %10250 = vmatmul.bf16.gmra.mxu0 %v9897
      %v10251 = vpop.f32.mrf.mxu0
      %v10252 = vadd.f32 %v10049, %v10251
      %v10253 = vpop.f32.mrf.mxu0
      %v10254 = vadd.f32 %v10051, %v10253
      %10255 = vmatmul.bf16.gmra.mxu0 %v9900
      %v10256 = vpop.f32.mrf.mxu0
      %v10257 = vadd.f32 %v10054, %v10256
      %v10258 = vpop.f32.mrf.mxu0
      %v10259 = vadd.f32 %v10056, %v10258
      %10260 = vmatmul.bf16.gmra.mxu0 %v9903
      %v10261 = vpop.f32.mrf.mxu0
      %v10262 = vadd.f32 %v10059, %v10261
      %v10263 = vpop.f32.mrf.mxu0
      %v10264 = vadd.f32 %v10061, %v10263
      %10265 = vmatmul.bf16.gmra.mxu0 %v9906
      %v10266 = vpop.f32.mrf.mxu0
      %v10267 = vadd.f32 %v10064, %v10266
      %v10268 = vpop.f32.mrf.mxu0
      %v10269 = vadd.f32 %v10066, %v10268
      %10270 = vmatmul.bf16.gmra.mxu0 %v9909
      %v10271 = vpop.f32.mrf.mxu0
      %v10272 = vadd.f32 %v10069, %v10271
      %v10273 = vpop.f32.mrf.mxu0
      %v10274 = vadd.f32 %v10071, %v10273
      %10275 = vmatmul.bf16.gmra.mxu0 %v9912
      %v10276 = vpop.f32.mrf.mxu0
      %v10277 = vadd.f32 %v10074, %v10276
      %v10278 = vpop.f32.mrf.mxu0
      %v10279 = vadd.f32 %v10076, %v10278
      %10280 = vmatmul.bf16.gmra.mxu0 %v9915
      %v10281 = vpop.f32.mrf.mxu0
      %v10282 = vadd.f32 %v10079, %v10281
      %v10283 = vpop.f32.mrf.mxu0
      %v10284 = vadd.f32 %v10081, %v10283
      %10285 = vmatmul.bf16.gmra.mxu0 %v9918
      %v10286 = vpop.f32.mrf.mxu0
      %v10287 = vadd.f32 %v10084, %v10286
      %v10288 = vpop.f32.mrf.mxu0
      %v10289 = vadd.f32 %v10086, %v10288
      %10290 = vmatmul.bf16.gmra.mxu0 %v9921
      %v10291 = vpop.f32.mrf.mxu0
      %v10292 = vadd.f32 %v10089, %v10291
      %v10293 = vpop.f32.mrf.mxu0
      %v10294 = vadd.f32 %v10091, %v10293
      %10295 = vmatmul.bf16.gmra.mxu0 %v9924
      %v10296 = vpop.f32.mrf.mxu0
      %v10297 = vadd.f32 %v10094, %v10296
      %v10298 = vpop.f32.mrf.mxu0
      %v10299 = vadd.f32 %v10096, %v10298
      %10300 = vmatmul.bf16.gmra.mxu0 %v9927
      %v10301 = vpop.f32.mrf.mxu0
      %v10302 = vadd.f32 %v10099, %v10301
      %v10303 = vpop.f32.mrf.mxu0
      %v10304 = vadd.f32 %v10101, %v10303
      %10305 = vmatmul.bf16.gmra.mxu0 %v9930
      %v10306 = vpop.f32.mrf.mxu0
      %v10307 = vadd.f32 %v10104, %v10306
      %v10308 = vpop.f32.mrf.mxu0
      %v10309 = vadd.f32 %v10106, %v10308
      %10310 = vmatmul.bf16.gmra.mxu0 %v9933
      %v10311 = vpop.f32.mrf.mxu0
      %v10312 = vadd.f32 %v10109, %v10311
      %v10313 = vpop.f32.mrf.mxu0
      %v10314 = vadd.f32 %v10111, %v10313
      %10315 = vmatmul.bf16.gmra.mxu0 %v9936
      %v10316 = vpop.f32.mrf.mxu0
      %v10317 = vadd.f32 %v10114, %v10316
      %v10318 = vpop.f32.mrf.mxu0
      %v10319 = vadd.f32 %v10116, %v10318
      %10320 = vmatmul.bf16.gmra.mxu0 %v9939
      %v10321 = vpop.f32.mrf.mxu0
      %v10322 = vadd.f32 %v10119, %v10321
      %v10323 = vpop.f32.mrf.mxu0
      %v10324 = vadd.f32 %v10121, %v10323
      %10325 = vmatmul.bf16.gmra.mxu0 %v9942
      %v10326 = vpop.f32.mrf.mxu0
      %v10327 = vadd.f32 %v10124, %v10326
      %v10328 = vpop.f32.mrf.mxu0
      %v10329 = vadd.f32 %v10126, %v10328
      %10330 = vmatmul.bf16.gmra.mxu0 %v9945
      %v10331 = vpop.f32.mrf.mxu0
      %v10332 = vadd.f32 %v10129, %v10331
      %v10333 = vpop.f32.mrf.mxu0
      %v10334 = vadd.f32 %v10131, %v10333
      %10335 = vmatmul.bf16.gmra.mxu0 %v9948
      %v10336 = vpop.f32.mrf.mxu0
      %v10337 = vadd.f32 %v10134, %v10336
      %v10338 = vpop.f32.mrf.mxu0
      %v10339 = vadd.f32 %v10136, %v10338
      %10340 = vmatmul.bf16.gmra.mxu0 %v9951
      %v10341 = vpop.f32.mrf.mxu0
      %v10342 = vadd.f32 %v10139, %v10341
      %v10343 = vpop.f32.mrf.mxu0
      %v10344 = vadd.f32 %v10141, %v10343
      %10345 = vmatmul.bf16.gmra.mxu0 %v9954
      %v10346 = vpop.f32.mrf.mxu0
      %v10347 = vadd.f32 %v10144, %v10346
      %v10348 = vpop.f32.mrf.mxu0
      %v10349 = vadd.f32 %v10146, %v10348
      %10350 = vmatmul.bf16.gmra.mxu0 %v9957
      %v10351 = vpop.f32.mrf.mxu0
      %v10352 = vadd.f32 %v10149, %v10351
      %v10353 = vpop.f32.mrf.mxu0
      %v10354 = vadd.f32 %v10151, %v10353
      %10355 = vmatmul.bf16.gmra.mxu0 %v9960
      %v10356 = vpop.f32.mrf.mxu0
      %v10357 = vadd.f32 %v10154, %v10356
      %v10358 = vpop.f32.mrf.mxu0
      %v10359 = vadd.f32 %v10156, %v10358
      %10360 = vmatmul.bf16.gmra.mxu0 %v9963
      %v10361 = vpop.f32.mrf.mxu0
      %v10362 = vadd.f32 %v10159, %v10361
      %v10363 = vpop.f32.mrf.mxu0
      %v10364 = vadd.f32 %v10161, %v10363
      %10365 = vmatmul.bf16.gmra.mxu0 %v9966
      %v10366 = vpop.f32.mrf.mxu0
      %v10367 = vadd.f32 %v10164, %v10366
      %v10368 = vpop.f32.mrf.mxu0
      %v10369 = vadd.f32 %v10166, %v10368
      %10370 = vmatmul.bf16.gmra.mxu0 %v9969
      %v10371 = vpop.f32.mrf.mxu0
      %v10372 = vadd.f32 %v10169, %v10371
      %v10373 = vpop.f32.mrf.mxu0
      %v10374 = vadd.f32 %v10171, %v10373
      %10375 = vmatmul.bf16.gmra.mxu0 %v9972
      %v10376 = vpop.f32.mrf.mxu0
      %v10377 = vadd.f32 %v10174, %v10376
      %v10378 = vpop.f32.mrf.mxu0
      %10379 = vdwg.mxu0
      %v10380 = vmax.f32 %v10187, 0.0
      %v10381 = vmax.f32 %v10189, 0.0
      %v10382 = vmax.f32 %v10192, 0.0
      %v10383 = vmax.f32 %v10194, 0.0
      %v10384 = vmax.f32 %v10197, 0.0
      %v10385 = vmax.f32 %v10199, 0.0
      %v10386 = vmax.f32 %v10202, 0.0
      %v10387 = vmax.f32 %v10204, 0.0
      %v10388 = vmax.f32 %v10207, 0.0
      %v10389 = vmax.f32 %v10209, 0.0
      %v10390 = vmax.f32 %v10212, 0.0
      %v10391 = vmax.f32 %v10214, 0.0
      %v10392 = vmax.f32 %v10217, 0.0
      %v10393 = vmax.f32 %v10219, 0.0
      %v10394 = vmax.f32 %v10222, 0.0
      %v10395 = vmax.f32 %v10224, 0.0
      %v10396 = vmax.f32 %v10227, 0.0
      %v10397 = vmax.f32 %v10229, 0.0
      %v10398 = vmax.f32 %v10232, 0.0
      %v10399 = vmax.f32 %v10234, 0.0
      %v10400 = vmax.f32 %v10237, 0.0
      %v10401 = vmax.f32 %v10239, 0.0
      %v10402 = vmax.f32 %v10242, 0.0
      %v10403 = vmax.f32 %v10244, 0.0
      %v10404 = vmax.f32 %v10247, 0.0
      %v10405 = vmax.f32 %v10249, 0.0
      %v10406 = vmax.f32 %v10252, 0.0
      %v10407 = vmax.f32 %v10254, 0.0
      %v10408 = vmax.f32 %v10257, 0.0
      %v10409 = vmax.f32 %v10259, 0.0
      %v10410 = vmax.f32 %v10262, 0.0
      %v10411 = vmax.f32 %v10264, 0.0
      %v10412 = vmax.f32 %v10267, 0.0
      %v10413 = vmax.f32 %v10269, 0.0
      %v10414 = vmax.f32 %v10272, 0.0
      %v10415 = vmax.f32 %v10274, 0.0
      %v10416 = vmax.f32 %v10277, 0.0
      %v10417 = vmax.f32 %v10279, 0.0
      %v10418 = vmax.f32 %v10282, 0.0
      %v10419 = vmax.f32 %v10284, 0.0
      %v10420 = vmax.f32 %v10287, 0.0
      %v10421 = vmax.f32 %v10289, 0.0
      %v10422 = vmax.f32 %v10292, 0.0
      %v10423 = vmax.f32 %v10294, 0.0
      %v10424 = vmax.f32 %v10297, 0.0
      %v10425 = vmax.f32 %v10299, 0.0
      %v10426 = vmax.f32 %v10302, 0.0
      %v10427 = vmax.f32 %v10304, 0.0
      %v10428 = vmax.f32 %v10307, 0.0
      %v10429 = vmax.f32 %v10309, 0.0
      %v10430 = vmax.f32 %v10312, 0.0
      %v10431 = vmax.f32 %v10314, 0.0
      %v10432 = vmax.f32 %v10317, 0.0
      %v10433 = vmax.f32 %v10319, 0.0
      %v10434 = vmax.f32 %v10322, 0.0
      %v10435 = vmax.f32 %v10324, 0.0
      %v10436 = vmax.f32 %v10327, 0.0
      %v10437 = vmax.f32 %v10329, 0.0
      %v10438 = vmax.f32 %v10332, 0.0
      %v10439 = vmax.f32 %v10334, 0.0
      %v10440 = vmax.f32 %v10337, 0.0
      %v10441 = vmax.f32 %v10339, 0.0
      %v10442 = vmax.f32 %v10342, 0.0
      %v10443 = vmax.f32 %v10344, 0.0
      %v10444 = vmax.f32 %v10347, 0.0
      %v10445 = vmax.f32 %v10349, 0.0
      %v10446 = vmax.f32 %v10352, 0.0
      %v10447 = vmax.f32 %v10354, 0.0
      %v10448 = vmax.f32 %v10357, 0.0
      %v10449 = vmax.f32 %v10359, 0.0
      %v10450 = vmax.f32 %v10362, 0.0
      %v10451 = vmax.f32 %v10364, 0.0
      %v10452 = vmax.f32 %v10367, 0.0
      %v10453 = vmax.f32 %v10369, 0.0
      %v10454 = vmax.f32 %v10372, 0.0
      %v10455 = vmax.f32 %v10374, 0.0
      %v10456 = vmax.f32 %v10377, 0.0
      %v10457 = vpack.c.bf16 %v10380, %v10380
      %v10458 = vpack.c.bf16 %v10381, %v10381
      %v10459 = vpack.c.bf16 %v10382, %v10382
      %v10460 = vpack.c.bf16 %v10383, %v10383
      %v10461 = vpack.c.bf16 %v10384, %v10384
      %v10462 = vpack.c.bf16 %v10385, %v10385
      %v10463 = vpack.c.bf16 %v10386, %v10386
      %v10464 = vpack.c.bf16 %v10387, %v10387
      %v10465 = vpack.c.bf16 %v10388, %v10388
      %v10466 = vpack.c.bf16 %v10389, %v10389
      %v10467 = vpack.c.bf16 %v10390, %v10390
      %v10468 = vpack.c.bf16 %v10391, %v10391
      %v10469 = vpack.c.bf16 %v10392, %v10392
      %v10470 = vpack.c.bf16 %v10393, %v10393
      %v10471 = vpack.c.bf16 %v10394, %v10394
      %v10472 = vpack.c.bf16 %v10395, %v10395
      %v10473 = vpack.c.bf16 %v10396, %v10396
      %v10474 = vpack.c.bf16 %v10397, %v10397
      %v10475 = vpack.c.bf16 %v10398, %v10398
      %v10476 = vpack.c.bf16 %v10399, %v10399
      %v10477 = vpack.c.bf16 %v10400, %v10400
      %v10478 = vpack.c.bf16 %v10401, %v10401
      %v10479 = vpack.c.bf16 %v10402, %v10402
      %v10480 = vpack.c.bf16 %v10403, %v10403
      %v10481 = vpack.c.bf16 %v10404, %v10404
      %v10482 = vpack.c.bf16 %v10405, %v10405
      %v10483 = vpack.c.bf16 %v10406, %v10406
      %v10484 = vpack.c.bf16 %v10407, %v10407
      %v10485 = vpack.c.bf16 %v10408, %v10408
      %v10486 = vpack.c.bf16 %v10409, %v10409
      %v10487 = vpack.c.bf16 %v10410, %v10410
      %v10488 = vpack.c.bf16 %v10411, %v10411
      %v10489 = vpack.c.bf16 %v10412, %v10412
      %v10490 = vpack.c.bf16 %v10413, %v10413
      %v10491 = vpack.c.bf16 %v10414, %v10414
      %v10492 = vpack.c.bf16 %v10415, %v10415
      %v10493 = vpack.c.bf16 %v10416, %v10416
      %v10494 = vpack.c.bf16 %v10417, %v10417
      %v10495 = vpack.c.bf16 %v10418, %v10418
      %v10496 = vpack.c.bf16 %v10419, %v10419
      %v10497 = vpack.c.bf16 %v10420, %v10420
      %v10498 = vpack.c.bf16 %v10421, %v10421
      %v10499 = vpack.c.bf16 %v10422, %v10422
      %v10500 = vpack.c.bf16 %v10423, %v10423
      %v10501 = vpack.c.bf16 %v10424, %v10424
      %v10502 = vpack.c.bf16 %v10425, %v10425
      %v10503 = vpack.c.bf16 %v10426, %v10426
      %v10504 = vpack.c.bf16 %v10427, %v10427
      %v10505 = vpack.c.bf16 %v10428, %v10428
      %v10506 = vpack.c.bf16 %v10429, %v10429
      %v10507 = vpack.c.bf16 %v10430, %v10430
      %v10508 = vpack.c.bf16 %v10431, %v10431
      %v10509 = vpack.c.bf16 %v10432, %v10432
      %v10510 = vpack.c.bf16 %v10433, %v10433
      %v10511 = vpack.c.bf16 %v10434, %v10434
      %v10512 = vpack.c.bf16 %v10435, %v10435
      %v10513 = vpack.c.bf16 %v10436, %v10436
      %v10514 = vpack.c.bf16 %v10437, %v10437
      %v10515 = vpack.c.bf16 %v10438, %v10438
      %v10516 = vpack.c.bf16 %v10439, %v10439
      %v10517 = vpack.c.bf16 %v10440, %v10440
      %v10518 = vpack.c.bf16 %v10441, %v10441
      %v10519 = vpack.c.bf16 %v10442, %v10442
      %v10520 = vpack.c.bf16 %v10443, %v10443
      %v10521 = vpack.c.bf16 %v10444, %v10444
      %v10522 = vpack.c.bf16 %v10445, %v10445
      %v10523 = vpack.c.bf16 %v10446, %v10446
      %v10524 = vpack.c.bf16 %v10447, %v10447
      %v10525 = vpack.c.bf16 %v10448, %v10448
      %v10526 = vpack.c.bf16 %v10449, %v10449
      %v10527 = vpack.c.bf16 %v10450, %v10450
      %v10528 = vpack.c.bf16 %v10451, %v10451
      %v10529 = vpack.c.bf16 %v10452, %v10452
      %v10530 = vpack.c.bf16 %v10453, %v10453
      %v10531 = vpack.c.bf16 %v10454, %v10454
      %v10532 = vpack.c.bf16 %v10455, %v10455
      %v10533 = vpack.c.bf16 %v10456, %v10456
      %vm10534 = vcmask 257024
      %10535 = vst.msk [vmem:[%s280] sm:$0xf] %vm10534, %v10457
      %10536 = vst.msk [vmem:[%s280 + $0x4] sm:$0xf] %vm10534, %v10458
      %10537 = vst.msk [vmem:[%s280 + $0x8] sm:$0xf] %vm10534, %v10459
      %10538 = vst.msk [vmem:[%s280 + $0xc] sm:$0xf] %vm10534, %v10460
      %10539 = vst.msk [vmem:[%s280 + $0x10] sm:$0xf] %vm10534, %v10461
      %10540 = vst.msk [vmem:[%s280 + $0x14] sm:$0xf] %vm10534, %v10462
      %10541 = vst.msk [vmem:[%s280 + $0x18] sm:$0xf] %vm10534, %v10463
      %10542 = vst.msk [vmem:[%s280 + $0x1c] sm:$0xf] %vm10534, %v10464
      %10543 = vst.msk [vmem:[%s280 + $0x20] sm:$0xf] %vm10534, %v10465
      %10544 = vst.msk [vmem:[%s280 + $0x24] sm:$0xf] %vm10534, %v10466
      %10545 = vst.msk [vmem:[%s280 + $0x28] sm:$0xf] %vm10534, %v10467
      %10546 = vst.msk [vmem:[%s280 + $0x2c] sm:$0xf] %vm10534, %v10468
      %10547 = vst.msk [vmem:[%s280 + $0x30] sm:$0xf] %vm10534, %v10469
      %10548 = vst.msk [vmem:[%s280 + $0x34] sm:$0xf] %vm10534, %v10470
      %10549 = vst.msk [vmem:[%s280 + $0x38] sm:$0xf] %vm10534, %v10471
      %10550 = vst.msk [vmem:[%s280 + $0x3c] sm:$0xf] %vm10534, %v10472
      %10551 = vst.msk [vmem:[%s280 + $0x40] sm:$0xf] %vm10534, %v10473
      %10552 = vst.msk [vmem:[%s280 + $0x44] sm:$0xf] %vm10534, %v10474
      %10553 = vst.msk [vmem:[%s280 + $0x48] sm:$0xf] %vm10534, %v10475
      %10554 = vst.msk [vmem:[%s280 + $0x4c] sm:$0xf] %vm10534, %v10476
      %10555 = vst.msk [vmem:[%s280 + $0x50] sm:$0xf] %vm10534, %v10477
      %10556 = vst.msk [vmem:[%s280 + $0x54] sm:$0xf] %vm10534, %v10478
      %10557 = vst.msk [vmem:[%s280 + $0x58] sm:$0xf] %vm10534, %v10479
      %10558 = vst.msk [vmem:[%s280 + $0x5c] sm:$0xf] %vm10534, %v10480
      %10559 = vst.msk [vmem:[%s280 + $0x60] sm:$0xf] %vm10534, %v10481
      %10560 = vst.msk [vmem:[%s280 + $0x64] sm:$0xf] %vm10534, %v10482
      %10561 = vst.msk [vmem:[%s280 + $0x68] sm:$0xf] %vm10534, %v10483
      %10562 = vst.msk [vmem:[%s280 + $0x6c] sm:$0xf] %vm10534, %v10484
      %10563 = vst.msk [vmem:[%s280 + $0x70] sm:$0xf] %vm10534, %v10485
      %10564 = vst.msk [vmem:[%s280 + $0x74] sm:$0xf] %vm10534, %v10486
      %10565 = vst.msk [vmem:[%s280 + $0x78] sm:$0xf] %vm10534, %v10487
      %10566 = vst.msk [vmem:[%s280 + $0x7c] sm:$0xf] %vm10534, %v10488
      %10567 = vst.msk [vmem:[%s280 + $0x80] sm:$0xf] %vm10534, %v10489
      %10568 = vst.msk [vmem:[%s280 + $0x84] sm:$0xf] %vm10534, %v10490
      %10569 = vst.msk [vmem:[%s280 + $0x88] sm:$0xf] %vm10534, %v10491
      %10570 = vst.msk [vmem:[%s280 + $0x8c] sm:$0xf] %vm10534, %v10492
      %10571 = vst.msk [vmem:[%s280 + $0x90] sm:$0xf] %vm10534, %v10493
      %10572 = vst.msk [vmem:[%s280 + $0x94] sm:$0xf] %vm10534, %v10494
      %10573 = vst.msk [vmem:[%s280 + $0x98] sm:$0xf] %vm10534, %v10495
      %10574 = vst.msk [vmem:[%s280 + $0x9c] sm:$0xf] %vm10534, %v10496
      %10575 = vst.msk [vmem:[%s280 + $0xa0] sm:$0xf] %vm10534, %v10497
      %10576 = vst.msk [vmem:[%s280 + $0xa4] sm:$0xf] %vm10534, %v10498
      %10577 = vst.msk [vmem:[%s280 + $0xa8] sm:$0xf] %vm10534, %v10499
      %10578 = vst.msk [vmem:[%s280 + $0xac] sm:$0xf] %vm10534, %v10500
      %10579 = vst.msk [vmem:[%s280 + $0xb0] sm:$0xf] %vm10534, %v10501
      %10580 = vst.msk [vmem:[%s280 + $0xb4] sm:$0xf] %vm10534, %v10502
      %10581 = vst.msk [vmem:[%s280 + $0xb8] sm:$0xf] %vm10534, %v10503
      %10582 = vst.msk [vmem:[%s280 + $0xbc] sm:$0xf] %vm10534, %v10504
      %10583 = vst.msk [vmem:[%s280 + $0xc0] sm:$0xf] %vm10534, %v10505
      %10584 = vst.msk [vmem:[%s280 + $0xc4] sm:$0xf] %vm10534, %v10506
      %10585 = vst.msk [vmem:[%s280 + $0xc8] sm:$0xf] %vm10534, %v10507
      %10586 = vst.msk [vmem:[%s280 + $0xcc] sm:$0xf] %vm10534, %v10508
      %10587 = vst.msk [vmem:[%s280 + $0xd0] sm:$0xf] %vm10534, %v10509
      %10588 = vst.msk [vmem:[%s280 + $0xd4] sm:$0xf] %vm10534, %v10510
      %10589 = vst.msk [vmem:[%s280 + $0xd8] sm:$0xf] %vm10534, %v10511
      %10590 = vst.msk [vmem:[%s280 + $0xdc] sm:$0xf] %vm10534, %v10512
      %10591 = vst.msk [vmem:[%s280 + $0xe0] sm:$0xf] %vm10534, %v10513
      %10592 = vst.msk [vmem:[%s280 + $0xe4] sm:$0xf] %vm10534, %v10514
      %10593 = vst.msk [vmem:[%s280 + $0xe8] sm:$0xf] %vm10534, %v10515
      %10594 = vst.msk [vmem:[%s280 + $0xec] sm:$0xf] %vm10534, %v10516
      %10595 = vst.msk [vmem:[%s280 + $0xf0] sm:$0xf] %vm10534, %v10517
      %10596 = vst.msk [vmem:[%s280 + $0xf4] sm:$0xf] %vm10534, %v10518
      %10597 = vst.msk [vmem:[%s280 + $0xf8] sm:$0xf] %vm10534, %v10519
      %10598 = vst.msk [vmem:[%s280 + $0xfc] sm:$0xf] %vm10534, %v10520
      %10599 = vst.msk [vmem:[%s280 + $0x100] sm:$0xf] %vm10534, %v10521
      %10600 = vst.msk [vmem:[%s280 + $0x104] sm:$0xf] %vm10534, %v10522
      %10601 = vst.msk [vmem:[%s280 + $0x108] sm:$0xf] %vm10534, %v10523
      %10602 = vst.msk [vmem:[%s280 + $0x10c] sm:$0xf] %vm10534, %v10524
      %10603 = vst.msk [vmem:[%s280 + $0x110] sm:$0xf] %vm10534, %v10525
      %10604 = vst.msk [vmem:[%s280 + $0x114] sm:$0xf] %vm10534, %v10526
      %10605 = vst.msk [vmem:[%s280 + $0x118] sm:$0xf] %vm10534, %v10527
      %10606 = vst.msk [vmem:[%s280 + $0x11c] sm:$0xf] %vm10534, %v10528
      %10607 = vst.msk [vmem:[%s280 + $0x120] sm:$0xf] %vm10534, %v10529
      %10608 = vst.msk [vmem:[%s280 + $0x124] sm:$0xf] %vm10534, %v10530
      %10609 = vst.msk [vmem:[%s280 + $0x128] sm:$0xf] %vm10534, %v10531
      %10610 = vst.msk [vmem:[%s280 + $0x12c] sm:$0xf] %vm10534, %v10532
      %vm10611 = vcmask 253952
      %10612 = vst.msk [vmem:[%s280 + $0x130] sm:$0x1] %vm10611, %v10533
      %p10613 = scmp.lt.s32.totalorder %s18, 1
      %s10614 = scalar_select %p10613, %s18, 1
      %s10615 = smul.addr %s10614, 77
      %s10616 = smul.addr %s10615, 4
      %s10617 = scalar_lea.vmem %s7, %s10616
      // Predicated region
      $region49: #{tpu_custom_call.1} parent=47 // pred_check
        %p10618 = pneg %p188
      $region50: #{tpu_custom_call.1} parent=47 // pred_check_branch
        %10620 = sbr.rel (%p10618) target = $region52
      $region51: #{tpu_custom_call.1} parent=47 // pred_region
        _
      $region52: #{tpu_custom_call.1} parent=47 // pred_fallthru
        _
    $region48: #{tpu_custom_call.1} parent=5 // pred_fallthru
      _
    %p10621 = scmp.le.s32.totalorder 2, %s13
    // Predicated region
    $region53: #{tpu_custom_call.1} parent=5 // pred_check
      %p10622 = pneg %p10621
    $region54: #{tpu_custom_call.1} parent=5 // pred_check_branch
      %10624 = sbr.rel (%p10622) target = $region56
    $region55: #{tpu_custom_call.1} parent=5 // pred_region
      %s10625 = ssub.s32 %s13, 2
      // Predicated region
      $region57: #{tpu_custom_call.1} parent=55 // pred_check
        %p10626 = pneg %p194
      $region58: #{tpu_custom_call.1} parent=55 // pred_check_branch
        %10628 = sbr.rel (%p10626) target = $region60
      $region59: #{tpu_custom_call.1} parent=55 // pred_region
        %p10629 = scmp.lt.s32.totalorder %s19, 1
        %s10630 = scalar_select %p10629, %s19, 1
        %s10631 = smul.addr %s10630, 77
        %s10632 = smul.addr %s10631, 4
        %s10633 = scalar_lea.vmem %s7, %s10632
      $region60: #{tpu_custom_call.1} parent=55 // pred_fallthru
        _
    $region56: #{tpu_custom_call.1} parent=5 // pred_fallthru
      _
  $region6: #{tpu_custom_call.1} parent=0 // loop_footer
    %s17 = sadd.s32 1, %s13
  $region7: #{tpu_custom_call.1} parent=0 // loop_footer_branch
    %12 = sbr.rel target = $region3
  $region8: #{tpu_custom_call.1} parent=0 // loop_exit
    _

</llo_original>
